<compile_context>
chip_gen: v5e
topology: v5e:2x2
jax: 0.10.0
libtpu: 0.0.40
codegen_flags: <defaults>
</compile_context>

<pallas_src>
import functools

import jax
import jax.numpy as jnp
from jax.experimental import pallas as pl
from jax.experimental.pallas import tpu as pltpu

D_SHAPE = 64                     # internal channel width of the block
SPACE_DIMS = 3                   # learned-coordinate dims of GravNetConv
GF_S_OFF = 2 * D_SHAPE           # column offset of s in the fused gravnet output
GF_WIDTH = 2 * D_SHAPE + 128     # lane-dense fused width: [h | out1 | s | 0-pad]
BN_EPS = 1e-5


# ----------------------------------------------------------------------------
# helpers
# ----------------------------------------------------------------------------
def _elu(y):
    # PyTorch ELU (alpha=1): x if x > 0 else exp(x) - 1
    return jnp.where(y > 0, y, jnp.exp(jnp.minimum(y, 0.0)) - 1.0)


def _pick_row_tile(n, target=512):
    """Largest multiple-of-8 row tile <= target that divides n."""
    assert n % 8 == 0, "number of nodes must be a multiple of 8"
    tm = min(n, target)
    while n % tm:
        tm -= 8
    return tm


def _pick_pdist_tile(n):
    if n <= 128:
        return n
    assert n % 128 == 0, "pairwise-distance tiling expects n % 128 == 0 for n > 128"
    return 128


def _fold_bn(mean, inv, w, b):
    """Fold y = ((x - mean) * inv) @ w + b  into  y = x @ w' + b'."""
    wf = w * inv.reshape(-1, 1)
    bf = b - jnp.dot(mean * inv, w)
    return wf, bf


# ----------------------------------------------------------------------------
# Kernel A: pre_gravnet (Linear+ELU, Linear+ELU) fused + BN1 stat accumulation
# ----------------------------------------------------------------------------
def _pre_kernel(x_ref, w1_ref, b1_ref, w2_ref, b2_ref, y_ref, sum_ref, ssq_ref):
    y = jnp.dot(x_ref[...], w1_ref[...], preferred_element_type=jnp.float32) + b1_ref[...]
    y = _elu(y)
    y = jnp.dot(y, w2_ref[...], preferred_element_type=jnp.float32) + b2_ref[...]
    y = _elu(y)
    y_ref[...] = y

    @pl.when(pl.program_id(0) == 0)
    def _():
        sum_ref[...] = jnp.zeros_like(sum_ref)
        ssq_ref[...] = jnp.zeros_like(ssq_ref)

    sum_ref[...] = sum_ref[...] + jnp.sum(y, axis=0, keepdims=True)
    ssq_ref[...] = ssq_ref[...] + jnp.sum(y * y, axis=0, keepdims=True)


def pre_fused(x, w1, b1, w2, b2, *, tm):
    n, cin = x.shape
    d = w1.shape[1]
    return pl.pallas_call(
        _pre_kernel,
        out_shape=(jax.ShapeDtypeStruct((n, d), jnp.float32),
                   jax.ShapeDtypeStruct((1, d), jnp.float32),
                   jax.ShapeDtypeStruct((1, d), jnp.float32)),
        grid=(n // tm,),
        in_specs=[
            pl.BlockSpec((tm, cin), lambda i: (i, 0)),
            pl.BlockSpec((cin, d), lambda i: (0, 0)),
            pl.BlockSpec((1, d), lambda i: (0, 0)),
            pl.BlockSpec((d, d), lambda i: (0, 0)),
            pl.BlockSpec((1, d), lambda i: (0, 0)),
        ],
        out_specs=(
            pl.BlockSpec((tm, d), lambda i: (i, 0)),
            pl.BlockSpec((1, d), lambda i: (0, 0)),   # resident accumulator
            pl.BlockSpec((1, d), lambda i: (0, 0)),   # resident accumulator
        ),
        compiler_params=pltpu.CompilerParams(dimension_semantics=("arbitrary",)),
    )(x, w1, b1.reshape(1, -1), w2, b2.reshape(1, -1))


# ----------------------------------------------------------------------------
# Kernel B: fused gravnet linears (lin_h | lin_out1 | lin_s), lane-dense output
# ----------------------------------------------------------------------------
def _fused_linear_kernel(x_ref, w_ref, b_ref, o_ref):
    o_ref[...] = (jnp.dot(x_ref[...], w_ref[...], preferred_element_type=jnp.float32)
                  + b_ref[...])


def fused_linear(x, w, b, *, tm):
    n, cin = x.shape
    cout = w.shape[1]
    return pl.pallas_call(
        _fused_linear_kernel,
        out_shape=jax.ShapeDtypeStruct((n, cout), jnp.float32),
        grid=(n // tm,),
        in_specs=[pl.BlockSpec((tm, cin), lambda i: (i, 0)),
                  pl.BlockSpec((cin, cout), lambda i: (0, 0)),
                  pl.BlockSpec((1, cout), lambda i: (0, 0))],
        out_specs=pl.BlockSpec((tm, cout), lambda i: (i, 0)),
        compiler_params=pltpu.CompilerParams(dimension_semantics=("parallel",)),
    )(x, w, b)


# ----------------------------------------------------------------------------
# Kernel C0: pairwise squared distances in the learned s-space (2-D tiled)
# ----------------------------------------------------------------------------
def _pdist_kernel(si_ref, sj_ref, njr_ref, d_ref):
    si = si_ref[...]      # (ti, 128): s in lanes 0:3, zeros elsewhere -> dot is exact
    sj = sj_ref[...]      # (tj, 128)
    ni = jnp.sum(si * si, axis=1, keepdims=True)                       # (ti, 1)
    g = jax.lax.dot_general(si, sj, (((1,), (1,)), ((), ())),
                            preferred_element_type=jnp.float32)        # (ti, tj)
    d_ref[...] = jnp.maximum(ni + njr_ref[...] - 2.0 * g, 0.0)


def pairwise_sq_dist(f, s_norm_row):
    n = f.shape[0]
    tp = _pick_pdist_tile(n)
    return pl.pallas_call(
        _pdist_kernel,
        out_shape=jax.ShapeDtypeStruct((n, n), jnp.float32),
        grid=(n // tp, n // tp),
        in_specs=[
            pl.BlockSpec((tp, 128), lambda i, j: (i, 1)),   # s rows (zero-padded col block)
            pl.BlockSpec((tp, 128), lambda i, j: (j, 1)),   # s cols (zero-padded col block)
            pl.BlockSpec((1, tp), lambda i, j: (0, j)),     # ||s_j||^2 as a row vector
        ],
        out_specs=pl.BlockSpec((tp, tp), lambda i, j: (i, j)),
        compiler_params=pltpu.CompilerParams(
            dimension_semantics=("parallel", "parallel")),
    )(f, f, s_norm_row)


# ----------------------------------------------------------------------------
# Kernel C: k-sparse aggregation (exp / mean / max over k) + lin_out2 + out1 add
# ----------------------------------------------------------------------------
def _agg_kernel(dsel_ref, hnb_ref, f0_ref, w2_ref, b2_ref, o_ref, *, k, p):
    w = jnp.exp(-10.0 * dsel_ref[...])                       # (tm, k) edge weights

    def slot(j):
        # weighted message of neighbor slot j: (tm, 1) * (tm, p)
        return w[:, j:j + 1] * hnb_ref[:, j * p:(j + 1) * p]

    wh = slot(0)
    acc_sum = wh
    acc_max = wh
    for j in range(1, k):                                    # k is small & static
        wh = slot(j)
        acc_sum = acc_sum + wh
        acc_max = jnp.maximum(acc_max, wh)

    mean_agg = acc_sum * (1.0 / k)                           # exactly k neighbors / node
    out1 = f0_ref[:, p:2 * p]                                # lin_out1(x) columns
    o_ref[...] = (out1
                  + jnp.dot(mean_agg, w2_ref[0:p, :], preferred_element_type=jnp.float32)
                  + jnp.dot(acc_max, w2_ref[p:2 * p, :], preferred_element_type=jnp.float32)
                  + b2_ref[...])


def gravnet_aggregate(d_sel, h_nb_flat, f, w_out2, b_out2, *, k, tm):
    n = d_sel.shape[0]
    p = D_SHAPE
    return pl.pallas_call(
        functools.partial(_agg_kernel, k=k, p=p),
        out_shape=jax.ShapeDtypeStruct((n, p), jnp.float32),
        grid=(n // tm,),
        in_specs=[
            pl.BlockSpec((tm, k), lambda i: (i, 0)),          # distances to k neighbors
            pl.BlockSpec((tm, k * p), lambda i: (i, 0)),      # gathered neighbor features
            pl.BlockSpec((tm, 2 * p), lambda i: (i, 0)),      # F col block 0 = [h | out1]
            pl.BlockSpec((2 * p, p), lambda i: (0, 0)),       # lin_out2 weight
            pl.BlockSpec((1, p), lambda i: (0, 0)),           # lin_out2 bias
        ],
        out_specs=pl.BlockSpec((tm, p), lambda i: (i, 0)),
        compiler_params=pltpu.CompilerParams(dimension_semantics=("parallel",)),
    )(d_sel, h_nb_flat, f, w_out2, b_out2)


# ----------------------------------------------------------------------------
# Kernel D: post_gravnet fused (split post_w1, folded BN1) + BN2 stat accumulation
# ----------------------------------------------------------------------------
def _post_kernel(xgn_ref, f1_ref, xpre_ref, wa_ref, wc_ref, wb_ref, b1_ref,
                 w2_ref, b2_ref, y_ref, sum_ref, ssq_ref):
    y = (jnp.dot(xgn_ref[...], wa_ref[...], preferred_element_type=jnp.float32)
         + jnp.dot(f1_ref[...], wc_ref[...], preferred_element_type=jnp.float32)
         + jnp.dot(xpre_ref[...], wb_ref[...], preferred_element_type=jnp.float32)
         + b1_ref[...])
    y = _elu(y)
    y = jnp.dot(y, w2_ref[...], preferred_element_type=jnp.float32) + b2_ref[...]
    y = _elu(y)
    y_ref[...] = y

    @pl.when(pl.program_id(0) == 0)
    def _():
        sum_ref[...] = jnp.zeros_like(sum_ref)
        ssq_ref[...] = jnp.zeros_like(ssq_ref)

    sum_ref[...] = sum_ref[...] + jnp.sum(y, axis=0, keepdims=True)
    ssq_ref[...] = ssq_ref[...] + jnp.sum(y * y, axis=0, keepdims=True)


def post_fused(xgn, f, x_pre, w_a, w_c_pad, w_b, b1, w2, b2, *, tm):
    n, d = xgn.shape
    return pl.pallas_call(
        _post_kernel,
        out_shape=(jax.ShapeDtypeStruct((n, d), jnp.float32),
                   jax.ShapeDtypeStruct((1, d), jnp.float32),
                   jax.ShapeDtypeStruct((1, d), jnp.float32)),
        grid=(n // tm,),
        in_specs=[
            pl.BlockSpec((tm, d), lambda i: (i, 0)),      # xgn
            pl.BlockSpec((tm, 128), lambda i: (i, 1)),    # F col block 1 (s, zero padded)
            pl.BlockSpec((tm, d), lambda i: (i, 0)),      # x_pre (BN1 folded into w_b)
            pl.BlockSpec((d, d), lambda i: (0, 0)),       # W_a   (xgn part of post_w1)
            pl.BlockSpec((128, d), lambda i: (0, 0)),     # W_c padded (gncoords part)
            pl.BlockSpec((d, d), lambda i: (0, 0)),       # W_b folded (x_input part)
            pl.BlockSpec((1, d), lambda i: (0, 0)),       # b1 folded
            pl.BlockSpec((d, d), lambda i: (0, 0)),       # post_w2
            pl.BlockSpec((1, d), lambda i: (0, 0)),       # post_b2
        ],
        out_specs=(
            pl.BlockSpec((tm, d), lambda i: (i, 0)),
            pl.BlockSpec((1, d), lambda i: (0, 0)),
            pl.BlockSpec((1, d), lambda i: (0, 0)),
        ),
        compiler_params=pltpu.CompilerParams(dimension_semantics=("arbitrary",)),
    )(xgn, f, x_pre, w_a, w_c_pad, w_b, b1, w2, b2)


# ----------------------------------------------------------------------------
# Kernel E: apply BatchNorm2 normalization
# ----------------------------------------------------------------------------
def _bn_apply_kernel(y_ref, mean_ref, inv_ref, o_ref):
    o_ref[...] = (y_ref[...] - mean_ref[...]) * inv_ref[...]


def bn_apply(y, mean, inv, *, tm):
    n, d = y.shape
    return pl.pallas_call(
        _bn_apply_kernel,
        out_shape=jax.ShapeDtypeStruct((n, d), jnp.float32),
        grid=(n // tm,),
        in_specs=[pl.BlockSpec((tm, d), lambda i: (i, 0)),
                  pl.BlockSpec((1, d), lambda i: (0, 0)),
                  pl.BlockSpec((1, d), lambda i: (0, 0))],
        out_specs=pl.BlockSpec((tm, d), lambda i: (i, 0)),
        compiler_params=pltpu.CompilerParams(dimension_semantics=("parallel",)),
    )(y, mean, inv)


# ----------------------------------------------------------------------------
# GravNetConv + full block forward (glue in plain JAX)
# ----------------------------------------------------------------------------
def gravnet_conv(gp, x_pre, mean1, inv1, *, k, tm):
    n, d = x_pre.shape
    # One lane-dense fused linear: F = BN1(x_pre) @ [W_h | W_out1 | W_s | 0] + b
    w_g = jnp.concatenate(
        [gp["lin_h_w"], gp["lin_out1_w"],
         jnp.pad(gp["lin_s_w"], ((0, 0), (0, 128 - SPACE_DIMS)))], axis=1)
    b_g = jnp.concatenate(
        [gp["lin_h_b"], jnp.zeros((D_SHAPE,), jnp.float32),
         jnp.pad(gp["lin_s_b"], (0, 128 - SPACE_DIMS))]).reshape(1, GF_WIDTH)
    w_gf, b_gf = _fold_bn(mean1, inv1, w_g, b_g)
    f = fused_linear(x_pre, w_gf, b_gf, tm=tm)                      # (N, 256)

    # kNN in learned coordinate space (single graph; `batch` is all zeros here).
    s_norm_row = jnp.sum(
        f[:, GF_S_OFF:GF_S_OFF + SPACE_DIMS] ** 2, axis=1).reshape(1, n)
    dist = pairwise_sq_dist(f, s_norm_row)                          # (N, N)
    neg_d, nbr_idx = jax.lax.top_k(-dist, k)                        # includes self (d=0)
    d_sel = jnp.maximum(-neg_d, 0.0)                                # (N, k)

    # k-sparse gather of neighbor propagated features.
    # TODO(synk): move this gather in-kernel (scalar-prefetch driven DMA gather)
    # to avoid the (N, k, P) HBM intermediate at very large N.
    h_nb = jnp.take(f[:, 0:D_SHAPE], nbr_idx, axis=0)               # (N, k, 64)
    h_nb_flat = h_nb.reshape(n, k * D_SHAPE)

    xgn = gravnet_aggregate(d_sel, h_nb_flat, f, gp["lin_out2_w"],
                            gp["lin_out2_b"][None, :], k=k, tm=tm)  # (N, 64)
    return xgn, nbr_idx, f


def gravnet_block_forward(params, x, batch, original_coords, *, k):
    del batch, original_coords  # single-graph demo; standard GravNetConv semantics
    n = x.shape[0]
    tm = _pick_row_tile(n)

    # pre_gravnet (two Linear+ELU) fused, with BN1 batch-stat accumulation.
    x_pre, s1, q1 = pre_fused(x, params["pre_w1"], params["pre_b1"],
                              params["pre_w2"], params["pre_b2"], tm=tm)
    mean1 = s1 / n
    inv1 = jax.lax.rsqrt(jnp.maximum(q1 / n - mean1 * mean1, 0.0) + BN_EPS)
    # BN1 output is never materialized: its (scale, shift) are folded into every
    # downstream linear that consumes it (gravnet lin_s/lin_h/lin_out1, post W_b).

    xgn, nbr_idx, f = gravnet_conv(params["gravnet"], x_pre, mean1, inv1, k=k, tm=tm)
    loss_regularizing_neig = jnp.float32(0.0)  # TODO(synk): custom-conv aux loss not in source
    ll_r = jnp.float32(0.0)                    # TODO(synk): custom-conv aux loss not in source

    # post_gravnet on cat([xgn, gncoords, x_input]) with the concat folded away:
    # post_w1 is split row-wise per source; x_input = BN1(x_pre) is BN-folded.
    wp = params["post_w1"]                     # (64+3+64, 64), rows in torch concat order
    w_a = wp[0:D_SHAPE]
    w_c = wp[D_SHAPE:D_SHAPE + SPACE_DIMS]
    w_b = wp[D_SHAPE + SPACE_DIMS:]
    w_c_pad = jnp.pad(w_c, ((0, 128 - SPACE_DIMS), (0, 0)))
    w_bf, b1f = _fold_bn(mean1, inv1, w_b, params["post_b1"][None, :])

    y2, s2, q2 = post_fused(xgn, f, x_pre, w_a, w_c_pad, w_bf, b1f,
                            params["post_w2"], params["post_b2"][None, :], tm=tm)
    mean2 = s2 / n
    inv2 = jax.lax.rsqrt(jnp.maximum(q2 / n - mean2 * mean2, 0.0) + BN_EPS)
    out = bn_apply(y2, mean2, inv2, tm=tm)

    return out, nbr_idx, loss_regularizing_neig, ll_r


# ----------------------------------------------------------------------------
# Deterministic parameter init (xavier-uniform weights, zero biases)
# ----------------------------------------------------------------------------
def _xavier(key, cin, cout):
    limit = (6.0 / (cin + cout)) ** 0.5
    return jax.random.uniform(key, (cin, cout), jnp.float32, -limit, limit)


def init_params(key, in_channels, out_channels=D_SHAPE):
    d = D_SHAPE
    keys = jax.random.split(key, 8)
    zeros = lambda c: jnp.zeros((c,), jnp.float32)
    return {
        "pre_w1": _xavier(keys[0], in_channels, d), "pre_b1": zeros(d),
        "pre_w2": _xavier(keys[1], d, d),           "pre_b2": zeros(d),
        "post_w1": _xavier(keys[2], out_channels + SPACE_DIMS + d, d), "post_b1": zeros(d),
        "post_w2": _xavier(keys[3], d, d),          "post_b2": zeros(d),
        "gravnet": {
            "lin_s_w": _xavier(keys[4], d, SPACE_DIMS), "lin_s_b": zeros(SPACE_DIMS),
            "lin_h_w": _xavier(keys[5], d, d),          "lin_h_b": zeros(d),
            "lin_out1_w": _xavier(keys[6], d, out_channels),          # no bias in torch
            "lin_out2_w": _xavier(keys[7], 2 * d, out_channels),
            "lin_out2_b": zeros(out_channels),
        },
    }


if __name__ == "__main__":
    N = 256         # nodes (small single-graph demo; must be a multiple of 128 here)
    IN_CH = 32      # input feature channels
    K = 8           # k nearest neighbors (module default is 40; small demo value)

    key = jax.random.PRNGKey(0)
    kx, kc, kp = jax.random.split(key, 3)
    x = jax.random.normal(kx, (N, IN_CH), jnp.float32)
    original_coords = jax.random.normal(kc, (N, SPACE_DIMS), jnp.float32)
    batch = jnp.zeros((N,), jnp.int32)
    params = init_params(kp, IN_CH)

    fwd = jax.jit(functools.partial(gravnet_block_forward, k=K))
    out, graph, loss_reg, ll_r = fwd(params, x, batch, original_coords)
    jax.block_until_ready(out)

    assert out.shape == (N, D_SHAPE), out.shape
    assert graph.shape == (N, K), graph.shape
    assert bool(jnp.all(jnp.isfinite(out)))
    print("KERNEL_OK")
</pallas_src>

<mosaic_0001>
module attributes {stable_mosaic.version = 11 : i64} {
  func.func @_pre_kernel(%arg0: i32, %arg1: memref<256x32xf32, #tpu.memory_space<vmem>>, %arg2: memref<32x64xf32, #tpu.memory_space<vmem>>, %arg3: memref<1x64xf32, #tpu.memory_space<vmem>>, %arg4: memref<64x64xf32, #tpu.memory_space<vmem>>, %arg5: memref<1x64xf32, #tpu.memory_space<vmem>>, %arg6: memref<256x64xf32, #tpu.memory_space<vmem>>, %arg7: memref<1x64xf32, #tpu.memory_space<vmem>>, %arg8: memref<1x64xf32, #tpu.memory_space<vmem>>) attributes {dimension_semantics = [#tpu.dimension_semantics<arbitrary>], iteration_bounds = array<i64: 1>, scalar_prefetch = 0 : i64, scratch_operands = 0 : i64, tpu.core_type = #tpu.core_type<tc>, window_params = [{transform_indices = @transform_0, window_bounds = array<i64: 256, 32>}, {pipeline_mode = #tpu.pipeline_mode<synchronous>, transform_indices = @transform_1, window_bounds = array<i64: 32, 64>}, {pipeline_mode = #tpu.pipeline_mode<synchronous>, transform_indices = @transform_2, window_bounds = array<i64: 1, 64>}, {pipeline_mode = #tpu.pipeline_mode<synchronous>, transform_indices = @transform_3, window_bounds = array<i64: 64, 64>}, {pipeline_mode = #tpu.pipeline_mode<synchronous>, transform_indices = @transform_4, window_bounds = array<i64: 1, 64>}, {transform_indices = @transform_5, window_bounds = array<i64: 256, 64>}, {pipeline_mode = #tpu.pipeline_mode<synchronous>, transform_indices = @transform_6, window_bounds = array<i64: 1, 64>}, {pipeline_mode = #tpu.pipeline_mode<synchronous>, transform_indices = @transform_7, window_bounds = array<i64: 1, 64>}]} {
    %c0 = arith.constant 0 : index
    %c0_0 = arith.constant 0 : index
    %0 = vector.load %arg1[%c0, %c0_0] : memref<256x32xf32, #tpu.memory_space<vmem>>, vector<256x32xf32>
    %c0_1 = arith.constant 0 : index
    %c0_2 = arith.constant 0 : index
    %1 = vector.load %arg2[%c0_1, %c0_2] : memref<32x64xf32, #tpu.memory_space<vmem>>, vector<32x64xf32>
    %cst = arith.constant dense<0.000000e+00> : vector<256x64xf32>
    %2 = tpu.matmul %0, %1, %cst {dimension_numbers = #tpu.dot_dimension_numbers<[1], [0], [0], [1], [0, 0, 1, 1], [], []>} : vector<256x32xf32>, vector<32x64xf32>, vector<256x64xf32> -> vector<256x64xf32>
    %c0_3 = arith.constant 0 : index
    %c0_4 = arith.constant 0 : index
    %3 = vector.load %arg3[%c0_3, %c0_4] : memref<1x64xf32, #tpu.memory_space<vmem>>, vector<1x64xf32>
    %4 = vector.broadcast %3 : vector<1x64xf32> to vector<256x64xf32>
    %5 = arith.addf %2, %4 : vector<256x64xf32>
    %cst_5 = arith.constant 0.000000e+00 : f32
    %6 = vector.broadcast %cst_5 : f32 to vector<256x64xf32>
    %7 = arith.cmpf ogt, %5, %6 : vector<256x64xf32>
    %cst_6 = arith.constant 0.000000e+00 : f32
    %8 = vector.broadcast %cst_6 : f32 to vector<256x64xf32>
    %9 = arith.minimumf %5, %8 : vector<256x64xf32>
    %10 = math.exp %9 : vector<256x64xf32>
    %cst_7 = arith.constant 1.000000e+00 : f32
    %11 = vector.broadcast %cst_7 : f32 to vector<256x64xf32>
    %12 = arith.subf %10, %11 : vector<256x64xf32>
    %13 = arith.select %7, %5, %12 : vector<256x64xi1>, vector<256x64xf32>
    %c0_8 = arith.constant 0 : index
    %c0_9 = arith.constant 0 : index
    %14 = vector.load %arg4[%c0_8, %c0_9] : memref<64x64xf32, #tpu.memory_space<vmem>>, vector<64x64xf32>
    %cst_10 = arith.constant dense<0.000000e+00> : vector<256x64xf32>
    %15 = tpu.matmul %13, %14, %cst_10 {dimension_numbers = #tpu.dot_dimension_numbers<[1], [0], [0], [1], [0, 0, 1, 1], [], []>} : vector<256x64xf32>, vector<64x64xf32>, vector<256x64xf32> -> vector<256x64xf32>
    %c0_11 = arith.constant 0 : index
    %c0_12 = arith.constant 0 : index
    %16 = vector.load %arg5[%c0_11, %c0_12] : memref<1x64xf32, #tpu.memory_space<vmem>>, vector<1x64xf32>
    %17 = vector.broadcast %16 : vector<1x64xf32> to vector<256x64xf32>
    %18 = arith.addf %15, %17 : vector<256x64xf32>
    %cst_13 = arith.constant 0.000000e+00 : f32
    %19 = vector.broadcast %cst_13 : f32 to vector<256x64xf32>
    %20 = arith.cmpf ogt, %18, %19 : vector<256x64xf32>
    %cst_14 = arith.constant 0.000000e+00 : f32
    %21 = vector.broadcast %cst_14 : f32 to vector<256x64xf32>
    %22 = arith.minimumf %18, %21 : vector<256x64xf32>
    %23 = math.exp %22 : vector<256x64xf32>
    %cst_15 = arith.constant 1.000000e+00 : f32
    %24 = vector.broadcast %cst_15 : f32 to vector<256x64xf32>
    %25 = arith.subf %23, %24 : vector<256x64xf32>
    %26 = arith.select %20, %18, %25 : vector<256x64xi1>, vector<256x64xf32>
    %c0_16 = arith.constant 0 : index
    %c0_17 = arith.constant 0 : index
    %27 = vector.load %arg6[%c0_16, %c0_17] : memref<256x64xf32, #tpu.memory_space<vmem>>, vector<256x64xf32>
    tpu.vector_store %arg6[%c0_16, %c0_17], %26 {strides = array<i32>} : memref<256x64xf32, #tpu.memory_space<vmem>>, vector<256x64xf32>,
    %c0_i32 = arith.constant 0 : i32
    %28 = arith.cmpi eq, %arg0, %c0_i32 : i32
    %29 = arith.extui %28 : i1 to i32
    %c0_i32_18 = arith.constant 0 : i32
    %30 = arith.cmpi ne, %29, %c0_i32_18 : i32
    scf.if %30 {
      %cst_29 = arith.constant 0.000000e+00 : f32
      %42 = vector.broadcast %cst_29 : f32 to vector<1x64xf32>
      %c0_30 = arith.constant 0 : index
      %c0_31 = arith.constant 0 : index
      %43 = vector.load %arg7[%c0_30, %c0_31] : memref<1x64xf32, #tpu.memory_space<vmem>>, vector<1x64xf32>
      tpu.vector_store %arg7[%c0_30, %c0_31], %42 {strides = array<i32>} : memref<1x64xf32, #tpu.memory_space<vmem>>, vector<1x64xf32>,
      %cst_32 = arith.constant 0.000000e+00 : f32
      %44 = vector.broadcast %cst_32 : f32 to vector<1x64xf32>
      %c0_33 = arith.constant 0 : index
      %c0_34 = arith.constant 0 : index
      %45 = vector.load %arg8[%c0_33, %c0_34] : memref<1x64xf32, #tpu.memory_space<vmem>>, vector<1x64xf32>
      tpu.vector_store %arg8[%c0_33, %c0_34], %44 {strides = array<i32>} : memref<1x64xf32, #tpu.memory_space<vmem>>, vector<1x64xf32>,
    } else {
    }
    %c0_19 = arith.constant 0 : index
    %c0_20 = arith.constant 0 : index
    %31 = vector.load %arg7[%c0_19, %c0_20] : memref<1x64xf32, #tpu.memory_space<vmem>>, vector<1x64xf32>
    %cst_21 = arith.constant dense<0.000000e+00> : vector<64xf32>
    %32 = vector.multi_reduction <add>, %26, %cst_21 [0] : vector<256x64xf32> to vector<64xf32>
    %33 = vector.shape_cast %32 : vector<64xf32> to vector<1x64xf32>
    %34 = arith.addf %31, %33 : vector<1x64xf32>
    %c0_22 = arith.constant 0 : index
    %c0_23 = arith.constant 0 : index
    %35 = vector.load %arg7[%c0_22, %c0_23] : memref<1x64xf32, #tpu.memory_space<vmem>>, vector<1x64xf32>
    tpu.vector_store %arg7[%c0_22, %c0_23], %34 {strides = array<i32>} : memref<1x64xf32, #tpu.memory_space<vmem>>, vector<1x64xf32>,
    %c0_24 = arith.constant 0 : index
    %c0_25 = arith.constant 0 : index
    %36 = vector.load %arg8[%c0_24, %c0_25] : memref<1x64xf32, #tpu.memory_space<vmem>>, vector<1x64xf32>
    %37 = arith.mulf %26, %26 : vector<256x64xf32>
    %cst_26 = arith.constant dense<0.000000e+00> : vector<64xf32>
    %38 = vector.multi_reduction <add>, %37, %cst_26 [0] : vector<256x64xf32> to vector<64xf32>
    %39 = vector.shape_cast %38 : vector<64xf32> to vector<1x64xf32>
    %40 = arith.addf %36, %39 : vector<1x64xf32>
    %c0_27 = arith.constant 0 : index
    %c0_28 = arith.constant 0 : index
    %41 = vector.load %arg8[%c0_27, %c0_28] : memref<1x64xf32, #tpu.memory_space<vmem>>, vector<1x64xf32>
    tpu.vector_store %arg8[%c0_27, %c0_28], %40 {strides = array<i32>} : memref<1x64xf32, #tpu.memory_space<vmem>>, vector<1x64xf32>,
    return
  }
  func.func @transform_0(%arg0: i32) -> (i32, i32) {
    %c0_i32 = arith.constant 0 : i32
    %c0_i32_0 = arith.constant 0 : i32
    return %arg0, %c0_i32 : i32, i32
  }
  func.func @transform_1(%arg0: i32) -> (i32, i32) {
    %c0_i32 = arith.constant 0 : i32
    %c0_i32_0 = arith.constant 0 : i32
    %c0_i32_1 = arith.constant 0 : i32
    return %c0_i32, %c0_i32_0 : i32, i32
  }
  func.func @transform_2(%arg0: i32) -> (i32, i32) {
    %c0_i32 = arith.constant 0 : i32
    %c0_i32_0 = arith.constant 0 : i32
    %c0_i32_1 = arith.constant 0 : i32
    return %c0_i32, %c0_i32_0 : i32, i32
  }
  func.func @transform_3(%arg0: i32) -> (i32, i32) {
    %c0_i32 = arith.constant 0 : i32
    %c0_i32_0 = arith.constant 0 : i32
    %c0_i32_1 = arith.constant 0 : i32
    return %c0_i32, %c0_i32_0 : i32, i32
  }
  func.func @transform_4(%arg0: i32) -> (i32, i32) {
    %c0_i32 = arith.constant 0 : i32
    %c0_i32_0 = arith.constant 0 : i32
    %c0_i32_1 = arith.constant 0 : i32
    return %c0_i32, %c0_i32_0 : i32, i32
  }
  func.func @transform_5(%arg0: i32) -> (i32, i32) {
    %c0_i32 = arith.constant 0 : i32
    %c0_i32_0 = arith.constant 0 : i32
    return %arg0, %c0_i32 : i32, i32
  }
  func.func @transform_6(%arg0: i32) -> (i32, i32) {
    %c0_i32 = arith.constant 0 : i32
    %c0_i32_0 = arith.constant 0 : i32
    %c0_i32_1 = arith.constant 0 : i32
    return %c0_i32, %c0_i32_0 : i32, i32
  }
  func.func @transform_7(%arg0: i32) -> (i32, i32) {
    %c0_i32 = arith.constant 0 : i32
    %c0_i32_0 = arith.constant 0 : i32
    %c0_i32_1 = arith.constant 0 : i32
    return %c0_i32, %c0_i32_0 : i32, i32
  }
}

module attributes {stable_mosaic.version = 11 : i64} {
  func.func @_fused_linear_kernel(%arg0: i32, %arg1: memref<256x64xf32, #tpu.memory_space<vmem>>, %arg2: memref<64x256xf32, #tpu.memory_space<vmem>>, %arg3: memref<1x256xf32, #tpu.memory_space<vmem>>, %arg4: memref<256x256xf32, #tpu.memory_space<vmem>>) attributes {dimension_semantics = [#tpu.dimension_semantics<parallel>], iteration_bounds = array<i64: 1>, scalar_prefetch = 0 : i64, scratch_operands = 0 : i64, tpu.core_type = #tpu.core_type<tc>, window_params = [{transform_indices = @transform_0, window_bounds = array<i64: 256, 64>}, {pipeline_mode = #tpu.pipeline_mode<synchronous>, transform_indices = @transform_1, window_bounds = array<i64: 64, 256>}, {pipeline_mode = #tpu.pipeline_mode<synchronous>, transform_indices = @transform_2, window_bounds = array<i64: 1, 256>}, {transform_indices = @transform_3, window_bounds = array<i64: 256, 256>}]} {
    %c0 = arith.constant 0 : index
    %c0_0 = arith.constant 0 : index
    %0 = vector.load %arg1[%c0, %c0_0] : memref<256x64xf32, #tpu.memory_space<vmem>>, vector<256x64xf32>
    %c0_1 = arith.constant 0 : index
    %c0_2 = arith.constant 0 : index
    %1 = vector.load %arg2[%c0_1, %c0_2] : memref<64x256xf32, #tpu.memory_space<vmem>>, vector<64x256xf32>
    %cst = arith.constant dense<0.000000e+00> : vector<256x256xf32>
    %2 = tpu.matmul %0, %1, %cst {dimension_numbers = #tpu.dot_dimension_numbers<[1], [0], [0], [1], [0, 0, 1, 1], [], []>} : vector<256x64xf32>, vector<64x256xf32>, vector<256x256xf32> -> vector<256x256xf32>
    %c0_3 = arith.constant 0 : index
    %c0_4 = arith.constant 0 : index
    %3 = vector.load %arg3[%c0_3, %c0_4] : memref<1x256xf32, #tpu.memory_space<vmem>>, vector<1x256xf32>
    %4 = vector.broadcast %3 : vector<1x256xf32> to vector<256x256xf32>
    %5 = arith.addf %2, %4 : vector<256x256xf32>
    %c0_5 = arith.constant 0 : index
    %c0_6 = arith.constant 0 : index
    %6 = vector.load %arg4[%c0_5, %c0_6] : memref<256x256xf32, #tpu.memory_space<vmem>>, vector<256x256xf32>
    tpu.vector_store %arg4[%c0_5, %c0_6], %5 {strides = array<i32>} : memref<256x256xf32, #tpu.memory_space<vmem>>, vector<256x256xf32>,
    return
  }
  func.func @transform_0(%arg0: i32) -> (i32, i32) {
    %c0_i32 = arith.constant 0 : i32
    %c0_i32_0 = arith.constant 0 : i32
    return %arg0, %c0_i32 : i32, i32
  }
  func.func @transform_1(%arg0: i32) -> (i32, i32) {
    %c0_i32 = arith.constant 0 : i32
    %c0_i32_0 = arith.constant 0 : i32
    %c0_i32_1 = arith.constant 0 : i32
    return %c0_i32, %c0_i32_0 : i32, i32
  }
  func.func @transform_2(%arg0: i32) -> (i32, i32) {
    %c0_i32 = arith.constant 0 : i32
    %c0_i32_0 = arith.constant 0 : i32
    %c0_i32_1 = arith.constant 0 : i32
    return %c0_i32, %c0_i32_0 : i32, i32
  }
  func.func @transform_3(%arg0: i32) -> (i32, i32) {
    %c0_i32 = arith.constant 0 : i32
    %c0_i32_0 = arith.constant 0 : i32
    return %arg0, %c0_i32 : i32, i32
  }
}

module attributes {stable_mosaic.version = 11 : i64} {
  func.func @_pdist_kernel(%arg0: i32, %arg1: i32, %arg2: memref<128x128xf32, #tpu.memory_space<vmem>>, %arg3: memref<128x128xf32, #tpu.memory_space<vmem>>, %arg4: memref<1x128xf32, #tpu.memory_space<vmem>>, %arg5: memref<128x128xf32, #tpu.memory_space<vmem>>) attributes {dimension_semantics = [#tpu.dimension_semantics<parallel>, #tpu.dimension_semantics<parallel>], iteration_bounds = array<i64: 2, 2>, scalar_prefetch = 0 : i64, scratch_operands = 0 : i64, tpu.core_type = #tpu.core_type<tc>, window_params = [{transform_indices = @transform_0, window_bounds = array<i64: 128, 128>}, {transform_indices = @transform_1, window_bounds = array<i64: 128, 128>}, {transform_indices = @transform_2, window_bounds = array<i64: 1, 128>}, {transform_indices = @transform_3, window_bounds = array<i64: 128, 128>}]} {
    %c0 = arith.constant 0 : index
    %c0_0 = arith.constant 0 : index
    %0 = vector.load %arg2[%c0, %c0_0] : memref<128x128xf32, #tpu.memory_space<vmem>>, vector<128x128xf32>
    %c0_1 = arith.constant 0 : index
    %c0_2 = arith.constant 0 : index
    %1 = vector.load %arg3[%c0_1, %c0_2] : memref<128x128xf32, #tpu.memory_space<vmem>>, vector<128x128xf32>
    %2 = arith.mulf %0, %0 : vector<128x128xf32>
    %cst = arith.constant dense<0.000000e+00> : vector<128xf32>
    %3 = vector.multi_reduction <add>, %2, %cst [1] : vector<128x128xf32> to vector<128xf32>
    %4 = vector.shape_cast %3 : vector<128xf32> to vector<128x1xf32>
    %cst_3 = arith.constant dense<0.000000e+00> : vector<128x128xf32>
    %5 = tpu.matmul %0, %1, %cst_3 {dimension_numbers = #tpu.dot_dimension_numbers<[1], [1], [0], [0], [0, 0, 1, 0], [], []>} : vector<128x128xf32>, vector<128x128xf32>, vector<128x128xf32> -> vector<128x128xf32>
    %c0_4 = arith.constant 0 : index
    %c0_5 = arith.constant 0 : index
    %6 = vector.load %arg4[%c0_4, %c0_5] : memref<1x128xf32, #tpu.memory_space<vmem>>, vector<1x128xf32>
    %7 = vector.broadcast %4 : vector<128x1xf32> to vector<128x128xf32>
    %8 = vector.broadcast %6 : vector<1x128xf32> to vector<128x128xf32>
    %9 = arith.addf %7, %8 : vector<128x128xf32>
    %cst_6 = arith.constant 2.000000e+00 : f32
    %10 = vector.broadcast %cst_6 : f32 to vector<128x128xf32>
    %11 = arith.mulf %10, %5 : vector<128x128xf32>
    %12 = arith.subf %9, %11 : vector<128x128xf32>
    %cst_7 = arith.constant 0.000000e+00 : f32
    %13 = vector.broadcast %cst_7 : f32 to vector<128x128xf32>
    %14 = arith.maximumf %12, %13 : vector<128x128xf32>
    %c0_8 = arith.constant 0 : index
    %c0_9 = arith.constant 0 : index
    %15 = vector.load %arg5[%c0_8, %c0_9] : memref<128x128xf32, #tpu.memory_space<vmem>>, vector<128x128xf32>
    tpu.vector_store %arg5[%c0_8, %c0_9], %14 {strides = array<i32>} : memref<128x128xf32, #tpu.memory_space<vmem>>, vector<128x128xf32>,
    return
  }
  func.func @transform_0(%arg0: i32, %arg1: i32) -> (i32, i32) {
    %c1_i32 = arith.constant 1 : i32
    %c0_i32 = arith.constant 0 : i32
    return %arg0, %c1_i32 : i32, i32
  }
  func.func @transform_1(%arg0: i32, %arg1: i32) -> (i32, i32) {
    %c1_i32 = arith.constant 1 : i32
    %c0_i32 = arith.constant 0 : i32
    return %arg1, %c1_i32 : i32, i32
  }
  func.func @transform_2(%arg0: i32, %arg1: i32) -> (i32, i32) {
    %c0_i32 = arith.constant 0 : i32
    %c0_i32_0 = arith.constant 0 : i32
    return %c0_i32, %arg1 : i32, i32
  }
  func.func @transform_3(%arg0: i32, %arg1: i32) -> (i32, i32) {
    %c0_i32 = arith.constant 0 : i32
    return %arg0, %arg1 : i32, i32
  }
}

module attributes {stable_mosaic.version = 11 : i64} {
  func.func @_agg_kernel(%arg0: i32, %arg1: memref<256x8xf32, #tpu.memory_space<vmem>>, %arg2: memref<256x512xf32, #tpu.memory_space<vmem>>, %arg3: memref<256x128xf32, #tpu.memory_space<vmem>>, %arg4: memref<128x64xf32, #tpu.memory_space<vmem>>, %arg5: memref<1x64xf32, #tpu.memory_space<vmem>>, %arg6: memref<256x64xf32, #tpu.memory_space<vmem>>) attributes {dimension_semantics = [#tpu.dimension_semantics<parallel>], iteration_bounds = array<i64: 1>, scalar_prefetch = 0 : i64, scratch_operands = 0 : i64, tpu.core_type = #tpu.core_type<tc>, window_params = [{transform_indices = @transform_0, window_bounds = array<i64: 256, 8>}, {transform_indices = @transform_1, window_bounds = array<i64: 256, 512>}, {transform_indices = @transform_2, window_bounds = array<i64: 256, 128>}, {pipeline_mode = #tpu.pipeline_mode<synchronous>, transform_indices = @transform_3, window_bounds = array<i64: 128, 64>}, {pipeline_mode = #tpu.pipeline_mode<synchronous>, transform_indices = @transform_4, window_bounds = array<i64: 1, 64>}, {transform_indices = @transform_5, window_bounds = array<i64: 256, 64>}]} {
    %c0 = arith.constant 0 : index
    %c0_0 = arith.constant 0 : index
    %0 = vector.load %arg1[%c0, %c0_0] : memref<256x8xf32, #tpu.memory_space<vmem>>, vector<256x8xf32>
    %cst = arith.constant -1.000000e+01 : f32
    %1 = vector.broadcast %cst : f32 to vector<256x8xf32>
    %2 = arith.mulf %1, %0 : vector<256x8xf32>
    %3 = math.exp %2 : vector<256x8xf32>
    %4 = vector.extract_strided_slice %3 {offsets = [0, 0], sizes = [256, 1], strides = [1, 1]} : vector<256x8xf32> to vector<256x1xf32>
    %c0_1 = arith.constant 0 : index
    %c0_2 = arith.constant 0 : index
    %5 = vector.load %arg2[%c0_1, %c0_2] : memref<256x512xf32, #tpu.memory_space<vmem>>, vector<256x64xf32>
    %6 = vector.broadcast %4 : vector<256x1xf32> to vector<256x64xf32>
    %7 = arith.mulf %6, %5 : vector<256x64xf32>
    %8 = vector.extract_strided_slice %3 {offsets = [0, 1], sizes = [256, 1], strides = [1, 1]} : vector<256x8xf32> to vector<256x1xf32>
    %c0_3 = arith.constant 0 : index
    %c64 = arith.constant 64 : index
    %9 = vector.load %arg2[%c0_3, %c64] : memref<256x512xf32, #tpu.memory_space<vmem>>, vector<256x64xf32>
    %10 = vector.broadcast %8 : vector<256x1xf32> to vector<256x64xf32>
    %11 = arith.mulf %10, %9 : vector<256x64xf32>
    %12 = arith.addf %7, %11 : vector<256x64xf32>
    %13 = arith.maximumf %7, %11 : vector<256x64xf32>
    %14 = vector.extract_strided_slice %3 {offsets = [0, 2], sizes = [256, 1], strides = [1, 1]} : vector<256x8xf32> to vector<256x1xf32>
    %c0_4 = arith.constant 0 : index
    %c128 = arith.constant 128 : index
    %15 = vector.load %arg2[%c0_4, %c128] : memref<256x512xf32, #tpu.memory_space<vmem>>, vector<256x64xf32>
    %16 = vector.broadcast %14 : vector<256x1xf32> to vector<256x64xf32>
    %17 = arith.mulf %16, %15 : vector<256x64xf32>
    %18 = arith.addf %12, %17 : vector<256x64xf32>
    %19 = arith.maximumf %13, %17 : vector<256x64xf32>
    %20 = vector.extract_strided_slice %3 {offsets = [0, 3], sizes = [256, 1], strides = [1, 1]} : vector<256x8xf32> to vector<256x1xf32>
    %c0_5 = arith.constant 0 : index
    %c192 = arith.constant 192 : index
    %21 = vector.load %arg2[%c0_5, %c192] : memref<256x512xf32, #tpu.memory_space<vmem>>, vector<256x64xf32>
    %22 = vector.broadcast %20 : vector<256x1xf32> to vector<256x64xf32>
    %23 = arith.mulf %22, %21 : vector<256x64xf32>
    %24 = arith.addf %18, %23 : vector<256x64xf32>
    %25 = arith.maximumf %19, %23 : vector<256x64xf32>
    %26 = vector.extract_strided_slice %3 {offsets = [0, 4], sizes = [256, 1], strides = [1, 1]} : vector<256x8xf32> to vector<256x1xf32>
    %c0_6 = arith.constant 0 : index
    %c256 = arith.constant 256 : index
    %27 = vector.load %arg2[%c0_6, %c256] : memref<256x512xf32, #tpu.memory_space<vmem>>, vector<256x64xf32>
    %28 = vector.broadcast %26 : vector<256x1xf32> to vector<256x64xf32>
    %29 = arith.mulf %28, %27 : vector<256x64xf32>
    %30 = arith.addf %24, %29 : vector<256x64xf32>
    %31 = arith.maximumf %25, %29 : vector<256x64xf32>
    %32 = vector.extract_strided_slice %3 {offsets = [0, 5], sizes = [256, 1], strides = [1, 1]} : vector<256x8xf32> to vector<256x1xf32>
    %c0_7 = arith.constant 0 : index
    %c320 = arith.constant 320 : index
    %33 = vector.load %arg2[%c0_7, %c320] : memref<256x512xf32, #tpu.memory_space<vmem>>, vector<256x64xf32>
    %34 = vector.broadcast %32 : vector<256x1xf32> to vector<256x64xf32>
    %35 = arith.mulf %34, %33 : vector<256x64xf32>
    %36 = arith.addf %30, %35 : vector<256x64xf32>
    %37 = arith.maximumf %31, %35 : vector<256x64xf32>
    %38 = vector.extract_strided_slice %3 {offsets = [0, 6], sizes = [256, 1], strides = [1, 1]} : vector<256x8xf32> to vector<256x1xf32>
    %c0_8 = arith.constant 0 : index
    %c384 = arith.constant 384 : index
    %39 = vector.load %arg2[%c0_8, %c384] : memref<256x512xf32, #tpu.memory_space<vmem>>, vector<256x64xf32>
    %40 = vector.broadcast %38 : vector<256x1xf32> to vector<256x64xf32>
    %41 = arith.mulf %40, %39 : vector<256x64xf32>
    %42 = arith.addf %36, %41 : vector<256x64xf32>
    %43 = arith.maximumf %37, %41 : vector<256x64xf32>
    %44 = vector.extract_strided_slice %3 {offsets = [0, 7], sizes = [256, 1], strides = [1, 1]} : vector<256x8xf32> to vector<256x1xf32>
    %c0_9 = arith.constant 0 : index
    %c448 = arith.constant 448 : index
    %45 = vector.load %arg2[%c0_9, %c448] : memref<256x512xf32, #tpu.memory_space<vmem>>, vector<256x64xf32>
    %46 = vector.broadcast %44 : vector<256x1xf32> to vector<256x64xf32>
    %47 = arith.mulf %46, %45 : vector<256x64xf32>
    %48 = arith.addf %42, %47 : vector<256x64xf32>
    %49 = arith.maximumf %43, %47 : vector<256x64xf32>
    %cst_10 = arith.constant 1.250000e-01 : f32
    %50 = vector.broadcast %cst_10 : f32 to vector<256x64xf32>
    %51 = arith.mulf %48, %50 : vector<256x64xf32>
    %c0_11 = arith.constant 0 : index
    %c64_12 = arith.constant 64 : index
    %52 = vector.load %arg3[%c0_11, %c64_12] : memref<256x128xf32, #tpu.memory_space<vmem>>, vector<256x64xf32>
    %c0_13 = arith.constant 0 : index
    %c0_14 = arith.constant 0 : index
    %53 = vector.load %arg4[%c0_13, %c0_14] : memref<128x64xf32, #tpu.memory_space<vmem>>, vector<64x64xf32>
    %cst_15 = arith.constant dense<0.000000e+00> : vector<256x64xf32>
    %54 = tpu.matmul %51, %53, %cst_15 {dimension_numbers = #tpu.dot_dimension_numbers<[1], [0], [0], [1], [0, 0, 1, 1], [], []>} : vector<256x64xf32>, vector<64x64xf32>, vector<256x64xf32> -> vector<256x64xf32>
    %55 = arith.addf %52, %54 : vector<256x64xf32>
    %c64_16 = arith.constant 64 : index
    %c0_17 = arith.constant 0 : index
    %56 = vector.load %arg4[%c64_16, %c0_17] : memref<128x64xf32, #tpu.memory_space<vmem>>, vector<64x64xf32>
    %cst_18 = arith.constant dense<0.000000e+00> : vector<256x64xf32>
    %57 = tpu.matmul %49, %56, %cst_18 {dimension_numbers = #tpu.dot_dimension_numbers<[1], [0], [0], [1], [0, 0, 1, 1], [], []>} : vector<256x64xf32>, vector<64x64xf32>, vector<256x64xf32> -> vector<256x64xf32>
    %58 = arith.addf %55, %57 : vector<256x64xf32>
    %c0_19 = arith.constant 0 : index
    %c0_20 = arith.constant 0 : index
    %59 = vector.load %arg5[%c0_19, %c0_20] : memref<1x64xf32, #tpu.memory_space<vmem>>, vector<1x64xf32>
    %60 = vector.broadcast %59 : vector<1x64xf32> to vector<256x64xf32>
    %61 = arith.addf %58, %60 : vector<256x64xf32>
    %c0_21 = arith.constant 0 : index
    %c0_22 = arith.constant 0 : index
    %62 = vector.load %arg6[%c0_21, %c0_22] : memref<256x64xf32, #tpu.memory_space<vmem>>, vector<256x64xf32>
    tpu.vector_store %arg6[%c0_21, %c0_22], %61 {strides = array<i32>} : memref<256x64xf32, #tpu.memory_space<vmem>>, vector<256x64xf32>,
    return
  }
  func.func @transform_0(%arg0: i32) -> (i32, i32) {
    %c0_i32 = arith.constant 0 : i32
    %c0_i32_0 = arith.constant 0 : i32
    return %arg0, %c0_i32 : i32, i32
  }
  func.func @transform_1(%arg0: i32) -> (i32, i32) {
    %c0_i32 = arith.constant 0 : i32
    %c0_i32_0 = arith.constant 0 : i32
    return %arg0, %c0_i32 : i32, i32
  }
  func.func @transform_2(%arg0: i32) -> (i32, i32) {
    %c0_i32 = arith.constant 0 : i32
    %c0_i32_0 = arith.constant 0 : i32
    return %arg0, %c0_i32 : i32, i32
  }
  func.func @transform_3(%arg0: i32) -> (i32, i32) {
    %c0_i32 = arith.constant 0 : i32
    %c0_i32_0 = arith.constant 0 : i32
    %c0_i32_1 = arith.constant 0 : i32
    return %c0_i32, %c0_i32_0 : i32, i32
  }
  func.func @transform_4(%arg0: i32) -> (i32, i32) {
    %c0_i32 = arith.constant 0 : i32
    %c0_i32_0 = arith.constant 0 : i32
    %c0_i32_1 = arith.constant 0 : i32
    return %c0_i32, %c0_i32_0 : i32, i32
  }
  func.func @transform_5(%arg0: i32) -> (i32, i32) {
    %c0_i32 = arith.constant 0 : i32
    %c0_i32_0 = arith.constant 0 : i32
    return %arg0, %c0_i32 : i32, i32
  }
}

module attributes {stable_mosaic.version = 11 : i64} {
  func.func @_post_kernel(%arg0: i32, %arg1: memref<256x64xf32, #tpu.memory_space<vmem>>, %arg2: memref<256x128xf32, #tpu.memory_space<vmem>>, %arg3: memref<256x64xf32, #tpu.memory_space<vmem>>, %arg4: memref<64x64xf32, #tpu.memory_space<vmem>>, %arg5: memref<128x64xf32, #tpu.memory_space<vmem>>, %arg6: memref<64x64xf32, #tpu.memory_space<vmem>>, %arg7: memref<1x64xf32, #tpu.memory_space<vmem>>, %arg8: memref<64x64xf32, #tpu.memory_space<vmem>>, %arg9: memref<1x64xf32, #tpu.memory_space<vmem>>, %arg10: memref<256x64xf32, #tpu.memory_space<vmem>>, %arg11: memref<1x64xf32, #tpu.memory_space<vmem>>, %arg12: memref<1x64xf32, #tpu.memory_space<vmem>>) attributes {dimension_semantics = [#tpu.dimension_semantics<arbitrary>], iteration_bounds = array<i64: 1>, scalar_prefetch = 0 : i64, scratch_operands = 0 : i64, tpu.core_type = #tpu.core_type<tc>, window_params = [{transform_indices = @transform_0, window_bounds = array<i64: 256, 64>}, {transform_indices = @transform_1, window_bounds = array<i64: 256, 128>}, {transform_indices = @transform_2, window_bounds = array<i64: 256, 64>}, {pipeline_mode = #tpu.pipeline_mode<synchronous>, transform_indices = @transform_3, window_bounds = array<i64: 64, 64>}, {pipeline_mode = #tpu.pipeline_mode<synchronous>, transform_indices = @transform_4, window_bounds = array<i64: 128, 64>}, {pipeline_mode = #tpu.pipeline_mode<synchronous>, transform_indices = @transform_5, window_bounds = array<i64: 64, 64>}, {pipeline_mode = #tpu.pipeline_mode<synchronous>, transform_indices = @transform_6, window_bounds = array<i64: 1, 64>}, {pipeline_mode = #tpu.pipeline_mode<synchronous>, transform_indices = @transform_7, window_bounds = array<i64: 64, 64>}, {pipeline_mode = #tpu.pipeline_mode<synchronous>, transform_indices = @transform_8, window_bounds = array<i64: 1, 64>}, {transform_indices = @transform_9, window_bounds = array<i64: 256, 64>}, {pipeline_mode = #tpu.pipeline_mode<synchronous>, transform_indices = @transform_10, window_bounds = array<i64: 1, 64>}, {pipeline_mode = #tpu.pipeline_mode<synchronous>, transform_indices = @transform_11, window_bounds = array<i64: 1, 64>}]} {
    %c0 = arith.constant 0 : index
    %c0_0 = arith.constant 0 : index
    %0 = vector.load %arg1[%c0, %c0_0] : memref<256x64xf32, #tpu.memory_space<vmem>>, vector<256x64xf32>
    %c0_1 = arith.constant 0 : index
    %c0_2 = arith.constant 0 : index
    %1 = vector.load %arg4[%c0_1, %c0_2] : memref<64x64xf32, #tpu.memory_space<vmem>>, vector<64x64xf32>
    %cst = arith.constant dense<0.000000e+00> : vector<256x64xf32>
    %2 = tpu.matmul %0, %1, %cst {dimension_numbers = #tpu.dot_dimension_numbers<[1], [0], [0], [1], [0, 0, 1, 1], [], []>} : vector<256x64xf32>, vector<64x64xf32>, vector<256x64xf32> -> vector<256x64xf32>
    %c0_3 = arith.constant 0 : index
    %c0_4 = arith.constant 0 : index
    %3 = vector.load %arg2[%c0_3, %c0_4] : memref<256x128xf32, #tpu.memory_space<vmem>>, vector<256x128xf32>
    %c0_5 = arith.constant 0 : index
    %c0_6 = arith.constant 0 : index
    %4 = vector.load %arg5[%c0_5, %c0_6] : memref<128x64xf32, #tpu.memory_space<vmem>>, vector<128x64xf32>
    %cst_7 = arith.constant dense<0.000000e+00> : vector<256x64xf32>
    %5 = tpu.matmul %3, %4, %cst_7 {dimension_numbers = #tpu.dot_dimension_numbers<[1], [0], [0], [1], [0, 0, 1, 1], [], []>} : vector<256x128xf32>, vector<128x64xf32>, vector<256x64xf32> -> vector<256x64xf32>
    %6 = arith.addf %2, %5 : vector<256x64xf32>
    %c0_8 = arith.constant 0 : index
    %c0_9 = arith.constant 0 : index
    %7 = vector.load %arg3[%c0_8, %c0_9] : memref<256x64xf32, #tpu.memory_space<vmem>>, vector<256x64xf32>
    %c0_10 = arith.constant 0 : index
    %c0_11 = arith.constant 0 : index
    %8 = vector.load %arg6[%c0_10, %c0_11] : memref<64x64xf32, #tpu.memory_space<vmem>>, vector<64x64xf32>
    %cst_12 = arith.constant dense<0.000000e+00> : vector<256x64xf32>
    %9 = tpu.matmul %7, %8, %cst_12 {dimension_numbers = #tpu.dot_dimension_numbers<[1], [0], [0], [1], [0, 0, 1, 1], [], []>} : vector<256x64xf32>, vector<64x64xf32>, vector<256x64xf32> -> vector<256x64xf32>
    %10 = arith.addf %6, %9 : vector<256x64xf32>
    %c0_13 = arith.constant 0 : index
    %c0_14 = arith.constant 0 : index
    %11 = vector.load %arg7[%c0_13, %c0_14] : memref<1x64xf32, #tpu.memory_space<vmem>>, vector<1x64xf32>
    %12 = vector.broadcast %11 : vector<1x64xf32> to vector<256x64xf32>
    %13 = arith.addf %10, %12 : vector<256x64xf32>
    %cst_15 = arith.constant 0.000000e+00 : f32
    %14 = vector.broadcast %cst_15 : f32 to vector<256x64xf32>
    %15 = arith.cmpf ogt, %13, %14 : vector<256x64xf32>
    %cst_16 = arith.constant 0.000000e+00 : f32
    %16 = vector.broadcast %cst_16 : f32 to vector<256x64xf32>
    %17 = arith.minimumf %13, %16 : vector<256x64xf32>
    %18 = math.exp %17 : vector<256x64xf32>
    %cst_17 = arith.constant 1.000000e+00 : f32
    %19 = vector.broadcast %cst_17 : f32 to vector<256x64xf32>
    %20 = arith.subf %18, %19 : vector<256x64xf32>
    %21 = arith.select %15, %13, %20 : vector<256x64xi1>, vector<256x64xf32>
    %c0_18 = arith.constant 0 : index
    %c0_19 = arith.constant 0 : index
    %22 = vector.load %arg8[%c0_18, %c0_19] : memref<64x64xf32, #tpu.memory_space<vmem>>, vector<64x64xf32>
    %cst_20 = arith.constant dense<0.000000e+00> : vector<256x64xf32>
    %23 = tpu.matmul %21, %22, %cst_20 {dimension_numbers = #tpu.dot_dimension_numbers<[1], [0], [0], [1], [0, 0, 1, 1], [], []>} : vector<256x64xf32>, vector<64x64xf32>, vector<256x64xf32> -> vector<256x64xf32>
    %c0_21 = arith.constant 0 : index
    %c0_22 = arith.constant 0 : index
    %24 = vector.load %arg9[%c0_21, %c0_22] : memref<1x64xf32, #tpu.memory_space<vmem>>, vector<1x64xf32>
    %25 = vector.broadcast %24 : vector<1x64xf32> to vector<256x64xf32>
    %26 = arith.addf %23, %25 : vector<256x64xf32>
    %cst_23 = arith.constant 0.000000e+00 : f32
    %27 = vector.broadcast %cst_23 : f32 to vector<256x64xf32>
    %28 = arith.cmpf ogt, %26, %27 : vector<256x64xf32>
    %cst_24 = arith.constant 0.000000e+00 : f32
    %29 = vector.broadcast %cst_24 : f32 to vector<256x64xf32>
    %30 = arith.minimumf %26, %29 : vector<256x64xf32>
    %31 = math.exp %30 : vector<256x64xf32>
    %cst_25 = arith.constant 1.000000e+00 : f32
    %32 = vector.broadcast %cst_25 : f32 to vector<256x64xf32>
    %33 = arith.subf %31, %32 : vector<256x64xf32>
    %34 = arith.select %28, %26, %33 : vector<256x64xi1>, vector<256x64xf32>
    %c0_26 = arith.constant 0 : index
    %c0_27 = arith.constant 0 : index
    %35 = vector.load %arg10[%c0_26, %c0_27] : memref<256x64xf32, #tpu.memory_space<vmem>>, vector<256x64xf32>
    tpu.vector_store %arg10[%c0_26, %c0_27], %34 {strides = array<i32>} : memref<256x64xf32, #tpu.memory_space<vmem>>, vector<256x64xf32>,
    %c0_i32 = arith.constant 0 : i32
    %36 = arith.cmpi eq, %arg0, %c0_i32 : i32
    %37 = arith.extui %36 : i1 to i32
    %c0_i32_28 = arith.constant 0 : i32
    %38 = arith.cmpi ne, %37, %c0_i32_28 : i32
    scf.if %38 {
      %cst_39 = arith.constant 0.000000e+00 : f32
      %50 = vector.broadcast %cst_39 : f32 to vector<1x64xf32>
      %c0_40 = arith.constant 0 : index
      %c0_41 = arith.constant 0 : index
      %51 = vector.load %arg11[%c0_40, %c0_41] : memref<1x64xf32, #tpu.memory_space<vmem>>, vector<1x64xf32>
      tpu.vector_store %arg11[%c0_40, %c0_41], %50 {strides = array<i32>} : memref<1x64xf32, #tpu.memory_space<vmem>>, vector<1x64xf32>,
      %cst_42 = arith.constant 0.000000e+00 : f32
      %52 = vector.broadcast %cst_42 : f32 to vector<1x64xf32>
      %c0_43 = arith.constant 0 : index
      %c0_44 = arith.constant 0 : index
      %53 = vector.load %arg12[%c0_43, %c0_44] : memref<1x64xf32, #tpu.memory_space<vmem>>, vector<1x64xf32>
      tpu.vector_store %arg12[%c0_43, %c0_44], %52 {strides = array<i32>} : memref<1x64xf32, #tpu.memory_space<vmem>>, vector<1x64xf32>,
    } else {
    }
    %c0_29 = arith.constant 0 : index
    %c0_30 = arith.constant 0 : index
    %39 = vector.load %arg11[%c0_29, %c0_30] : memref<1x64xf32, #tpu.memory_space<vmem>>, vector<1x64xf32>
    %cst_31 = arith.constant dense<0.000000e+00> : vector<64xf32>
    %40 = vector.multi_reduction <add>, %34, %cst_31 [0] : vector<256x64xf32> to vector<64xf32>
    %41 = vector.shape_cast %40 : vector<64xf32> to vector<1x64xf32>
    %42 = arith.addf %39, %41 : vector<1x64xf32>
    %c0_32 = arith.constant 0 : index
    %c0_33 = arith.constant 0 : index
    %43 = vector.load %arg11[%c0_32, %c0_33] : memref<1x64xf32, #tpu.memory_space<vmem>>, vector<1x64xf32>
    tpu.vector_store %arg11[%c0_32, %c0_33], %42 {strides = array<i32>} : memref<1x64xf32, #tpu.memory_space<vmem>>, vector<1x64xf32>,
    %c0_34 = arith.constant 0 : index
    %c0_35 = arith.constant 0 : index
    %44 = vector.load %arg12[%c0_34, %c0_35] : memref<1x64xf32, #tpu.memory_space<vmem>>, vector<1x64xf32>
    %45 = arith.mulf %34, %34 : vector<256x64xf32>
    %cst_36 = arith.constant dense<0.000000e+00> : vector<64xf32>
    %46 = vector.multi_reduction <add>, %45, %cst_36 [0] : vector<256x64xf32> to vector<64xf32>
    %47 = vector.shape_cast %46 : vector<64xf32> to vector<1x64xf32>
    %48 = arith.addf %44, %47 : vector<1x64xf32>
    %c0_37 = arith.constant 0 : index
    %c0_38 = arith.constant 0 : index
    %49 = vector.load %arg12[%c0_37, %c0_38] : memref<1x64xf32, #tpu.memory_space<vmem>>, vector<1x64xf32>
    tpu.vector_store %arg12[%c0_37, %c0_38], %48 {strides = array<i32>} : memref<1x64xf32, #tpu.memory_space<vmem>>, vector<1x64xf32>,
    return
  }
  func.func @transform_0(%arg0: i32) -> (i32, i32) {
    %c0_i32 = arith.constant 0 : i32
    %c0_i32_0 = arith.constant 0 : i32
    return %arg0, %c0_i32 : i32, i32
  }
  func.func @transform_1(%arg0: i32) -> (i32, i32) {
    %c1_i32 = arith.constant 1 : i32
    %c0_i32 = arith.constant 0 : i32
    return %arg0, %c1_i32 : i32, i32
  }
  func.func @transform_2(%arg0: i32) -> (i32, i32) {
    %c0_i32 = arith.constant 0 : i32
    %c0_i32_0 = arith.constant 0 : i32
    return %arg0, %c0_i32 : i32, i32
  }
  func.func @transform_3(%arg0: i32) -> (i32, i32) {
    %c0_i32 = arith.constant 0 : i32
    %c0_i32_0 = arith.constant 0 : i32
    %c0_i32_1 = arith.constant 0 : i32
    return %c0_i32, %c0_i32_0 : i32, i32
  }
  func.func @transform_4(%arg0: i32) -> (i32, i32) {
    %c0_i32 = arith.constant 0 : i32
    %c0_i32_0 = arith.constant 0 : i32
    %c0_i32_1 = arith.constant 0 : i32
    return %c0_i32, %c0_i32_0 : i32, i32
  }
  func.func @transform_5(%arg0: i32) -> (i32, i32) {
    %c0_i32 = arith.constant 0 : i32
    %c0_i32_0 = arith.constant 0 : i32
    %c0_i32_1 = arith.constant 0 : i32
    return %c0_i32, %c0_i32_0 : i32, i32
  }
  func.func @transform_6(%arg0: i32) -> (i32, i32) {
    %c0_i32 = arith.constant 0 : i32
    %c0_i32_0 = arith.constant 0 : i32
    %c0_i32_1 = arith.constant 0 : i32
    return %c0_i32, %c0_i32_0 : i32, i32
  }
  func.func @transform_7(%arg0: i32) -> (i32, i32) {
    %c0_i32 = arith.constant 0 : i32
    %c0_i32_0 = arith.constant 0 : i32
    %c0_i32_1 = arith.constant 0 : i32
    return %c0_i32, %c0_i32_0 : i32, i32
  }
  func.func @transform_8(%arg0: i32) -> (i32, i32) {
    %c0_i32 = arith.constant 0 : i32
    %c0_i32_0 = arith.constant 0 : i32
    %c0_i32_1 = arith.constant 0 : i32
    return %c0_i32, %c0_i32_0 : i32, i32
  }
  func.func @transform_9(%arg0: i32) -> (i32, i32) {
    %c0_i32 = arith.constant 0 : i32
    %c0_i32_0 = arith.constant 0 : i32
    return %arg0, %c0_i32 : i32, i32
  }
  func.func @transform_10(%arg0: i32) -> (i32, i32) {
    %c0_i32 = arith.constant 0 : i32
    %c0_i32_0 = arith.constant 0 : i32
    %c0_i32_1 = arith.constant 0 : i32
    return %c0_i32, %c0_i32_0 : i32, i32
  }
  func.func @transform_11(%arg0: i32) -> (i32, i32) {
    %c0_i32 = arith.constant 0 : i32
    %c0_i32_0 = arith.constant 0 : i32
    %c0_i32_1 = arith.constant 0 : i32
    return %c0_i32, %c0_i32_0 : i32, i32
  }
}

module attributes {stable_mosaic.version = 11 : i64} {
  func.func @_bn_apply_kernel(%arg0: i32, %arg1: memref<256x64xf32, #tpu.memory_space<vmem>>, %arg2: memref<1x64xf32, #tpu.memory_space<vmem>>, %arg3: memref<1x64xf32, #tpu.memory_space<vmem>>, %arg4: memref<256x64xf32, #tpu.memory_space<vmem>>) attributes {dimension_semantics = [#tpu.dimension_semantics<parallel>], iteration_bounds = array<i64: 1>, scalar_prefetch = 0 : i64, scratch_operands = 0 : i64, tpu.core_type = #tpu.core_type<tc>, window_params = [{transform_indices = @transform_0, window_bounds = array<i64: 256, 64>}, {pipeline_mode = #tpu.pipeline_mode<synchronous>, transform_indices = @transform_1, window_bounds = array<i64: 1, 64>}, {pipeline_mode = #tpu.pipeline_mode<synchronous>, transform_indices = @transform_2, window_bounds = array<i64: 1, 64>}, {transform_indices = @transform_3, window_bounds = array<i64: 256, 64>}]} {
    %c0 = arith.constant 0 : index
    %c0_0 = arith.constant 0 : index
    %0 = vector.load %arg1[%c0, %c0_0] : memref<256x64xf32, #tpu.memory_space<vmem>>, vector<256x64xf32>
    %c0_1 = arith.constant 0 : index
    %c0_2 = arith.constant 0 : index
    %1 = vector.load %arg2[%c0_1, %c0_2] : memref<1x64xf32, #tpu.memory_space<vmem>>, vector<1x64xf32>
    %2 = vector.broadcast %1 : vector<1x64xf32> to vector<256x64xf32>
    %3 = arith.subf %0, %2 : vector<256x64xf32>
    %c0_3 = arith.constant 0 : index
    %c0_4 = arith.constant 0 : index
    %4 = vector.load %arg3[%c0_3, %c0_4] : memref<1x64xf32, #tpu.memory_space<vmem>>, vector<1x64xf32>
    %5 = vector.broadcast %4 : vector<1x64xf32> to vector<256x64xf32>
    %6 = arith.mulf %3, %5 : vector<256x64xf32>
    %c0_5 = arith.constant 0 : index
    %c0_6 = arith.constant 0 : index
    %7 = vector.load %arg4[%c0_5, %c0_6] : memref<256x64xf32, #tpu.memory_space<vmem>>, vector<256x64xf32>
    tpu.vector_store %arg4[%c0_5, %c0_6], %6 {strides = array<i32>} : memref<256x64xf32, #tpu.memory_space<vmem>>, vector<256x64xf32>,
    return
  }
  func.func @transform_0(%arg0: i32) -> (i32, i32) {
    %c0_i32 = arith.constant 0 : i32
    %c0_i32_0 = arith.constant 0 : i32
    return %arg0, %c0_i32 : i32, i32
  }
  func.func @transform_1(%arg0: i32) -> (i32, i32) {
    %c0_i32 = arith.constant 0 : i32
    %c0_i32_0 = arith.constant 0 : i32
    %c0_i32_1 = arith.constant 0 : i32
    return %c0_i32, %c0_i32_0 : i32, i32
  }
  func.func @transform_2(%arg0: i32) -> (i32, i32) {
    %c0_i32 = arith.constant 0 : i32
    %c0_i32_0 = arith.constant 0 : i32
    %c0_i32_1 = arith.constant 0 : i32
    return %c0_i32, %c0_i32_0 : i32, i32
  }
  func.func @transform_3(%arg0: i32) -> (i32, i32) {
    %c0_i32 = arith.constant 0 : i32
    %c0_i32_0 = arith.constant 0 : i32
    return %arg0, %c0_i32 : i32, i32
  }
}

</mosaic_0001>

<llo_original>
// kernel: neg.2
$region0: #{neg.2}
  #allocation0 [shape = 's32[1]{0}', space=sflag, size = 0x4, scoped, tag = 'scoped memory for neg.2']
  %s0 = inlined_call_operand.vmem [shape: f32[256,256], index: 0, kind: input, shape index: {}]
  %s1 = inlined_call_operand.vmem [shape: f32[256,256], index: 1, kind: output, shape index: {}]
  %v2 = vld [vmem:[%s0] sm:$0xff]
  %3 = xla_tuple %v2
  %4 = xla_tuple %3
  %v5 = vxor.u32 %v2, 2147483648
  %6 = xla_tuple %v5
  %7 = vst [vmem:[%s1] sm:$0xff] %v5
  %s8 = scalar_lea.vmem %s0, 16
  %v9 = vld [vmem:[%s8] sm:$0xff]
  %10 = xla_tuple %v9
  %11 = xla_tuple %10
  %v12 = vxor.u32 %v9, 2147483648
  %13 = xla_tuple %v12
  %s14 = scalar_lea.vmem %s1, 16
  %15 = vst [vmem:[%s14] sm:$0xff] %v12
  %s16 = scalar_lea.vmem %s0, 32
  %v17 = vld [vmem:[%s16] sm:$0xff]
  %18 = xla_tuple %v17
  %19 = xla_tuple %18
  %v20 = vxor.u32 %v17, 2147483648
  %21 = xla_tuple %v20
  %s22 = scalar_lea.vmem %s1, 32
  %23 = vst [vmem:[%s22] sm:$0xff] %v20
  %s24 = scalar_lea.vmem %s0, 48
  %v25 = vld [vmem:[%s24] sm:$0xff]
  %26 = xla_tuple %v25
  %27 = xla_tuple %26
  %v28 = vxor.u32 %v25, 2147483648
  %29 = xla_tuple %v28
  %s30 = scalar_lea.vmem %s1, 48
  %31 = vst [vmem:[%s30] sm:$0xff] %v28
  %s32 = scalar_lea.vmem %s0, 64
  %v33 = vld [vmem:[%s32] sm:$0xff]
  %34 = xla_tuple %v33
  %35 = xla_tuple %34
  %v36 = vxor.u32 %v33, 2147483648
  %37 = xla_tuple %v36
  %s38 = scalar_lea.vmem %s1, 64
  %39 = vst [vmem:[%s38] sm:$0xff] %v36
  %s40 = scalar_lea.vmem %s0, 80
  %v41 = vld [vmem:[%s40] sm:$0xff]
  %42 = xla_tuple %v41
  %43 = xla_tuple %42
  %v44 = vxor.u32 %v41, 2147483648
  %45 = xla_tuple %v44
  %s46 = scalar_lea.vmem %s1, 80
  %47 = vst [vmem:[%s46] sm:$0xff] %v44
  %s48 = scalar_lea.vmem %s0, 96
  %v49 = vld [vmem:[%s48] sm:$0xff]
  %50 = xla_tuple %v49
  %51 = xla_tuple %50
  %v52 = vxor.u32 %v49, 2147483648
  %53 = xla_tuple %v52
  %s54 = scalar_lea.vmem %s1, 96
  %55 = vst [vmem:[%s54] sm:$0xff] %v52
  %s56 = scalar_lea.vmem %s0, 112
  %v57 = vld [vmem:[%s56] sm:$0xff]
  %58 = xla_tuple %v57
  %59 = xla_tuple %58
  %v60 = vxor.u32 %v57, 2147483648
  %61 = xla_tuple %v60
  %s62 = scalar_lea.vmem %s1, 112
  %63 = vst [vmem:[%s62] sm:$0xff] %v60
  %s64 = scalar_lea.vmem %s0, 128
  %v65 = vld [vmem:[%s64] sm:$0xff]
  %66 = xla_tuple %v65
  %67 = xla_tuple %66
  %v68 = vxor.u32 %v65, 2147483648
  %69 = xla_tuple %v68
  %s70 = scalar_lea.vmem %s1, 128
  %71 = vst [vmem:[%s70] sm:$0xff] %v68
  %s72 = scalar_lea.vmem %s0, 144
  %v73 = vld [vmem:[%s72] sm:$0xff]
  %74 = xla_tuple %v73
  %75 = xla_tuple %74
  %v76 = vxor.u32 %v73, 2147483648
  %77 = xla_tuple %v76
  %s78 = scalar_lea.vmem %s1, 144
  %79 = vst [vmem:[%s78] sm:$0xff] %v76
  %s80 = scalar_lea.vmem %s0, 160
  %v81 = vld [vmem:[%s80] sm:$0xff]
  %82 = xla_tuple %v81
  %83 = xla_tuple %82
  %v84 = vxor.u32 %v81, 2147483648
  %85 = xla_tuple %v84
  %s86 = scalar_lea.vmem %s1, 160
  %87 = vst [vmem:[%s86] sm:$0xff] %v84
  %s88 = scalar_lea.vmem %s0, 176
  %v89 = vld [vmem:[%s88] sm:$0xff]
  %90 = xla_tuple %v89
  %91 = xla_tuple %90
  %v92 = vxor.u32 %v89, 2147483648
  %93 = xla_tuple %v92
  %s94 = scalar_lea.vmem %s1, 176
  %95 = vst [vmem:[%s94] sm:$0xff] %v92
  %s96 = scalar_lea.vmem %s0, 192
  %v97 = vld [vmem:[%s96] sm:$0xff]
  %98 = xla_tuple %v97
  %99 = xla_tuple %98
  %v100 = vxor.u32 %v97, 2147483648
  %101 = xla_tuple %v100
  %s102 = scalar_lea.vmem %s1, 192
  %103 = vst [vmem:[%s102] sm:$0xff] %v100
  %s104 = scalar_lea.vmem %s0, 208
  %v105 = vld [vmem:[%s104] sm:$0xff]
  %106 = xla_tuple %v105
  %107 = xla_tuple %106
  %v108 = vxor.u32 %v105, 2147483648
  %109 = xla_tuple %v108
  %s110 = scalar_lea.vmem %s1, 208
  %111 = vst [vmem:[%s110] sm:$0xff] %v108
  %s112 = scalar_lea.vmem %s0, 224
  %v113 = vld [vmem:[%s112] sm:$0xff]
  %114 = xla_tuple %v113
  %115 = xla_tuple %114
  %v116 = vxor.u32 %v113, 2147483648
  %117 = xla_tuple %v116
  %s118 = scalar_lea.vmem %s1, 224
  %119 = vst [vmem:[%s118] sm:$0xff] %v116
  %s120 = scalar_lea.vmem %s0, 240
  %v121 = vld [vmem:[%s120] sm:$0xff]
  %122 = xla_tuple %v121
  %123 = xla_tuple %122
  %v124 = vxor.u32 %v121, 2147483648
  %125 = xla_tuple %v124
  %s126 = scalar_lea.vmem %s1, 240
  %127 = vst [vmem:[%s126] sm:$0xff] %v124
  %s128 = scalar_lea.vmem %s0, 256
  %v129 = vld [vmem:[%s128] sm:$0xff]
  %130 = xla_tuple %v129
  %131 = xla_tuple %130
  %v132 = vxor.u32 %v129, 2147483648
  %133 = xla_tuple %v132
  %s134 = scalar_lea.vmem %s1, 256
  %135 = vst [vmem:[%s134] sm:$0xff] %v132
  %s136 = scalar_lea.vmem %s0, 272
  %v137 = vld [vmem:[%s136] sm:$0xff]
  %138 = xla_tuple %v137
  %139 = xla_tuple %138
  %v140 = vxor.u32 %v137, 2147483648
  %141 = xla_tuple %v140
  %s142 = scalar_lea.vmem %s1, 272
  %143 = vst [vmem:[%s142] sm:$0xff] %v140
  %s144 = scalar_lea.vmem %s0, 288
  %v145 = vld [vmem:[%s144] sm:$0xff]
  %146 = xla_tuple %v145
  %147 = xla_tuple %146
  %v148 = vxor.u32 %v145, 2147483648
  %149 = xla_tuple %v148
  %s150 = scalar_lea.vmem %s1, 288
  %151 = vst [vmem:[%s150] sm:$0xff] %v148
  %s152 = scalar_lea.vmem %s0, 304
  %v153 = vld [vmem:[%s152] sm:$0xff]
  %154 = xla_tuple %v153
  %155 = xla_tuple %154
  %v156 = vxor.u32 %v153, 2147483648
  %157 = xla_tuple %v156
  %s158 = scalar_lea.vmem %s1, 304
  %159 = vst [vmem:[%s158] sm:$0xff] %v156
  %s160 = scalar_lea.vmem %s0, 320
  %v161 = vld [vmem:[%s160] sm:$0xff]
  %162 = xla_tuple %v161
  %163 = xla_tuple %162
  %v164 = vxor.u32 %v161, 2147483648
  %165 = xla_tuple %v164
  %s166 = scalar_lea.vmem %s1, 320
  %167 = vst [vmem:[%s166] sm:$0xff] %v164
  %s168 = scalar_lea.vmem %s0, 336
  %v169 = vld [vmem:[%s168] sm:$0xff]
  %170 = xla_tuple %v169
  %171 = xla_tuple %170
  %v172 = vxor.u32 %v169, 2147483648
  %173 = xla_tuple %v172
  %s174 = scalar_lea.vmem %s1, 336
  %175 = vst [vmem:[%s174] sm:$0xff] %v172
  %s176 = scalar_lea.vmem %s0, 352
  %v177 = vld [vmem:[%s176] sm:$0xff]
  %178 = xla_tuple %v177
  %179 = xla_tuple %178
  %v180 = vxor.u32 %v177, 2147483648
  %181 = xla_tuple %v180
  %s182 = scalar_lea.vmem %s1, 352
  %183 = vst [vmem:[%s182] sm:$0xff] %v180
  %s184 = scalar_lea.vmem %s0, 368
  %v185 = vld [vmem:[%s184] sm:$0xff]
  %186 = xla_tuple %v185
  %187 = xla_tuple %186
  %v188 = vxor.u32 %v185, 2147483648
  %189 = xla_tuple %v188
  %s190 = scalar_lea.vmem %s1, 368
  %191 = vst [vmem:[%s190] sm:$0xff] %v188
  %s192 = scalar_lea.vmem %s0, 384
  %v193 = vld [vmem:[%s192] sm:$0xff]
  %194 = xla_tuple %v193
  %195 = xla_tuple %194
  %v196 = vxor.u32 %v193, 2147483648
  %197 = xla_tuple %v196
  %s198 = scalar_lea.vmem %s1, 384
  %199 = vst [vmem:[%s198] sm:$0xff] %v196
  %s200 = scalar_lea.vmem %s0, 400
  %v201 = vld [vmem:[%s200] sm:$0xff]
  %202 = xla_tuple %v201
  %203 = xla_tuple %202
  %v204 = vxor.u32 %v201, 2147483648
  %205 = xla_tuple %v204
  %s206 = scalar_lea.vmem %s1, 400
  %207 = vst [vmem:[%s206] sm:$0xff] %v204
  %s208 = scalar_lea.vmem %s0, 416
  %v209 = vld [vmem:[%s208] sm:$0xff]
  %210 = xla_tuple %v209
  %211 = xla_tuple %210
  %v212 = vxor.u32 %v209, 2147483648
  %213 = xla_tuple %v212
  %s214 = scalar_lea.vmem %s1, 416
  %215 = vst [vmem:[%s214] sm:$0xff] %v212
  %s216 = scalar_lea.vmem %s0, 432
  %v217 = vld [vmem:[%s216] sm:$0xff]
  %218 = xla_tuple %v217
  %219 = xla_tuple %218
  %v220 = vxor.u32 %v217, 2147483648
  %221 = xla_tuple %v220
  %s222 = scalar_lea.vmem %s1, 432
  %223 = vst [vmem:[%s222] sm:$0xff] %v220
  %s224 = scalar_lea.vmem %s0, 448
  %v225 = vld [vmem:[%s224] sm:$0xff]
  %226 = xla_tuple %v225
  %227 = xla_tuple %226
  %v228 = vxor.u32 %v225, 2147483648
  %229 = xla_tuple %v228
  %s230 = scalar_lea.vmem %s1, 448
  %231 = vst [vmem:[%s230] sm:$0xff] %v228
  %s232 = scalar_lea.vmem %s0, 464
  %v233 = vld [vmem:[%s232] sm:$0xff]
  %234 = xla_tuple %v233
  %235 = xla_tuple %234
  %v236 = vxor.u32 %v233, 2147483648
  %237 = xla_tuple %v236
  %s238 = scalar_lea.vmem %s1, 464
  %239 = vst [vmem:[%s238] sm:$0xff] %v236
  %s240 = scalar_lea.vmem %s0, 480
  %v241 = vld [vmem:[%s240] sm:$0xff]
  %242 = xla_tuple %v241
  %243 = xla_tuple %242
  %v244 = vxor.u32 %v241, 2147483648
  %245 = xla_tuple %v244
  %s246 = scalar_lea.vmem %s1, 480
  %247 = vst [vmem:[%s246] sm:$0xff] %v244
  %s248 = scalar_lea.vmem %s0, 496
  %v249 = vld [vmem:[%s248] sm:$0xff]
  %250 = xla_tuple %v249
  %251 = xla_tuple %250
  %v252 = vxor.u32 %v249, 2147483648
  %253 = xla_tuple %v252
  %s254 = scalar_lea.vmem %s1, 496
  %255 = vst [vmem:[%s254] sm:$0xff] %v252
  %s256 = scalar_lea.vmem %s0, 8
  %v257 = vld [vmem:[%s256] sm:$0xff]
  %258 = xla_tuple %v257
  %259 = xla_tuple %258
  %v260 = vxor.u32 %v257, 2147483648
  %261 = xla_tuple %v260
  %s262 = scalar_lea.vmem %s1, 8
  %263 = vst [vmem:[%s262] sm:$0xff] %v260
  %s264 = scalar_lea.vmem %s0, 24
  %v265 = vld [vmem:[%s264] sm:$0xff]
  %266 = xla_tuple %v265
  %267 = xla_tuple %266
  %v268 = vxor.u32 %v265, 2147483648
  %269 = xla_tuple %v268
  %s270 = scalar_lea.vmem %s1, 24
  %271 = vst [vmem:[%s270] sm:$0xff] %v268
  %s272 = scalar_lea.vmem %s0, 40
  %v273 = vld [vmem:[%s272] sm:$0xff]
  %274 = xla_tuple %v273
  %275 = xla_tuple %274
  %v276 = vxor.u32 %v273, 2147483648
  %277 = xla_tuple %v276
  %s278 = scalar_lea.vmem %s1, 40
  %279 = vst [vmem:[%s278] sm:$0xff] %v276
  %s280 = scalar_lea.vmem %s0, 56
  %v281 = vld [vmem:[%s280] sm:$0xff]
  %282 = xla_tuple %v281
  %283 = xla_tuple %282
  %v284 = vxor.u32 %v281, 2147483648
  %285 = xla_tuple %v284
  %s286 = scalar_lea.vmem %s1, 56
  %287 = vst [vmem:[%s286] sm:$0xff] %v284
  %s288 = scalar_lea.vmem %s0, 72
  %v289 = vld [vmem:[%s288] sm:$0xff]
  %290 = xla_tuple %v289
  %291 = xla_tuple %290
  %v292 = vxor.u32 %v289, 2147483648
  %293 = xla_tuple %v292
  %s294 = scalar_lea.vmem %s1, 72
  %295 = vst [vmem:[%s294] sm:$0xff] %v292
  %s296 = scalar_lea.vmem %s0, 88
  %v297 = vld [vmem:[%s296] sm:$0xff]
  %298 = xla_tuple %v297
  %299 = xla_tuple %298
  %v300 = vxor.u32 %v297, 2147483648
  %301 = xla_tuple %v300
  %s302 = scalar_lea.vmem %s1, 88
  %303 = vst [vmem:[%s302] sm:$0xff] %v300
  %s304 = scalar_lea.vmem %s0, 104
  %v305 = vld [vmem:[%s304] sm:$0xff]
  %306 = xla_tuple %v305
  %307 = xla_tuple %306
  %v308 = vxor.u32 %v305, 2147483648
  %309 = xla_tuple %v308
  %s310 = scalar_lea.vmem %s1, 104
  %311 = vst [vmem:[%s310] sm:$0xff] %v308
  %s312 = scalar_lea.vmem %s0, 120
  %v313 = vld [vmem:[%s312] sm:$0xff]
  %314 = xla_tuple %v313
  %315 = xla_tuple %314
  %v316 = vxor.u32 %v313, 2147483648
  %317 = xla_tuple %v316
  %s318 = scalar_lea.vmem %s1, 120
  %319 = vst [vmem:[%s318] sm:$0xff] %v316
  %s320 = scalar_lea.vmem %s0, 136
  %v321 = vld [vmem:[%s320] sm:$0xff]
  %322 = xla_tuple %v321
  %323 = xla_tuple %322
  %v324 = vxor.u32 %v321, 2147483648
  %325 = xla_tuple %v324
  %s326 = scalar_lea.vmem %s1, 136
  %327 = vst [vmem:[%s326] sm:$0xff] %v324
  %s328 = scalar_lea.vmem %s0, 152
  %v329 = vld [vmem:[%s328] sm:$0xff]
  %330 = xla_tuple %v329
  %331 = xla_tuple %330
  %v332 = vxor.u32 %v329, 2147483648
  %333 = xla_tuple %v332
  %s334 = scalar_lea.vmem %s1, 152
  %335 = vst [vmem:[%s334] sm:$0xff] %v332
  %s336 = scalar_lea.vmem %s0, 168
  %v337 = vld [vmem:[%s336] sm:$0xff]
  %338 = xla_tuple %v337
  %339 = xla_tuple %338
  %v340 = vxor.u32 %v337, 2147483648
  %341 = xla_tuple %v340
  %s342 = scalar_lea.vmem %s1, 168
  %343 = vst [vmem:[%s342] sm:$0xff] %v340
  %s344 = scalar_lea.vmem %s0, 184
  %v345 = vld [vmem:[%s344] sm:$0xff]
  %346 = xla_tuple %v345
  %347 = xla_tuple %346
  %v348 = vxor.u32 %v345, 2147483648
  %349 = xla_tuple %v348
  %s350 = scalar_lea.vmem %s1, 184
  %351 = vst [vmem:[%s350] sm:$0xff] %v348
  %s352 = scalar_lea.vmem %s0, 200
  %v353 = vld [vmem:[%s352] sm:$0xff]
  %354 = xla_tuple %v353
  %355 = xla_tuple %354
  %v356 = vxor.u32 %v353, 2147483648
  %357 = xla_tuple %v356
  %s358 = scalar_lea.vmem %s1, 200
  %359 = vst [vmem:[%s358] sm:$0xff] %v356
  %s360 = scalar_lea.vmem %s0, 216
  %v361 = vld [vmem:[%s360] sm:$0xff]
  %362 = xla_tuple %v361
  %363 = xla_tuple %362
  %v364 = vxor.u32 %v361, 2147483648
  %365 = xla_tuple %v364
  %s366 = scalar_lea.vmem %s1, 216
  %367 = vst [vmem:[%s366] sm:$0xff] %v364
  %s368 = scalar_lea.vmem %s0, 232
  %v369 = vld [vmem:[%s368] sm:$0xff]
  %370 = xla_tuple %v369
  %371 = xla_tuple %370
  %v372 = vxor.u32 %v369, 2147483648
  %373 = xla_tuple %v372
  %s374 = scalar_lea.vmem %s1, 232
  %375 = vst [vmem:[%s374] sm:$0xff] %v372
  %s376 = scalar_lea.vmem %s0, 248
  %v377 = vld [vmem:[%s376] sm:$0xff]
  %378 = xla_tuple %v377
  %379 = xla_tuple %378
  %v380 = vxor.u32 %v377, 2147483648
  %381 = xla_tuple %v380
  %s382 = scalar_lea.vmem %s1, 248
  %383 = vst [vmem:[%s382] sm:$0xff] %v380
  %s384 = scalar_lea.vmem %s0, 264
  %v385 = vld [vmem:[%s384] sm:$0xff]
  %386 = xla_tuple %v385
  %387 = xla_tuple %386
  %v388 = vxor.u32 %v385, 2147483648
  %389 = xla_tuple %v388
  %s390 = scalar_lea.vmem %s1, 264
  %391 = vst [vmem:[%s390] sm:$0xff] %v388
  %s392 = scalar_lea.vmem %s0, 280
  %v393 = vld [vmem:[%s392] sm:$0xff]
  %394 = xla_tuple %v393
  %395 = xla_tuple %394
  %v396 = vxor.u32 %v393, 2147483648
  %397 = xla_tuple %v396
  %s398 = scalar_lea.vmem %s1, 280
  %399 = vst [vmem:[%s398] sm:$0xff] %v396
  %s400 = scalar_lea.vmem %s0, 296
  %v401 = vld [vmem:[%s400] sm:$0xff]
  %402 = xla_tuple %v401
  %403 = xla_tuple %402
  %v404 = vxor.u32 %v401, 2147483648
  %405 = xla_tuple %v404
  %s406 = scalar_lea.vmem %s1, 296
  %407 = vst [vmem:[%s406] sm:$0xff] %v404
  %s408 = scalar_lea.vmem %s0, 312
  %v409 = vld [vmem:[%s408] sm:$0xff]
  %410 = xla_tuple %v409
  %411 = xla_tuple %410
  %v412 = vxor.u32 %v409, 2147483648
  %413 = xla_tuple %v412
  %s414 = scalar_lea.vmem %s1, 312
  %415 = vst [vmem:[%s414] sm:$0xff] %v412
  %s416 = scalar_lea.vmem %s0, 328
  %v417 = vld [vmem:[%s416] sm:$0xff]
  %418 = xla_tuple %v417
  %419 = xla_tuple %418
  %v420 = vxor.u32 %v417, 2147483648
  %421 = xla_tuple %v420
  %s422 = scalar_lea.vmem %s1, 328
  %423 = vst [vmem:[%s422] sm:$0xff] %v420
  %s424 = scalar_lea.vmem %s0, 344
  %v425 = vld [vmem:[%s424] sm:$0xff]
  %426 = xla_tuple %v425
  %427 = xla_tuple %426
  %v428 = vxor.u32 %v425, 2147483648
  %429 = xla_tuple %v428
  %s430 = scalar_lea.vmem %s1, 344
  %431 = vst [vmem:[%s430] sm:$0xff] %v428
  %s432 = scalar_lea.vmem %s0, 360
  %v433 = vld [vmem:[%s432] sm:$0xff]
  %434 = xla_tuple %v433
  %435 = xla_tuple %434
  %v436 = vxor.u32 %v433, 2147483648
  %437 = xla_tuple %v436
  %s438 = scalar_lea.vmem %s1, 360
  %439 = vst [vmem:[%s438] sm:$0xff] %v436
  %s440 = scalar_lea.vmem %s0, 376
  %v441 = vld [vmem:[%s440] sm:$0xff]
  %442 = xla_tuple %v441
  %443 = xla_tuple %442
  %v444 = vxor.u32 %v441, 2147483648
  %445 = xla_tuple %v444
  %s446 = scalar_lea.vmem %s1, 376
  %447 = vst [vmem:[%s446] sm:$0xff] %v444
  %s448 = scalar_lea.vmem %s0, 392
  %v449 = vld [vmem:[%s448] sm:$0xff]
  %450 = xla_tuple %v449
  %451 = xla_tuple %450
  %v452 = vxor.u32 %v449, 2147483648
  %453 = xla_tuple %v452
  %s454 = scalar_lea.vmem %s1, 392
  %455 = vst [vmem:[%s454] sm:$0xff] %v452
  %s456 = scalar_lea.vmem %s0, 408
  %v457 = vld [vmem:[%s456] sm:$0xff]
  %458 = xla_tuple %v457
  %459 = xla_tuple %458
  %v460 = vxor.u32 %v457, 2147483648
  %461 = xla_tuple %v460
  %s462 = scalar_lea.vmem %s1, 408
  %463 = vst [vmem:[%s462] sm:$0xff] %v460
  %s464 = scalar_lea.vmem %s0, 424
  %v465 = vld [vmem:[%s464] sm:$0xff]
  %466 = xla_tuple %v465
  %467 = xla_tuple %466
  %v468 = vxor.u32 %v465, 2147483648
  %469 = xla_tuple %v468
  %s470 = scalar_lea.vmem %s1, 424
  %471 = vst [vmem:[%s470] sm:$0xff] %v468
  %s472 = scalar_lea.vmem %s0, 440
  %v473 = vld [vmem:[%s472] sm:$0xff]
  %474 = xla_tuple %v473
  %475 = xla_tuple %474
  %v476 = vxor.u32 %v473, 2147483648
  %477 = xla_tuple %v476
  %s478 = scalar_lea.vmem %s1, 440
  %479 = vst [vmem:[%s478] sm:$0xff] %v476
  %s480 = scalar_lea.vmem %s0, 456
  %v481 = vld [vmem:[%s480] sm:$0xff]
  %482 = xla_tuple %v481
  %483 = xla_tuple %482
  %v484 = vxor.u32 %v481, 2147483648
  %485 = xla_tuple %v484
  %s486 = scalar_lea.vmem %s1, 456
  %487 = vst [vmem:[%s486] sm:$0xff] %v484
  %s488 = scalar_lea.vmem %s0, 472
  %v489 = vld [vmem:[%s488] sm:$0xff]
  %490 = xla_tuple %v489
  %491 = xla_tuple %490
  %v492 = vxor.u32 %v489, 2147483648
  %493 = xla_tuple %v492
  %s494 = scalar_lea.vmem %s1, 472
  %495 = vst [vmem:[%s494] sm:$0xff] %v492
  %s496 = scalar_lea.vmem %s0, 488
  %v497 = vld [vmem:[%s496] sm:$0xff]
  %498 = xla_tuple %v497
  %499 = xla_tuple %498
  %v500 = vxor.u32 %v497, 2147483648
  %501 = xla_tuple %v500
  %s502 = scalar_lea.vmem %s1, 488
  %503 = vst [vmem:[%s502] sm:$0xff] %v500
  %s504 = scalar_lea.vmem %s0, 504
  %v505 = vld [vmem:[%s504] sm:$0xff]
  %506 = xla_tuple %v505
  %507 = xla_tuple %506
  %v508 = vxor.u32 %v505, 2147483648
  %509 = xla_tuple %v508
  %s510 = scalar_lea.vmem %s1, 504
  %511 = vst [vmem:[%s510] sm:$0xff] %v508

// kernel: gravnet_block_forward.8
$region0: #{gravnet_block_forward.8}
  #allocation0 [shape = 'u32[]', space=smem, size = 0x4, offset = 0x4, fixed_abs, tag = 'smem constant byte address 0x4 - core index']
  #allocation1 [shape = 'u32[72,128]{1,0:T(1,128)}', space=vmem, size = 0x9000, scoped, tag = 'internal scratch']
  %s0 = inlined_call_operand.vmem [shape: f32[256,256], index: 0, kind: input, shape index: {}, may-alias: {0,1}]
  %s1 = inlined_call_operand.vmem [shape: f32[256,256], index: 1, kind: input, shape index: {}, may-alias: {0,1}]
  %s2 = inlined_call_operand.vmem [shape: f32[1,256], index: 2, kind: input, shape index: {}]
  %s3 = inlined_call_operand.vmem [shape: f32[256,256], index: 3, kind: output, shape index: {}]
  %s4 = sld [smem:[#allocation0]]
  $region155: #{gravnet_block_forward.8} parent=0
    _
  %s6 = ssub.s32 1, %s4
  %s7 = scalar_select 0, %s6, %s4
  $region1: #{gravnet_block_forward.8} parent=0
    #allocation2 [shape = 'u8[131072]{0}', space=vmem, size = 0x20000, scoped, tag = 'input window, operand 0']
    #allocation3 [shape = 'u8[131072]{0}', space=vmem, size = 0x20000, scoped, tag = 'input window, operand 1']
    #allocation4 [shape = 'u8[131072]{0}', space=vmem, size = 0x20000, scoped, tag = 'output window, operand 0']
    loop: start=0, step=1, limit=6
    $region2: #{gravnet_block_forward.8} parent=1 // loop_pre_header
      _
    $region3: #{gravnet_block_forward.8} parent=1 // loop_header
      %s9 = sphi 0, %s13
      %p10 = scmp.ge.s32.totalorder %s9, 6
      %s16 = sphi 0, %s28
      %s17 = sphi 0, %s24
      %s18 = sphi 0, %s16
      %s19 = sphi 0, %s17
      %s20 = sphi 0, %s18
      %s21 = sphi 0, %s19
      %s31 = sphi 0, %s33
      %s34 = sphi 0, %s31
      %s35 = sphi 0, %s34
      %s51 = sphi 0, %s35
      %s57 = sphi 0, %s59
      %s60 = sphi 0, %s57
      %s61 = sphi 0, %s60
      %s77 = sphi 0, %s61
      %s83 = sphi 0, %s85
      %s86 = sphi 0, %s83
      %s87 = sphi 0, %s86
      %s103 = sphi 0, %s87
      %s111 = sphi 0, %s113
      %s114 = sphi 0, %s111
      %s115 = sphi 0, %s114
      %s131 = sphi 0, %s115
    $region4: #{gravnet_block_forward.8} parent=1 // loop_header_branch
      %12 = sbr.rel (%p10) target = $region8
    $region5: #{gravnet_block_forward.8} parent=1 // loop_body
      %s14 = ssub.s32 %s9, 1
      %s15 = ssub.s32 %s9, 2
      %s22 = sadd.s32 1, %s17
      %p23 = scmp.ge.s32.totalorder %s22, 2
      %s24 = scalar_select %p23, 0, %s22
      %s25 = sadd.s32 1, %s16
      %s26 = scalar_select %p23, %s25, %s16
      %p27 = scmp.ge.s32.totalorder %s26, 2
      %s28 = scalar_select %p27, 0, %s26
      %s29 = ssub.s32 %s16, %s28
      %p30 = scmp.eq.s32.totalorder %s29, 0
      %s32 = sadd.s32 %s31, 1
      %s33 = scalar_select %p30, %s31, %s32
      %p36 = pneg %p30
      %p37 = scmp.eq.s32.totalorder %s9, 3
      %p38 = por %p36, %p37
      %p39 = scmp.ne.s32.totalorder %s31, %s34
      %p40 = scmp.eq.s32.totalorder %s9, 0
      %p41 = por %p39, %p40
      %p42 = scmp.ne.s32.totalorder %s31, %s34
      %p43 = scmp.eq.s32.totalorder %s14, 3
      %p44 = por %p42, %p43
      %p45 = scmp.ne.s32.totalorder %s34, %s35
      %p46 = scmp.eq.s32.totalorder %s14, 0
      %p47 = por %p45, %p46
      %p48 = scmp.ne.s32.totalorder %s34, %s35
      %p49 = scmp.eq.s32.totalorder %s15, 3
      %p50 = por %p48, %p49
      %p52 = scmp.ne.s32.totalorder %s35, %s51
      %p53 = scmp.eq.s32.totalorder %s15, 0
      %p54 = por %p52, %p53
      %s55 = ssub.s32 %s17, %s24
      %p56 = scmp.eq.s32.totalorder %s55, 0
      %s58 = sadd.s32 %s57, 1
      %s59 = scalar_select %p56, %s57, %s58
      %p62 = pneg %p56
      %p63 = scmp.eq.s32.totalorder %s9, 3
      %p64 = por %p62, %p63
      %p65 = scmp.ne.s32.totalorder %s57, %s60
      %p66 = scmp.eq.s32.totalorder %s9, 0
      %p67 = por %p65, %p66
      %p68 = scmp.ne.s32.totalorder %s57, %s60
      %p69 = scmp.eq.s32.totalorder %s14, 3
      %p70 = por %p68, %p69
      %p71 = scmp.ne.s32.totalorder %s60, %s61
      %p72 = scmp.eq.s32.totalorder %s14, 0
      %p73 = por %p71, %p72
      %p74 = scmp.ne.s32.totalorder %s60, %s61
      %p75 = scmp.eq.s32.totalorder %s15, 3
      %p76 = por %p74, %p75
      %p78 = scmp.ne.s32.totalorder %s61, %s77
      %p79 = scmp.eq.s32.totalorder %s15, 0
      %p80 = por %p78, %p79
      %s81 = ssub.s32 %s17, %s24
      %p82 = scmp.eq.s32.totalorder %s81, 0
      %s84 = sadd.s32 %s83, 1
      %s85 = scalar_select %p82, %s83, %s84
      %p88 = pneg %p82
      %p89 = scmp.eq.s32.totalorder %s9, 3
      %p90 = por %p88, %p89
      %p91 = scmp.ne.s32.totalorder %s83, %s86
      %p92 = scmp.eq.s32.totalorder %s9, 0
      %p93 = por %p91, %p92
      %p94 = scmp.ne.s32.totalorder %s83, %s86
      %p95 = scmp.eq.s32.totalorder %s14, 3
      %p96 = por %p94, %p95
      %p97 = scmp.ne.s32.totalorder %s86, %s87
      %p98 = scmp.eq.s32.totalorder %s14, 0
      %p99 = por %p97, %p98
      %p100 = scmp.ne.s32.totalorder %s86, %s87
      %p101 = scmp.eq.s32.totalorder %s15, 3
      %p102 = por %p100, %p101
      %p104 = scmp.ne.s32.totalorder %s87, %s103
      %p105 = scmp.eq.s32.totalorder %s15, 0
      %p106 = por %p104, %p105
      %s107 = ssub.s32 %s16, %s28
      %s108 = ssub.s32 %s17, %s24
      %s109 = sor.u32 %s107, %s108
      %p110 = scmp.eq.s32.totalorder %s109, 0
      %s112 = sadd.s32 %s111, 1
      %s113 = scalar_select %p110, %s111, %s112
      %p116 = pneg %p110
      %p117 = scmp.eq.s32.totalorder %s9, 3
      %p118 = por %p116, %p117
      %p119 = scmp.ne.s32.totalorder %s111, %s114
      %p120 = scmp.eq.s32.totalorder %s9, 0
      %p121 = por %p119, %p120
      %p122 = scmp.ne.s32.totalorder %s111, %s114
      %p123 = scmp.eq.s32.totalorder %s14, 3
      %p124 = por %p122, %p123
      %p125 = scmp.ne.s32.totalorder %s114, %s115
      %p126 = scmp.eq.s32.totalorder %s14, 0
      %p127 = por %p125, %p126
      %p128 = scmp.ne.s32.totalorder %s114, %s115
      %p129 = scmp.eq.s32.totalorder %s15, 3
      %p130 = por %p128, %p129
      %p132 = scmp.ne.s32.totalorder %s115, %s131
      %p133 = scmp.eq.s32.totalorder %s15, 0
      %p134 = por %p132, %p133
      %p135 = scmp.le.s32.totalorder 1, %s9
      %p136 = scmp.lt.s32.totalorder %s9, 5
      %p137 = pnand %p135, %p136
      %p138 = pneg %p137
      // Predicated region
      $region9: #{gravnet_block_forward.8} parent=5 // pred_check
        _
      $region10: #{gravnet_block_forward.8} parent=5 // pred_check_branch
        %140 = sbr.rel (%p137) target = $region12
      $region11: #{gravnet_block_forward.8} parent=5 // pred_region
        %s141 = ssub.s32 %s9, 1
      $region12: #{gravnet_block_forward.8} parent=5 // pred_fallthru
        _
      %p142 = scmp.lt.s32.totalorder %s9, 4
      // Predicated region
      $region13: #{gravnet_block_forward.8} parent=5 // pred_check
        %p143 = pneg %p142
      $region14: #{gravnet_block_forward.8} parent=5 // pred_check_branch
        %145 = sbr.rel (%p143) target = $region16
      $region15: #{gravnet_block_forward.8} parent=5 // pred_region
        // Predicated region
        $region17: #{gravnet_block_forward.8} parent=15 // pred_check
          %p146 = pneg %p41
        $region18: #{gravnet_block_forward.8} parent=15 // pred_check_branch
          %148 = sbr.rel (%p146) target = $region20
        $region19: #{gravnet_block_forward.8} parent=15 // pred_region
          %s149 = sand.u32 %s31, 1
          %s150 = sand.u32 %s31, 1
          %s151 = smul.addr %s150, 128
          %s152 = scalar_lea.vmem [#allocation2], %s151
          %s153 = smul.u32 16, %s16
          %s154 = smul.addr %s153, 2
          %s155 = sadd.s32 1, %s154
          %s156 = smul.addr %s155, 8
          %s157 = scalar_lea.vmem %s0, %s156
          // Predicated region
          $region21: #{gravnet_block_forward.8} parent=19 // pred_check
            _
          $region22: #{gravnet_block_forward.8} parent=19 // pred_check_branch
            %159 = sbr.rel (0) target = $region24
          $region23: #{gravnet_block_forward.8} parent=19 // pred_region
            // Predicated region
            $region25: #{gravnet_block_forward.8} parent=23 // pred_check
              _
            $region26: #{gravnet_block_forward.8} parent=23 // pred_check_branch
              %161 = sbr.rel (0) target = $region28
            $region27: #{gravnet_block_forward.8} parent=23 // pred_region
              // Predicated region
              $region40: #{gravnet_block_forward.8} parent=27 // pred_check
                _
              $region41: #{gravnet_block_forward.8} parent=27 // pred_check_branch
                %207 = sbr.rel (0) target = $region43
              $region42: #{gravnet_block_forward.8} parent=27 // pred_region
                loop: start=0, step=1, limit=1
                $region44: #{gravnet_block_forward.8} parent=42 // loop_pre_header
                  _
                $region45: #{gravnet_block_forward.8} parent=42 // loop_header
                  %s209 = sphi 0, %s213
                  %p210 = scmp.ge.s32.totalorder %s209, 1
                  %s214 = sphi %s157, %s157
                  %s215 = sphi %s152, %s152
                $region46: #{gravnet_block_forward.8} parent=42 // loop_header_branch
                  %212 = sbr.rel (%p210) target = $region50
                $region47: #{gravnet_block_forward.8} parent=42 // loop_body
                  %v216 = vld [vmem:[%s214] sm:$0xff]
                  %217 = vst [vmem:[%s215] sm:$0xff] %v216
                  %v218 = vld [vmem:[%s214 + $0x10] sm:$0xff]
                  %219 = vst [vmem:[%s215 + $0x8] sm:$0xff] %v218
                  %v220 = vld [vmem:[%s214 + $0x20] sm:$0xff]
                  %221 = vst [vmem:[%s215 + $0x10] sm:$0xff] %v220
                  %v222 = vld [vmem:[%s214 + $0x30] sm:$0xff]
                  %223 = vst [vmem:[%s215 + $0x18] sm:$0xff] %v222
                  %v224 = vld [vmem:[%s214 + $0x40] sm:$0xff]
                  %225 = vst [vmem:[%s215 + $0x20] sm:$0xff] %v224
                  %v226 = vld [vmem:[%s214 + $0x50] sm:$0xff]
                  %227 = vst [vmem:[%s215 + $0x28] sm:$0xff] %v226
                  %v228 = vld [vmem:[%s214 + $0x60] sm:$0xff]
                  %229 = vst [vmem:[%s215 + $0x30] sm:$0xff] %v228
                  %v230 = vld [vmem:[%s214 + $0x70] sm:$0xff]
                  %231 = vst [vmem:[%s215 + $0x38] sm:$0xff] %v230
                  %v232 = vld [vmem:[%s214 + $0x80] sm:$0xff]
                  %233 = vst [vmem:[%s215 + $0x40] sm:$0xff] %v232
                  %v234 = vld [vmem:[%s214 + $0x90] sm:$0xff]
                  %235 = vst [vmem:[%s215 + $0x48] sm:$0xff] %v234
                  %v236 = vld [vmem:[%s214 + $0xa0] sm:$0xff]
                  %237 = vst [vmem:[%s215 + $0x50] sm:$0xff] %v236
                  %v238 = vld [vmem:[%s214 + $0xb0] sm:$0xff]
                  %239 = vst [vmem:[%s215 + $0x58] sm:$0xff] %v238
                  %v240 = vld [vmem:[%s214 + $0xc0] sm:$0xff]
                  %241 = vst [vmem:[%s215 + $0x60] sm:$0xff] %v240
                  %v242 = vld [vmem:[%s214 + $0xd0] sm:$0xff]
                  %243 = vst [vmem:[%s215 + $0x68] sm:$0xff] %v242
                  %v244 = vld [vmem:[%s214 + $0xe0] sm:$0xff]
                  %245 = vst [vmem:[%s215 + $0x70] sm:$0xff] %v244
                  %v246 = vld [vmem:[%s214 + $0xf0] sm:$0xff]
                  %247 = vst [vmem:[%s215 + $0x78] sm:$0xff] %v246
                $region48: #{gravnet_block_forward.8} parent=42 // loop_footer
                  %s213 = sadd.s32 1, %s209
                $region49: #{gravnet_block_forward.8} parent=42 // loop_footer_branch
                  %208 = sbr.rel target = $region45
                $region50: #{gravnet_block_forward.8} parent=42 // loop_exit
                  _
              $region43: #{gravnet_block_forward.8} parent=27 // pred_fallthru
                _
              // Predicated region
              $region51: #{gravnet_block_forward.8} parent=27 // pred_check
                _
              $region52: #{gravnet_block_forward.8} parent=27 // pred_check_branch
                %249 = sbr.rel target = $region54
              $region53: #{gravnet_block_forward.8} parent=27 // pred_region
                _
              $region54: #{gravnet_block_forward.8} parent=27 // pred_fallthru
                _
            $region28: #{gravnet_block_forward.8} parent=23 // pred_fallthru
              _
            // Predicated region
            $region29: #{gravnet_block_forward.8} parent=23 // pred_check
              _
            $region30: #{gravnet_block_forward.8} parent=23 // pred_check_branch
              %163 = sbr.rel target = $region32
            $region31: #{gravnet_block_forward.8} parent=23 // pred_region
              %s165 = ssub.s32 256, 1
              loop: start=0, step=1, limit=1
              $region33: #{gravnet_block_forward.8} parent=31 // loop_pre_header
                _
              $region34: #{gravnet_block_forward.8} parent=31 // loop_header
                %s167 = sphi 0, %s171
                %p168 = scmp.ge.s32.totalorder %s167, 1
                %s172 = sphi %s157, %s157
                %s173 = sphi %s152, %s152
              $region35: #{gravnet_block_forward.8} parent=31 // loop_header_branch
                %170 = sbr.rel (%p168) target = $region39
              $region36: #{gravnet_block_forward.8} parent=31 // loop_body
                %v174 = vld [vmem:[%s172] sm:%s165]
                %175 = vst [vmem:[%s173] sm:%s165] %v174
                %v176 = vld [vmem:[%s172 + $0x10] sm:%s165]
                %177 = vst [vmem:[%s173 + $0x8] sm:%s165] %v176
                %v178 = vld [vmem:[%s172 + $0x20] sm:%s165]
                %179 = vst [vmem:[%s173 + $0x10] sm:%s165] %v178
                %v180 = vld [vmem:[%s172 + $0x30] sm:%s165]
                %181 = vst [vmem:[%s173 + $0x18] sm:%s165] %v180
                %v182 = vld [vmem:[%s172 + $0x40] sm:%s165]
                %183 = vst [vmem:[%s173 + $0x20] sm:%s165] %v182
                %v184 = vld [vmem:[%s172 + $0x50] sm:%s165]
                %185 = vst [vmem:[%s173 + $0x28] sm:%s165] %v184
                %v186 = vld [vmem:[%s172 + $0x60] sm:%s165]
                %187 = vst [vmem:[%s173 + $0x30] sm:%s165] %v186
                %v188 = vld [vmem:[%s172 + $0x70] sm:%s165]
                %189 = vst [vmem:[%s173 + $0x38] sm:%s165] %v188
                %v190 = vld [vmem:[%s172 + $0x80] sm:%s165]
                %191 = vst [vmem:[%s173 + $0x40] sm:%s165] %v190
                %v192 = vld [vmem:[%s172 + $0x90] sm:%s165]
                %193 = vst [vmem:[%s173 + $0x48] sm:%s165] %v192
                %v194 = vld [vmem:[%s172 + $0xa0] sm:%s165]
                %195 = vst [vmem:[%s173 + $0x50] sm:%s165] %v194
                %v196 = vld [vmem:[%s172 + $0xb0] sm:%s165]
                %197 = vst [vmem:[%s173 + $0x58] sm:%s165] %v196
                %v198 = vld [vmem:[%s172 + $0xc0] sm:%s165]
                %199 = vst [vmem:[%s173 + $0x60] sm:%s165] %v198
                %v200 = vld [vmem:[%s172 + $0xd0] sm:%s165]
                %201 = vst [vmem:[%s173 + $0x68] sm:%s165] %v200
                %v202 = vld [vmem:[%s172 + $0xe0] sm:%s165]
                %203 = vst [vmem:[%s173 + $0x70] sm:%s165] %v202
                %v204 = vld [vmem:[%s172 + $0xf0] sm:%s165]
                %205 = vst [vmem:[%s173 + $0x78] sm:%s165] %v204
              $region37: #{gravnet_block_forward.8} parent=31 // loop_footer
                %s171 = sadd.s32 1, %s167
              $region38: #{gravnet_block_forward.8} parent=31 // loop_footer_branch
                %166 = sbr.rel target = $region34
              $region39: #{gravnet_block_forward.8} parent=31 // loop_exit
                _
            $region32: #{gravnet_block_forward.8} parent=23 // pred_fallthru
              _
          $region24: #{gravnet_block_forward.8} parent=19 // pred_fallthru
            _
          %250 = vnop
        $region20: #{gravnet_block_forward.8} parent=15 // pred_fallthru
          _
        // Predicated region
        $region55: #{gravnet_block_forward.8} parent=15 // pred_check
          %p251 = pneg %p67
        $region56: #{gravnet_block_forward.8} parent=15 // pred_check_branch
          %253 = sbr.rel (%p251) target = $region58
        $region57: #{gravnet_block_forward.8} parent=15 // pred_region
          %s254 = sand.u32 %s57, 1
          %s255 = sand.u32 %s57, 1
          %s256 = smul.addr %s255, 128
          %s257 = scalar_lea.vmem [#allocation3], %s256
          %s258 = smul.u32 16, %s17
          %s259 = smul.addr %s258, 2
          %s260 = sadd.s32 1, %s259
          %s261 = smul.addr %s260, 8
          %s262 = scalar_lea.vmem %s1, %s261
          // Predicated region
          $region59: #{gravnet_block_forward.8} parent=57 // pred_check
            _
          $region60: #{gravnet_block_forward.8} parent=57 // pred_check_branch
            %264 = sbr.rel (0) target = $region62
          $region61: #{gravnet_block_forward.8} parent=57 // pred_region
            // Predicated region
            $region63: #{gravnet_block_forward.8} parent=61 // pred_check
              _
            $region64: #{gravnet_block_forward.8} parent=61 // pred_check_branch
              %266 = sbr.rel (0) target = $region66
            $region65: #{gravnet_block_forward.8} parent=61 // pred_region
              // Predicated region
              $region78: #{gravnet_block_forward.8} parent=65 // pred_check
                _
              $region79: #{gravnet_block_forward.8} parent=65 // pred_check_branch
                %312 = sbr.rel (0) target = $region81
              $region80: #{gravnet_block_forward.8} parent=65 // pred_region
                loop: start=0, step=1, limit=1
                $region82: #{gravnet_block_forward.8} parent=80 // loop_pre_header
                  _
                $region83: #{gravnet_block_forward.8} parent=80 // loop_header
                  %s314 = sphi 0, %s318
                  %p315 = scmp.ge.s32.totalorder %s314, 1
                  %s319 = sphi %s262, %s262
                  %s320 = sphi %s257, %s257
                $region84: #{gravnet_block_forward.8} parent=80 // loop_header_branch
                  %317 = sbr.rel (%p315) target = $region88
                $region85: #{gravnet_block_forward.8} parent=80 // loop_body
                  %v321 = vld [vmem:[%s319] sm:$0xff]
                  %322 = vst [vmem:[%s320] sm:$0xff] %v321
                  %v323 = vld [vmem:[%s319 + $0x10] sm:$0xff]
                  %324 = vst [vmem:[%s320 + $0x8] sm:$0xff] %v323
                  %v325 = vld [vmem:[%s319 + $0x20] sm:$0xff]
                  %326 = vst [vmem:[%s320 + $0x10] sm:$0xff] %v325
                  %v327 = vld [vmem:[%s319 + $0x30] sm:$0xff]
                  %328 = vst [vmem:[%s320 + $0x18] sm:$0xff] %v327
                  %v329 = vld [vmem:[%s319 + $0x40] sm:$0xff]
                  %330 = vst [vmem:[%s320 + $0x20] sm:$0xff] %v329
                  %v331 = vld [vmem:[%s319 + $0x50] sm:$0xff]
                  %332 = vst [vmem:[%s320 + $0x28] sm:$0xff] %v331
                  %v333 = vld [vmem:[%s319 + $0x60] sm:$0xff]
                  %334 = vst [vmem:[%s320 + $0x30] sm:$0xff] %v333
                  %v335 = vld [vmem:[%s319 + $0x70] sm:$0xff]
                  %336 = vst [vmem:[%s320 + $0x38] sm:$0xff] %v335
                  %v337 = vld [vmem:[%s319 + $0x80] sm:$0xff]
                  %338 = vst [vmem:[%s320 + $0x40] sm:$0xff] %v337
                  %v339 = vld [vmem:[%s319 + $0x90] sm:$0xff]
                  %340 = vst [vmem:[%s320 + $0x48] sm:$0xff] %v339
                  %v341 = vld [vmem:[%s319 + $0xa0] sm:$0xff]
                  %342 = vst [vmem:[%s320 + $0x50] sm:$0xff] %v341
                  %v343 = vld [vmem:[%s319 + $0xb0] sm:$0xff]
                  %344 = vst [vmem:[%s320 + $0x58] sm:$0xff] %v343
                  %v345 = vld [vmem:[%s319 + $0xc0] sm:$0xff]
                  %346 = vst [vmem:[%s320 + $0x60] sm:$0xff] %v345
                  %v347 = vld [vmem:[%s319 + $0xd0] sm:$0xff]
                  %348 = vst [vmem:[%s320 + $0x68] sm:$0xff] %v347
                  %v349 = vld [vmem:[%s319 + $0xe0] sm:$0xff]
                  %350 = vst [vmem:[%s320 + $0x70] sm:$0xff] %v349
                  %v351 = vld [vmem:[%s319 + $0xf0] sm:$0xff]
                  %352 = vst [vmem:[%s320 + $0x78] sm:$0xff] %v351
                $region86: #{gravnet_block_forward.8} parent=80 // loop_footer
                  %s318 = sadd.s32 1, %s314
                $region87: #{gravnet_block_forward.8} parent=80 // loop_footer_branch
                  %313 = sbr.rel target = $region83
                $region88: #{gravnet_block_forward.8} parent=80 // loop_exit
                  _
              $region81: #{gravnet_block_forward.8} parent=65 // pred_fallthru
                _
              // Predicated region
              $region89: #{gravnet_block_forward.8} parent=65 // pred_check
                _
              $region90: #{gravnet_block_forward.8} parent=65 // pred_check_branch
                %354 = sbr.rel target = $region92
              $region91: #{gravnet_block_forward.8} parent=65 // pred_region
                _
              $region92: #{gravnet_block_forward.8} parent=65 // pred_fallthru
                _
            $region66: #{gravnet_block_forward.8} parent=61 // pred_fallthru
              _
            // Predicated region
            $region67: #{gravnet_block_forward.8} parent=61 // pred_check
              _
            $region68: #{gravnet_block_forward.8} parent=61 // pred_check_branch
              %268 = sbr.rel target = $region70
            $region69: #{gravnet_block_forward.8} parent=61 // pred_region
              %s270 = ssub.s32 256, 1
              loop: start=0, step=1, limit=1
              $region71: #{gravnet_block_forward.8} parent=69 // loop_pre_header
                _
              $region72: #{gravnet_block_forward.8} parent=69 // loop_header
                %s272 = sphi 0, %s276
                %p273 = scmp.ge.s32.totalorder %s272, 1
                %s277 = sphi %s262, %s262
                %s278 = sphi %s257, %s257
              $region73: #{gravnet_block_forward.8} parent=69 // loop_header_branch
                %275 = sbr.rel (%p273) target = $region77
              $region74: #{gravnet_block_forward.8} parent=69 // loop_body
                %v279 = vld [vmem:[%s277] sm:%s270]
                %280 = vst [vmem:[%s278] sm:%s270] %v279
                %v281 = vld [vmem:[%s277 + $0x10] sm:%s270]
                %282 = vst [vmem:[%s278 + $0x8] sm:%s270] %v281
                %v283 = vld [vmem:[%s277 + $0x20] sm:%s270]
                %284 = vst [vmem:[%s278 + $0x10] sm:%s270] %v283
                %v285 = vld [vmem:[%s277 + $0x30] sm:%s270]
                %286 = vst [vmem:[%s278 + $0x18] sm:%s270] %v285
                %v287 = vld [vmem:[%s277 + $0x40] sm:%s270]
                %288 = vst [vmem:[%s278 + $0x20] sm:%s270] %v287
                %v289 = vld [vmem:[%s277 + $0x50] sm:%s270]
                %290 = vst [vmem:[%s278 + $0x28] sm:%s270] %v289
                %v291 = vld [vmem:[%s277 + $0x60] sm:%s270]
                %292 = vst [vmem:[%s278 + $0x30] sm:%s270] %v291
                %v293 = vld [vmem:[%s277 + $0x70] sm:%s270]
                %294 = vst [vmem:[%s278 + $0x38] sm:%s270] %v293
                %v295 = vld [vmem:[%s277 + $0x80] sm:%s270]
                %296 = vst [vmem:[%s278 + $0x40] sm:%s270] %v295
                %v297 = vld [vmem:[%s277 + $0x90] sm:%s270]
                %298 = vst [vmem:[%s278 + $0x48] sm:%s270] %v297
                %v299 = vld [vmem:[%s277 + $0xa0] sm:%s270]
                %300 = vst [vmem:[%s278 + $0x50] sm:%s270] %v299
                %v301 = vld [vmem:[%s277 + $0xb0] sm:%s270]
                %302 = vst [vmem:[%s278 + $0x58] sm:%s270] %v301
                %v303 = vld [vmem:[%s277 + $0xc0] sm:%s270]
                %304 = vst [vmem:[%s278 + $0x60] sm:%s270] %v303
                %v305 = vld [vmem:[%s277 + $0xd0] sm:%s270]
                %306 = vst [vmem:[%s278 + $0x68] sm:%s270] %v305
                %v307 = vld [vmem:[%s277 + $0xe0] sm:%s270]
                %308 = vst [vmem:[%s278 + $0x70] sm:%s270] %v307
                %v309 = vld [vmem:[%s277 + $0xf0] sm:%s270]
                %310 = vst [vmem:[%s278 + $0x78] sm:%s270] %v309
              $region75: #{gravnet_block_forward.8} parent=69 // loop_footer
                %s276 = sadd.s32 1, %s272
              $region76: #{gravnet_block_forward.8} parent=69 // loop_footer_branch
                %271 = sbr.rel target = $region72
              $region77: #{gravnet_block_forward.8} parent=69 // loop_exit
                _
            $region70: #{gravnet_block_forward.8} parent=61 // pred_fallthru
              _
          $region62: #{gravnet_block_forward.8} parent=57 // pred_fallthru
            _
          %355 = vnop
        $region58: #{gravnet_block_forward.8} parent=15 // pred_fallthru
          _
        // Predicated region
        $region93: #{gravnet_block_forward.8} parent=15 // pred_check
          %p356 = pneg %p93
        $region94: #{gravnet_block_forward.8} parent=15 // pred_check_branch
          %358 = sbr.rel (%p356) target = $region96
        $region95: #{gravnet_block_forward.8} parent=15 // pred_region
          %p359 = scmp.lt.s32.totalorder %s17, 1
          %s360 = scalar_select %p359, %s17, 1
          %s361 = scalar_lea.vmem %s2, %s360
        $region96: #{gravnet_block_forward.8} parent=15 // pred_fallthru
          _
      $region16: #{gravnet_block_forward.8} parent=5 // pred_fallthru
        _
      %p362 = scmp.le.s32.totalorder 1, %s9
      %p363 = scmp.lt.s32.totalorder %s9, 5
      %p364 = pnand %p362, %p363
      %p365 = pneg %p364
      // Predicated region
      $region97: #{gravnet_block_forward.8} parent=5 // pred_check
        _
      $region98: #{gravnet_block_forward.8} parent=5 // pred_check_branch
        %367 = sbr.rel (%p364) target = $region100
      $region99: #{gravnet_block_forward.8} parent=5 // pred_region
        %s368 = ssub.s32 %s9, 1
        %s369 = sand.u32 %s34, 1
        %s370 = sand.u32 %s34, 1
        %s371 = smul.addr %s370, 128
        %s372 = scalar_lea.vmem [#allocation2], %s371
        // Predicated region
        $region101: #{gravnet_block_forward.8} parent=99 // pred_check
          %p373 = pneg %p47
        $region102: #{gravnet_block_forward.8} parent=99 // pred_check_branch
          %375 = sbr.rel (%p373) target = $region104
        $region103: #{gravnet_block_forward.8} parent=99 // pred_region
          _
        $region104: #{gravnet_block_forward.8} parent=99 // pred_fallthru
          _
        %s376 = sand.u32 %s60, 1
        %s377 = sand.u32 %s60, 1
        %s378 = smul.addr %s377, 128
        %s379 = scalar_lea.vmem [#allocation3], %s378
        // Predicated region
        $region105: #{gravnet_block_forward.8} parent=99 // pred_check
          %p380 = pneg %p73
        $region106: #{gravnet_block_forward.8} parent=99 // pred_check_branch
          %382 = sbr.rel (%p380) target = $region108
        $region107: #{gravnet_block_forward.8} parent=99 // pred_region
          _
        $region108: #{gravnet_block_forward.8} parent=99 // pred_fallthru
          _
        %s383 = sand.u32 %s34, 1
        %s384 = sand.u32 %s34, 1
        %s385 = smul.addr %s384, 128
        %s386 = scalar_lea.vmem [#allocation2], %s385
        %p387 = pneg %p47
        %p388 = pneg %p44
        %s389 = sand.u32 %s60, 1
        %s390 = sand.u32 %s60, 1
        %s391 = smul.addr %s390, 128
        %s392 = scalar_lea.vmem [#allocation3], %s391
        %p393 = pneg %p73
        %p394 = pneg %p70
        %p395 = scmp.lt.s32.totalorder %s19, 1
        %s396 = scalar_select %p395, %s19, 1
        %s397 = scalar_lea.vmem %s2, %s396
        %p398 = pneg %p99
        %p399 = pneg %p96
        %p400 = pneg %p127
        %p401 = pneg %p124
        %s402 = sand.u32 %s114, 1
        %s403 = sand.u32 %s114, 1
        %s404 = smul.addr %s403, 128
        %s405 = scalar_lea.vmem [#allocation4], %s404
        %s406 = smul.u32 16, %s18
        %s407 = smul.u32 16, %s19
        %p408 = scmp.lt.s32.totalorder %s19, 1
        %s409 = scalar_select %p408, %s19, 1
        %s410 = scalar_lea.vmem %s2, %s409
        %s411 = smul.u32 16, %s18
        %v412 = vld [vmem:[%s372] sm:$0xff]
        %v413 = vld [vmem:[%s372 + $0x8] sm:$0xff]
        %v414 = vld [vmem:[%s372 + $0x10] sm:$0xff]
        %v415 = vld [vmem:[%s372 + $0x18] sm:$0xff]
        %v416 = vld [vmem:[%s372 + $0x20] sm:$0xff]
        %v417 = vld [vmem:[%s372 + $0x28] sm:$0xff]
        %v418 = vld [vmem:[%s372 + $0x30] sm:$0xff]
        %v419 = vld [vmem:[%s372 + $0x38] sm:$0xff]
        %v420 = vld [vmem:[%s372 + $0x40] sm:$0xff]
        %v421 = vld [vmem:[%s372 + $0x48] sm:$0xff]
        %v422 = vld [vmem:[%s372 + $0x50] sm:$0xff]
        %v423 = vld [vmem:[%s372 + $0x58] sm:$0xff]
        %v424 = vld [vmem:[%s372 + $0x60] sm:$0xff]
        %v425 = vld [vmem:[%s372 + $0x68] sm:$0xff]
        %v426 = vld [vmem:[%s372 + $0x70] sm:$0xff]
        %v427 = vld [vmem:[%s372 + $0x78] sm:$0xff]
        %v428 = vld [vmem:[%s379] sm:$0xff]
        %v429 = vld [vmem:[%s379 + $0x8] sm:$0xff]
        %v430 = vld [vmem:[%s379 + $0x10] sm:$0xff]
        %v431 = vld [vmem:[%s379 + $0x18] sm:$0xff]
        %v432 = vld [vmem:[%s379 + $0x20] sm:$0xff]
        %v433 = vld [vmem:[%s379 + $0x28] sm:$0xff]
        %v434 = vld [vmem:[%s379 + $0x30] sm:$0xff]
        %v435 = vld [vmem:[%s379 + $0x38] sm:$0xff]
        %v436 = vld [vmem:[%s379 + $0x40] sm:$0xff]
        %v437 = vld [vmem:[%s379 + $0x48] sm:$0xff]
        %v438 = vld [vmem:[%s379 + $0x50] sm:$0xff]
        %v439 = vld [vmem:[%s379 + $0x58] sm:$0xff]
        %v440 = vld [vmem:[%s379 + $0x60] sm:$0xff]
        %v441 = vld [vmem:[%s379 + $0x68] sm:$0xff]
        %v442 = vld [vmem:[%s379 + $0x70] sm:$0xff]
        %v443 = vld [vmem:[%s379 + $0x78] sm:$0xff]
        %v444 = vmul.f32 %v412, %v412
        %v445 = vmul.f32 %v413, %v413
        %v446 = vmul.f32 %v414, %v414
        %v447 = vmul.f32 %v415, %v415
        %v448 = vmul.f32 %v416, %v416
        %v449 = vmul.f32 %v417, %v417
        %v450 = vmul.f32 %v418, %v418
        %v451 = vmul.f32 %v419, %v419
        %v452 = vmul.f32 %v420, %v420
        %v453 = vmul.f32 %v421, %v421
        %v454 = vmul.f32 %v422, %v422
        %v455 = vmul.f32 %v423, %v423
        %v456 = vmul.f32 %v424, %v424
        %v457 = vmul.f32 %v425, %v425
        %v458 = vmul.f32 %v426, %v426
        %v459 = vmul.f32 %v427, %v427
        %460 = vadd.xlane.f32.xlu0 %v444
        %v461 = vpop.xlane.xlu0 %460
        %462 = vadd.xlane.f32.xlu0 %v445
        %v463 = vpop.xlane.xlu0 %462
        %464 = vadd.xlane.f32.xlu0 %v446
        %v465 = vpop.xlane.xlu0 %464
        %466 = vadd.xlane.f32.xlu0 %v447
        %v467 = vpop.xlane.xlu0 %466
        %468 = vadd.xlane.f32.xlu0 %v448
        %v469 = vpop.xlane.xlu0 %468
        %470 = vadd.xlane.f32.xlu0 %v449
        %v471 = vpop.xlane.xlu0 %470
        %472 = vadd.xlane.f32.xlu0 %v450
        %v473 = vpop.xlane.xlu0 %472
        %474 = vadd.xlane.f32.xlu0 %v451
        %v475 = vpop.xlane.xlu0 %474
        %476 = vadd.xlane.f32.xlu0 %v452
        %v477 = vpop.xlane.xlu0 %476
        %478 = vadd.xlane.f32.xlu0 %v453
        %v479 = vpop.xlane.xlu0 %478
        %480 = vadd.xlane.f32.xlu0 %v454
        %v481 = vpop.xlane.xlu0 %480
        %482 = vadd.xlane.f32.xlu0 %v455
        %v483 = vpop.xlane.xlu0 %482
        %484 = vadd.xlane.f32.xlu0 %v456
        %v485 = vpop.xlane.xlu0 %484
        %486 = vadd.xlane.f32.xlu0 %v457
        %v487 = vpop.xlane.xlu0 %486
        %488 = vadd.xlane.f32.xlu0 %v458
        %v489 = vpop.xlane.xlu0 %488
        %490 = vadd.xlane.f32.xlu0 %v459
        %v491 = vpop.xlane.xlu0 %490
        %492 = vmatpush.xpose.msra.mxu0 %v443
        %493 = vmatpush.xpose.msra.mxu0 %v442
        %494 = vmatpush.xpose.msra.mxu0 %v441
        %495 = vmatpush.xpose.msra.mxu0 %v440
        %496 = vmatpush.xpose.msra.mxu0 %v439
        %497 = vmatpush.xpose.msra.mxu0 %v438
        %498 = vmatpush.xpose.msra.mxu0 %v437
        %499 = vmatpush.xpose.msra.mxu0 %v436
        %500 = vmatpush.xpose.msra.mxu0 %v435
        %501 = vmatpush.xpose.msra.mxu0 %v434
        %502 = vmatpush.xpose.msra.mxu0 %v433
        %503 = vmatpush.xpose.msra.mxu0 %v432
        %504 = vmatpush.xpose.msra.mxu0 %v431
        %505 = vmatpush.xpose.msra.mxu0 %v430
        %506 = vmatpush.xpose.msra.mxu0 %v429
        %507 = vmatpush.xpose.msra.mxu0 %v428
        %508 = vmatmul.f32.gmra.mxu0 %v412
        %v509 = vpop.f32.mrf.mxu0
        %v510 = vadd.f32 0.0, %v509
        %511 = vmatmul.f32.gmra.mxu0 %v413
        %v512 = vpop.f32.mrf.mxu0
        %v513 = vadd.f32 0.0, %v512
        %514 = vmatmul.f32.gmra.mxu0 %v414
        %v515 = vpop.f32.mrf.mxu0
        %v516 = vadd.f32 0.0, %v515
        %517 = vmatmul.f32.gmra.mxu0 %v415
        %v518 = vpop.f32.mrf.mxu0
        %v519 = vadd.f32 0.0, %v518
        %520 = vmatmul.f32.gmra.mxu0 %v416
        %v521 = vpop.f32.mrf.mxu0
        %v522 = vadd.f32 0.0, %v521
        %523 = vmatmul.f32.gmra.mxu0 %v417
        %v524 = vpop.f32.mrf.mxu0
        %v525 = vadd.f32 0.0, %v524
        %526 = vmatmul.f32.gmra.mxu0 %v418
        %v527 = vpop.f32.mrf.mxu0
        %v528 = vadd.f32 0.0, %v527
        %529 = vmatmul.f32.gmra.mxu0 %v419
        %v530 = vpop.f32.mrf.mxu0
        %v531 = vadd.f32 0.0, %v530
        %532 = vmatmul.f32.gmra.mxu0 %v420
        %v533 = vpop.f32.mrf.mxu0
        %v534 = vadd.f32 0.0, %v533
        %535 = vmatmul.f32.gmra.mxu0 %v421
        %v536 = vpop.f32.mrf.mxu0
        %v537 = vadd.f32 0.0, %v536
        %538 = vmatmul.f32.gmra.mxu0 %v422
        %v539 = vpop.f32.mrf.mxu0
        %v540 = vadd.f32 0.0, %v539
        %541 = vmatmul.f32.gmra.mxu0 %v423
        %v542 = vpop.f32.mrf.mxu0
        %v543 = vadd.f32 0.0, %v542
        %544 = vmatmul.f32.gmra.mxu0 %v424
        %v545 = vpop.f32.mrf.mxu0
        %v546 = vadd.f32 0.0, %v545
        %547 = vmatmul.f32.gmra.mxu0 %v425
        %v548 = vpop.f32.mrf.mxu0
        %v549 = vadd.f32 0.0, %v548
        %550 = vmatmul.f32.gmra.mxu0 %v426
        %v551 = vpop.f32.mrf.mxu0
        %v552 = vadd.f32 0.0, %v551
        %553 = vmatmul.f32.gmra.mxu0 %v427
        %v554 = vpop.f32.mrf.mxu0
        %v555 = vadd.f32 0.0, %v554
        %556 = vdwg.mxu0
        %v557 = vld [vmem:[%s410] sm:$0x1]
        %v559 = vperm.slane %v557, 0
        %v561 = vadd.f32 %v461, %v559
        %v562 = vadd.f32 %v463, %v559
        %v563 = vadd.f32 %v465, %v559
        %v564 = vadd.f32 %v467, %v559
        %v565 = vadd.f32 %v469, %v559
        %v566 = vadd.f32 %v471, %v559
        %v567 = vadd.f32 %v473, %v559
        %v568 = vadd.f32 %v475, %v559
        %v569 = vadd.f32 %v477, %v559
        %v570 = vadd.f32 %v479, %v559
        %v571 = vadd.f32 %v481, %v559
        %v572 = vadd.f32 %v483, %v559
        %v573 = vadd.f32 %v485, %v559
        %v574 = vadd.f32 %v487, %v559
        %v575 = vadd.f32 %v489, %v559
        %v576 = vadd.f32 %v491, %v559
        %v577 = vmul.f32 %v510, 2.0
        %v578 = vmul.f32 %v513, 2.0
        %v579 = vmul.f32 %v516, 2.0
        %v580 = vmul.f32 %v519, 2.0
        %v581 = vmul.f32 %v522, 2.0
        %v582 = vmul.f32 %v525, 2.0
        %v583 = vmul.f32 %v528, 2.0
        %v584 = vmul.f32 %v531, 2.0
        %v585 = vmul.f32 %v534, 2.0
        %v586 = vmul.f32 %v537, 2.0
        %v587 = vmul.f32 %v540, 2.0
        %v588 = vmul.f32 %v543, 2.0
        %v589 = vmul.f32 %v546, 2.0
        %v590 = vmul.f32 %v549, 2.0
        %v591 = vmul.f32 %v552, 2.0
        %v592 = vmul.f32 %v555, 2.0
        %v593 = vsub.f32 %v561, %v577
        %v594 = vsub.f32 %v562, %v578
        %v595 = vsub.f32 %v563, %v579
        %v596 = vsub.f32 %v564, %v580
        %v597 = vsub.f32 %v565, %v581
        %v598 = vsub.f32 %v566, %v582
        %v599 = vsub.f32 %v567, %v583
        %v600 = vsub.f32 %v568, %v584
        %v601 = vsub.f32 %v569, %v585
        %v602 = vsub.f32 %v570, %v586
        %v603 = vsub.f32 %v571, %v587
        %v604 = vsub.f32 %v572, %v588
        %v605 = vsub.f32 %v573, %v589
        %v606 = vsub.f32 %v574, %v590
        %v607 = vsub.f32 %v575, %v591
        %v608 = vsub.f32 %v576, %v592
        %v609 = vmax.f32 %v593, 0.0
        %v610 = vmax.f32 %v594, 0.0
        %v611 = vmax.f32 %v595, 0.0
        %v612 = vmax.f32 %v596, 0.0
        %v613 = vmax.f32 %v597, 0.0
        %v614 = vmax.f32 %v598, 0.0
        %v615 = vmax.f32 %v599, 0.0
        %v616 = vmax.f32 %v600, 0.0
        %v617 = vmax.f32 %v601, 0.0
        %v618 = vmax.f32 %v602, 0.0
        %v619 = vmax.f32 %v603, 0.0
        %v620 = vmax.f32 %v604, 0.0
        %v621 = vmax.f32 %v605, 0.0
        %v622 = vmax.f32 %v606, 0.0
        %v623 = vmax.f32 %v607, 0.0
        %v624 = vmax.f32 %v608, 0.0
        %625 = vst [vmem:[%s405] sm:$0xff] %v609
        %626 = vst [vmem:[%s405 + $0x8] sm:$0xff] %v610
        %627 = vst [vmem:[%s405 + $0x10] sm:$0xff] %v611
        %628 = vst [vmem:[%s405 + $0x18] sm:$0xff] %v612
        %629 = vst [vmem:[%s405 + $0x20] sm:$0xff] %v613
        %630 = vst [vmem:[%s405 + $0x28] sm:$0xff] %v614
        %631 = vst [vmem:[%s405 + $0x30] sm:$0xff] %v615
        %632 = vst [vmem:[%s405 + $0x38] sm:$0xff] %v616
        %633 = vst [vmem:[%s405 + $0x40] sm:$0xff] %v617
        %634 = vst [vmem:[%s405 + $0x48] sm:$0xff] %v618
        %635 = vst [vmem:[%s405 + $0x50] sm:$0xff] %v619
        %636 = vst [vmem:[%s405 + $0x58] sm:$0xff] %v620
        %637 = vst [vmem:[%s405 + $0x60] sm:$0xff] %v621
        %638 = vst [vmem:[%s405 + $0x68] sm:$0xff] %v622
        %639 = vst [vmem:[%s405 + $0x70] sm:$0xff] %v623
        %640 = vst [vmem:[%s405 + $0x78] sm:$0xff] %v624
        %s641 = sand.u32 %s114, 1
        %s642 = sand.u32 %s114, 1
        %s643 = smul.addr %s642, 128
        %s644 = scalar_lea.vmem [#allocation4], %s643
        // Predicated region
        $region109: #{gravnet_block_forward.8} parent=99 // pred_check
          %p645 = pneg %p124
        $region110: #{gravnet_block_forward.8} parent=99 // pred_check_branch
          %647 = sbr.rel (%p645) target = $region112
        $region111: #{gravnet_block_forward.8} parent=99 // pred_region
          %s648 = smul.u32 16, %s18
          %s649 = smul.addr %s648, 2
          %s650 = sadd.s32 %s19, %s649
          %s651 = smul.addr %s650, 8
          %s652 = scalar_lea.vmem %s3, %s651
          // Predicated region
          $region113: #{gravnet_block_forward.8} parent=111 // pred_check
            _
          $region114: #{gravnet_block_forward.8} parent=111 // pred_check_branch
            %654 = sbr.rel (0) target = $region116
          $region115: #{gravnet_block_forward.8} parent=111 // pred_region
            // Predicated region
            $region117: #{gravnet_block_forward.8} parent=115 // pred_check
              _
            $region118: #{gravnet_block_forward.8} parent=115 // pred_check_branch
              %656 = sbr.rel (0) target = $region120
            $region119: #{gravnet_block_forward.8} parent=115 // pred_region
              // Predicated region
              $region132: #{gravnet_block_forward.8} parent=119 // pred_check
                _
              $region133: #{gravnet_block_forward.8} parent=119 // pred_check_branch
                %702 = sbr.rel (0) target = $region135
              $region134: #{gravnet_block_forward.8} parent=119 // pred_region
                loop: start=0, step=1, limit=1
                $region136: #{gravnet_block_forward.8} parent=134 // loop_pre_header
                  _
                $region137: #{gravnet_block_forward.8} parent=134 // loop_header
                  %s704 = sphi 0, %s708
                  %p705 = scmp.ge.s32.totalorder %s704, 1
                  %s709 = sphi %s644, %s644
                  %s710 = sphi %s652, %s652
                $region138: #{gravnet_block_forward.8} parent=134 // loop_header_branch
                  %707 = sbr.rel (%p705) target = $region142
                $region139: #{gravnet_block_forward.8} parent=134 // loop_body
                  %v711 = vld [vmem:[%s709] sm:$0xff]
                  %712 = vst [vmem:[%s710] sm:$0xff] %v711
                  %v713 = vld [vmem:[%s709 + $0x8] sm:$0xff]
                  %714 = vst [vmem:[%s710 + $0x10] sm:$0xff] %v713
                  %v715 = vld [vmem:[%s709 + $0x10] sm:$0xff]
                  %716 = vst [vmem:[%s710 + $0x20] sm:$0xff] %v715
                  %v717 = vld [vmem:[%s709 + $0x18] sm:$0xff]
                  %718 = vst [vmem:[%s710 + $0x30] sm:$0xff] %v717
                  %v719 = vld [vmem:[%s709 + $0x20] sm:$0xff]
                  %720 = vst [vmem:[%s710 + $0x40] sm:$0xff] %v719
                  %v721 = vld [vmem:[%s709 + $0x28] sm:$0xff]
                  %722 = vst [vmem:[%s710 + $0x50] sm:$0xff] %v721
                  %v723 = vld [vmem:[%s709 + $0x30] sm:$0xff]
                  %724 = vst [vmem:[%s710 + $0x60] sm:$0xff] %v723
                  %v725 = vld [vmem:[%s709 + $0x38] sm:$0xff]
                  %726 = vst [vmem:[%s710 + $0x70] sm:$0xff] %v725
                  %v727 = vld [vmem:[%s709 + $0x40] sm:$0xff]
                  %728 = vst [vmem:[%s710 + $0x80] sm:$0xff] %v727
                  %v729 = vld [vmem:[%s709 + $0x48] sm:$0xff]
                  %730 = vst [vmem:[%s710 + $0x90] sm:$0xff] %v729
                  %v731 = vld [vmem:[%s709 + $0x50] sm:$0xff]
                  %732 = vst [vmem:[%s710 + $0xa0] sm:$0xff] %v731
                  %v733 = vld [vmem:[%s709 + $0x58] sm:$0xff]
                  %734 = vst [vmem:[%s710 + $0xb0] sm:$0xff] %v733
                  %v735 = vld [vmem:[%s709 + $0x60] sm:$0xff]
                  %736 = vst [vmem:[%s710 + $0xc0] sm:$0xff] %v735
                  %v737 = vld [vmem:[%s709 + $0x68] sm:$0xff]
                  %738 = vst [vmem:[%s710 + $0xd0] sm:$0xff] %v737
                  %v739 = vld [vmem:[%s709 + $0x70] sm:$0xff]
                  %740 = vst [vmem:[%s710 + $0xe0] sm:$0xff] %v739
                  %v741 = vld [vmem:[%s709 + $0x78] sm:$0xff]
                  %742 = vst [vmem:[%s710 + $0xf0] sm:$0xff] %v741
                $region140: #{gravnet_block_forward.8} parent=134 // loop_footer
                  %s708 = sadd.s32 1, %s704
                $region141: #{gravnet_block_forward.8} parent=134 // loop_footer_branch
                  %703 = sbr.rel target = $region137
                $region142: #{gravnet_block_forward.8} parent=134 // loop_exit
                  _
              $region135: #{gravnet_block_forward.8} parent=119 // pred_fallthru
                _
              // Predicated region
              $region143: #{gravnet_block_forward.8} parent=119 // pred_check
                _
              $region144: #{gravnet_block_forward.8} parent=119 // pred_check_branch
                %744 = sbr.rel target = $region146
              $region145: #{gravnet_block_forward.8} parent=119 // pred_region
                _
              $region146: #{gravnet_block_forward.8} parent=119 // pred_fallthru
                _
            $region120: #{gravnet_block_forward.8} parent=115 // pred_fallthru
              _
            // Predicated region
            $region121: #{gravnet_block_forward.8} parent=115 // pred_check
              _
            $region122: #{gravnet_block_forward.8} parent=115 // pred_check_branch
              %658 = sbr.rel target = $region124
            $region123: #{gravnet_block_forward.8} parent=115 // pred_region
              %s660 = ssub.s32 256, 1
              loop: start=0, step=1, limit=1
              $region125: #{gravnet_block_forward.8} parent=123 // loop_pre_header
                _
              $region126: #{gravnet_block_forward.8} parent=123 // loop_header
                %s662 = sphi 0, %s666
                %p663 = scmp.ge.s32.totalorder %s662, 1
                %s667 = sphi %s644, %s644
                %s668 = sphi %s652, %s652
              $region127: #{gravnet_block_forward.8} parent=123 // loop_header_branch
                %665 = sbr.rel (%p663) target = $region131
              $region128: #{gravnet_block_forward.8} parent=123 // loop_body
                %v669 = vld [vmem:[%s667] sm:%s660]
                %670 = vst [vmem:[%s668] sm:%s660] %v669
                %v671 = vld [vmem:[%s667 + $0x8] sm:%s660]
                %672 = vst [vmem:[%s668 + $0x10] sm:%s660] %v671
                %v673 = vld [vmem:[%s667 + $0x10] sm:%s660]
                %674 = vst [vmem:[%s668 + $0x20] sm:%s660] %v673
                %v675 = vld [vmem:[%s667 + $0x18] sm:%s660]
                %676 = vst [vmem:[%s668 + $0x30] sm:%s660] %v675
                %v677 = vld [vmem:[%s667 + $0x20] sm:%s660]
                %678 = vst [vmem:[%s668 + $0x40] sm:%s660] %v677
                %v679 = vld [vmem:[%s667 + $0x28] sm:%s660]
                %680 = vst [vmem:[%s668 + $0x50] sm:%s660] %v679
                %v681 = vld [vmem:[%s667 + $0x30] sm:%s660]
                %682 = vst [vmem:[%s668 + $0x60] sm:%s660] %v681
                %v683 = vld [vmem:[%s667 + $0x38] sm:%s660]
                %684 = vst [vmem:[%s668 + $0x70] sm:%s660] %v683
                %v685 = vld [vmem:[%s667 + $0x40] sm:%s660]
                %686 = vst [vmem:[%s668 + $0x80] sm:%s660] %v685
                %v687 = vld [vmem:[%s667 + $0x48] sm:%s660]
                %688 = vst [vmem:[%s668 + $0x90] sm:%s660] %v687
                %v689 = vld [vmem:[%s667 + $0x50] sm:%s660]
                %690 = vst [vmem:[%s668 + $0xa0] sm:%s660] %v689
                %v691 = vld [vmem:[%s667 + $0x58] sm:%s660]
                %692 = vst [vmem:[%s668 + $0xb0] sm:%s660] %v691
                %v693 = vld [vmem:[%s667 + $0x60] sm:%s660]
                %694 = vst [vmem:[%s668 + $0xc0] sm:%s660] %v693
                %v695 = vld [vmem:[%s667 + $0x68] sm:%s660]
                %696 = vst [vmem:[%s668 + $0xd0] sm:%s660] %v695
                %v697 = vld [vmem:[%s667 + $0x70] sm:%s660]
                %698 = vst [vmem:[%s668 + $0xe0] sm:%s660] %v697
                %v699 = vld [vmem:[%s667 + $0x78] sm:%s660]
                %700 = vst [vmem:[%s668 + $0xf0] sm:%s660] %v699
              $region129: #{gravnet_block_forward.8} parent=123 // loop_footer
                %s666 = sadd.s32 1, %s662
              $region130: #{gravnet_block_forward.8} parent=123 // loop_footer_branch
                %661 = sbr.rel target = $region126
              $region131: #{gravnet_block_forward.8} parent=123 // loop_exit
                _
            $region124: #{gravnet_block_forward.8} parent=115 // pred_fallthru
              _
          $region116: #{gravnet_block_forward.8} parent=111 // pred_fallthru
            _
          %745 = vnop
        $region112: #{gravnet_block_forward.8} parent=99 // pred_fallthru
          _
      $region100: #{gravnet_block_forward.8} parent=5 // pred_fallthru
        _
      %p746 = scmp.le.s32.totalorder 2, %s9
      // Predicated region
      $region147: #{gravnet_block_forward.8} parent=5 // pred_check
        %p747 = pneg %p746
      $region148: #{gravnet_block_forward.8} parent=5 // pred_check_branch
        %749 = sbr.rel (%p747) target = $region150
      $region149: #{gravnet_block_forward.8} parent=5 // pred_region
        %s750 = ssub.s32 %s9, 2
        // Predicated region
        $region151: #{gravnet_block_forward.8} parent=149 // pred_check
          %p751 = pneg %p130
        $region152: #{gravnet_block_forward.8} parent=149 // pred_check_branch
          %753 = sbr.rel (%p751) target = $region154
        $region153: #{gravnet_block_forward.8} parent=149 // pred_region
          %s754 = sand.u32 %s115, 1
          %s755 = sand.u32 %s115, 1
          %s756 = smul.addr %s755, 128
          %s757 = scalar_lea.vmem [#allocation4], %s756
        $region154: #{gravnet_block_forward.8} parent=149 // pred_fallthru
          _
      $region150: #{gravnet_block_forward.8} parent=5 // pred_fallthru
        _
    $region6: #{gravnet_block_forward.8} parent=1 // loop_footer
      %s13 = sadd.s32 1, %s9
    $region7: #{gravnet_block_forward.8} parent=1 // loop_footer_branch
      %8 = sbr.rel target = $region3
    $region8: #{gravnet_block_forward.8} parent=1 // loop_exit
      _

// kernel: gravnet_block_forward.6
$region0: #{gravnet_block_forward.6}
  #allocation0 [shape = 'u32[]', space=smem, size = 0x4, offset = 0x4, fixed_abs, tag = 'smem constant byte address 0x4 - core index']
  #allocation1 [shape = 'u32[72,128]{1,0:T(1,128)}', space=vmem, size = 0x9000, scoped, tag = 'internal scratch']
  %s0 = inlined_call_operand.vmem [shape: f32[256,32], index: 0, kind: input, shape index: {}]
  %s1 = inlined_call_operand.vmem [shape: f32[32,64], index: 1, kind: input, shape index: {}]
  %s2 = inlined_call_operand.vmem [shape: f32[1,64], index: 2, kind: input, shape index: {}]
  %s3 = inlined_call_operand.vmem [shape: f32[64,64], index: 3, kind: input, shape index: {}]
  %s4 = inlined_call_operand.vmem [shape: f32[1,64], index: 4, kind: input, shape index: {}]
  %s5 = inlined_call_operand.vmem [shape: f32[256,64], index: 5, kind: output, shape index: {0}]
  %s6 = inlined_call_operand.vmem [shape: f32[1,64], index: 6, kind: output, shape index: {1}]
  %s7 = inlined_call_operand.vmem [shape: f32[1,64], index: 7, kind: output, shape index: {2}]
  %8 = xla_tuple %s5, %s6, %s7
  %s9 = sld [smem:[#allocation0]]
  $region50: #{gravnet_block_forward.6} parent=0
    _
  %s11 = ssub.s32 1, %s9
  %s12 = scalar_select 0, %s11, %s9
  // Predicated region
  $region2: #{gravnet_block_forward.6} parent=0 // pred_check
    _
  $region3: #{gravnet_block_forward.6} parent=0 // pred_check_branch
    %14 = sbr.rel (0) target = $region5
  $region4: #{gravnet_block_forward.6} parent=0 // pred_region
    _
  $region5: #{gravnet_block_forward.6} parent=0 // pred_fallthru
    _
  // Predicated region
  $region6: #{gravnet_block_forward.6} parent=0 // pred_check
    _
  $region7: #{gravnet_block_forward.6} parent=0 // pred_check_branch
    %16 = sbr.rel (0) target = $region9
  $region8: #{gravnet_block_forward.6} parent=0 // pred_region
    _
  $region9: #{gravnet_block_forward.6} parent=0 // pred_fallthru
    _
  // Predicated region
  $region10: #{gravnet_block_forward.6} parent=0 // pred_check
    _
  $region11: #{gravnet_block_forward.6} parent=0 // pred_check_branch
    %18 = sbr.rel (0) target = $region13
  $region12: #{gravnet_block_forward.6} parent=0 // pred_region
    _
  $region13: #{gravnet_block_forward.6} parent=0 // pred_fallthru
    _
  // Predicated region
  $region14: #{gravnet_block_forward.6} parent=0 // pred_check
    _
  $region15: #{gravnet_block_forward.6} parent=0 // pred_check_branch
    %20 = sbr.rel (0) target = $region17
  $region16: #{gravnet_block_forward.6} parent=0 // pred_region
    _
  $region17: #{gravnet_block_forward.6} parent=0 // pred_fallthru
    _
  // Predicated region
  $region18: #{gravnet_block_forward.6} parent=0 // pred_check
    _
  $region19: #{gravnet_block_forward.6} parent=0 // pred_check_branch
    %22 = sbr.rel (0) target = $region21
  $region20: #{gravnet_block_forward.6} parent=0 // pred_region
    _
  $region21: #{gravnet_block_forward.6} parent=0 // pred_fallthru
    _
  %v23 = vld [vmem:[%s0] sm:$0xff]
  %v24 = vld [vmem:[%s0 + $0x8] sm:$0xff]
  %v25 = vld [vmem:[%s0 + $0x10] sm:$0xff]
  %v26 = vld [vmem:[%s0 + $0x18] sm:$0xff]
  %v27 = vld [vmem:[%s0 + $0x20] sm:$0xff]
  %v28 = vld [vmem:[%s0 + $0x28] sm:$0xff]
  %v29 = vld [vmem:[%s0 + $0x30] sm:$0xff]
  %v30 = vld [vmem:[%s0 + $0x38] sm:$0xff]
  %v31 = vld [vmem:[%s0 + $0x40] sm:$0xff]
  %v32 = vld [vmem:[%s0 + $0x48] sm:$0xff]
  %v33 = vld [vmem:[%s0 + $0x50] sm:$0xff]
  %v34 = vld [vmem:[%s0 + $0x58] sm:$0xff]
  %v35 = vld [vmem:[%s0 + $0x60] sm:$0xff]
  %v36 = vld [vmem:[%s0 + $0x68] sm:$0xff]
  %v37 = vld [vmem:[%s0 + $0x70] sm:$0xff]
  %v38 = vld [vmem:[%s0 + $0x78] sm:$0xff]
  %v39 = vld [vmem:[%s0 + $0x80] sm:$0xff]
  %v40 = vld [vmem:[%s0 + $0x88] sm:$0xff]
  %v41 = vld [vmem:[%s0 + $0x90] sm:$0xff]
  %v42 = vld [vmem:[%s0 + $0x98] sm:$0xff]
  %v43 = vld [vmem:[%s0 + $0xa0] sm:$0xff]
  %v44 = vld [vmem:[%s0 + $0xa8] sm:$0xff]
  %v45 = vld [vmem:[%s0 + $0xb0] sm:$0xff]
  %v46 = vld [vmem:[%s0 + $0xb8] sm:$0xff]
  %v47 = vld [vmem:[%s0 + $0xc0] sm:$0xff]
  %v48 = vld [vmem:[%s0 + $0xc8] sm:$0xff]
  %v49 = vld [vmem:[%s0 + $0xd0] sm:$0xff]
  %v50 = vld [vmem:[%s0 + $0xd8] sm:$0xff]
  %v51 = vld [vmem:[%s0 + $0xe0] sm:$0xff]
  %v52 = vld [vmem:[%s0 + $0xe8] sm:$0xff]
  %v53 = vld [vmem:[%s0 + $0xf0] sm:$0xff]
  %v54 = vld [vmem:[%s0 + $0xf8] sm:$0xff]
  %v55 = vld [vmem:[%s1] sm:$0xff]
  %v56 = vld [vmem:[%s1 + $0x8] sm:$0xff]
  %v57 = vld [vmem:[%s1 + $0x10] sm:$0xff]
  %v58 = vld [vmem:[%s1 + $0x18] sm:$0xff]
  %v59 = vld [vmem:[%s2] sm:$0x1]
  %v61 = vperm.slane %v59, 0
  %vm63 = vcmask 261120
  %v65 = vsel %vm63, %v23, 0
  %v68 = vsel %vm63, %v24, 0
  %v71 = vsel %vm63, %v25, 0
  %v74 = vsel %vm63, %v26, 0
  %v77 = vsel %vm63, %v27, 0
  %v80 = vsel %vm63, %v28, 0
  %v83 = vsel %vm63, %v29, 0
  %v86 = vsel %vm63, %v30, 0
  %v89 = vsel %vm63, %v31, 0
  %v92 = vsel %vm63, %v32, 0
  %v95 = vsel %vm63, %v33, 0
  %v98 = vsel %vm63, %v34, 0
  %v101 = vsel %vm63, %v35, 0
  %v104 = vsel %vm63, %v36, 0
  %v107 = vsel %vm63, %v37, 0
  %v110 = vsel %vm63, %v38, 0
  %v113 = vsel %vm63, %v39, 0
  %v116 = vsel %vm63, %v40, 0
  %v119 = vsel %vm63, %v41, 0
  %v122 = vsel %vm63, %v42, 0
  %v125 = vsel %vm63, %v43, 0
  %v128 = vsel %vm63, %v44, 0
  %v131 = vsel %vm63, %v45, 0
  %v134 = vsel %vm63, %v46, 0
  %v137 = vsel %vm63, %v47, 0
  %v140 = vsel %vm63, %v48, 0
  %v143 = vsel %vm63, %v49, 0
  %v146 = vsel %vm63, %v50, 0
  %v149 = vsel %vm63, %v51, 0
  %v152 = vsel %vm63, %v52, 0
  %v155 = vsel %vm63, %v53, 0
  %v158 = vsel %vm63, %v54, 0
  %160 = vmatpush.msra.mxu0 0.0
  %161 = vmatpush.msra.mxu0 0.0
  %162 = vmatpush.msra.mxu0 0.0
  %163 = vmatpush.msra.mxu0 0.0
  %164 = vmatpush.msra.mxu0 0.0
  %165 = vmatpush.msra.mxu0 0.0
  %166 = vmatpush.msra.mxu0 0.0
  %167 = vmatpush.msra.mxu0 0.0
  %168 = vmatpush.msra.mxu0 0.0
  %169 = vmatpush.msra.mxu0 0.0
  %170 = vmatpush.msra.mxu0 0.0
  %171 = vmatpush.msra.mxu0 0.0
  %172 = vmatpush.msra.mxu0 %v58
  %173 = vmatpush.msra.mxu0 %v57
  %174 = vmatpush.msra.mxu0 %v56
  %175 = vmatpush.msra.mxu0 %v55
  %176 = vmatmul.f32.gmra.mxu0 %v65
  %v177 = vpop.f32.mrf.mxu0
  %v178 = vadd.f32 %v61, %v177
  %179 = vmatmul.f32.gmra.mxu0 %v68
  %v180 = vpop.f32.mrf.mxu0
  %v181 = vadd.f32 %v61, %v180
  %182 = vmatmul.f32.gmra.mxu0 %v71
  %v183 = vpop.f32.mrf.mxu0
  %v184 = vadd.f32 %v61, %v183
  %185 = vmatmul.f32.gmra.mxu0 %v74
  %v186 = vpop.f32.mrf.mxu0
  %v187 = vadd.f32 %v61, %v186
  %188 = vmatmul.f32.gmra.mxu0 %v77
  %v189 = vpop.f32.mrf.mxu0
  %v190 = vadd.f32 %v61, %v189
  %191 = vmatmul.f32.gmra.mxu0 %v80
  %v192 = vpop.f32.mrf.mxu0
  %v193 = vadd.f32 %v61, %v192
  %194 = vmatmul.f32.gmra.mxu0 %v83
  %v195 = vpop.f32.mrf.mxu0
  %v196 = vadd.f32 %v61, %v195
  %197 = vmatmul.f32.gmra.mxu0 %v86
  %v198 = vpop.f32.mrf.mxu0
  %v199 = vadd.f32 %v61, %v198
  %200 = vmatmul.f32.gmra.mxu0 %v89
  %v201 = vpop.f32.mrf.mxu0
  %v202 = vadd.f32 %v61, %v201
  %203 = vmatmul.f32.gmra.mxu0 %v92
  %v204 = vpop.f32.mrf.mxu0
  %v205 = vadd.f32 %v61, %v204
  %206 = vmatmul.f32.gmra.mxu0 %v95
  %v207 = vpop.f32.mrf.mxu0
  %v208 = vadd.f32 %v61, %v207
  %209 = vmatmul.f32.gmra.mxu0 %v98
  %v210 = vpop.f32.mrf.mxu0
  %v211 = vadd.f32 %v61, %v210
  %212 = vmatmul.f32.gmra.mxu0 %v101
  %v213 = vpop.f32.mrf.mxu0
  %v214 = vadd.f32 %v61, %v213
  %215 = vmatmul.f32.gmra.mxu0 %v104
  %v216 = vpop.f32.mrf.mxu0
  %v217 = vadd.f32 %v61, %v216
  %218 = vmatmul.f32.gmra.mxu0 %v107
  %v219 = vpop.f32.mrf.mxu0
  %v220 = vadd.f32 %v61, %v219
  %221 = vmatmul.f32.gmra.mxu0 %v110
  %v222 = vpop.f32.mrf.mxu0
  %v223 = vadd.f32 %v61, %v222
  %224 = vmatmul.f32.gmra.mxu0 %v113
  %v225 = vpop.f32.mrf.mxu0
  %v226 = vadd.f32 %v61, %v225
  %227 = vmatmul.f32.gmra.mxu0 %v116
  %v228 = vpop.f32.mrf.mxu0
  %v229 = vadd.f32 %v61, %v228
  %230 = vmatmul.f32.gmra.mxu0 %v119
  %v231 = vpop.f32.mrf.mxu0
  %v232 = vadd.f32 %v61, %v231
  %233 = vmatmul.f32.gmra.mxu0 %v122
  %v234 = vpop.f32.mrf.mxu0
  %v235 = vadd.f32 %v61, %v234
  %236 = vmatmul.f32.gmra.mxu0 %v125
  %v237 = vpop.f32.mrf.mxu0
  %v238 = vadd.f32 %v61, %v237
  %239 = vmatmul.f32.gmra.mxu0 %v128
  %v240 = vpop.f32.mrf.mxu0
  %v241 = vadd.f32 %v61, %v240
  %242 = vmatmul.f32.gmra.mxu0 %v131
  %v243 = vpop.f32.mrf.mxu0
  %v244 = vadd.f32 %v61, %v243
  %245 = vmatmul.f32.gmra.mxu0 %v134
  %v246 = vpop.f32.mrf.mxu0
  %v247 = vadd.f32 %v61, %v246
  %248 = vmatmul.f32.gmra.mxu0 %v137
  %v249 = vpop.f32.mrf.mxu0
  %v250 = vadd.f32 %v61, %v249
  %251 = vmatmul.f32.gmra.mxu0 %v140
  %v252 = vpop.f32.mrf.mxu0
  %v253 = vadd.f32 %v61, %v252
  %254 = vmatmul.f32.gmra.mxu0 %v143
  %v255 = vpop.f32.mrf.mxu0
  %v256 = vadd.f32 %v61, %v255
  %257 = vmatmul.f32.gmra.mxu0 %v146
  %v258 = vpop.f32.mrf.mxu0
  %v259 = vadd.f32 %v61, %v258
  %260 = vmatmul.f32.gmra.mxu0 %v149
  %v261 = vpop.f32.mrf.mxu0
  %v262 = vadd.f32 %v61, %v261
  %263 = vmatmul.f32.gmra.mxu0 %v152
  %v264 = vpop.f32.mrf.mxu0
  %v265 = vadd.f32 %v61, %v264
  %266 = vmatmul.f32.gmra.mxu0 %v155
  %v267 = vpop.f32.mrf.mxu0
  %v268 = vadd.f32 %v61, %v267
  %269 = vmatmul.f32.gmra.mxu0 %v158
  %v270 = vpop.f32.mrf.mxu0
  %v271 = vadd.f32 %v61, %v270
  %272 = vdwg.mxu0
  %vm273 = vcmp.gt.f32.partialorder %v178, 0.0
  %vm274 = vcmp.gt.f32.partialorder %v181, 0.0
  %vm275 = vcmp.gt.f32.partialorder %v184, 0.0
  %vm276 = vcmp.gt.f32.partialorder %v187, 0.0
  %vm277 = vcmp.gt.f32.partialorder %v190, 0.0
  %vm278 = vcmp.gt.f32.partialorder %v193, 0.0
  %vm279 = vcmp.gt.f32.partialorder %v196, 0.0
  %vm280 = vcmp.gt.f32.partialorder %v199, 0.0
  %vm281 = vcmp.gt.f32.partialorder %v202, 0.0
  %vm282 = vcmp.gt.f32.partialorder %v205, 0.0
  %vm283 = vcmp.gt.f32.partialorder %v208, 0.0
  %vm284 = vcmp.gt.f32.partialorder %v211, 0.0
  %vm285 = vcmp.gt.f32.partialorder %v214, 0.0
  %vm286 = vcmp.gt.f32.partialorder %v217, 0.0
  %vm287 = vcmp.gt.f32.partialorder %v220, 0.0
  %vm288 = vcmp.gt.f32.partialorder %v223, 0.0
  %vm289 = vcmp.gt.f32.partialorder %v226, 0.0
  %vm290 = vcmp.gt.f32.partialorder %v229, 0.0
  %vm291 = vcmp.gt.f32.partialorder %v232, 0.0
  %vm292 = vcmp.gt.f32.partialorder %v235, 0.0
  %vm293 = vcmp.gt.f32.partialorder %v238, 0.0
  %vm294 = vcmp.gt.f32.partialorder %v241, 0.0
  %vm295 = vcmp.gt.f32.partialorder %v244, 0.0
  %vm296 = vcmp.gt.f32.partialorder %v247, 0.0
  %vm297 = vcmp.gt.f32.partialorder %v250, 0.0
  %vm298 = vcmp.gt.f32.partialorder %v253, 0.0
  %vm299 = vcmp.gt.f32.partialorder %v256, 0.0
  %vm300 = vcmp.gt.f32.partialorder %v259, 0.0
  %vm301 = vcmp.gt.f32.partialorder %v262, 0.0
  %vm302 = vcmp.gt.f32.partialorder %v265, 0.0
  %vm303 = vcmp.gt.f32.partialorder %v268, 0.0
  %vm304 = vcmp.gt.f32.partialorder %v271, 0.0
  %v305 = vmin.f32 %v178, 0.0
  %v306 = vmin.f32 %v181, 0.0
  %v307 = vmin.f32 %v184, 0.0
  %v308 = vmin.f32 %v187, 0.0
  %v309 = vmin.f32 %v190, 0.0
  %v310 = vmin.f32 %v193, 0.0
  %v311 = vmin.f32 %v196, 0.0
  %v312 = vmin.f32 %v199, 0.0
  %v313 = vmin.f32 %v202, 0.0
  %v314 = vmin.f32 %v205, 0.0
  %v315 = vmin.f32 %v208, 0.0
  %v316 = vmin.f32 %v211, 0.0
  %v317 = vmin.f32 %v214, 0.0
  %v318 = vmin.f32 %v217, 0.0
  %v319 = vmin.f32 %v220, 0.0
  %v320 = vmin.f32 %v223, 0.0
  %v321 = vmin.f32 %v226, 0.0
  %v322 = vmin.f32 %v229, 0.0
  %v323 = vmin.f32 %v232, 0.0
  %v324 = vmin.f32 %v235, 0.0
  %v325 = vmin.f32 %v238, 0.0
  %v326 = vmin.f32 %v241, 0.0
  %v327 = vmin.f32 %v244, 0.0
  %v328 = vmin.f32 %v247, 0.0
  %v329 = vmin.f32 %v250, 0.0
  %v330 = vmin.f32 %v253, 0.0
  %v331 = vmin.f32 %v256, 0.0
  %v332 = vmin.f32 %v259, 0.0
  %v333 = vmin.f32 %v262, 0.0
  %v334 = vmin.f32 %v265, 0.0
  %v335 = vmin.f32 %v268, 0.0
  %v336 = vmin.f32 %v271, 0.0
  %v337 = vmul.f32 %v305, 1.442695
  %v338 = vpow.pop %v337
  %v339 = vmul.f32 %v306, 1.442695
  %v340 = vpow.pop %v339
  %v341 = vmul.f32 %v307, 1.442695
  %v342 = vpow.pop %v341
  %v343 = vmul.f32 %v308, 1.442695
  %v344 = vpow.pop %v343
  %v345 = vmul.f32 %v309, 1.442695
  %v346 = vpow.pop %v345
  %v347 = vmul.f32 %v310, 1.442695
  %v348 = vpow.pop %v347
  %v349 = vmul.f32 %v311, 1.442695
  %v350 = vpow.pop %v349
  %v351 = vmul.f32 %v312, 1.442695
  %v352 = vpow.pop %v351
  %v353 = vmul.f32 %v313, 1.442695
  %v354 = vpow.pop %v353
  %v355 = vmul.f32 %v314, 1.442695
  %v356 = vpow.pop %v355
  %v357 = vmul.f32 %v315, 1.442695
  %v358 = vpow.pop %v357
  %v359 = vmul.f32 %v316, 1.442695
  %v360 = vpow.pop %v359
  %v361 = vmul.f32 %v317, 1.442695
  %v362 = vpow.pop %v361
  %v363 = vmul.f32 %v318, 1.442695
  %v364 = vpow.pop %v363
  %v365 = vmul.f32 %v319, 1.442695
  %v366 = vpow.pop %v365
  %v367 = vmul.f32 %v320, 1.442695
  %v368 = vpow.pop %v367
  %v369 = vmul.f32 %v321, 1.442695
  %v370 = vpow.pop %v369
  %v371 = vmul.f32 %v322, 1.442695
  %v372 = vpow.pop %v371
  %v373 = vmul.f32 %v323, 1.442695
  %v374 = vpow.pop %v373
  %v375 = vmul.f32 %v324, 1.442695
  %v376 = vpow.pop %v375
  %v377 = vmul.f32 %v325, 1.442695
  %v378 = vpow.pop %v377
  %v379 = vmul.f32 %v326, 1.442695
  %v380 = vpow.pop %v379
  %v381 = vmul.f32 %v327, 1.442695
  %v382 = vpow.pop %v381
  %v383 = vmul.f32 %v328, 1.442695
  %v384 = vpow.pop %v383
  %v385 = vmul.f32 %v329, 1.442695
  %v386 = vpow.pop %v385
  %v387 = vmul.f32 %v330, 1.442695
  %v388 = vpow.pop %v387
  %v389 = vmul.f32 %v331, 1.442695
  %v390 = vpow.pop %v389
  %v391 = vmul.f32 %v332, 1.442695
  %v392 = vpow.pop %v391
  %v393 = vmul.f32 %v333, 1.442695
  %v394 = vpow.pop %v393
  %v395 = vmul.f32 %v334, 1.442695
  %v396 = vpow.pop %v395
  %v397 = vmul.f32 %v335, 1.442695
  %v398 = vpow.pop %v397
  %v399 = vmul.f32 %v336, 1.442695
  %v400 = vpow.pop %v399
  %v401 = vsub.f32 %v338, 1.0
  %v402 = vsub.f32 %v340, 1.0
  %v403 = vsub.f32 %v342, 1.0
  %v404 = vsub.f32 %v344, 1.0
  %v405 = vsub.f32 %v346, 1.0
  %v406 = vsub.f32 %v348, 1.0
  %v407 = vsub.f32 %v350, 1.0
  %v408 = vsub.f32 %v352, 1.0
  %v409 = vsub.f32 %v354, 1.0
  %v410 = vsub.f32 %v356, 1.0
  %v411 = vsub.f32 %v358, 1.0
  %v412 = vsub.f32 %v360, 1.0
  %v413 = vsub.f32 %v362, 1.0
  %v414 = vsub.f32 %v364, 1.0
  %v415 = vsub.f32 %v366, 1.0
  %v416 = vsub.f32 %v368, 1.0
  %v417 = vsub.f32 %v370, 1.0
  %v418 = vsub.f32 %v372, 1.0
  %v419 = vsub.f32 %v374, 1.0
  %v420 = vsub.f32 %v376, 1.0
  %v421 = vsub.f32 %v378, 1.0
  %v422 = vsub.f32 %v380, 1.0
  %v423 = vsub.f32 %v382, 1.0
  %v424 = vsub.f32 %v384, 1.0
  %v425 = vsub.f32 %v386, 1.0
  %v426 = vsub.f32 %v388, 1.0
  %v427 = vsub.f32 %v390, 1.0
  %v428 = vsub.f32 %v392, 1.0
  %v429 = vsub.f32 %v394, 1.0
  %v430 = vsub.f32 %v396, 1.0
  %v431 = vsub.f32 %v398, 1.0
  %v432 = vsub.f32 %v400, 1.0
  %v433 = vsel %vm273, %v178, %v401
  %v434 = vsel %vm274, %v181, %v402
  %v435 = vsel %vm275, %v184, %v403
  %v436 = vsel %vm276, %v187, %v404
  %v437 = vsel %vm277, %v190, %v405
  %v438 = vsel %vm278, %v193, %v406
  %v439 = vsel %vm279, %v196, %v407
  %v440 = vsel %vm280, %v199, %v408
  %v441 = vsel %vm281, %v202, %v409
  %v442 = vsel %vm282, %v205, %v410
  %v443 = vsel %vm283, %v208, %v411
  %v444 = vsel %vm284, %v211, %v412
  %v445 = vsel %vm285, %v214, %v413
  %v446 = vsel %vm286, %v217, %v414
  %v447 = vsel %vm287, %v220, %v415
  %v448 = vsel %vm288, %v223, %v416
  %v449 = vsel %vm289, %v226, %v417
  %v450 = vsel %vm290, %v229, %v418
  %v451 = vsel %vm291, %v232, %v419
  %v452 = vsel %vm292, %v235, %v420
  %v453 = vsel %vm293, %v238, %v421
  %v454 = vsel %vm294, %v241, %v422
  %v455 = vsel %vm295, %v244, %v423
  %v456 = vsel %vm296, %v247, %v424
  %v457 = vsel %vm297, %v250, %v425
  %v458 = vsel %vm298, %v253, %v426
  %v459 = vsel %vm299, %v256, %v427
  %v460 = vsel %vm300, %v259, %v428
  %v461 = vsel %vm301, %v262, %v429
  %v462 = vsel %vm302, %v265, %v430
  %v463 = vsel %vm303, %v268, %v431
  %v464 = vsel %vm304, %v271, %v432
  %v465 = vld [vmem:[%s3] sm:$0xff]
  %v466 = vld [vmem:[%s3 + $0x8] sm:$0xff]
  %v467 = vld [vmem:[%s3 + $0x10] sm:$0xff]
  %v468 = vld [vmem:[%s3 + $0x18] sm:$0xff]
  %v469 = vld [vmem:[%s3 + $0x20] sm:$0xff]
  %v470 = vld [vmem:[%s3 + $0x28] sm:$0xff]
  %v471 = vld [vmem:[%s3 + $0x30] sm:$0xff]
  %v472 = vld [vmem:[%s3 + $0x38] sm:$0xff]
  %v473 = vld [vmem:[%s4] sm:$0x1]
  %v475 = vperm.slane %v473, 0
  %vm477 = vcmask 523264
  %v479 = vsel %vm477, %v433, 0
  %v482 = vsel %vm477, %v434, 0
  %v485 = vsel %vm477, %v435, 0
  %v488 = vsel %vm477, %v436, 0
  %v491 = vsel %vm477, %v437, 0
  %v494 = vsel %vm477, %v438, 0
  %v497 = vsel %vm477, %v439, 0
  %v500 = vsel %vm477, %v440, 0
  %v503 = vsel %vm477, %v441, 0
  %v506 = vsel %vm477, %v442, 0
  %v509 = vsel %vm477, %v443, 0
  %v512 = vsel %vm477, %v444, 0
  %v515 = vsel %vm477, %v445, 0
  %v518 = vsel %vm477, %v446, 0
  %v521 = vsel %vm477, %v447, 0
  %v524 = vsel %vm477, %v448, 0
  %v527 = vsel %vm477, %v449, 0
  %v530 = vsel %vm477, %v450, 0
  %v533 = vsel %vm477, %v451, 0
  %v536 = vsel %vm477, %v452, 0
  %v539 = vsel %vm477, %v453, 0
  %v542 = vsel %vm477, %v454, 0
  %v545 = vsel %vm477, %v455, 0
  %v548 = vsel %vm477, %v456, 0
  %v551 = vsel %vm477, %v457, 0
  %v554 = vsel %vm477, %v458, 0
  %v557 = vsel %vm477, %v459, 0
  %v560 = vsel %vm477, %v460, 0
  %v563 = vsel %vm477, %v461, 0
  %v566 = vsel %vm477, %v462, 0
  %v569 = vsel %vm477, %v463, 0
  %v572 = vsel %vm477, %v464, 0
  %574 = vmatpush.msra.mxu0 0.0
  %575 = vmatpush.msra.mxu0 0.0
  %576 = vmatpush.msra.mxu0 0.0
  %577 = vmatpush.msra.mxu0 0.0
  %578 = vmatpush.msra.mxu0 0.0
  %579 = vmatpush.msra.mxu0 0.0
  %580 = vmatpush.msra.mxu0 0.0
  %581 = vmatpush.msra.mxu0 0.0
  %582 = vmatpush.msra.mxu0 %v472
  %583 = vmatpush.msra.mxu0 %v471
  %584 = vmatpush.msra.mxu0 %v470
  %585 = vmatpush.msra.mxu0 %v469
  %586 = vmatpush.msra.mxu0 %v468
  %587 = vmatpush.msra.mxu0 %v467
  %588 = vmatpush.msra.mxu0 %v466
  %589 = vmatpush.msra.mxu0 %v465
  %590 = vmatmul.f32.gmra.mxu0 %v479
  %v591 = vpop.f32.mrf.mxu0
  %v592 = vadd.f32 %v475, %v591
  %593 = vmatmul.f32.gmra.mxu0 %v482
  %v594 = vpop.f32.mrf.mxu0
  %v595 = vadd.f32 %v475, %v594
  %596 = vmatmul.f32.gmra.mxu0 %v485
  %v597 = vpop.f32.mrf.mxu0
  %v598 = vadd.f32 %v475, %v597
  %599 = vmatmul.f32.gmra.mxu0 %v488
  %v600 = vpop.f32.mrf.mxu0
  %v601 = vadd.f32 %v475, %v600
  %602 = vmatmul.f32.gmra.mxu0 %v491
  %v603 = vpop.f32.mrf.mxu0
  %v604 = vadd.f32 %v475, %v603
  %605 = vmatmul.f32.gmra.mxu0 %v494
  %v606 = vpop.f32.mrf.mxu0
  %v607 = vadd.f32 %v475, %v606
  %608 = vmatmul.f32.gmra.mxu0 %v497
  %v609 = vpop.f32.mrf.mxu0
  %v610 = vadd.f32 %v475, %v609
  %611 = vmatmul.f32.gmra.mxu0 %v500
  %v612 = vpop.f32.mrf.mxu0
  %v613 = vadd.f32 %v475, %v612
  %614 = vmatmul.f32.gmra.mxu0 %v503
  %v615 = vpop.f32.mrf.mxu0
  %v616 = vadd.f32 %v475, %v615
  %617 = vmatmul.f32.gmra.mxu0 %v506
  %v618 = vpop.f32.mrf.mxu0
  %v619 = vadd.f32 %v475, %v618
  %620 = vmatmul.f32.gmra.mxu0 %v509
  %v621 = vpop.f32.mrf.mxu0
  %v622 = vadd.f32 %v475, %v621
  %623 = vmatmul.f32.gmra.mxu0 %v512
  %v624 = vpop.f32.mrf.mxu0
  %v625 = vadd.f32 %v475, %v624
  %626 = vmatmul.f32.gmra.mxu0 %v515
  %v627 = vpop.f32.mrf.mxu0
  %v628 = vadd.f32 %v475, %v627
  %629 = vmatmul.f32.gmra.mxu0 %v518
  %v630 = vpop.f32.mrf.mxu0
  %v631 = vadd.f32 %v475, %v630
  %632 = vmatmul.f32.gmra.mxu0 %v521
  %v633 = vpop.f32.mrf.mxu0
  %v634 = vadd.f32 %v475, %v633
  %635 = vmatmul.f32.gmra.mxu0 %v524
  %v636 = vpop.f32.mrf.mxu0
  %v637 = vadd.f32 %v475, %v636
  %638 = vmatmul.f32.gmra.mxu0 %v527
  %v639 = vpop.f32.mrf.mxu0
  %v640 = vadd.f32 %v475, %v639
  %641 = vmatmul.f32.gmra.mxu0 %v530
  %v642 = vpop.f32.mrf.mxu0
  %v643 = vadd.f32 %v475, %v642
  %644 = vmatmul.f32.gmra.mxu0 %v533
  %v645 = vpop.f32.mrf.mxu0
  %v646 = vadd.f32 %v475, %v645
  %647 = vmatmul.f32.gmra.mxu0 %v536
  %v648 = vpop.f32.mrf.mxu0
  %v649 = vadd.f32 %v475, %v648
  %650 = vmatmul.f32.gmra.mxu0 %v539
  %v651 = vpop.f32.mrf.mxu0
  %v652 = vadd.f32 %v475, %v651
  %653 = vmatmul.f32.gmra.mxu0 %v542
  %v654 = vpop.f32.mrf.mxu0
  %v655 = vadd.f32 %v475, %v654
  %656 = vmatmul.f32.gmra.mxu0 %v545
  %v657 = vpop.f32.mrf.mxu0
  %v658 = vadd.f32 %v475, %v657
  %659 = vmatmul.f32.gmra.mxu0 %v548
  %v660 = vpop.f32.mrf.mxu0
  %v661 = vadd.f32 %v475, %v660
  %662 = vmatmul.f32.gmra.mxu0 %v551
  %v663 = vpop.f32.mrf.mxu0
  %v664 = vadd.f32 %v475, %v663
  %665 = vmatmul.f32.gmra.mxu0 %v554
  %v666 = vpop.f32.mrf.mxu0
  %v667 = vadd.f32 %v475, %v666
  %668 = vmatmul.f32.gmra.mxu0 %v557
  %v669 = vpop.f32.mrf.mxu0
  %v670 = vadd.f32 %v475, %v669
  %671 = vmatmul.f32.gmra.mxu0 %v560
  %v672 = vpop.f32.mrf.mxu0
  %v673 = vadd.f32 %v475, %v672
  %674 = vmatmul.f32.gmra.mxu0 %v563
  %v675 = vpop.f32.mrf.mxu0
  %v676 = vadd.f32 %v475, %v675
  %677 = vmatmul.f32.gmra.mxu0 %v566
  %v678 = vpop.f32.mrf.mxu0
  %v679 = vadd.f32 %v475, %v678
  %680 = vmatmul.f32.gmra.mxu0 %v569
  %v681 = vpop.f32.mrf.mxu0
  %v682 = vadd.f32 %v475, %v681
  %683 = vmatmul.f32.gmra.mxu0 %v572
  %v684 = vpop.f32.mrf.mxu0
  %v685 = vadd.f32 %v475, %v684
  %686 = vdwg.mxu0
  %vm687 = vcmp.gt.f32.partialorder %v592, 0.0
  %vm688 = vcmp.gt.f32.partialorder %v595, 0.0
  %vm689 = vcmp.gt.f32.partialorder %v598, 0.0
  %vm690 = vcmp.gt.f32.partialorder %v601, 0.0
  %vm691 = vcmp.gt.f32.partialorder %v604, 0.0
  %vm692 = vcmp.gt.f32.partialorder %v607, 0.0
  %vm693 = vcmp.gt.f32.partialorder %v610, 0.0
  %vm694 = vcmp.gt.f32.partialorder %v613, 0.0
  %vm695 = vcmp.gt.f32.partialorder %v616, 0.0
  %vm696 = vcmp.gt.f32.partialorder %v619, 0.0
  %vm697 = vcmp.gt.f32.partialorder %v622, 0.0
  %vm698 = vcmp.gt.f32.partialorder %v625, 0.0
  %vm699 = vcmp.gt.f32.partialorder %v628, 0.0
  %vm700 = vcmp.gt.f32.partialorder %v631, 0.0
  %vm701 = vcmp.gt.f32.partialorder %v634, 0.0
  %vm702 = vcmp.gt.f32.partialorder %v637, 0.0
  %vm703 = vcmp.gt.f32.partialorder %v640, 0.0
  %vm704 = vcmp.gt.f32.partialorder %v643, 0.0
  %vm705 = vcmp.gt.f32.partialorder %v646, 0.0
  %vm706 = vcmp.gt.f32.partialorder %v649, 0.0
  %vm707 = vcmp.gt.f32.partialorder %v652, 0.0
  %vm708 = vcmp.gt.f32.partialorder %v655, 0.0
  %vm709 = vcmp.gt.f32.partialorder %v658, 0.0
  %vm710 = vcmp.gt.f32.partialorder %v661, 0.0
  %vm711 = vcmp.gt.f32.partialorder %v664, 0.0
  %vm712 = vcmp.gt.f32.partialorder %v667, 0.0
  %vm713 = vcmp.gt.f32.partialorder %v670, 0.0
  %vm714 = vcmp.gt.f32.partialorder %v673, 0.0
  %vm715 = vcmp.gt.f32.partialorder %v676, 0.0
  %vm716 = vcmp.gt.f32.partialorder %v679, 0.0
  %vm717 = vcmp.gt.f32.partialorder %v682, 0.0
  %vm718 = vcmp.gt.f32.partialorder %v685, 0.0
  %v719 = vmin.f32 %v592, 0.0
  %v720 = vmin.f32 %v595, 0.0
  %v721 = vmin.f32 %v598, 0.0
  %v722 = vmin.f32 %v601, 0.0
  %v723 = vmin.f32 %v604, 0.0
  %v724 = vmin.f32 %v607, 0.0
  %v725 = vmin.f32 %v610, 0.0
  %v726 = vmin.f32 %v613, 0.0
  %v727 = vmin.f32 %v616, 0.0
  %v728 = vmin.f32 %v619, 0.0
  %v729 = vmin.f32 %v622, 0.0
  %v730 = vmin.f32 %v625, 0.0
  %v731 = vmin.f32 %v628, 0.0
  %v732 = vmin.f32 %v631, 0.0
  %v733 = vmin.f32 %v634, 0.0
  %v734 = vmin.f32 %v637, 0.0
  %v735 = vmin.f32 %v640, 0.0
  %v736 = vmin.f32 %v643, 0.0
  %v737 = vmin.f32 %v646, 0.0
  %v738 = vmin.f32 %v649, 0.0
  %v739 = vmin.f32 %v652, 0.0
  %v740 = vmin.f32 %v655, 0.0
  %v741 = vmin.f32 %v658, 0.0
  %v742 = vmin.f32 %v661, 0.0
  %v743 = vmin.f32 %v664, 0.0
  %v744 = vmin.f32 %v667, 0.0
  %v745 = vmin.f32 %v670, 0.0
  %v746 = vmin.f32 %v673, 0.0
  %v747 = vmin.f32 %v676, 0.0
  %v748 = vmin.f32 %v679, 0.0
  %v749 = vmin.f32 %v682, 0.0
  %v750 = vmin.f32 %v685, 0.0
  %v751 = vmul.f32 %v719, 1.442695
  %v752 = vpow.pop %v751
  %v753 = vmul.f32 %v720, 1.442695
  %v754 = vpow.pop %v753
  %v755 = vmul.f32 %v721, 1.442695
  %v756 = vpow.pop %v755
  %v757 = vmul.f32 %v722, 1.442695
  %v758 = vpow.pop %v757
  %v759 = vmul.f32 %v723, 1.442695
  %v760 = vpow.pop %v759
  %v761 = vmul.f32 %v724, 1.442695
  %v762 = vpow.pop %v761
  %v763 = vmul.f32 %v725, 1.442695
  %v764 = vpow.pop %v763
  %v765 = vmul.f32 %v726, 1.442695
  %v766 = vpow.pop %v765
  %v767 = vmul.f32 %v727, 1.442695
  %v768 = vpow.pop %v767
  %v769 = vmul.f32 %v728, 1.442695
  %v770 = vpow.pop %v769
  %v771 = vmul.f32 %v729, 1.442695
  %v772 = vpow.pop %v771
  %v773 = vmul.f32 %v730, 1.442695
  %v774 = vpow.pop %v773
  %v775 = vmul.f32 %v731, 1.442695
  %v776 = vpow.pop %v775
  %v777 = vmul.f32 %v732, 1.442695
  %v778 = vpow.pop %v777
  %v779 = vmul.f32 %v733, 1.442695
  %v780 = vpow.pop %v779
  %v781 = vmul.f32 %v734, 1.442695
  %v782 = vpow.pop %v781
  %v783 = vmul.f32 %v735, 1.442695
  %v784 = vpow.pop %v783
  %v785 = vmul.f32 %v736, 1.442695
  %v786 = vpow.pop %v785
  %v787 = vmul.f32 %v737, 1.442695
  %v788 = vpow.pop %v787
  %v789 = vmul.f32 %v738, 1.442695
  %v790 = vpow.pop %v789
  %v791 = vmul.f32 %v739, 1.442695
  %v792 = vpow.pop %v791
  %v793 = vmul.f32 %v740, 1.442695
  %v794 = vpow.pop %v793
  %v795 = vmul.f32 %v741, 1.442695
  %v796 = vpow.pop %v795
  %v797 = vmul.f32 %v742, 1.442695
  %v798 = vpow.pop %v797
  %v799 = vmul.f32 %v743, 1.442695
  %v800 = vpow.pop %v799
  %v801 = vmul.f32 %v744, 1.442695
  %v802 = vpow.pop %v801
  %v803 = vmul.f32 %v745, 1.442695
  %v804 = vpow.pop %v803
  %v805 = vmul.f32 %v746, 1.442695
  %v806 = vpow.pop %v805
  %v807 = vmul.f32 %v747, 1.442695
  %v808 = vpow.pop %v807
  %v809 = vmul.f32 %v748, 1.442695
  %v810 = vpow.pop %v809
  %v811 = vmul.f32 %v749, 1.442695
  %v812 = vpow.pop %v811
  %v813 = vmul.f32 %v750, 1.442695
  %v814 = vpow.pop %v813
  %v815 = vsub.f32 %v752, 1.0
  %v816 = vsub.f32 %v754, 1.0
  %v817 = vsub.f32 %v756, 1.0
  %v818 = vsub.f32 %v758, 1.0
  %v819 = vsub.f32 %v760, 1.0
  %v820 = vsub.f32 %v762, 1.0
  %v821 = vsub.f32 %v764, 1.0
  %v822 = vsub.f32 %v766, 1.0
  %v823 = vsub.f32 %v768, 1.0
  %v824 = vsub.f32 %v770, 1.0
  %v825 = vsub.f32 %v772, 1.0
  %v826 = vsub.f32 %v774, 1.0
  %v827 = vsub.f32 %v776, 1.0
  %v828 = vsub.f32 %v778, 1.0
  %v829 = vsub.f32 %v780, 1.0
  %v830 = vsub.f32 %v782, 1.0
  %v831 = vsub.f32 %v784, 1.0
  %v832 = vsub.f32 %v786, 1.0
  %v833 = vsub.f32 %v788, 1.0
  %v834 = vsub.f32 %v790, 1.0
  %v835 = vsub.f32 %v792, 1.0
  %v836 = vsub.f32 %v794, 1.0
  %v837 = vsub.f32 %v796, 1.0
  %v838 = vsub.f32 %v798, 1.0
  %v839 = vsub.f32 %v800, 1.0
  %v840 = vsub.f32 %v802, 1.0
  %v841 = vsub.f32 %v804, 1.0
  %v842 = vsub.f32 %v806, 1.0
  %v843 = vsub.f32 %v808, 1.0
  %v844 = vsub.f32 %v810, 1.0
  %v845 = vsub.f32 %v812, 1.0
  %v846 = vsub.f32 %v814, 1.0
  %v847 = vsel %vm687, %v592, %v815
  %v848 = vsel %vm688, %v595, %v816
  %v849 = vsel %vm689, %v598, %v817
  %v850 = vsel %vm690, %v601, %v818
  %v851 = vsel %vm691, %v604, %v819
  %v852 = vsel %vm692, %v607, %v820
  %v853 = vsel %vm693, %v610, %v821
  %v854 = vsel %vm694, %v613, %v822
  %v855 = vsel %vm695, %v616, %v823
  %v856 = vsel %vm696, %v619, %v824
  %v857 = vsel %vm697, %v622, %v825
  %v858 = vsel %vm698, %v625, %v826
  %v859 = vsel %vm699, %v628, %v827
  %v860 = vsel %vm700, %v631, %v828
  %v861 = vsel %vm701, %v634, %v829
  %v862 = vsel %vm702, %v637, %v830
  %v863 = vsel %vm703, %v640, %v831
  %v864 = vsel %vm704, %v643, %v832
  %v865 = vsel %vm705, %v646, %v833
  %v866 = vsel %vm706, %v649, %v834
  %v867 = vsel %vm707, %v652, %v835
  %v868 = vsel %vm708, %v655, %v836
  %v869 = vsel %vm709, %v658, %v837
  %v870 = vsel %vm710, %v661, %v838
  %v871 = vsel %vm711, %v664, %v839
  %v872 = vsel %vm712, %v667, %v840
  %v873 = vsel %vm713, %v670, %v841
  %v874 = vsel %vm714, %v673, %v842
  %v875 = vsel %vm715, %v676, %v843
  %v876 = vsel %vm716, %v679, %v844
  %v877 = vsel %vm717, %v682, %v845
  %v878 = vsel %vm718, %v685, %v846
  %879 = vst.msk [vmem:[%s5] sm:$0xff] %vm477, %v847
  %880 = vst.msk [vmem:[%s5 + $0x8] sm:$0xff] %vm477, %v848
  %881 = vst.msk [vmem:[%s5 + $0x10] sm:$0xff] %vm477, %v849
  %882 = vst.msk [vmem:[%s5 + $0x18] sm:$0xff] %vm477, %v850
  %883 = vst.msk [vmem:[%s5 + $0x20] sm:$0xff] %vm477, %v851
  %884 = vst.msk [vmem:[%s5 + $0x28] sm:$0xff] %vm477, %v852
  %885 = vst.msk [vmem:[%s5 + $0x30] sm:$0xff] %vm477, %v853
  %886 = vst.msk [vmem:[%s5 + $0x38] sm:$0xff] %vm477, %v854
  %887 = vst.msk [vmem:[%s5 + $0x40] sm:$0xff] %vm477, %v855
  %888 = vst.msk [vmem:[%s5 + $0x48] sm:$0xff] %vm477, %v856
  %889 = vst.msk [vmem:[%s5 + $0x50] sm:$0xff] %vm477, %v857
  %890 = vst.msk [vmem:[%s5 + $0x58] sm:$0xff] %vm477, %v858
  %891 = vst.msk [vmem:[%s5 + $0x60] sm:$0xff] %vm477, %v859
  %892 = vst.msk [vmem:[%s5 + $0x68] sm:$0xff] %vm477, %v860
  %893 = vst.msk [vmem:[%s5 + $0x70] sm:$0xff] %vm477, %v861
  %894 = vst.msk [vmem:[%s5 + $0x78] sm:$0xff] %vm477, %v862
  %895 = vst.msk [vmem:[%s5 + $0x80] sm:$0xff] %vm477, %v863
  %896 = vst.msk [vmem:[%s5 + $0x88] sm:$0xff] %vm477, %v864
  %897 = vst.msk [vmem:[%s5 + $0x90] sm:$0xff] %vm477, %v865
  %898 = vst.msk [vmem:[%s5 + $0x98] sm:$0xff] %vm477, %v866
  %899 = vst.msk [vmem:[%s5 + $0xa0] sm:$0xff] %vm477, %v867
  %900 = vst.msk [vmem:[%s5 + $0xa8] sm:$0xff] %vm477, %v868
  %901 = vst.msk [vmem:[%s5 + $0xb0] sm:$0xff] %vm477, %v869
  %902 = vst.msk [vmem:[%s5 + $0xb8] sm:$0xff] %vm477, %v870
  %903 = vst.msk [vmem:[%s5 + $0xc0] sm:$0xff] %vm477, %v871
  %904 = vst.msk [vmem:[%s5 + $0xc8] sm:$0xff] %vm477, %v872
  %905 = vst.msk [vmem:[%s5 + $0xd0] sm:$0xff] %vm477, %v873
  %906 = vst.msk [vmem:[%s5 + $0xd8] sm:$0xff] %vm477, %v874
  %907 = vst.msk [vmem:[%s5 + $0xe0] sm:$0xff] %vm477, %v875
  %908 = vst.msk [vmem:[%s5 + $0xe8] sm:$0xff] %vm477, %v876
  %909 = vst.msk [vmem:[%s5 + $0xf0] sm:$0xff] %vm477, %v877
  %910 = vst.msk [vmem:[%s5 + $0xf8] sm:$0xff] %vm477, %v878
  %p911 = scmp.eq.s32.totalorder 0, 0
  // Predicated region
  $region22: #{gravnet_block_forward.6} parent=0 // pred_check
    %p912 = pneg %p911
  $region23: #{gravnet_block_forward.6} parent=0 // pred_check_branch
    %914 = sbr.rel (%p912) target = $region25
  $region24: #{gravnet_block_forward.6} parent=0 // pred_region
    %vm915 = vcmask 516096
    %916 = vst.msk [vmem:[%s6] sm:$0x1] %vm915, 0.0
    %917 = vst.msk [vmem:[%s7] sm:$0x1] %vm915, 0.0
  $region25: #{gravnet_block_forward.6} parent=0 // pred_fallthru
    _
  %v918 = vld [vmem:[%s6] sm:$0x1]
  %v919 = vsel %vm477, %v847, 0.0
  %v920 = vsel %vm477, %v848, 0.0
  %v921 = vadd.f32 %v919, %v920
  %v922 = vsel %vm477, %v849, 0.0
  %v923 = vadd.f32 %v921, %v922
  %v924 = vsel %vm477, %v850, 0.0
  %v925 = vadd.f32 %v923, %v924
  %v926 = vsel %vm477, %v851, 0.0
  %v927 = vadd.f32 %v925, %v926
  %v928 = vsel %vm477, %v852, 0.0
  %v929 = vadd.f32 %v927, %v928
  %v930 = vsel %vm477, %v853, 0.0
  %v931 = vadd.f32 %v929, %v930
  %v932 = vsel %vm477, %v854, 0.0
  %v933 = vadd.f32 %v931, %v932
  %v934 = vsel %vm477, %v855, 0.0
  %v935 = vadd.f32 %v933, %v934
  %v936 = vsel %vm477, %v856, 0.0
  %v937 = vadd.f32 %v935, %v936
  %v938 = vsel %vm477, %v857, 0.0
  %v939 = vadd.f32 %v937, %v938
  %v940 = vsel %vm477, %v858, 0.0
  %v941 = vadd.f32 %v939, %v940
  %v942 = vsel %vm477, %v859, 0.0
  %v943 = vadd.f32 %v941, %v942
  %v944 = vsel %vm477, %v860, 0.0
  %v945 = vadd.f32 %v943, %v944
  %v946 = vsel %vm477, %v861, 0.0
  %v947 = vadd.f32 %v945, %v946
  %v948 = vsel %vm477, %v862, 0.0
  %v949 = vadd.f32 %v947, %v948
  %v950 = vsel %vm477, %v863, 0.0
  %v951 = vadd.f32 %v949, %v950
  %v952 = vsel %vm477, %v864, 0.0
  %v953 = vadd.f32 %v951, %v952
  %v954 = vsel %vm477, %v865, 0.0
  %v955 = vadd.f32 %v953, %v954
  %v956 = vsel %vm477, %v866, 0.0
  %v957 = vadd.f32 %v955, %v956
  %v958 = vsel %vm477, %v867, 0.0
  %v959 = vadd.f32 %v957, %v958
  %v960 = vsel %vm477, %v868, 0.0
  %v961 = vadd.f32 %v959, %v960
  %v962 = vsel %vm477, %v869, 0.0
  %v963 = vadd.f32 %v961, %v962
  %v964 = vsel %vm477, %v870, 0.0
  %v965 = vadd.f32 %v963, %v964
  %v966 = vsel %vm477, %v871, 0.0
  %v967 = vadd.f32 %v965, %v966
  %v968 = vsel %vm477, %v872, 0.0
  %v969 = vadd.f32 %v967, %v968
  %v970 = vsel %vm477, %v873, 0.0
  %v971 = vadd.f32 %v969, %v970
  %v972 = vsel %vm477, %v874, 0.0
  %v973 = vadd.f32 %v971, %v972
  %v974 = vsel %vm477, %v875, 0.0
  %v975 = vadd.f32 %v973, %v974
  %v976 = vsel %vm477, %v876, 0.0
  %v977 = vadd.f32 %v975, %v976
  %v978 = vsel %vm477, %v877, 0.0
  %v979 = vadd.f32 %v977, %v978
  %v980 = vsel %vm477, %v878, 0.0
  %v981 = vadd.f32 %v979, %v980
  %v982 = vrot.slane %v981, 4
  %v983 = vadd.f32 %v981, %v982
  %v984 = vrot.slane %v983, 2
  %v985 = vadd.f32 %v983, %v984
  %v986 = vrot.slane %v985, 1
  %v987 = vadd.f32 %v985, %v986
  %v988 = vadd.f32 %v918, %v987
  %vm989 = vcmask 516096
  %990 = vst.msk [vmem:[%s6] sm:$0x1] %vm989, %v988
  %v991 = vld [vmem:[%s7] sm:$0x1]
  %v992 = vmul.f32 %v847, %v847
  %v993 = vmul.f32 %v848, %v848
  %v994 = vmul.f32 %v849, %v849
  %v995 = vmul.f32 %v850, %v850
  %v996 = vmul.f32 %v851, %v851
  %v997 = vmul.f32 %v852, %v852
  %v998 = vmul.f32 %v853, %v853
  %v999 = vmul.f32 %v854, %v854
  %v1000 = vmul.f32 %v855, %v855
  %v1001 = vmul.f32 %v856, %v856
  %v1002 = vmul.f32 %v857, %v857
  %v1003 = vmul.f32 %v858, %v858
  %v1004 = vmul.f32 %v859, %v859
  %v1005 = vmul.f32 %v860, %v860
  %v1006 = vmul.f32 %v861, %v861
  %v1007 = vmul.f32 %v862, %v862
  %v1008 = vmul.f32 %v863, %v863
  %v1009 = vmul.f32 %v864, %v864
  %v1010 = vmul.f32 %v865, %v865
  %v1011 = vmul.f32 %v866, %v866
  %v1012 = vmul.f32 %v867, %v867
  %v1013 = vmul.f32 %v868, %v868
  %v1014 = vmul.f32 %v869, %v869
  %v1015 = vmul.f32 %v870, %v870
  %v1016 = vmul.f32 %v871, %v871
  %v1017 = vmul.f32 %v872, %v872
  %v1018 = vmul.f32 %v873, %v873
  %v1019 = vmul.f32 %v874, %v874
  %v1020 = vmul.f32 %v875, %v875
  %v1021 = vmul.f32 %v876, %v876
  %v1022 = vmul.f32 %v877, %v877
  %v1023 = vmul.f32 %v878, %v878
  %v1024 = vsel %vm477, %v992, 0.0
  %v1025 = vsel %vm477, %v993, 0.0
  %v1026 = vadd.f32 %v1024, %v1025
  %v1027 = vsel %vm477, %v994, 0.0
  %v1028 = vadd.f32 %v1026, %v1027
  %v1029 = vsel %vm477, %v995, 0.0
  %v1030 = vadd.f32 %v1028, %v1029
  %v1031 = vsel %vm477, %v996, 0.0
  %v1032 = vadd.f32 %v1030, %v1031
  %v1033 = vsel %vm477, %v997, 0.0
  %v1034 = vadd.f32 %v1032, %v1033
  %v1035 = vsel %vm477, %v998, 0.0
  %v1036 = vadd.f32 %v1034, %v1035
  %v1037 = vsel %vm477, %v999, 0.0
  %v1038 = vadd.f32 %v1036, %v1037
  %v1039 = vsel %vm477, %v1000, 0.0
  %v1040 = vadd.f32 %v1038, %v1039
  %v1041 = vsel %vm477, %v1001, 0.0
  %v1042 = vadd.f32 %v1040, %v1041
  %v1043 = vsel %vm477, %v1002, 0.0
  %v1044 = vadd.f32 %v1042, %v1043
  %v1045 = vsel %vm477, %v1003, 0.0
  %v1046 = vadd.f32 %v1044, %v1045
  %v1047 = vsel %vm477, %v1004, 0.0
  %v1048 = vadd.f32 %v1046, %v1047
  %v1049 = vsel %vm477, %v1005, 0.0
  %v1050 = vadd.f32 %v1048, %v1049
  %v1051 = vsel %vm477, %v1006, 0.0
  %v1052 = vadd.f32 %v1050, %v1051
  %v1053 = vsel %vm477, %v1007, 0.0
  %v1054 = vadd.f32 %v1052, %v1053
  %v1055 = vsel %vm477, %v1008, 0.0
  %v1056 = vadd.f32 %v1054, %v1055
  %v1057 = vsel %vm477, %v1009, 0.0
  %v1058 = vadd.f32 %v1056, %v1057
  %v1059 = vsel %vm477, %v1010, 0.0
  %v1060 = vadd.f32 %v1058, %v1059
  %v1061 = vsel %vm477, %v1011, 0.0
  %v1062 = vadd.f32 %v1060, %v1061
  %v1063 = vsel %vm477, %v1012, 0.0
  %v1064 = vadd.f32 %v1062, %v1063
  %v1065 = vsel %vm477, %v1013, 0.0
  %v1066 = vadd.f32 %v1064, %v1065
  %v1067 = vsel %vm477, %v1014, 0.0
  %v1068 = vadd.f32 %v1066, %v1067
  %v1069 = vsel %vm477, %v1015, 0.0
  %v1070 = vadd.f32 %v1068, %v1069
  %v1071 = vsel %vm477, %v1016, 0.0
  %v1072 = vadd.f32 %v1070, %v1071
  %v1073 = vsel %vm477, %v1017, 0.0
  %v1074 = vadd.f32 %v1072, %v1073
  %v1075 = vsel %vm477, %v1018, 0.0
  %v1076 = vadd.f32 %v1074, %v1075
  %v1077 = vsel %vm477, %v1019, 0.0
  %v1078 = vadd.f32 %v1076, %v1077
  %v1079 = vsel %vm477, %v1020, 0.0
  %v1080 = vadd.f32 %v1078, %v1079
  %v1081 = vsel %vm477, %v1021, 0.0
  %v1082 = vadd.f32 %v1080, %v1081
  %v1083 = vsel %vm477, %v1022, 0.0
  %v1084 = vadd.f32 %v1082, %v1083
  %v1085 = vsel %vm477, %v1023, 0.0
  %v1086 = vadd.f32 %v1084, %v1085
  %v1087 = vrot.slane %v1086, 4
  %v1088 = vadd.f32 %v1086, %v1087
  %v1089 = vrot.slane %v1088, 2
  %v1090 = vadd.f32 %v1088, %v1089
  %v1091 = vrot.slane %v1090, 1
  %v1092 = vadd.f32 %v1090, %v1091
  %v1093 = vadd.f32 %v991, %v1092
  %1094 = vst.msk [vmem:[%s7] sm:$0x1] %vm989, %v1093
  // Predicated region
  $region26: #{gravnet_block_forward.6} parent=0 // pred_check
    _
  $region27: #{gravnet_block_forward.6} parent=0 // pred_check_branch
    %1096 = sbr.rel (0) target = $region29
  $region28: #{gravnet_block_forward.6} parent=0 // pred_region
    _
  $region29: #{gravnet_block_forward.6} parent=0 // pred_fallthru
    _
  // Predicated region
  $region30: #{gravnet_block_forward.6} parent=0 // pred_check
    _
  $region31: #{gravnet_block_forward.6} parent=0 // pred_check_branch
    %1098 = sbr.rel (0) target = $region33
  $region32: #{gravnet_block_forward.6} parent=0 // pred_region
    _
  $region33: #{gravnet_block_forward.6} parent=0 // pred_fallthru
    _
  // Predicated region
  $region34: #{gravnet_block_forward.6} parent=0 // pred_check
    _
  $region35: #{gravnet_block_forward.6} parent=0 // pred_check_branch
    %1100 = sbr.rel (0) target = $region37
  $region36: #{gravnet_block_forward.6} parent=0 // pred_region
    _
  $region37: #{gravnet_block_forward.6} parent=0 // pred_fallthru
    _
  // Predicated region
  $region38: #{gravnet_block_forward.6} parent=0 // pred_check
    _
  $region39: #{gravnet_block_forward.6} parent=0 // pred_check_branch
    %1102 = sbr.rel (0) target = $region41
  $region40: #{gravnet_block_forward.6} parent=0 // pred_region
    _
  $region41: #{gravnet_block_forward.6} parent=0 // pred_fallthru
    _
  // Predicated region
  $region42: #{gravnet_block_forward.6} parent=0 // pred_check
    _
  $region43: #{gravnet_block_forward.6} parent=0 // pred_check_branch
    %1104 = sbr.rel (0) target = $region45
  $region44: #{gravnet_block_forward.6} parent=0 // pred_region
    _
  $region45: #{gravnet_block_forward.6} parent=0 // pred_fallthru
    _
  // Predicated region
  $region46: #{gravnet_block_forward.6} parent=0 // pred_check
    _
  $region47: #{gravnet_block_forward.6} parent=0 // pred_check_branch
    %1106 = sbr.rel (0) target = $region49
  $region48: #{gravnet_block_forward.6} parent=0 // pred_region
    _
  $region49: #{gravnet_block_forward.6} parent=0 // pred_fallthru
    _

// kernel: gravnet_block_forward.7
$region0: #{gravnet_block_forward.7}
  #allocation0 [shape = 'u32[]', space=smem, size = 0x4, offset = 0x4, fixed_abs, tag = 'smem constant byte address 0x4 - core index']
  #allocation1 [shape = 'u32[72,128]{1,0:T(1,128)}', space=vmem, size = 0x9000, scoped, tag = 'internal scratch']
  %s0 = inlined_call_operand.vmem [shape: f32[256,64], index: 0, kind: input, shape index: {}]
  %s1 = inlined_call_operand.vmem [shape: f32[64,256], index: 1, kind: input, shape index: {}]
  %s2 = inlined_call_operand.vmem [shape: f32[1,256], index: 2, kind: input, shape index: {}]
  %s3 = inlined_call_operand.vmem [shape: f32[256,256], index: 3, kind: output, shape index: {}]
  %s4 = sld [smem:[#allocation0]]
  $region22: #{gravnet_block_forward.7} parent=0
    _
  %s6 = ssub.s32 1, %s4
  %s7 = scalar_select 0, %s6, %s4
  // Predicated region
  $region2: #{gravnet_block_forward.7} parent=0 // pred_check
    _
  $region3: #{gravnet_block_forward.7} parent=0 // pred_check_branch
    %9 = sbr.rel (0) target = $region5
  $region4: #{gravnet_block_forward.7} parent=0 // pred_region
    _
  $region5: #{gravnet_block_forward.7} parent=0 // pred_fallthru
    _
  // Predicated region
  $region6: #{gravnet_block_forward.7} parent=0 // pred_check
    _
  $region7: #{gravnet_block_forward.7} parent=0 // pred_check_branch
    %11 = sbr.rel (0) target = $region9
  $region8: #{gravnet_block_forward.7} parent=0 // pred_region
    _
  $region9: #{gravnet_block_forward.7} parent=0 // pred_fallthru
    _
  // Predicated region
  $region10: #{gravnet_block_forward.7} parent=0 // pred_check
    _
  $region11: #{gravnet_block_forward.7} parent=0 // pred_check_branch
    %13 = sbr.rel (0) target = $region13
  $region12: #{gravnet_block_forward.7} parent=0 // pred_region
    _
  $region13: #{gravnet_block_forward.7} parent=0 // pred_fallthru
    _
  %v14 = vld [vmem:[%s0] sm:$0xff]
  %v15 = vld [vmem:[%s0 + $0x8] sm:$0xff]
  %v16 = vld [vmem:[%s0 + $0x10] sm:$0xff]
  %v17 = vld [vmem:[%s0 + $0x18] sm:$0xff]
  %v18 = vld [vmem:[%s0 + $0x20] sm:$0xff]
  %v19 = vld [vmem:[%s0 + $0x28] sm:$0xff]
  %v20 = vld [vmem:[%s0 + $0x30] sm:$0xff]
  %v21 = vld [vmem:[%s0 + $0x38] sm:$0xff]
  %v22 = vld [vmem:[%s0 + $0x40] sm:$0xff]
  %v23 = vld [vmem:[%s0 + $0x48] sm:$0xff]
  %v24 = vld [vmem:[%s0 + $0x50] sm:$0xff]
  %v25 = vld [vmem:[%s0 + $0x58] sm:$0xff]
  %v26 = vld [vmem:[%s0 + $0x60] sm:$0xff]
  %v27 = vld [vmem:[%s0 + $0x68] sm:$0xff]
  %v28 = vld [vmem:[%s0 + $0x70] sm:$0xff]
  %v29 = vld [vmem:[%s0 + $0x78] sm:$0xff]
  %v30 = vld [vmem:[%s0 + $0x80] sm:$0xff]
  %v31 = vld [vmem:[%s0 + $0x88] sm:$0xff]
  %v32 = vld [vmem:[%s0 + $0x90] sm:$0xff]
  %v33 = vld [vmem:[%s0 + $0x98] sm:$0xff]
  %v34 = vld [vmem:[%s0 + $0xa0] sm:$0xff]
  %v35 = vld [vmem:[%s0 + $0xa8] sm:$0xff]
  %v36 = vld [vmem:[%s0 + $0xb0] sm:$0xff]
  %v37 = vld [vmem:[%s0 + $0xb8] sm:$0xff]
  %v38 = vld [vmem:[%s0 + $0xc0] sm:$0xff]
  %v39 = vld [vmem:[%s0 + $0xc8] sm:$0xff]
  %v40 = vld [vmem:[%s0 + $0xd0] sm:$0xff]
  %v41 = vld [vmem:[%s0 + $0xd8] sm:$0xff]
  %v42 = vld [vmem:[%s0 + $0xe0] sm:$0xff]
  %v43 = vld [vmem:[%s0 + $0xe8] sm:$0xff]
  %v44 = vld [vmem:[%s0 + $0xf0] sm:$0xff]
  %v45 = vld [vmem:[%s0 + $0xf8] sm:$0xff]
  %v46 = vld [vmem:[%s1] sm:$0xff]
  %v47 = vld [vmem:[%s1 + $0x8] sm:$0xff]
  %v48 = vld [vmem:[%s1 + $0x10] sm:$0xff]
  %v49 = vld [vmem:[%s1 + $0x18] sm:$0xff]
  %v50 = vld [vmem:[%s1 + $0x20] sm:$0xff]
  %v51 = vld [vmem:[%s1 + $0x28] sm:$0xff]
  %v52 = vld [vmem:[%s1 + $0x30] sm:$0xff]
  %v53 = vld [vmem:[%s1 + $0x38] sm:$0xff]
  %v54 = vld [vmem:[%s1 + $0x40] sm:$0xff]
  %v55 = vld [vmem:[%s1 + $0x48] sm:$0xff]
  %v56 = vld [vmem:[%s1 + $0x50] sm:$0xff]
  %v57 = vld [vmem:[%s1 + $0x58] sm:$0xff]
  %v58 = vld [vmem:[%s1 + $0x60] sm:$0xff]
  %v59 = vld [vmem:[%s1 + $0x68] sm:$0xff]
  %v60 = vld [vmem:[%s1 + $0x70] sm:$0xff]
  %v61 = vld [vmem:[%s1 + $0x78] sm:$0xff]
  %v62 = vld [vmem:[%s2] sm:$0x3]
  %v64 = vperm.slane %v62, 0
  %v65 = vperm.slane %v62, 1
  %vm68 = vcmask 523264
  %v70 = vsel %vm68, %v14, 0
  %v73 = vsel %vm68, %v15, 0
  %v76 = vsel %vm68, %v16, 0
  %v79 = vsel %vm68, %v17, 0
  %v82 = vsel %vm68, %v18, 0
  %v85 = vsel %vm68, %v19, 0
  %v88 = vsel %vm68, %v20, 0
  %v91 = vsel %vm68, %v21, 0
  %v94 = vsel %vm68, %v22, 0
  %v97 = vsel %vm68, %v23, 0
  %v100 = vsel %vm68, %v24, 0
  %v103 = vsel %vm68, %v25, 0
  %v106 = vsel %vm68, %v26, 0
  %v109 = vsel %vm68, %v27, 0
  %v112 = vsel %vm68, %v28, 0
  %v115 = vsel %vm68, %v29, 0
  %v118 = vsel %vm68, %v30, 0
  %v121 = vsel %vm68, %v31, 0
  %v124 = vsel %vm68, %v32, 0
  %v127 = vsel %vm68, %v33, 0
  %v130 = vsel %vm68, %v34, 0
  %v133 = vsel %vm68, %v35, 0
  %v136 = vsel %vm68, %v36, 0
  %v139 = vsel %vm68, %v37, 0
  %v142 = vsel %vm68, %v38, 0
  %v145 = vsel %vm68, %v39, 0
  %v148 = vsel %vm68, %v40, 0
  %v151 = vsel %vm68, %v41, 0
  %v154 = vsel %vm68, %v42, 0
  %v157 = vsel %vm68, %v43, 0
  %v160 = vsel %vm68, %v44, 0
  %v163 = vsel %vm68, %v45, 0
  %165 = vmatpush.msra.mxu0 0.0
  %166 = vmatpush.msra.mxu0 0.0
  %167 = vmatpush.msra.mxu0 0.0
  %168 = vmatpush.msra.mxu0 0.0
  %169 = vmatpush.msra.mxu0 0.0
  %170 = vmatpush.msra.mxu0 0.0
  %171 = vmatpush.msra.mxu0 0.0
  %172 = vmatpush.msra.mxu0 0.0
  %173 = vmatpush.msra.mxu0 %v60
  %174 = vmatpush.msra.mxu0 %v58
  %175 = vmatpush.msra.mxu0 %v56
  %176 = vmatpush.msra.mxu0 %v54
  %177 = vmatpush.msra.mxu0 %v52
  %178 = vmatpush.msra.mxu0 %v50
  %179 = vmatpush.msra.mxu0 %v48
  %180 = vmatpush.msra.mxu0 %v46
  %181 = vmatmul.f32.gmra.mxu0 %v70
  %v182 = vpop.f32.mrf.mxu0
  %v183 = vadd.f32 %v64, %v182
  %184 = vmatmul.f32.gmra.mxu0 %v73
  %v185 = vpop.f32.mrf.mxu0
  %v186 = vadd.f32 %v64, %v185
  %187 = vmatmul.f32.gmra.mxu0 %v76
  %v188 = vpop.f32.mrf.mxu0
  %v189 = vadd.f32 %v64, %v188
  %190 = vmatmul.f32.gmra.mxu0 %v79
  %v191 = vpop.f32.mrf.mxu0
  %v192 = vadd.f32 %v64, %v191
  %193 = vmatmul.f32.gmra.mxu0 %v82
  %v194 = vpop.f32.mrf.mxu0
  %v195 = vadd.f32 %v64, %v194
  %196 = vmatmul.f32.gmra.mxu0 %v85
  %v197 = vpop.f32.mrf.mxu0
  %v198 = vadd.f32 %v64, %v197
  %199 = vmatmul.f32.gmra.mxu0 %v88
  %v200 = vpop.f32.mrf.mxu0
  %v201 = vadd.f32 %v64, %v200
  %202 = vmatmul.f32.gmra.mxu0 %v91
  %v203 = vpop.f32.mrf.mxu0
  %v204 = vadd.f32 %v64, %v203
  %205 = vmatmul.f32.gmra.mxu0 %v94
  %v206 = vpop.f32.mrf.mxu0
  %v207 = vadd.f32 %v64, %v206
  %208 = vmatmul.f32.gmra.mxu0 %v97
  %v209 = vpop.f32.mrf.mxu0
  %v210 = vadd.f32 %v64, %v209
  %211 = vmatmul.f32.gmra.mxu0 %v100
  %v212 = vpop.f32.mrf.mxu0
  %v213 = vadd.f32 %v64, %v212
  %214 = vmatmul.f32.gmra.mxu0 %v103
  %v215 = vpop.f32.mrf.mxu0
  %v216 = vadd.f32 %v64, %v215
  %217 = vmatmul.f32.gmra.mxu0 %v106
  %v218 = vpop.f32.mrf.mxu0
  %v219 = vadd.f32 %v64, %v218
  %220 = vmatmul.f32.gmra.mxu0 %v109
  %v221 = vpop.f32.mrf.mxu0
  %v222 = vadd.f32 %v64, %v221
  %223 = vmatmul.f32.gmra.mxu0 %v112
  %v224 = vpop.f32.mrf.mxu0
  %v225 = vadd.f32 %v64, %v224
  %226 = vmatmul.f32.gmra.mxu0 %v115
  %v227 = vpop.f32.mrf.mxu0
  %v228 = vadd.f32 %v64, %v227
  %229 = vmatmul.f32.gmra.mxu0 %v118
  %v230 = vpop.f32.mrf.mxu0
  %v231 = vadd.f32 %v64, %v230
  %232 = vmatmul.f32.gmra.mxu0 %v121
  %v233 = vpop.f32.mrf.mxu0
  %v234 = vadd.f32 %v64, %v233
  %235 = vmatmul.f32.gmra.mxu0 %v124
  %v236 = vpop.f32.mrf.mxu0
  %v237 = vadd.f32 %v64, %v236
  %238 = vmatmul.f32.gmra.mxu0 %v127
  %v239 = vpop.f32.mrf.mxu0
  %v240 = vadd.f32 %v64, %v239
  %241 = vmatmul.f32.gmra.mxu0 %v130
  %v242 = vpop.f32.mrf.mxu0
  %v243 = vadd.f32 %v64, %v242
  %244 = vmatmul.f32.gmra.mxu0 %v133
  %v245 = vpop.f32.mrf.mxu0
  %v246 = vadd.f32 %v64, %v245
  %247 = vmatmul.f32.gmra.mxu0 %v136
  %v248 = vpop.f32.mrf.mxu0
  %v249 = vadd.f32 %v64, %v248
  %250 = vmatmul.f32.gmra.mxu0 %v139
  %v251 = vpop.f32.mrf.mxu0
  %v252 = vadd.f32 %v64, %v251
  %253 = vmatmul.f32.gmra.mxu0 %v142
  %v254 = vpop.f32.mrf.mxu0
  %v255 = vadd.f32 %v64, %v254
  %256 = vmatmul.f32.gmra.mxu0 %v145
  %v257 = vpop.f32.mrf.mxu0
  %v258 = vadd.f32 %v64, %v257
  %259 = vmatmul.f32.gmra.mxu0 %v148
  %v260 = vpop.f32.mrf.mxu0
  %v261 = vadd.f32 %v64, %v260
  %262 = vmatmul.f32.gmra.mxu0 %v151
  %v263 = vpop.f32.mrf.mxu0
  %v264 = vadd.f32 %v64, %v263
  %265 = vmatmul.f32.gmra.mxu0 %v154
  %v266 = vpop.f32.mrf.mxu0
  %v267 = vadd.f32 %v64, %v266
  %268 = vmatmul.f32.gmra.mxu0 %v157
  %v269 = vpop.f32.mrf.mxu0
  %v270 = vadd.f32 %v64, %v269
  %271 = vmatmul.f32.gmra.mxu0 %v160
  %v272 = vpop.f32.mrf.mxu0
  %v273 = vadd.f32 %v64, %v272
  %274 = vmatmul.f32.gmra.mxu0 %v163
  %v275 = vpop.f32.mrf.mxu0
  %v276 = vadd.f32 %v64, %v275
  %277 = vdwg.mxu0
  %278 = vmatpush.msra.mxu0 0.0
  %279 = vmatpush.msra.mxu0 0.0
  %280 = vmatpush.msra.mxu0 0.0
  %281 = vmatpush.msra.mxu0 0.0
  %282 = vmatpush.msra.mxu0 0.0
  %283 = vmatpush.msra.mxu0 0.0
  %284 = vmatpush.msra.mxu0 0.0
  %285 = vmatpush.msra.mxu0 0.0
  %286 = vmatpush.msra.mxu0 %v61
  %287 = vmatpush.msra.mxu0 %v59
  %288 = vmatpush.msra.mxu0 %v57
  %289 = vmatpush.msra.mxu0 %v55
  %290 = vmatpush.msra.mxu0 %v53
  %291 = vmatpush.msra.mxu0 %v51
  %292 = vmatpush.msra.mxu0 %v49
  %293 = vmatpush.msra.mxu0 %v47
  %294 = vmatmul.f32.gmra.mxu0 %v70
  %v295 = vpop.f32.mrf.mxu0
  %v296 = vadd.f32 %v65, %v295
  %297 = vmatmul.f32.gmra.mxu0 %v73
  %v298 = vpop.f32.mrf.mxu0
  %v299 = vadd.f32 %v65, %v298
  %300 = vmatmul.f32.gmra.mxu0 %v76
  %v301 = vpop.f32.mrf.mxu0
  %v302 = vadd.f32 %v65, %v301
  %303 = vmatmul.f32.gmra.mxu0 %v79
  %v304 = vpop.f32.mrf.mxu0
  %v305 = vadd.f32 %v65, %v304
  %306 = vmatmul.f32.gmra.mxu0 %v82
  %v307 = vpop.f32.mrf.mxu0
  %v308 = vadd.f32 %v65, %v307
  %309 = vmatmul.f32.gmra.mxu0 %v85
  %v310 = vpop.f32.mrf.mxu0
  %v311 = vadd.f32 %v65, %v310
  %312 = vmatmul.f32.gmra.mxu0 %v88
  %v313 = vpop.f32.mrf.mxu0
  %v314 = vadd.f32 %v65, %v313
  %315 = vmatmul.f32.gmra.mxu0 %v91
  %v316 = vpop.f32.mrf.mxu0
  %v317 = vadd.f32 %v65, %v316
  %318 = vmatmul.f32.gmra.mxu0 %v94
  %v319 = vpop.f32.mrf.mxu0
  %v320 = vadd.f32 %v65, %v319
  %321 = vmatmul.f32.gmra.mxu0 %v97
  %v322 = vpop.f32.mrf.mxu0
  %v323 = vadd.f32 %v65, %v322
  %324 = vmatmul.f32.gmra.mxu0 %v100
  %v325 = vpop.f32.mrf.mxu0
  %v326 = vadd.f32 %v65, %v325
  %327 = vmatmul.f32.gmra.mxu0 %v103
  %v328 = vpop.f32.mrf.mxu0
  %v329 = vadd.f32 %v65, %v328
  %330 = vmatmul.f32.gmra.mxu0 %v106
  %v331 = vpop.f32.mrf.mxu0
  %v332 = vadd.f32 %v65, %v331
  %333 = vmatmul.f32.gmra.mxu0 %v109
  %v334 = vpop.f32.mrf.mxu0
  %v335 = vadd.f32 %v65, %v334
  %336 = vmatmul.f32.gmra.mxu0 %v112
  %v337 = vpop.f32.mrf.mxu0
  %v338 = vadd.f32 %v65, %v337
  %339 = vmatmul.f32.gmra.mxu0 %v115
  %v340 = vpop.f32.mrf.mxu0
  %v341 = vadd.f32 %v65, %v340
  %342 = vmatmul.f32.gmra.mxu0 %v118
  %v343 = vpop.f32.mrf.mxu0
  %v344 = vadd.f32 %v65, %v343
  %345 = vmatmul.f32.gmra.mxu0 %v121
  %v346 = vpop.f32.mrf.mxu0
  %v347 = vadd.f32 %v65, %v346
  %348 = vmatmul.f32.gmra.mxu0 %v124
  %v349 = vpop.f32.mrf.mxu0
  %v350 = vadd.f32 %v65, %v349
  %351 = vmatmul.f32.gmra.mxu0 %v127
  %v352 = vpop.f32.mrf.mxu0
  %v353 = vadd.f32 %v65, %v352
  %354 = vmatmul.f32.gmra.mxu0 %v130
  %v355 = vpop.f32.mrf.mxu0
  %v356 = vadd.f32 %v65, %v355
  %357 = vmatmul.f32.gmra.mxu0 %v133
  %v358 = vpop.f32.mrf.mxu0
  %v359 = vadd.f32 %v65, %v358
  %360 = vmatmul.f32.gmra.mxu0 %v136
  %v361 = vpop.f32.mrf.mxu0
  %v362 = vadd.f32 %v65, %v361
  %363 = vmatmul.f32.gmra.mxu0 %v139
  %v364 = vpop.f32.mrf.mxu0
  %v365 = vadd.f32 %v65, %v364
  %366 = vmatmul.f32.gmra.mxu0 %v142
  %v367 = vpop.f32.mrf.mxu0
  %v368 = vadd.f32 %v65, %v367
  %369 = vmatmul.f32.gmra.mxu0 %v145
  %v370 = vpop.f32.mrf.mxu0
  %v371 = vadd.f32 %v65, %v370
  %372 = vmatmul.f32.gmra.mxu0 %v148
  %v373 = vpop.f32.mrf.mxu0
  %v374 = vadd.f32 %v65, %v373
  %375 = vmatmul.f32.gmra.mxu0 %v151
  %v376 = vpop.f32.mrf.mxu0
  %v377 = vadd.f32 %v65, %v376
  %378 = vmatmul.f32.gmra.mxu0 %v154
  %v379 = vpop.f32.mrf.mxu0
  %v380 = vadd.f32 %v65, %v379
  %381 = vmatmul.f32.gmra.mxu0 %v157
  %v382 = vpop.f32.mrf.mxu0
  %v383 = vadd.f32 %v65, %v382
  %384 = vmatmul.f32.gmra.mxu0 %v160
  %v385 = vpop.f32.mrf.mxu0
  %v386 = vadd.f32 %v65, %v385
  %387 = vmatmul.f32.gmra.mxu0 %v163
  %v388 = vpop.f32.mrf.mxu0
  %v389 = vadd.f32 %v65, %v388
  %390 = vdwg.mxu0
  %391 = vst [vmem:[%s3] sm:$0xff] %v183
  %392 = vst [vmem:[%s3 + $0x8] sm:$0xff] %v296
  %393 = vst [vmem:[%s3 + $0x10] sm:$0xff] %v186
  %394 = vst [vmem:[%s3 + $0x18] sm:$0xff] %v299
  %395 = vst [vmem:[%s3 + $0x20] sm:$0xff] %v189
  %396 = vst [vmem:[%s3 + $0x28] sm:$0xff] %v302
  %397 = vst [vmem:[%s3 + $0x30] sm:$0xff] %v192
  %398 = vst [vmem:[%s3 + $0x38] sm:$0xff] %v305
  %399 = vst [vmem:[%s3 + $0x40] sm:$0xff] %v195
  %400 = vst [vmem:[%s3 + $0x48] sm:$0xff] %v308
  %401 = vst [vmem:[%s3 + $0x50] sm:$0xff] %v198
  %402 = vst [vmem:[%s3 + $0x58] sm:$0xff] %v311
  %403 = vst [vmem:[%s3 + $0x60] sm:$0xff] %v201
  %404 = vst [vmem:[%s3 + $0x68] sm:$0xff] %v314
  %405 = vst [vmem:[%s3 + $0x70] sm:$0xff] %v204
  %406 = vst [vmem:[%s3 + $0x78] sm:$0xff] %v317
  %407 = vst [vmem:[%s3 + $0x80] sm:$0xff] %v207
  %408 = vst [vmem:[%s3 + $0x88] sm:$0xff] %v320
  %409 = vst [vmem:[%s3 + $0x90] sm:$0xff] %v210
  %410 = vst [vmem:[%s3 + $0x98] sm:$0xff] %v323
  %411 = vst [vmem:[%s3 + $0xa0] sm:$0xff] %v213
  %412 = vst [vmem:[%s3 + $0xa8] sm:$0xff] %v326
  %413 = vst [vmem:[%s3 + $0xb0] sm:$0xff] %v216
  %414 = vst [vmem:[%s3 + $0xb8] sm:$0xff] %v329
  %415 = vst [vmem:[%s3 + $0xc0] sm:$0xff] %v219
  %416 = vst [vmem:[%s3 + $0xc8] sm:$0xff] %v332
  %417 = vst [vmem:[%s3 + $0xd0] sm:$0xff] %v222
  %418 = vst [vmem:[%s3 + $0xd8] sm:$0xff] %v335
  %419 = vst [vmem:[%s3 + $0xe0] sm:$0xff] %v225
  %420 = vst [vmem:[%s3 + $0xe8] sm:$0xff] %v338
  %421 = vst [vmem:[%s3 + $0xf0] sm:$0xff] %v228
  %422 = vst [vmem:[%s3 + $0xf8] sm:$0xff] %v341
  %423 = vst [vmem:[%s3 + $0x100] sm:$0xff] %v231
  %424 = vst [vmem:[%s3 + $0x108] sm:$0xff] %v344
  %425 = vst [vmem:[%s3 + $0x110] sm:$0xff] %v234
  %426 = vst [vmem:[%s3 + $0x118] sm:$0xff] %v347
  %427 = vst [vmem:[%s3 + $0x120] sm:$0xff] %v237
  %428 = vst [vmem:[%s3 + $0x128] sm:$0xff] %v350
  %429 = vst [vmem:[%s3 + $0x130] sm:$0xff] %v240
  %430 = vst [vmem:[%s3 + $0x138] sm:$0xff] %v353
  %431 = vst [vmem:[%s3 + $0x140] sm:$0xff] %v243
  %432 = vst [vmem:[%s3 + $0x148] sm:$0xff] %v356
  %433 = vst [vmem:[%s3 + $0x150] sm:$0xff] %v246
  %434 = vst [vmem:[%s3 + $0x158] sm:$0xff] %v359
  %435 = vst [vmem:[%s3 + $0x160] sm:$0xff] %v249
  %436 = vst [vmem:[%s3 + $0x168] sm:$0xff] %v362
  %437 = vst [vmem:[%s3 + $0x170] sm:$0xff] %v252
  %438 = vst [vmem:[%s3 + $0x178] sm:$0xff] %v365
  %439 = vst [vmem:[%s3 + $0x180] sm:$0xff] %v255
  %440 = vst [vmem:[%s3 + $0x188] sm:$0xff] %v368
  %441 = vst [vmem:[%s3 + $0x190] sm:$0xff] %v258
  %442 = vst [vmem:[%s3 + $0x198] sm:$0xff] %v371
  %443 = vst [vmem:[%s3 + $0x1a0] sm:$0xff] %v261
  %444 = vst [vmem:[%s3 + $0x1a8] sm:$0xff] %v374
  %445 = vst [vmem:[%s3 + $0x1b0] sm:$0xff] %v264
  %446 = vst [vmem:[%s3 + $0x1b8] sm:$0xff] %v377
  %447 = vst [vmem:[%s3 + $0x1c0] sm:$0xff] %v267
  %448 = vst [vmem:[%s3 + $0x1c8] sm:$0xff] %v380
  %449 = vst [vmem:[%s3 + $0x1d0] sm:$0xff] %v270
  %450 = vst [vmem:[%s3 + $0x1d8] sm:$0xff] %v383
  %451 = vst [vmem:[%s3 + $0x1e0] sm:$0xff] %v273
  %452 = vst [vmem:[%s3 + $0x1e8] sm:$0xff] %v386
  %453 = vst [vmem:[%s3 + $0x1f0] sm:$0xff] %v276
  %454 = vst [vmem:[%s3 + $0x1f8] sm:$0xff] %v389
  // Predicated region
  $region14: #{gravnet_block_forward.7} parent=0 // pred_check
    _
  $region15: #{gravnet_block_forward.7} parent=0 // pred_check_branch
    %456 = sbr.rel (0) target = $region17
  $region16: #{gravnet_block_forward.7} parent=0 // pred_region
    _
  $region17: #{gravnet_block_forward.7} parent=0 // pred_fallthru
    _
  // Predicated region
  $region18: #{gravnet_block_forward.7} parent=0 // pred_check
    _
  $region19: #{gravnet_block_forward.7} parent=0 // pred_check_branch
    %458 = sbr.rel (0) target = $region21
  $region20: #{gravnet_block_forward.7} parent=0 // pred_region
    _
  $region21: #{gravnet_block_forward.7} parent=0 // pred_fallthru
    _

// kernel: gravnet_block_forward.10
$region0: #{gravnet_block_forward.10}
  #allocation0 [shape = 'u32[]', space=smem, size = 0x4, offset = 0x4, fixed_abs, tag = 'smem constant byte address 0x4 - core index']
  #allocation1 [shape = 'u32[72,128]{1,0:T(1,128)}', space=vmem, size = 0x9000, scoped, tag = 'internal scratch']
  %s0 = inlined_call_operand.vmem [shape: f32[256,64], index: 0, kind: input, shape index: {}]
  %s1 = inlined_call_operand.vmem [shape: f32[256,256], index: 1, kind: input, shape index: {}]
  %s2 = inlined_call_operand.vmem [shape: f32[256,64], index: 2, kind: input, shape index: {}]
  %s3 = inlined_call_operand.vmem [shape: f32[64,64], index: 3, kind: input, shape index: {}]
  %s4 = inlined_call_operand.vmem [shape: f32[128,64], index: 4, kind: input, shape index: {}]
  %s5 = inlined_call_operand.vmem [shape: f32[64,64], index: 5, kind: input, shape index: {}]
  %s6 = inlined_call_operand.vmem [shape: f32[1,64], index: 6, kind: input, shape index: {}]
  %s7 = inlined_call_operand.vmem [shape: f32[64,64], index: 7, kind: input, shape index: {}]
  %s8 = inlined_call_operand.vmem [shape: f32[1,64], index: 8, kind: input, shape index: {}]
  %s9 = inlined_call_operand.vmem [shape: f32[256,64], index: 9, kind: output, shape index: {0}]
  %s10 = inlined_call_operand.vmem [shape: f32[1,64], index: 10, kind: output, shape index: {1}]
  %s11 = inlined_call_operand.vmem [shape: f32[1,64], index: 11, kind: output, shape index: {2}]
  %12 = xla_tuple %s9, %s10, %s11
  %s13 = sld [smem:[#allocation0]]
  $region104: #{gravnet_block_forward.10} parent=0
    _
  %s15 = ssub.s32 1, %s13
  %s16 = scalar_select 0, %s15, %s13
  $region1: #{gravnet_block_forward.10} parent=0
    #allocation2 [shape = 'u8[131072]{0}', space=vmem, size = 0x20000, scoped, tag = 'input window, operand 1, single buffered']
    // Predicated region
    $region2: #{gravnet_block_forward.10} parent=1 // pred_check
      _
    $region3: #{gravnet_block_forward.10} parent=1 // pred_check_branch
      %18 = sbr.rel (0) target = $region5
    $region4: #{gravnet_block_forward.10} parent=1 // pred_region
      _
    $region5: #{gravnet_block_forward.10} parent=1 // pred_fallthru
      _
    // Predicated region
    $region6: #{gravnet_block_forward.10} parent=1 // pred_check
      _
    $region7: #{gravnet_block_forward.10} parent=1 // pred_check_branch
      %20 = sbr.rel (0) target = $region9
    $region8: #{gravnet_block_forward.10} parent=1 // pred_region
      %s21 = scalar_lea.vmem %s1, 8
      // Predicated region
      $region10: #{gravnet_block_forward.10} parent=8 // pred_check
        _
      $region11: #{gravnet_block_forward.10} parent=8 // pred_check_branch
        %23 = sbr.rel (0) target = $region13
      $region12: #{gravnet_block_forward.10} parent=8 // pred_region
        // Predicated region
        $region14: #{gravnet_block_forward.10} parent=12 // pred_check
          _
        $region15: #{gravnet_block_forward.10} parent=12 // pred_check_branch
          %25 = sbr.rel (0) target = $region17
        $region16: #{gravnet_block_forward.10} parent=12 // pred_region
          // Predicated region
          $region29: #{gravnet_block_forward.10} parent=16 // pred_check
            _
          $region30: #{gravnet_block_forward.10} parent=16 // pred_check_branch
            %103 = sbr.rel (0) target = $region32
          $region31: #{gravnet_block_forward.10} parent=16 // pred_region
            loop: start=0, step=1, limit=1
            $region33: #{gravnet_block_forward.10} parent=31 // loop_pre_header
              _
            $region34: #{gravnet_block_forward.10} parent=31 // loop_header
              %s105 = sphi 0, %s109
              %p106 = scmp.ge.s32.totalorder %s105, 1
              %s110 = sphi %s21, %s21
              %s111 = sphi [#allocation2], [#allocation2]
            $region35: #{gravnet_block_forward.10} parent=31 // loop_header_branch
              %108 = sbr.rel (%p106) target = $region39
            $region36: #{gravnet_block_forward.10} parent=31 // loop_body
              %v112 = vld [vmem:[%s110] sm:$0xff]
              %113 = vst [vmem:[%s111] sm:$0xff] %v112
              %v114 = vld [vmem:[%s110 + $0x10] sm:$0xff]
              %115 = vst [vmem:[%s111 + $0x8] sm:$0xff] %v114
              %v116 = vld [vmem:[%s110 + $0x20] sm:$0xff]
              %117 = vst [vmem:[%s111 + $0x10] sm:$0xff] %v116
              %v118 = vld [vmem:[%s110 + $0x30] sm:$0xff]
              %119 = vst [vmem:[%s111 + $0x18] sm:$0xff] %v118
              %v120 = vld [vmem:[%s110 + $0x40] sm:$0xff]
              %121 = vst [vmem:[%s111 + $0x20] sm:$0xff] %v120
              %v122 = vld [vmem:[%s110 + $0x50] sm:$0xff]
              %123 = vst [vmem:[%s111 + $0x28] sm:$0xff] %v122
              %v124 = vld [vmem:[%s110 + $0x60] sm:$0xff]
              %125 = vst [vmem:[%s111 + $0x30] sm:$0xff] %v124
              %v126 = vld [vmem:[%s110 + $0x70] sm:$0xff]
              %127 = vst [vmem:[%s111 + $0x38] sm:$0xff] %v126
              %v128 = vld [vmem:[%s110 + $0x80] sm:$0xff]
              %129 = vst [vmem:[%s111 + $0x40] sm:$0xff] %v128
              %v130 = vld [vmem:[%s110 + $0x90] sm:$0xff]
              %131 = vst [vmem:[%s111 + $0x48] sm:$0xff] %v130
              %v132 = vld [vmem:[%s110 + $0xa0] sm:$0xff]
              %133 = vst [vmem:[%s111 + $0x50] sm:$0xff] %v132
              %v134 = vld [vmem:[%s110 + $0xb0] sm:$0xff]
              %135 = vst [vmem:[%s111 + $0x58] sm:$0xff] %v134
              %v136 = vld [vmem:[%s110 + $0xc0] sm:$0xff]
              %137 = vst [vmem:[%s111 + $0x60] sm:$0xff] %v136
              %v138 = vld [vmem:[%s110 + $0xd0] sm:$0xff]
              %139 = vst [vmem:[%s111 + $0x68] sm:$0xff] %v138
              %v140 = vld [vmem:[%s110 + $0xe0] sm:$0xff]
              %141 = vst [vmem:[%s111 + $0x70] sm:$0xff] %v140
              %v142 = vld [vmem:[%s110 + $0xf0] sm:$0xff]
              %143 = vst [vmem:[%s111 + $0x78] sm:$0xff] %v142
              %v144 = vld [vmem:[%s110 + $0x100] sm:$0xff]
              %145 = vst [vmem:[%s111 + $0x80] sm:$0xff] %v144
              %v146 = vld [vmem:[%s110 + $0x110] sm:$0xff]
              %147 = vst [vmem:[%s111 + $0x88] sm:$0xff] %v146
              %v148 = vld [vmem:[%s110 + $0x120] sm:$0xff]
              %149 = vst [vmem:[%s111 + $0x90] sm:$0xff] %v148
              %v150 = vld [vmem:[%s110 + $0x130] sm:$0xff]
              %151 = vst [vmem:[%s111 + $0x98] sm:$0xff] %v150
              %v152 = vld [vmem:[%s110 + $0x140] sm:$0xff]
              %153 = vst [vmem:[%s111 + $0xa0] sm:$0xff] %v152
              %v154 = vld [vmem:[%s110 + $0x150] sm:$0xff]
              %155 = vst [vmem:[%s111 + $0xa8] sm:$0xff] %v154
              %v156 = vld [vmem:[%s110 + $0x160] sm:$0xff]
              %157 = vst [vmem:[%s111 + $0xb0] sm:$0xff] %v156
              %v158 = vld [vmem:[%s110 + $0x170] sm:$0xff]
              %159 = vst [vmem:[%s111 + $0xb8] sm:$0xff] %v158
              %v160 = vld [vmem:[%s110 + $0x180] sm:$0xff]
              %161 = vst [vmem:[%s111 + $0xc0] sm:$0xff] %v160
              %v162 = vld [vmem:[%s110 + $0x190] sm:$0xff]
              %163 = vst [vmem:[%s111 + $0xc8] sm:$0xff] %v162
              %v164 = vld [vmem:[%s110 + $0x1a0] sm:$0xff]
              %165 = vst [vmem:[%s111 + $0xd0] sm:$0xff] %v164
              %v166 = vld [vmem:[%s110 + $0x1b0] sm:$0xff]
              %167 = vst [vmem:[%s111 + $0xd8] sm:$0xff] %v166
              %v168 = vld [vmem:[%s110 + $0x1c0] sm:$0xff]
              %169 = vst [vmem:[%s111 + $0xe0] sm:$0xff] %v168
              %v170 = vld [vmem:[%s110 + $0x1d0] sm:$0xff]
              %171 = vst [vmem:[%s111 + $0xe8] sm:$0xff] %v170
              %v172 = vld [vmem:[%s110 + $0x1e0] sm:$0xff]
              %173 = vst [vmem:[%s111 + $0xf0] sm:$0xff] %v172
              %v174 = vld [vmem:[%s110 + $0x1f0] sm:$0xff]
              %175 = vst [vmem:[%s111 + $0xf8] sm:$0xff] %v174
            $region37: #{gravnet_block_forward.10} parent=31 // loop_footer
              %s109 = sadd.s32 1, %s105
            $region38: #{gravnet_block_forward.10} parent=31 // loop_footer_branch
              %104 = sbr.rel target = $region34
            $region39: #{gravnet_block_forward.10} parent=31 // loop_exit
              _
          $region32: #{gravnet_block_forward.10} parent=16 // pred_fallthru
            _
          // Predicated region
          $region40: #{gravnet_block_forward.10} parent=16 // pred_check
            _
          $region41: #{gravnet_block_forward.10} parent=16 // pred_check_branch
            %177 = sbr.rel target = $region43
          $region42: #{gravnet_block_forward.10} parent=16 // pred_region
            _
          $region43: #{gravnet_block_forward.10} parent=16 // pred_fallthru
            _
        $region17: #{gravnet_block_forward.10} parent=12 // pred_fallthru
          _
        // Predicated region
        $region18: #{gravnet_block_forward.10} parent=12 // pred_check
          _
        $region19: #{gravnet_block_forward.10} parent=12 // pred_check_branch
          %27 = sbr.rel target = $region21
        $region20: #{gravnet_block_forward.10} parent=12 // pred_region
          %s29 = ssub.s32 256, 1
          loop: start=0, step=1, limit=1
          $region22: #{gravnet_block_forward.10} parent=20 // loop_pre_header
            _
          $region23: #{gravnet_block_forward.10} parent=20 // loop_header
            %s31 = sphi 0, %s35
            %p32 = scmp.ge.s32.totalorder %s31, 1
            %s36 = sphi %s21, %s21
            %s37 = sphi [#allocation2], [#allocation2]
          $region24: #{gravnet_block_forward.10} parent=20 // loop_header_branch
            %34 = sbr.rel (%p32) target = $region28
          $region25: #{gravnet_block_forward.10} parent=20 // loop_body
            %v38 = vld [vmem:[%s36] sm:%s29]
            %39 = vst [vmem:[%s37] sm:%s29] %v38
            %v40 = vld [vmem:[%s36 + $0x10] sm:%s29]
            %41 = vst [vmem:[%s37 + $0x8] sm:%s29] %v40
            %v42 = vld [vmem:[%s36 + $0x20] sm:%s29]
            %43 = vst [vmem:[%s37 + $0x10] sm:%s29] %v42
            %v44 = vld [vmem:[%s36 + $0x30] sm:%s29]
            %45 = vst [vmem:[%s37 + $0x18] sm:%s29] %v44
            %v46 = vld [vmem:[%s36 + $0x40] sm:%s29]
            %47 = vst [vmem:[%s37 + $0x20] sm:%s29] %v46
            %v48 = vld [vmem:[%s36 + $0x50] sm:%s29]
            %49 = vst [vmem:[%s37 + $0x28] sm:%s29] %v48
            %v50 = vld [vmem:[%s36 + $0x60] sm:%s29]
            %51 = vst [vmem:[%s37 + $0x30] sm:%s29] %v50
            %v52 = vld [vmem:[%s36 + $0x70] sm:%s29]
            %53 = vst [vmem:[%s37 + $0x38] sm:%s29] %v52
            %v54 = vld [vmem:[%s36 + $0x80] sm:%s29]
            %55 = vst [vmem:[%s37 + $0x40] sm:%s29] %v54
            %v56 = vld [vmem:[%s36 + $0x90] sm:%s29]
            %57 = vst [vmem:[%s37 + $0x48] sm:%s29] %v56
            %v58 = vld [vmem:[%s36 + $0xa0] sm:%s29]
            %59 = vst [vmem:[%s37 + $0x50] sm:%s29] %v58
            %v60 = vld [vmem:[%s36 + $0xb0] sm:%s29]
            %61 = vst [vmem:[%s37 + $0x58] sm:%s29] %v60
            %v62 = vld [vmem:[%s36 + $0xc0] sm:%s29]
            %63 = vst [vmem:[%s37 + $0x60] sm:%s29] %v62
            %v64 = vld [vmem:[%s36 + $0xd0] sm:%s29]
            %65 = vst [vmem:[%s37 + $0x68] sm:%s29] %v64
            %v66 = vld [vmem:[%s36 + $0xe0] sm:%s29]
            %67 = vst [vmem:[%s37 + $0x70] sm:%s29] %v66
            %v68 = vld [vmem:[%s36 + $0xf0] sm:%s29]
            %69 = vst [vmem:[%s37 + $0x78] sm:%s29] %v68
            %v70 = vld [vmem:[%s36 + $0x100] sm:%s29]
            %71 = vst [vmem:[%s37 + $0x80] sm:%s29] %v70
            %v72 = vld [vmem:[%s36 + $0x110] sm:%s29]
            %73 = vst [vmem:[%s37 + $0x88] sm:%s29] %v72
            %v74 = vld [vmem:[%s36 + $0x120] sm:%s29]
            %75 = vst [vmem:[%s37 + $0x90] sm:%s29] %v74
            %v76 = vld [vmem:[%s36 + $0x130] sm:%s29]
            %77 = vst [vmem:[%s37 + $0x98] sm:%s29] %v76
            %v78 = vld [vmem:[%s36 + $0x140] sm:%s29]
            %79 = vst [vmem:[%s37 + $0xa0] sm:%s29] %v78
            %v80 = vld [vmem:[%s36 + $0x150] sm:%s29]
            %81 = vst [vmem:[%s37 + $0xa8] sm:%s29] %v80
            %v82 = vld [vmem:[%s36 + $0x160] sm:%s29]
            %83 = vst [vmem:[%s37 + $0xb0] sm:%s29] %v82
            %v84 = vld [vmem:[%s36 + $0x170] sm:%s29]
            %85 = vst [vmem:[%s37 + $0xb8] sm:%s29] %v84
            %v86 = vld [vmem:[%s36 + $0x180] sm:%s29]
            %87 = vst [vmem:[%s37 + $0xc0] sm:%s29] %v86
            %v88 = vld [vmem:[%s36 + $0x190] sm:%s29]
            %89 = vst [vmem:[%s37 + $0xc8] sm:%s29] %v88
            %v90 = vld [vmem:[%s36 + $0x1a0] sm:%s29]
            %91 = vst [vmem:[%s37 + $0xd0] sm:%s29] %v90
            %v92 = vld [vmem:[%s36 + $0x1b0] sm:%s29]
            %93 = vst [vmem:[%s37 + $0xd8] sm:%s29] %v92
            %v94 = vld [vmem:[%s36 + $0x1c0] sm:%s29]
            %95 = vst [vmem:[%s37 + $0xe0] sm:%s29] %v94
            %v96 = vld [vmem:[%s36 + $0x1d0] sm:%s29]
            %97 = vst [vmem:[%s37 + $0xe8] sm:%s29] %v96
            %v98 = vld [vmem:[%s36 + $0x1e0] sm:%s29]
            %99 = vst [vmem:[%s37 + $0xf0] sm:%s29] %v98
            %v100 = vld [vmem:[%s36 + $0x1f0] sm:%s29]
            %101 = vst [vmem:[%s37 + $0xf8] sm:%s29] %v100
          $region26: #{gravnet_block_forward.10} parent=20 // loop_footer
            %s35 = sadd.s32 1, %s31
          $region27: #{gravnet_block_forward.10} parent=20 // loop_footer_branch
            %30 = sbr.rel target = $region23
          $region28: #{gravnet_block_forward.10} parent=20 // loop_exit
            _
        $region21: #{gravnet_block_forward.10} parent=12 // pred_fallthru
          _
      $region13: #{gravnet_block_forward.10} parent=8 // pred_fallthru
        _
      %178 = vnop
    $region9: #{gravnet_block_forward.10} parent=1 // pred_fallthru
      _
    // Predicated region
    $region44: #{gravnet_block_forward.10} parent=1 // pred_check
      _
    $region45: #{gravnet_block_forward.10} parent=1 // pred_check_branch
      %180 = sbr.rel (0) target = $region47
    $region46: #{gravnet_block_forward.10} parent=1 // pred_region
      _
    $region47: #{gravnet_block_forward.10} parent=1 // pred_fallthru
      _
    // Predicated region
    $region48: #{gravnet_block_forward.10} parent=1 // pred_check
      _
    $region49: #{gravnet_block_forward.10} parent=1 // pred_check_branch
      %182 = sbr.rel (0) target = $region51
    $region50: #{gravnet_block_forward.10} parent=1 // pred_region
      _
    $region51: #{gravnet_block_forward.10} parent=1 // pred_fallthru
      _
    // Predicated region
    $region52: #{gravnet_block_forward.10} parent=1 // pred_check
      _
    $region53: #{gravnet_block_forward.10} parent=1 // pred_check_branch
      %184 = sbr.rel (0) target = $region55
    $region54: #{gravnet_block_forward.10} parent=1 // pred_region
      _
    $region55: #{gravnet_block_forward.10} parent=1 // pred_fallthru
      _
    // Predicated region
    $region56: #{gravnet_block_forward.10} parent=1 // pred_check
      _
    $region57: #{gravnet_block_forward.10} parent=1 // pred_check_branch
      %186 = sbr.rel (0) target = $region59
    $region58: #{gravnet_block_forward.10} parent=1 // pred_region
      _
    $region59: #{gravnet_block_forward.10} parent=1 // pred_fallthru
      _
    // Predicated region
    $region60: #{gravnet_block_forward.10} parent=1 // pred_check
      _
    $region61: #{gravnet_block_forward.10} parent=1 // pred_check_branch
      %188 = sbr.rel (0) target = $region63
    $region62: #{gravnet_block_forward.10} parent=1 // pred_region
      _
    $region63: #{gravnet_block_forward.10} parent=1 // pred_fallthru
      _
    // Predicated region
    $region64: #{gravnet_block_forward.10} parent=1 // pred_check
      _
    $region65: #{gravnet_block_forward.10} parent=1 // pred_check_branch
      %190 = sbr.rel (0) target = $region67
    $region66: #{gravnet_block_forward.10} parent=1 // pred_region
      _
    $region67: #{gravnet_block_forward.10} parent=1 // pred_fallthru
      _
    // Predicated region
    $region68: #{gravnet_block_forward.10} parent=1 // pred_check
      _
    $region69: #{gravnet_block_forward.10} parent=1 // pred_check_branch
      %192 = sbr.rel (0) target = $region71
    $region70: #{gravnet_block_forward.10} parent=1 // pred_region
      _
    $region71: #{gravnet_block_forward.10} parent=1 // pred_fallthru
      _
    // Predicated region
    $region72: #{gravnet_block_forward.10} parent=1 // pred_check
      _
    $region73: #{gravnet_block_forward.10} parent=1 // pred_check_branch
      %194 = sbr.rel (0) target = $region75
    $region74: #{gravnet_block_forward.10} parent=1 // pred_region
      _
    $region75: #{gravnet_block_forward.10} parent=1 // pred_fallthru
      _
    %v195 = vld [vmem:[%s0] sm:$0xff]
    %v196 = vld [vmem:[%s0 + $0x8] sm:$0xff]
    %v197 = vld [vmem:[%s0 + $0x10] sm:$0xff]
    %v198 = vld [vmem:[%s0 + $0x18] sm:$0xff]
    %v199 = vld [vmem:[%s0 + $0x20] sm:$0xff]
    %v200 = vld [vmem:[%s0 + $0x28] sm:$0xff]
    %v201 = vld [vmem:[%s0 + $0x30] sm:$0xff]
    %v202 = vld [vmem:[%s0 + $0x38] sm:$0xff]
    %v203 = vld [vmem:[%s0 + $0x40] sm:$0xff]
    %v204 = vld [vmem:[%s0 + $0x48] sm:$0xff]
    %v205 = vld [vmem:[%s0 + $0x50] sm:$0xff]
    %v206 = vld [vmem:[%s0 + $0x58] sm:$0xff]
    %v207 = vld [vmem:[%s0 + $0x60] sm:$0xff]
    %v208 = vld [vmem:[%s0 + $0x68] sm:$0xff]
    %v209 = vld [vmem:[%s0 + $0x70] sm:$0xff]
    %v210 = vld [vmem:[%s0 + $0x78] sm:$0xff]
    %v211 = vld [vmem:[%s0 + $0x80] sm:$0xff]
    %v212 = vld [vmem:[%s0 + $0x88] sm:$0xff]
    %v213 = vld [vmem:[%s0 + $0x90] sm:$0xff]
    %v214 = vld [vmem:[%s0 + $0x98] sm:$0xff]
    %v215 = vld [vmem:[%s0 + $0xa0] sm:$0xff]
    %v216 = vld [vmem:[%s0 + $0xa8] sm:$0xff]
    %v217 = vld [vmem:[%s0 + $0xb0] sm:$0xff]
    %v218 = vld [vmem:[%s0 + $0xb8] sm:$0xff]
    %v219 = vld [vmem:[%s0 + $0xc0] sm:$0xff]
    %v220 = vld [vmem:[%s0 + $0xc8] sm:$0xff]
    %v221 = vld [vmem:[%s0 + $0xd0] sm:$0xff]
    %v222 = vld [vmem:[%s0 + $0xd8] sm:$0xff]
    %v223 = vld [vmem:[%s0 + $0xe0] sm:$0xff]
    %v224 = vld [vmem:[%s0 + $0xe8] sm:$0xff]
    %v225 = vld [vmem:[%s0 + $0xf0] sm:$0xff]
    %v226 = vld [vmem:[%s0 + $0xf8] sm:$0xff]
    %v227 = vld [vmem:[%s3] sm:$0xff]
    %v228 = vld [vmem:[%s3 + $0x8] sm:$0xff]
    %v229 = vld [vmem:[%s3 + $0x10] sm:$0xff]
    %v230 = vld [vmem:[%s3 + $0x18] sm:$0xff]
    %v231 = vld [vmem:[%s3 + $0x20] sm:$0xff]
    %v232 = vld [vmem:[%s3 + $0x28] sm:$0xff]
    %v233 = vld [vmem:[%s3 + $0x30] sm:$0xff]
    %v234 = vld [vmem:[%s3 + $0x38] sm:$0xff]
    %v235 = vld [vmem:[#allocation2] sm:$0xff]
    %v236 = vld [vmem:[#allocation2 + $0x8] sm:$0xff]
    %v237 = vld [vmem:[#allocation2 + $0x10] sm:$0xff]
    %v238 = vld [vmem:[#allocation2 + $0x18] sm:$0xff]
    %v239 = vld [vmem:[#allocation2 + $0x20] sm:$0xff]
    %v240 = vld [vmem:[#allocation2 + $0x28] sm:$0xff]
    %v241 = vld [vmem:[#allocation2 + $0x30] sm:$0xff]
    %v242 = vld [vmem:[#allocation2 + $0x38] sm:$0xff]
    %v243 = vld [vmem:[#allocation2 + $0x40] sm:$0xff]
    %v244 = vld [vmem:[#allocation2 + $0x48] sm:$0xff]
    %v245 = vld [vmem:[#allocation2 + $0x50] sm:$0xff]
    %v246 = vld [vmem:[#allocation2 + $0x58] sm:$0xff]
    %v247 = vld [vmem:[#allocation2 + $0x60] sm:$0xff]
    %v248 = vld [vmem:[#allocation2 + $0x68] sm:$0xff]
    %v249 = vld [vmem:[#allocation2 + $0x70] sm:$0xff]
    %v250 = vld [vmem:[#allocation2 + $0x78] sm:$0xff]
    %v251 = vld [vmem:[#allocation2 + $0x80] sm:$0xff]
    %v252 = vld [vmem:[#allocation2 + $0x88] sm:$0xff]
    %v253 = vld [vmem:[#allocation2 + $0x90] sm:$0xff]
    %v254 = vld [vmem:[#allocation2 + $0x98] sm:$0xff]
    %v255 = vld [vmem:[#allocation2 + $0xa0] sm:$0xff]
    %v256 = vld [vmem:[#allocation2 + $0xa8] sm:$0xff]
    %v257 = vld [vmem:[#allocation2 + $0xb0] sm:$0xff]
    %v258 = vld [vmem:[#allocation2 + $0xb8] sm:$0xff]
    %v259 = vld [vmem:[#allocation2 + $0xc0] sm:$0xff]
    %v260 = vld [vmem:[#allocation2 + $0xc8] sm:$0xff]
    %v261 = vld [vmem:[#allocation2 + $0xd0] sm:$0xff]
    %v262 = vld [vmem:[#allocation2 + $0xd8] sm:$0xff]
    %v263 = vld [vmem:[#allocation2 + $0xe0] sm:$0xff]
    %v264 = vld [vmem:[#allocation2 + $0xe8] sm:$0xff]
    %v265 = vld [vmem:[#allocation2 + $0xf0] sm:$0xff]
    %v266 = vld [vmem:[#allocation2 + $0xf8] sm:$0xff]
    %v267 = vld [vmem:[%s4] sm:$0xff]
    %v268 = vld [vmem:[%s4 + $0x8] sm:$0xff]
    %v269 = vld [vmem:[%s4 + $0x10] sm:$0xff]
    %v270 = vld [vmem:[%s4 + $0x18] sm:$0xff]
    %v271 = vld [vmem:[%s4 + $0x20] sm:$0xff]
    %v272 = vld [vmem:[%s4 + $0x28] sm:$0xff]
    %v273 = vld [vmem:[%s4 + $0x30] sm:$0xff]
    %v274 = vld [vmem:[%s4 + $0x38] sm:$0xff]
    %v275 = vld [vmem:[%s4 + $0x40] sm:$0xff]
    %v276 = vld [vmem:[%s4 + $0x48] sm:$0xff]
    %v277 = vld [vmem:[%s4 + $0x50] sm:$0xff]
    %v278 = vld [vmem:[%s4 + $0x58] sm:$0xff]
    %v279 = vld [vmem:[%s4 + $0x60] sm:$0xff]
    %v280 = vld [vmem:[%s4 + $0x68] sm:$0xff]
    %v281 = vld [vmem:[%s4 + $0x70] sm:$0xff]
    %v282 = vld [vmem:[%s4 + $0x78] sm:$0xff]
    %283 = vmatpush.msra.mxu0 %v282
    %284 = vmatpush.msra.mxu0 %v281
    %285 = vmatpush.msra.mxu0 %v280
    %286 = vmatpush.msra.mxu0 %v279
    %287 = vmatpush.msra.mxu0 %v278
    %288 = vmatpush.msra.mxu0 %v277
    %289 = vmatpush.msra.mxu0 %v276
    %290 = vmatpush.msra.mxu0 %v275
    %291 = vmatpush.msra.mxu0 %v274
    %292 = vmatpush.msra.mxu0 %v273
    %293 = vmatpush.msra.mxu0 %v272
    %294 = vmatpush.msra.mxu0 %v271
    %295 = vmatpush.msra.mxu0 %v270
    %296 = vmatpush.msra.mxu0 %v269
    %297 = vmatpush.msra.mxu0 %v268
    %298 = vmatpush.msra.mxu0 %v267
    %299 = vmatmul.f32.gmra.mxu0 %v235
    %v300 = vpop.f32.mrf.mxu0
    %v301 = vadd.f32 0.0, %v300
    %302 = vmatmul.f32.gmra.mxu0 %v236
    %v303 = vpop.f32.mrf.mxu0
    %v304 = vadd.f32 0.0, %v303
    %305 = vmatmul.f32.gmra.mxu0 %v237
    %v306 = vpop.f32.mrf.mxu0
    %v307 = vadd.f32 0.0, %v306
    %308 = vmatmul.f32.gmra.mxu0 %v238
    %v309 = vpop.f32.mrf.mxu0
    %v310 = vadd.f32 0.0, %v309
    %311 = vmatmul.f32.gmra.mxu0 %v239
    %v312 = vpop.f32.mrf.mxu0
    %v313 = vadd.f32 0.0, %v312
    %314 = vmatmul.f32.gmra.mxu0 %v240
    %v315 = vpop.f32.mrf.mxu0
    %v316 = vadd.f32 0.0, %v315
    %317 = vmatmul.f32.gmra.mxu0 %v241
    %v318 = vpop.f32.mrf.mxu0
    %v319 = vadd.f32 0.0, %v318
    %320 = vmatmul.f32.gmra.mxu0 %v242
    %v321 = vpop.f32.mrf.mxu0
    %v322 = vadd.f32 0.0, %v321
    %323 = vmatmul.f32.gmra.mxu0 %v243
    %v324 = vpop.f32.mrf.mxu0
    %v325 = vadd.f32 0.0, %v324
    %326 = vmatmul.f32.gmra.mxu0 %v244
    %v327 = vpop.f32.mrf.mxu0
    %v328 = vadd.f32 0.0, %v327
    %329 = vmatmul.f32.gmra.mxu0 %v245
    %v330 = vpop.f32.mrf.mxu0
    %v331 = vadd.f32 0.0, %v330
    %332 = vmatmul.f32.gmra.mxu0 %v246
    %v333 = vpop.f32.mrf.mxu0
    %v334 = vadd.f32 0.0, %v333
    %335 = vmatmul.f32.gmra.mxu0 %v247
    %v336 = vpop.f32.mrf.mxu0
    %v337 = vadd.f32 0.0, %v336
    %338 = vmatmul.f32.gmra.mxu0 %v248
    %v339 = vpop.f32.mrf.mxu0
    %v340 = vadd.f32 0.0, %v339
    %341 = vmatmul.f32.gmra.mxu0 %v249
    %v342 = vpop.f32.mrf.mxu0
    %v343 = vadd.f32 0.0, %v342
    %344 = vmatmul.f32.gmra.mxu0 %v250
    %v345 = vpop.f32.mrf.mxu0
    %v346 = vadd.f32 0.0, %v345
    %347 = vmatmul.f32.gmra.mxu0 %v251
    %v348 = vpop.f32.mrf.mxu0
    %v349 = vadd.f32 0.0, %v348
    %350 = vmatmul.f32.gmra.mxu0 %v252
    %v351 = vpop.f32.mrf.mxu0
    %v352 = vadd.f32 0.0, %v351
    %353 = vmatmul.f32.gmra.mxu0 %v253
    %v354 = vpop.f32.mrf.mxu0
    %v355 = vadd.f32 0.0, %v354
    %356 = vmatmul.f32.gmra.mxu0 %v254
    %v357 = vpop.f32.mrf.mxu0
    %v358 = vadd.f32 0.0, %v357
    %359 = vmatmul.f32.gmra.mxu0 %v255
    %v360 = vpop.f32.mrf.mxu0
    %v361 = vadd.f32 0.0, %v360
    %362 = vmatmul.f32.gmra.mxu0 %v256
    %v363 = vpop.f32.mrf.mxu0
    %v364 = vadd.f32 0.0, %v363
    %365 = vmatmul.f32.gmra.mxu0 %v257
    %v366 = vpop.f32.mrf.mxu0
    %v367 = vadd.f32 0.0, %v366
    %368 = vmatmul.f32.gmra.mxu0 %v258
    %v369 = vpop.f32.mrf.mxu0
    %v370 = vadd.f32 0.0, %v369
    %371 = vmatmul.f32.gmra.mxu0 %v259
    %v372 = vpop.f32.mrf.mxu0
    %v373 = vadd.f32 0.0, %v372
    %374 = vmatmul.f32.gmra.mxu0 %v260
    %v375 = vpop.f32.mrf.mxu0
    %v376 = vadd.f32 0.0, %v375
    %377 = vmatmul.f32.gmra.mxu0 %v261
    %v378 = vpop.f32.mrf.mxu0
    %v379 = vadd.f32 0.0, %v378
    %380 = vmatmul.f32.gmra.mxu0 %v262
    %v381 = vpop.f32.mrf.mxu0
    %v382 = vadd.f32 0.0, %v381
    %383 = vmatmul.f32.gmra.mxu0 %v263
    %v384 = vpop.f32.mrf.mxu0
    %v385 = vadd.f32 0.0, %v384
    %386 = vmatmul.f32.gmra.mxu0 %v264
    %v387 = vpop.f32.mrf.mxu0
    %v388 = vadd.f32 0.0, %v387
    %389 = vmatmul.f32.gmra.mxu0 %v265
    %v390 = vpop.f32.mrf.mxu0
    %v391 = vadd.f32 0.0, %v390
    %392 = vmatmul.f32.gmra.mxu0 %v266
    %v393 = vpop.f32.mrf.mxu0
    %v394 = vadd.f32 0.0, %v393
    %395 = vdwg.mxu0
    %vm396 = vcmask 523264
    %v398 = vsel %vm396, %v195, 0
    %v401 = vsel %vm396, %v196, 0
    %v404 = vsel %vm396, %v197, 0
    %v407 = vsel %vm396, %v198, 0
    %v410 = vsel %vm396, %v199, 0
    %v413 = vsel %vm396, %v200, 0
    %v416 = vsel %vm396, %v201, 0
    %v419 = vsel %vm396, %v202, 0
    %v422 = vsel %vm396, %v203, 0
    %v425 = vsel %vm396, %v204, 0
    %v428 = vsel %vm396, %v205, 0
    %v431 = vsel %vm396, %v206, 0
    %v434 = vsel %vm396, %v207, 0
    %v437 = vsel %vm396, %v208, 0
    %v440 = vsel %vm396, %v209, 0
    %v443 = vsel %vm396, %v210, 0
    %v446 = vsel %vm396, %v211, 0
    %v449 = vsel %vm396, %v212, 0
    %v452 = vsel %vm396, %v213, 0
    %v455 = vsel %vm396, %v214, 0
    %v458 = vsel %vm396, %v215, 0
    %v461 = vsel %vm396, %v216, 0
    %v464 = vsel %vm396, %v217, 0
    %v467 = vsel %vm396, %v218, 0
    %v470 = vsel %vm396, %v219, 0
    %v473 = vsel %vm396, %v220, 0
    %v476 = vsel %vm396, %v221, 0
    %v479 = vsel %vm396, %v222, 0
    %v482 = vsel %vm396, %v223, 0
    %v485 = vsel %vm396, %v224, 0
    %v488 = vsel %vm396, %v225, 0
    %v491 = vsel %vm396, %v226, 0
    %493 = vmatpush.msra.mxu0 0.0
    %494 = vmatpush.msra.mxu0 0.0
    %495 = vmatpush.msra.mxu0 0.0
    %496 = vmatpush.msra.mxu0 0.0
    %497 = vmatpush.msra.mxu0 0.0
    %498 = vmatpush.msra.mxu0 0.0
    %499 = vmatpush.msra.mxu0 0.0
    %500 = vmatpush.msra.mxu0 0.0
    %501 = vmatpush.msra.mxu0 %v234
    %502 = vmatpush.msra.mxu0 %v233
    %503 = vmatpush.msra.mxu0 %v232
    %504 = vmatpush.msra.mxu0 %v231
    %505 = vmatpush.msra.mxu0 %v230
    %506 = vmatpush.msra.mxu0 %v229
    %507 = vmatpush.msra.mxu0 %v228
    %508 = vmatpush.msra.mxu0 %v227
    %509 = vmatmul.f32.gmra.mxu0 %v398
    %v510 = vpop.f32.mrf.mxu0
    %v511 = vadd.f32 %v301, %v510
    %512 = vmatmul.f32.gmra.mxu0 %v401
    %v513 = vpop.f32.mrf.mxu0
    %v514 = vadd.f32 %v304, %v513
    %515 = vmatmul.f32.gmra.mxu0 %v404
    %v516 = vpop.f32.mrf.mxu0
    %v517 = vadd.f32 %v307, %v516
    %518 = vmatmul.f32.gmra.mxu0 %v407
    %v519 = vpop.f32.mrf.mxu0
    %v520 = vadd.f32 %v310, %v519
    %521 = vmatmul.f32.gmra.mxu0 %v410
    %v522 = vpop.f32.mrf.mxu0
    %v523 = vadd.f32 %v313, %v522
    %524 = vmatmul.f32.gmra.mxu0 %v413
    %v525 = vpop.f32.mrf.mxu0
    %v526 = vadd.f32 %v316, %v525
    %527 = vmatmul.f32.gmra.mxu0 %v416
    %v528 = vpop.f32.mrf.mxu0
    %v529 = vadd.f32 %v319, %v528
    %530 = vmatmul.f32.gmra.mxu0 %v419
    %v531 = vpop.f32.mrf.mxu0
    %v532 = vadd.f32 %v322, %v531
    %533 = vmatmul.f32.gmra.mxu0 %v422
    %v534 = vpop.f32.mrf.mxu0
    %v535 = vadd.f32 %v325, %v534
    %536 = vmatmul.f32.gmra.mxu0 %v425
    %v537 = vpop.f32.mrf.mxu0
    %v538 = vadd.f32 %v328, %v537
    %539 = vmatmul.f32.gmra.mxu0 %v428
    %v540 = vpop.f32.mrf.mxu0
    %v541 = vadd.f32 %v331, %v540
    %542 = vmatmul.f32.gmra.mxu0 %v431
    %v543 = vpop.f32.mrf.mxu0
    %v544 = vadd.f32 %v334, %v543
    %545 = vmatmul.f32.gmra.mxu0 %v434
    %v546 = vpop.f32.mrf.mxu0
    %v547 = vadd.f32 %v337, %v546
    %548 = vmatmul.f32.gmra.mxu0 %v437
    %v549 = vpop.f32.mrf.mxu0
    %v550 = vadd.f32 %v340, %v549
    %551 = vmatmul.f32.gmra.mxu0 %v440
    %v552 = vpop.f32.mrf.mxu0
    %v553 = vadd.f32 %v343, %v552
    %554 = vmatmul.f32.gmra.mxu0 %v443
    %v555 = vpop.f32.mrf.mxu0
    %v556 = vadd.f32 %v346, %v555
    %557 = vmatmul.f32.gmra.mxu0 %v446
    %v558 = vpop.f32.mrf.mxu0
    %v559 = vadd.f32 %v349, %v558
    %560 = vmatmul.f32.gmra.mxu0 %v449
    %v561 = vpop.f32.mrf.mxu0
    %v562 = vadd.f32 %v352, %v561
    %563 = vmatmul.f32.gmra.mxu0 %v452
    %v564 = vpop.f32.mrf.mxu0
    %v565 = vadd.f32 %v355, %v564
    %566 = vmatmul.f32.gmra.mxu0 %v455
    %v567 = vpop.f32.mrf.mxu0
    %v568 = vadd.f32 %v358, %v567
    %569 = vmatmul.f32.gmra.mxu0 %v458
    %v570 = vpop.f32.mrf.mxu0
    %v571 = vadd.f32 %v361, %v570
    %572 = vmatmul.f32.gmra.mxu0 %v461
    %v573 = vpop.f32.mrf.mxu0
    %v574 = vadd.f32 %v364, %v573
    %575 = vmatmul.f32.gmra.mxu0 %v464
    %v576 = vpop.f32.mrf.mxu0
    %v577 = vadd.f32 %v367, %v576
    %578 = vmatmul.f32.gmra.mxu0 %v467
    %v579 = vpop.f32.mrf.mxu0
    %v580 = vadd.f32 %v370, %v579
    %581 = vmatmul.f32.gmra.mxu0 %v470
    %v582 = vpop.f32.mrf.mxu0
    %v583 = vadd.f32 %v373, %v582
    %584 = vmatmul.f32.gmra.mxu0 %v473
    %v585 = vpop.f32.mrf.mxu0
    %v586 = vadd.f32 %v376, %v585
    %587 = vmatmul.f32.gmra.mxu0 %v476
    %v588 = vpop.f32.mrf.mxu0
    %v589 = vadd.f32 %v379, %v588
    %590 = vmatmul.f32.gmra.mxu0 %v479
    %v591 = vpop.f32.mrf.mxu0
    %v592 = vadd.f32 %v382, %v591
    %593 = vmatmul.f32.gmra.mxu0 %v482
    %v594 = vpop.f32.mrf.mxu0
    %v595 = vadd.f32 %v385, %v594
    %596 = vmatmul.f32.gmra.mxu0 %v485
    %v597 = vpop.f32.mrf.mxu0
    %v598 = vadd.f32 %v388, %v597
    %599 = vmatmul.f32.gmra.mxu0 %v488
    %v600 = vpop.f32.mrf.mxu0
    %v601 = vadd.f32 %v391, %v600
    %602 = vmatmul.f32.gmra.mxu0 %v491
    %v603 = vpop.f32.mrf.mxu0
    %v604 = vadd.f32 %v394, %v603
    %605 = vdwg.mxu0
    %v606 = vld [vmem:[%s2] sm:$0xff]
    %v607 = vld [vmem:[%s2 + $0x8] sm:$0xff]
    %v608 = vld [vmem:[%s2 + $0x10] sm:$0xff]
    %v609 = vld [vmem:[%s2 + $0x18] sm:$0xff]
    %v610 = vld [vmem:[%s2 + $0x20] sm:$0xff]
    %v611 = vld [vmem:[%s2 + $0x28] sm:$0xff]
    %v612 = vld [vmem:[%s2 + $0x30] sm:$0xff]
    %v613 = vld [vmem:[%s2 + $0x38] sm:$0xff]
    %v614 = vld [vmem:[%s2 + $0x40] sm:$0xff]
    %v615 = vld [vmem:[%s2 + $0x48] sm:$0xff]
    %v616 = vld [vmem:[%s2 + $0x50] sm:$0xff]
    %v617 = vld [vmem:[%s2 + $0x58] sm:$0xff]
    %v618 = vld [vmem:[%s2 + $0x60] sm:$0xff]
    %v619 = vld [vmem:[%s2 + $0x68] sm:$0xff]
    %v620 = vld [vmem:[%s2 + $0x70] sm:$0xff]
    %v621 = vld [vmem:[%s2 + $0x78] sm:$0xff]
    %v622 = vld [vmem:[%s2 + $0x80] sm:$0xff]
    %v623 = vld [vmem:[%s2 + $0x88] sm:$0xff]
    %v624 = vld [vmem:[%s2 + $0x90] sm:$0xff]
    %v625 = vld [vmem:[%s2 + $0x98] sm:$0xff]
    %v626 = vld [vmem:[%s2 + $0xa0] sm:$0xff]
    %v627 = vld [vmem:[%s2 + $0xa8] sm:$0xff]
    %v628 = vld [vmem:[%s2 + $0xb0] sm:$0xff]
    %v629 = vld [vmem:[%s2 + $0xb8] sm:$0xff]
    %v630 = vld [vmem:[%s2 + $0xc0] sm:$0xff]
    %v631 = vld [vmem:[%s2 + $0xc8] sm:$0xff]
    %v632 = vld [vmem:[%s2 + $0xd0] sm:$0xff]
    %v633 = vld [vmem:[%s2 + $0xd8] sm:$0xff]
    %v634 = vld [vmem:[%s2 + $0xe0] sm:$0xff]
    %v635 = vld [vmem:[%s2 + $0xe8] sm:$0xff]
    %v636 = vld [vmem:[%s2 + $0xf0] sm:$0xff]
    %v637 = vld [vmem:[%s2 + $0xf8] sm:$0xff]
    %v638 = vld [vmem:[%s5] sm:$0xff]
    %v639 = vld [vmem:[%s5 + $0x8] sm:$0xff]
    %v640 = vld [vmem:[%s5 + $0x10] sm:$0xff]
    %v641 = vld [vmem:[%s5 + $0x18] sm:$0xff]
    %v642 = vld [vmem:[%s5 + $0x20] sm:$0xff]
    %v643 = vld [vmem:[%s5 + $0x28] sm:$0xff]
    %v644 = vld [vmem:[%s5 + $0x30] sm:$0xff]
    %v645 = vld [vmem:[%s5 + $0x38] sm:$0xff]
    %v647 = vsel %vm396, %v606, 0
    %v650 = vsel %vm396, %v607, 0
    %v653 = vsel %vm396, %v608, 0
    %v656 = vsel %vm396, %v609, 0
    %v659 = vsel %vm396, %v610, 0
    %v662 = vsel %vm396, %v611, 0
    %v665 = vsel %vm396, %v612, 0
    %v668 = vsel %vm396, %v613, 0
    %v671 = vsel %vm396, %v614, 0
    %v674 = vsel %vm396, %v615, 0
    %v677 = vsel %vm396, %v616, 0
    %v680 = vsel %vm396, %v617, 0
    %v683 = vsel %vm396, %v618, 0
    %v686 = vsel %vm396, %v619, 0
    %v689 = vsel %vm396, %v620, 0
    %v692 = vsel %vm396, %v621, 0
    %v695 = vsel %vm396, %v622, 0
    %v698 = vsel %vm396, %v623, 0
    %v701 = vsel %vm396, %v624, 0
    %v704 = vsel %vm396, %v625, 0
    %v707 = vsel %vm396, %v626, 0
    %v710 = vsel %vm396, %v627, 0
    %v713 = vsel %vm396, %v628, 0
    %v716 = vsel %vm396, %v629, 0
    %v719 = vsel %vm396, %v630, 0
    %v722 = vsel %vm396, %v631, 0
    %v725 = vsel %vm396, %v632, 0
    %v728 = vsel %vm396, %v633, 0
    %v731 = vsel %vm396, %v634, 0
    %v734 = vsel %vm396, %v635, 0
    %v737 = vsel %vm396, %v636, 0
    %v740 = vsel %vm396, %v637, 0
    %742 = vmatpush.msra.mxu0 0.0
    %743 = vmatpush.msra.mxu0 0.0
    %744 = vmatpush.msra.mxu0 0.0
    %745 = vmatpush.msra.mxu0 0.0
    %746 = vmatpush.msra.mxu0 0.0
    %747 = vmatpush.msra.mxu0 0.0
    %748 = vmatpush.msra.mxu0 0.0
    %749 = vmatpush.msra.mxu0 0.0
    %750 = vmatpush.msra.mxu0 %v645
    %751 = vmatpush.msra.mxu0 %v644
    %752 = vmatpush.msra.mxu0 %v643
    %753 = vmatpush.msra.mxu0 %v642
    %754 = vmatpush.msra.mxu0 %v641
    %755 = vmatpush.msra.mxu0 %v640
    %756 = vmatpush.msra.mxu0 %v639
    %757 = vmatpush.msra.mxu0 %v638
    %758 = vmatmul.f32.gmra.mxu0 %v647
    %v759 = vpop.f32.mrf.mxu0
    %v760 = vadd.f32 0.0, %v759
    %761 = vmatmul.f32.gmra.mxu0 %v650
    %v762 = vpop.f32.mrf.mxu0
    %v763 = vadd.f32 0.0, %v762
    %764 = vmatmul.f32.gmra.mxu0 %v653
    %v765 = vpop.f32.mrf.mxu0
    %v766 = vadd.f32 0.0, %v765
    %767 = vmatmul.f32.gmra.mxu0 %v656
    %v768 = vpop.f32.mrf.mxu0
    %v769 = vadd.f32 0.0, %v768
    %770 = vmatmul.f32.gmra.mxu0 %v659
    %v771 = vpop.f32.mrf.mxu0
    %v772 = vadd.f32 0.0, %v771
    %773 = vmatmul.f32.gmra.mxu0 %v662
    %v774 = vpop.f32.mrf.mxu0
    %v775 = vadd.f32 0.0, %v774
    %776 = vmatmul.f32.gmra.mxu0 %v665
    %v777 = vpop.f32.mrf.mxu0
    %v778 = vadd.f32 0.0, %v777
    %779 = vmatmul.f32.gmra.mxu0 %v668
    %v780 = vpop.f32.mrf.mxu0
    %v781 = vadd.f32 0.0, %v780
    %782 = vmatmul.f32.gmra.mxu0 %v671
    %v783 = vpop.f32.mrf.mxu0
    %v784 = vadd.f32 0.0, %v783
    %785 = vmatmul.f32.gmra.mxu0 %v674
    %v786 = vpop.f32.mrf.mxu0
    %v787 = vadd.f32 0.0, %v786
    %788 = vmatmul.f32.gmra.mxu0 %v677
    %v789 = vpop.f32.mrf.mxu0
    %v790 = vadd.f32 0.0, %v789
    %791 = vmatmul.f32.gmra.mxu0 %v680
    %v792 = vpop.f32.mrf.mxu0
    %v793 = vadd.f32 0.0, %v792
    %794 = vmatmul.f32.gmra.mxu0 %v683
    %v795 = vpop.f32.mrf.mxu0
    %v796 = vadd.f32 0.0, %v795
    %797 = vmatmul.f32.gmra.mxu0 %v686
    %v798 = vpop.f32.mrf.mxu0
    %v799 = vadd.f32 0.0, %v798
    %800 = vmatmul.f32.gmra.mxu0 %v689
    %v801 = vpop.f32.mrf.mxu0
    %v802 = vadd.f32 0.0, %v801
    %803 = vmatmul.f32.gmra.mxu0 %v692
    %v804 = vpop.f32.mrf.mxu0
    %v805 = vadd.f32 0.0, %v804
    %806 = vmatmul.f32.gmra.mxu0 %v695
    %v807 = vpop.f32.mrf.mxu0
    %v808 = vadd.f32 0.0, %v807
    %809 = vmatmul.f32.gmra.mxu0 %v698
    %v810 = vpop.f32.mrf.mxu0
    %v811 = vadd.f32 0.0, %v810
    %812 = vmatmul.f32.gmra.mxu0 %v701
    %v813 = vpop.f32.mrf.mxu0
    %v814 = vadd.f32 0.0, %v813
    %815 = vmatmul.f32.gmra.mxu0 %v704
    %v816 = vpop.f32.mrf.mxu0
    %v817 = vadd.f32 0.0, %v816
    %818 = vmatmul.f32.gmra.mxu0 %v707
    %v819 = vpop.f32.mrf.mxu0
    %v820 = vadd.f32 0.0, %v819
    %821 = vmatmul.f32.gmra.mxu0 %v710
    %v822 = vpop.f32.mrf.mxu0
    %v823 = vadd.f32 0.0, %v822
    %824 = vmatmul.f32.gmra.mxu0 %v713
    %v825 = vpop.f32.mrf.mxu0
    %v826 = vadd.f32 0.0, %v825
    %827 = vmatmul.f32.gmra.mxu0 %v716
    %v828 = vpop.f32.mrf.mxu0
    %v829 = vadd.f32 0.0, %v828
    %830 = vmatmul.f32.gmra.mxu0 %v719
    %v831 = vpop.f32.mrf.mxu0
    %v832 = vadd.f32 0.0, %v831
    %833 = vmatmul.f32.gmra.mxu0 %v722
    %v834 = vpop.f32.mrf.mxu0
    %v835 = vadd.f32 0.0, %v834
    %836 = vmatmul.f32.gmra.mxu0 %v725
    %v837 = vpop.f32.mrf.mxu0
    %v838 = vadd.f32 0.0, %v837
    %839 = vmatmul.f32.gmra.mxu0 %v728
    %v840 = vpop.f32.mrf.mxu0
    %v841 = vadd.f32 0.0, %v840
    %842 = vmatmul.f32.gmra.mxu0 %v731
    %v843 = vpop.f32.mrf.mxu0
    %v844 = vadd.f32 0.0, %v843
    %845 = vmatmul.f32.gmra.mxu0 %v734
    %v846 = vpop.f32.mrf.mxu0
    %v847 = vadd.f32 0.0, %v846
    %848 = vmatmul.f32.gmra.mxu0 %v737
    %v849 = vpop.f32.mrf.mxu0
    %v850 = vadd.f32 0.0, %v849
    %851 = vmatmul.f32.gmra.mxu0 %v740
    %v852 = vpop.f32.mrf.mxu0
    %v853 = vadd.f32 0.0, %v852
    %854 = vdwg.mxu0
    %v855 = vadd.f32 %v511, %v760
    %v856 = vadd.f32 %v514, %v763
    %v857 = vadd.f32 %v517, %v766
    %v858 = vadd.f32 %v520, %v769
    %v859 = vadd.f32 %v523, %v772
    %v860 = vadd.f32 %v526, %v775
    %v861 = vadd.f32 %v529, %v778
    %v862 = vadd.f32 %v532, %v781
    %v863 = vadd.f32 %v535, %v784
    %v864 = vadd.f32 %v538, %v787
    %v865 = vadd.f32 %v541, %v790
    %v866 = vadd.f32 %v544, %v793
    %v867 = vadd.f32 %v547, %v796
    %v868 = vadd.f32 %v550, %v799
    %v869 = vadd.f32 %v553, %v802
    %v870 = vadd.f32 %v556, %v805
    %v871 = vadd.f32 %v559, %v808
    %v872 = vadd.f32 %v562, %v811
    %v873 = vadd.f32 %v565, %v814
    %v874 = vadd.f32 %v568, %v817
    %v875 = vadd.f32 %v571, %v820
    %v876 = vadd.f32 %v574, %v823
    %v877 = vadd.f32 %v577, %v826
    %v878 = vadd.f32 %v580, %v829
    %v879 = vadd.f32 %v583, %v832
    %v880 = vadd.f32 %v586, %v835
    %v881 = vadd.f32 %v589, %v838
    %v882 = vadd.f32 %v592, %v841
    %v883 = vadd.f32 %v595, %v844
    %v884 = vadd.f32 %v598, %v847
    %v885 = vadd.f32 %v601, %v850
    %v886 = vadd.f32 %v604, %v853
    %v887 = vld [vmem:[%s6] sm:$0x1]
    %v889 = vperm.slane %v887, 0
    %v891 = vadd.f32 %v855, %v889
    %v892 = vadd.f32 %v856, %v889
    %v893 = vadd.f32 %v857, %v889
    %v894 = vadd.f32 %v858, %v889
    %v895 = vadd.f32 %v859, %v889
    %v896 = vadd.f32 %v860, %v889
    %v897 = vadd.f32 %v861, %v889
    %v898 = vadd.f32 %v862, %v889
    %v899 = vadd.f32 %v863, %v889
    %v900 = vadd.f32 %v864, %v889
    %v901 = vadd.f32 %v865, %v889
    %v902 = vadd.f32 %v866, %v889
    %v903 = vadd.f32 %v867, %v889
    %v904 = vadd.f32 %v868, %v889
    %v905 = vadd.f32 %v869, %v889
    %v906 = vadd.f32 %v870, %v889
    %v907 = vadd.f32 %v871, %v889
    %v908 = vadd.f32 %v872, %v889
    %v909 = vadd.f32 %v873, %v889
    %v910 = vadd.f32 %v874, %v889
    %v911 = vadd.f32 %v875, %v889
    %v912 = vadd.f32 %v876, %v889
    %v913 = vadd.f32 %v877, %v889
    %v914 = vadd.f32 %v878, %v889
    %v915 = vadd.f32 %v879, %v889
    %v916 = vadd.f32 %v880, %v889
    %v917 = vadd.f32 %v881, %v889
    %v918 = vadd.f32 %v882, %v889
    %v919 = vadd.f32 %v883, %v889
    %v920 = vadd.f32 %v884, %v889
    %v921 = vadd.f32 %v885, %v889
    %v922 = vadd.f32 %v886, %v889
    %vm923 = vcmp.gt.f32.partialorder %v891, 0.0
    %vm924 = vcmp.gt.f32.partialorder %v892, 0.0
    %vm925 = vcmp.gt.f32.partialorder %v893, 0.0
    %vm926 = vcmp.gt.f32.partialorder %v894, 0.0
    %vm927 = vcmp.gt.f32.partialorder %v895, 0.0
    %vm928 = vcmp.gt.f32.partialorder %v896, 0.0
    %vm929 = vcmp.gt.f32.partialorder %v897, 0.0
    %vm930 = vcmp.gt.f32.partialorder %v898, 0.0
    %vm931 = vcmp.gt.f32.partialorder %v899, 0.0
    %vm932 = vcmp.gt.f32.partialorder %v900, 0.0
    %vm933 = vcmp.gt.f32.partialorder %v901, 0.0
    %vm934 = vcmp.gt.f32.partialorder %v902, 0.0
    %vm935 = vcmp.gt.f32.partialorder %v903, 0.0
    %vm936 = vcmp.gt.f32.partialorder %v904, 0.0
    %vm937 = vcmp.gt.f32.partialorder %v905, 0.0
    %vm938 = vcmp.gt.f32.partialorder %v906, 0.0
    %vm939 = vcmp.gt.f32.partialorder %v907, 0.0
    %vm940 = vcmp.gt.f32.partialorder %v908, 0.0
    %vm941 = vcmp.gt.f32.partialorder %v909, 0.0
    %vm942 = vcmp.gt.f32.partialorder %v910, 0.0
    %vm943 = vcmp.gt.f32.partialorder %v911, 0.0
    %vm944 = vcmp.gt.f32.partialorder %v912, 0.0
    %vm945 = vcmp.gt.f32.partialorder %v913, 0.0
    %vm946 = vcmp.gt.f32.partialorder %v914, 0.0
    %vm947 = vcmp.gt.f32.partialorder %v915, 0.0
    %vm948 = vcmp.gt.f32.partialorder %v916, 0.0
    %vm949 = vcmp.gt.f32.partialorder %v917, 0.0
    %vm950 = vcmp.gt.f32.partialorder %v918, 0.0
    %vm951 = vcmp.gt.f32.partialorder %v919, 0.0
    %vm952 = vcmp.gt.f32.partialorder %v920, 0.0
    %vm953 = vcmp.gt.f32.partialorder %v921, 0.0
    %vm954 = vcmp.gt.f32.partialorder %v922, 0.0
    %v955 = vmin.f32 %v891, 0.0
    %v956 = vmin.f32 %v892, 0.0
    %v957 = vmin.f32 %v893, 0.0
    %v958 = vmin.f32 %v894, 0.0
    %v959 = vmin.f32 %v895, 0.0
    %v960 = vmin.f32 %v896, 0.0
    %v961 = vmin.f32 %v897, 0.0
    %v962 = vmin.f32 %v898, 0.0
    %v963 = vmin.f32 %v899, 0.0
    %v964 = vmin.f32 %v900, 0.0
    %v965 = vmin.f32 %v901, 0.0
    %v966 = vmin.f32 %v902, 0.0
    %v967 = vmin.f32 %v903, 0.0
    %v968 = vmin.f32 %v904, 0.0
    %v969 = vmin.f32 %v905, 0.0
    %v970 = vmin.f32 %v906, 0.0
    %v971 = vmin.f32 %v907, 0.0
    %v972 = vmin.f32 %v908, 0.0
    %v973 = vmin.f32 %v909, 0.0
    %v974 = vmin.f32 %v910, 0.0
    %v975 = vmin.f32 %v911, 0.0
    %v976 = vmin.f32 %v912, 0.0
    %v977 = vmin.f32 %v913, 0.0
    %v978 = vmin.f32 %v914, 0.0
    %v979 = vmin.f32 %v915, 0.0
    %v980 = vmin.f32 %v916, 0.0
    %v981 = vmin.f32 %v917, 0.0
    %v982 = vmin.f32 %v918, 0.0
    %v983 = vmin.f32 %v919, 0.0
    %v984 = vmin.f32 %v920, 0.0
    %v985 = vmin.f32 %v921, 0.0
    %v986 = vmin.f32 %v922, 0.0
    %v987 = vmul.f32 %v955, 1.442695
    %v988 = vpow.pop %v987
    %v989 = vmul.f32 %v956, 1.442695
    %v990 = vpow.pop %v989
    %v991 = vmul.f32 %v957, 1.442695
    %v992 = vpow.pop %v991
    %v993 = vmul.f32 %v958, 1.442695
    %v994 = vpow.pop %v993
    %v995 = vmul.f32 %v959, 1.442695
    %v996 = vpow.pop %v995
    %v997 = vmul.f32 %v960, 1.442695
    %v998 = vpow.pop %v997
    %v999 = vmul.f32 %v961, 1.442695
    %v1000 = vpow.pop %v999
    %v1001 = vmul.f32 %v962, 1.442695
    %v1002 = vpow.pop %v1001
    %v1003 = vmul.f32 %v963, 1.442695
    %v1004 = vpow.pop %v1003
    %v1005 = vmul.f32 %v964, 1.442695
    %v1006 = vpow.pop %v1005
    %v1007 = vmul.f32 %v965, 1.442695
    %v1008 = vpow.pop %v1007
    %v1009 = vmul.f32 %v966, 1.442695
    %v1010 = vpow.pop %v1009
    %v1011 = vmul.f32 %v967, 1.442695
    %v1012 = vpow.pop %v1011
    %v1013 = vmul.f32 %v968, 1.442695
    %v1014 = vpow.pop %v1013
    %v1015 = vmul.f32 %v969, 1.442695
    %v1016 = vpow.pop %v1015
    %v1017 = vmul.f32 %v970, 1.442695
    %v1018 = vpow.pop %v1017
    %v1019 = vmul.f32 %v971, 1.442695
    %v1020 = vpow.pop %v1019
    %v1021 = vmul.f32 %v972, 1.442695
    %v1022 = vpow.pop %v1021
    %v1023 = vmul.f32 %v973, 1.442695
    %v1024 = vpow.pop %v1023
    %v1025 = vmul.f32 %v974, 1.442695
    %v1026 = vpow.pop %v1025
    %v1027 = vmul.f32 %v975, 1.442695
    %v1028 = vpow.pop %v1027
    %v1029 = vmul.f32 %v976, 1.442695
    %v1030 = vpow.pop %v1029
    %v1031 = vmul.f32 %v977, 1.442695
    %v1032 = vpow.pop %v1031
    %v1033 = vmul.f32 %v978, 1.442695
    %v1034 = vpow.pop %v1033
    %v1035 = vmul.f32 %v979, 1.442695
    %v1036 = vpow.pop %v1035
    %v1037 = vmul.f32 %v980, 1.442695
    %v1038 = vpow.pop %v1037
    %v1039 = vmul.f32 %v981, 1.442695
    %v1040 = vpow.pop %v1039
    %v1041 = vmul.f32 %v982, 1.442695
    %v1042 = vpow.pop %v1041
    %v1043 = vmul.f32 %v983, 1.442695
    %v1044 = vpow.pop %v1043
    %v1045 = vmul.f32 %v984, 1.442695
    %v1046 = vpow.pop %v1045
    %v1047 = vmul.f32 %v985, 1.442695
    %v1048 = vpow.pop %v1047
    %v1049 = vmul.f32 %v986, 1.442695
    %v1050 = vpow.pop %v1049
    %v1051 = vsub.f32 %v988, 1.0
    %v1052 = vsub.f32 %v990, 1.0
    %v1053 = vsub.f32 %v992, 1.0
    %v1054 = vsub.f32 %v994, 1.0
    %v1055 = vsub.f32 %v996, 1.0
    %v1056 = vsub.f32 %v998, 1.0
    %v1057 = vsub.f32 %v1000, 1.0
    %v1058 = vsub.f32 %v1002, 1.0
    %v1059 = vsub.f32 %v1004, 1.0
    %v1060 = vsub.f32 %v1006, 1.0
    %v1061 = vsub.f32 %v1008, 1.0
    %v1062 = vsub.f32 %v1010, 1.0
    %v1063 = vsub.f32 %v1012, 1.0
    %v1064 = vsub.f32 %v1014, 1.0
    %v1065 = vsub.f32 %v1016, 1.0
    %v1066 = vsub.f32 %v1018, 1.0
    %v1067 = vsub.f32 %v1020, 1.0
    %v1068 = vsub.f32 %v1022, 1.0
    %v1069 = vsub.f32 %v1024, 1.0
    %v1070 = vsub.f32 %v1026, 1.0
    %v1071 = vsub.f32 %v1028, 1.0
    %v1072 = vsub.f32 %v1030, 1.0
    %v1073 = vsub.f32 %v1032, 1.0
    %v1074 = vsub.f32 %v1034, 1.0
    %v1075 = vsub.f32 %v1036, 1.0
    %v1076 = vsub.f32 %v1038, 1.0
    %v1077 = vsub.f32 %v1040, 1.0
    %v1078 = vsub.f32 %v1042, 1.0
    %v1079 = vsub.f32 %v1044, 1.0
    %v1080 = vsub.f32 %v1046, 1.0
    %v1081 = vsub.f32 %v1048, 1.0
    %v1082 = vsub.f32 %v1050, 1.0
    %v1083 = vsel %vm923, %v891, %v1051
    %v1084 = vsel %vm924, %v892, %v1052
    %v1085 = vsel %vm925, %v893, %v1053
    %v1086 = vsel %vm926, %v894, %v1054
    %v1087 = vsel %vm927, %v895, %v1055
    %v1088 = vsel %vm928, %v896, %v1056
    %v1089 = vsel %vm929, %v897, %v1057
    %v1090 = vsel %vm930, %v898, %v1058
    %v1091 = vsel %vm931, %v899, %v1059
    %v1092 = vsel %vm932, %v900, %v1060
    %v1093 = vsel %vm933, %v901, %v1061
    %v1094 = vsel %vm934, %v902, %v1062
    %v1095 = vsel %vm935, %v903, %v1063
    %v1096 = vsel %vm936, %v904, %v1064
    %v1097 = vsel %vm937, %v905, %v1065
    %v1098 = vsel %vm938, %v906, %v1066
    %v1099 = vsel %vm939, %v907, %v1067
    %v1100 = vsel %vm940, %v908, %v1068
    %v1101 = vsel %vm941, %v909, %v1069
    %v1102 = vsel %vm942, %v910, %v1070
    %v1103 = vsel %vm943, %v911, %v1071
    %v1104 = vsel %vm944, %v912, %v1072
    %v1105 = vsel %vm945, %v913, %v1073
    %v1106 = vsel %vm946, %v914, %v1074
    %v1107 = vsel %vm947, %v915, %v1075
    %v1108 = vsel %vm948, %v916, %v1076
    %v1109 = vsel %vm949, %v917, %v1077
    %v1110 = vsel %vm950, %v918, %v1078
    %v1111 = vsel %vm951, %v919, %v1079
    %v1112 = vsel %vm952, %v920, %v1080
    %v1113 = vsel %vm953, %v921, %v1081
    %v1114 = vsel %vm954, %v922, %v1082
    %v1115 = vld [vmem:[%s7] sm:$0xff]
    %v1116 = vld [vmem:[%s7 + $0x8] sm:$0xff]
    %v1117 = vld [vmem:[%s7 + $0x10] sm:$0xff]
    %v1118 = vld [vmem:[%s7 + $0x18] sm:$0xff]
    %v1119 = vld [vmem:[%s7 + $0x20] sm:$0xff]
    %v1120 = vld [vmem:[%s7 + $0x28] sm:$0xff]
    %v1121 = vld [vmem:[%s7 + $0x30] sm:$0xff]
    %v1122 = vld [vmem:[%s7 + $0x38] sm:$0xff]
    %v1123 = vld [vmem:[%s8] sm:$0x1]
    %v1125 = vperm.slane %v1123, 0
    %v1128 = vsel %vm396, %v1083, 0
    %v1131 = vsel %vm396, %v1084, 0
    %v1134 = vsel %vm396, %v1085, 0
    %v1137 = vsel %vm396, %v1086, 0
    %v1140 = vsel %vm396, %v1087, 0
    %v1143 = vsel %vm396, %v1088, 0
    %v1146 = vsel %vm396, %v1089, 0
    %v1149 = vsel %vm396, %v1090, 0
    %v1152 = vsel %vm396, %v1091, 0
    %v1155 = vsel %vm396, %v1092, 0
    %v1158 = vsel %vm396, %v1093, 0
    %v1161 = vsel %vm396, %v1094, 0
    %v1164 = vsel %vm396, %v1095, 0
    %v1167 = vsel %vm396, %v1096, 0
    %v1170 = vsel %vm396, %v1097, 0
    %v1173 = vsel %vm396, %v1098, 0
    %v1176 = vsel %vm396, %v1099, 0
    %v1179 = vsel %vm396, %v1100, 0
    %v1182 = vsel %vm396, %v1101, 0
    %v1185 = vsel %vm396, %v1102, 0
    %v1188 = vsel %vm396, %v1103, 0
    %v1191 = vsel %vm396, %v1104, 0
    %v1194 = vsel %vm396, %v1105, 0
    %v1197 = vsel %vm396, %v1106, 0
    %v1200 = vsel %vm396, %v1107, 0
    %v1203 = vsel %vm396, %v1108, 0
    %v1206 = vsel %vm396, %v1109, 0
    %v1209 = vsel %vm396, %v1110, 0
    %v1212 = vsel %vm396, %v1111, 0
    %v1215 = vsel %vm396, %v1112, 0
    %v1218 = vsel %vm396, %v1113, 0
    %v1221 = vsel %vm396, %v1114, 0
    %1223 = vmatpush.msra.mxu0 0.0
    %1224 = vmatpush.msra.mxu0 0.0
    %1225 = vmatpush.msra.mxu0 0.0
    %1226 = vmatpush.msra.mxu0 0.0
    %1227 = vmatpush.msra.mxu0 0.0
    %1228 = vmatpush.msra.mxu0 0.0
    %1229 = vmatpush.msra.mxu0 0.0
    %1230 = vmatpush.msra.mxu0 0.0
    %1231 = vmatpush.msra.mxu0 %v1122
    %1232 = vmatpush.msra.mxu0 %v1121
    %1233 = vmatpush.msra.mxu0 %v1120
    %1234 = vmatpush.msra.mxu0 %v1119
    %1235 = vmatpush.msra.mxu0 %v1118
    %1236 = vmatpush.msra.mxu0 %v1117
    %1237 = vmatpush.msra.mxu0 %v1116
    %1238 = vmatpush.msra.mxu0 %v1115
    %1239 = vmatmul.f32.gmra.mxu0 %v1128
    %v1240 = vpop.f32.mrf.mxu0
    %v1241 = vadd.f32 %v1125, %v1240
    %1242 = vmatmul.f32.gmra.mxu0 %v1131
    %v1243 = vpop.f32.mrf.mxu0
    %v1244 = vadd.f32 %v1125, %v1243
    %1245 = vmatmul.f32.gmra.mxu0 %v1134
    %v1246 = vpop.f32.mrf.mxu0
    %v1247 = vadd.f32 %v1125, %v1246
    %1248 = vmatmul.f32.gmra.mxu0 %v1137
    %v1249 = vpop.f32.mrf.mxu0
    %v1250 = vadd.f32 %v1125, %v1249
    %1251 = vmatmul.f32.gmra.mxu0 %v1140
    %v1252 = vpop.f32.mrf.mxu0
    %v1253 = vadd.f32 %v1125, %v1252
    %1254 = vmatmul.f32.gmra.mxu0 %v1143
    %v1255 = vpop.f32.mrf.mxu0
    %v1256 = vadd.f32 %v1125, %v1255
    %1257 = vmatmul.f32.gmra.mxu0 %v1146
    %v1258 = vpop.f32.mrf.mxu0
    %v1259 = vadd.f32 %v1125, %v1258
    %1260 = vmatmul.f32.gmra.mxu0 %v1149
    %v1261 = vpop.f32.mrf.mxu0
    %v1262 = vadd.f32 %v1125, %v1261
    %1263 = vmatmul.f32.gmra.mxu0 %v1152
    %v1264 = vpop.f32.mrf.mxu0
    %v1265 = vadd.f32 %v1125, %v1264
    %1266 = vmatmul.f32.gmra.mxu0 %v1155
    %v1267 = vpop.f32.mrf.mxu0
    %v1268 = vadd.f32 %v1125, %v1267
    %1269 = vmatmul.f32.gmra.mxu0 %v1158
    %v1270 = vpop.f32.mrf.mxu0
    %v1271 = vadd.f32 %v1125, %v1270
    %1272 = vmatmul.f32.gmra.mxu0 %v1161
    %v1273 = vpop.f32.mrf.mxu0
    %v1274 = vadd.f32 %v1125, %v1273
    %1275 = vmatmul.f32.gmra.mxu0 %v1164
    %v1276 = vpop.f32.mrf.mxu0
    %v1277 = vadd.f32 %v1125, %v1276
    %1278 = vmatmul.f32.gmra.mxu0 %v1167
    %v1279 = vpop.f32.mrf.mxu0
    %v1280 = vadd.f32 %v1125, %v1279
    %1281 = vmatmul.f32.gmra.mxu0 %v1170
    %v1282 = vpop.f32.mrf.mxu0
    %v1283 = vadd.f32 %v1125, %v1282
    %1284 = vmatmul.f32.gmra.mxu0 %v1173
    %v1285 = vpop.f32.mrf.mxu0
    %v1286 = vadd.f32 %v1125, %v1285
    %1287 = vmatmul.f32.gmra.mxu0 %v1176
    %v1288 = vpop.f32.mrf.mxu0
    %v1289 = vadd.f32 %v1125, %v1288
    %1290 = vmatmul.f32.gmra.mxu0 %v1179
    %v1291 = vpop.f32.mrf.mxu0
    %v1292 = vadd.f32 %v1125, %v1291
    %1293 = vmatmul.f32.gmra.mxu0 %v1182
    %v1294 = vpop.f32.mrf.mxu0
    %v1295 = vadd.f32 %v1125, %v1294
    %1296 = vmatmul.f32.gmra.mxu0 %v1185
    %v1297 = vpop.f32.mrf.mxu0
    %v1298 = vadd.f32 %v1125, %v1297
    %1299 = vmatmul.f32.gmra.mxu0 %v1188
    %v1300 = vpop.f32.mrf.mxu0
    %v1301 = vadd.f32 %v1125, %v1300
    %1302 = vmatmul.f32.gmra.mxu0 %v1191
    %v1303 = vpop.f32.mrf.mxu0
    %v1304 = vadd.f32 %v1125, %v1303
    %1305 = vmatmul.f32.gmra.mxu0 %v1194
    %v1306 = vpop.f32.mrf.mxu0
    %v1307 = vadd.f32 %v1125, %v1306
    %1308 = vmatmul.f32.gmra.mxu0 %v1197
    %v1309 = vpop.f32.mrf.mxu0
    %v1310 = vadd.f32 %v1125, %v1309
    %1311 = vmatmul.f32.gmra.mxu0 %v1200
    %v1312 = vpop.f32.mrf.mxu0
    %v1313 = vadd.f32 %v1125, %v1312
    %1314 = vmatmul.f32.gmra.mxu0 %v1203
    %v1315 = vpop.f32.mrf.mxu0
    %v1316 = vadd.f32 %v1125, %v1315
    %1317 = vmatmul.f32.gmra.mxu0 %v1206
    %v1318 = vpop.f32.mrf.mxu0
    %v1319 = vadd.f32 %v1125, %v1318
    %1320 = vmatmul.f32.gmra.mxu0 %v1209
    %v1321 = vpop.f32.mrf.mxu0
    %v1322 = vadd.f32 %v1125, %v1321
    %1323 = vmatmul.f32.gmra.mxu0 %v1212
    %v1324 = vpop.f32.mrf.mxu0
    %v1325 = vadd.f32 %v1125, %v1324
    %1326 = vmatmul.f32.gmra.mxu0 %v1215
    %v1327 = vpop.f32.mrf.mxu0
    %v1328 = vadd.f32 %v1125, %v1327
    %1329 = vmatmul.f32.gmra.mxu0 %v1218
    %v1330 = vpop.f32.mrf.mxu0
    %v1331 = vadd.f32 %v1125, %v1330
    %1332 = vmatmul.f32.gmra.mxu0 %v1221
    %v1333 = vpop.f32.mrf.mxu0
    %v1334 = vadd.f32 %v1125, %v1333
    %1335 = vdwg.mxu0
    %vm1336 = vcmp.gt.f32.partialorder %v1241, 0.0
    %vm1337 = vcmp.gt.f32.partialorder %v1244, 0.0
    %vm1338 = vcmp.gt.f32.partialorder %v1247, 0.0
    %vm1339 = vcmp.gt.f32.partialorder %v1250, 0.0
    %vm1340 = vcmp.gt.f32.partialorder %v1253, 0.0
    %vm1341 = vcmp.gt.f32.partialorder %v1256, 0.0
    %vm1342 = vcmp.gt.f32.partialorder %v1259, 0.0
    %vm1343 = vcmp.gt.f32.partialorder %v1262, 0.0
    %vm1344 = vcmp.gt.f32.partialorder %v1265, 0.0
    %vm1345 = vcmp.gt.f32.partialorder %v1268, 0.0
    %vm1346 = vcmp.gt.f32.partialorder %v1271, 0.0
    %vm1347 = vcmp.gt.f32.partialorder %v1274, 0.0
    %vm1348 = vcmp.gt.f32.partialorder %v1277, 0.0
    %vm1349 = vcmp.gt.f32.partialorder %v1280, 0.0
    %vm1350 = vcmp.gt.f32.partialorder %v1283, 0.0
    %vm1351 = vcmp.gt.f32.partialorder %v1286, 0.0
    %vm1352 = vcmp.gt.f32.partialorder %v1289, 0.0
    %vm1353 = vcmp.gt.f32.partialorder %v1292, 0.0
    %vm1354 = vcmp.gt.f32.partialorder %v1295, 0.0
    %vm1355 = vcmp.gt.f32.partialorder %v1298, 0.0
    %vm1356 = vcmp.gt.f32.partialorder %v1301, 0.0
    %vm1357 = vcmp.gt.f32.partialorder %v1304, 0.0
    %vm1358 = vcmp.gt.f32.partialorder %v1307, 0.0
    %vm1359 = vcmp.gt.f32.partialorder %v1310, 0.0
    %vm1360 = vcmp.gt.f32.partialorder %v1313, 0.0
    %vm1361 = vcmp.gt.f32.partialorder %v1316, 0.0
    %vm1362 = vcmp.gt.f32.partialorder %v1319, 0.0
    %vm1363 = vcmp.gt.f32.partialorder %v1322, 0.0
    %vm1364 = vcmp.gt.f32.partialorder %v1325, 0.0
    %vm1365 = vcmp.gt.f32.partialorder %v1328, 0.0
    %vm1366 = vcmp.gt.f32.partialorder %v1331, 0.0
    %vm1367 = vcmp.gt.f32.partialorder %v1334, 0.0
    %v1368 = vmin.f32 %v1241, 0.0
    %v1369 = vmin.f32 %v1244, 0.0
    %v1370 = vmin.f32 %v1247, 0.0
    %v1371 = vmin.f32 %v1250, 0.0
    %v1372 = vmin.f32 %v1253, 0.0
    %v1373 = vmin.f32 %v1256, 0.0
    %v1374 = vmin.f32 %v1259, 0.0
    %v1375 = vmin.f32 %v1262, 0.0
    %v1376 = vmin.f32 %v1265, 0.0
    %v1377 = vmin.f32 %v1268, 0.0
    %v1378 = vmin.f32 %v1271, 0.0
    %v1379 = vmin.f32 %v1274, 0.0
    %v1380 = vmin.f32 %v1277, 0.0
    %v1381 = vmin.f32 %v1280, 0.0
    %v1382 = vmin.f32 %v1283, 0.0
    %v1383 = vmin.f32 %v1286, 0.0
    %v1384 = vmin.f32 %v1289, 0.0
    %v1385 = vmin.f32 %v1292, 0.0
    %v1386 = vmin.f32 %v1295, 0.0
    %v1387 = vmin.f32 %v1298, 0.0
    %v1388 = vmin.f32 %v1301, 0.0
    %v1389 = vmin.f32 %v1304, 0.0
    %v1390 = vmin.f32 %v1307, 0.0
    %v1391 = vmin.f32 %v1310, 0.0
    %v1392 = vmin.f32 %v1313, 0.0
    %v1393 = vmin.f32 %v1316, 0.0
    %v1394 = vmin.f32 %v1319, 0.0
    %v1395 = vmin.f32 %v1322, 0.0
    %v1396 = vmin.f32 %v1325, 0.0
    %v1397 = vmin.f32 %v1328, 0.0
    %v1398 = vmin.f32 %v1331, 0.0
    %v1399 = vmin.f32 %v1334, 0.0
    %v1400 = vmul.f32 %v1368, 1.442695
    %v1401 = vpow.pop %v1400
    %v1402 = vmul.f32 %v1369, 1.442695
    %v1403 = vpow.pop %v1402
    %v1404 = vmul.f32 %v1370, 1.442695
    %v1405 = vpow.pop %v1404
    %v1406 = vmul.f32 %v1371, 1.442695
    %v1407 = vpow.pop %v1406
    %v1408 = vmul.f32 %v1372, 1.442695
    %v1409 = vpow.pop %v1408
    %v1410 = vmul.f32 %v1373, 1.442695
    %v1411 = vpow.pop %v1410
    %v1412 = vmul.f32 %v1374, 1.442695
    %v1413 = vpow.pop %v1412
    %v1414 = vmul.f32 %v1375, 1.442695
    %v1415 = vpow.pop %v1414
    %v1416 = vmul.f32 %v1376, 1.442695
    %v1417 = vpow.pop %v1416
    %v1418 = vmul.f32 %v1377, 1.442695
    %v1419 = vpow.pop %v1418
    %v1420 = vmul.f32 %v1378, 1.442695
    %v1421 = vpow.pop %v1420
    %v1422 = vmul.f32 %v1379, 1.442695
    %v1423 = vpow.pop %v1422
    %v1424 = vmul.f32 %v1380, 1.442695
    %v1425 = vpow.pop %v1424
    %v1426 = vmul.f32 %v1381, 1.442695
    %v1427 = vpow.pop %v1426
    %v1428 = vmul.f32 %v1382, 1.442695
    %v1429 = vpow.pop %v1428
    %v1430 = vmul.f32 %v1383, 1.442695
    %v1431 = vpow.pop %v1430
    %v1432 = vmul.f32 %v1384, 1.442695
    %v1433 = vpow.pop %v1432
    %v1434 = vmul.f32 %v1385, 1.442695
    %v1435 = vpow.pop %v1434
    %v1436 = vmul.f32 %v1386, 1.442695
    %v1437 = vpow.pop %v1436
    %v1438 = vmul.f32 %v1387, 1.442695
    %v1439 = vpow.pop %v1438
    %v1440 = vmul.f32 %v1388, 1.442695
    %v1441 = vpow.pop %v1440
    %v1442 = vmul.f32 %v1389, 1.442695
    %v1443 = vpow.pop %v1442
    %v1444 = vmul.f32 %v1390, 1.442695
    %v1445 = vpow.pop %v1444
    %v1446 = vmul.f32 %v1391, 1.442695
    %v1447 = vpow.pop %v1446
    %v1448 = vmul.f32 %v1392, 1.442695
    %v1449 = vpow.pop %v1448
    %v1450 = vmul.f32 %v1393, 1.442695
    %v1451 = vpow.pop %v1450
    %v1452 = vmul.f32 %v1394, 1.442695
    %v1453 = vpow.pop %v1452
    %v1454 = vmul.f32 %v1395, 1.442695
    %v1455 = vpow.pop %v1454
    %v1456 = vmul.f32 %v1396, 1.442695
    %v1457 = vpow.pop %v1456
    %v1458 = vmul.f32 %v1397, 1.442695
    %v1459 = vpow.pop %v1458
    %v1460 = vmul.f32 %v1398, 1.442695
    %v1461 = vpow.pop %v1460
    %v1462 = vmul.f32 %v1399, 1.442695
    %v1463 = vpow.pop %v1462
    %v1464 = vsub.f32 %v1401, 1.0
    %v1465 = vsub.f32 %v1403, 1.0
    %v1466 = vsub.f32 %v1405, 1.0
    %v1467 = vsub.f32 %v1407, 1.0
    %v1468 = vsub.f32 %v1409, 1.0
    %v1469 = vsub.f32 %v1411, 1.0
    %v1470 = vsub.f32 %v1413, 1.0
    %v1471 = vsub.f32 %v1415, 1.0
    %v1472 = vsub.f32 %v1417, 1.0
    %v1473 = vsub.f32 %v1419, 1.0
    %v1474 = vsub.f32 %v1421, 1.0
    %v1475 = vsub.f32 %v1423, 1.0
    %v1476 = vsub.f32 %v1425, 1.0
    %v1477 = vsub.f32 %v1427, 1.0
    %v1478 = vsub.f32 %v1429, 1.0
    %v1479 = vsub.f32 %v1431, 1.0
    %v1480 = vsub.f32 %v1433, 1.0
    %v1481 = vsub.f32 %v1435, 1.0
    %v1482 = vsub.f32 %v1437, 1.0
    %v1483 = vsub.f32 %v1439, 1.0
    %v1484 = vsub.f32 %v1441, 1.0
    %v1485 = vsub.f32 %v1443, 1.0
    %v1486 = vsub.f32 %v1445, 1.0
    %v1487 = vsub.f32 %v1447, 1.0
    %v1488 = vsub.f32 %v1449, 1.0
    %v1489 = vsub.f32 %v1451, 1.0
    %v1490 = vsub.f32 %v1453, 1.0
    %v1491 = vsub.f32 %v1455, 1.0
    %v1492 = vsub.f32 %v1457, 1.0
    %v1493 = vsub.f32 %v1459, 1.0
    %v1494 = vsub.f32 %v1461, 1.0
    %v1495 = vsub.f32 %v1463, 1.0
    %v1496 = vsel %vm1336, %v1241, %v1464
    %v1497 = vsel %vm1337, %v1244, %v1465
    %v1498 = vsel %vm1338, %v1247, %v1466
    %v1499 = vsel %vm1339, %v1250, %v1467
    %v1500 = vsel %vm1340, %v1253, %v1468
    %v1501 = vsel %vm1341, %v1256, %v1469
    %v1502 = vsel %vm1342, %v1259, %v1470
    %v1503 = vsel %vm1343, %v1262, %v1471
    %v1504 = vsel %vm1344, %v1265, %v1472
    %v1505 = vsel %vm1345, %v1268, %v1473
    %v1506 = vsel %vm1346, %v1271, %v1474
    %v1507 = vsel %vm1347, %v1274, %v1475
    %v1508 = vsel %vm1348, %v1277, %v1476
    %v1509 = vsel %vm1349, %v1280, %v1477
    %v1510 = vsel %vm1350, %v1283, %v1478
    %v1511 = vsel %vm1351, %v1286, %v1479
    %v1512 = vsel %vm1352, %v1289, %v1480
    %v1513 = vsel %vm1353, %v1292, %v1481
    %v1514 = vsel %vm1354, %v1295, %v1482
    %v1515 = vsel %vm1355, %v1298, %v1483
    %v1516 = vsel %vm1356, %v1301, %v1484
    %v1517 = vsel %vm1357, %v1304, %v1485
    %v1518 = vsel %vm1358, %v1307, %v1486
    %v1519 = vsel %vm1359, %v1310, %v1487
    %v1520 = vsel %vm1360, %v1313, %v1488
    %v1521 = vsel %vm1361, %v1316, %v1489
    %v1522 = vsel %vm1362, %v1319, %v1490
    %v1523 = vsel %vm1363, %v1322, %v1491
    %v1524 = vsel %vm1364, %v1325, %v1492
    %v1525 = vsel %vm1365, %v1328, %v1493
    %v1526 = vsel %vm1366, %v1331, %v1494
    %v1527 = vsel %vm1367, %v1334, %v1495
    %1528 = vst.msk [vmem:[%s9] sm:$0xff] %vm396, %v1496
    %1529 = vst.msk [vmem:[%s9 + $0x8] sm:$0xff] %vm396, %v1497
    %1530 = vst.msk [vmem:[%s9 + $0x10] sm:$0xff] %vm396, %v1498
    %1531 = vst.msk [vmem:[%s9 + $0x18] sm:$0xff] %vm396, %v1499
    %1532 = vst.msk [vmem:[%s9 + $0x20] sm:$0xff] %vm396, %v1500
    %1533 = vst.msk [vmem:[%s9 + $0x28] sm:$0xff] %vm396, %v1501
    %1534 = vst.msk [vmem:[%s9 + $0x30] sm:$0xff] %vm396, %v1502
    %1535 = vst.msk [vmem:[%s9 + $0x38] sm:$0xff] %vm396, %v1503
    %1536 = vst.msk [vmem:[%s9 + $0x40] sm:$0xff] %vm396, %v1504
    %1537 = vst.msk [vmem:[%s9 + $0x48] sm:$0xff] %vm396, %v1505
    %1538 = vst.msk [vmem:[%s9 + $0x50] sm:$0xff] %vm396, %v1506
    %1539 = vst.msk [vmem:[%s9 + $0x58] sm:$0xff] %vm396, %v1507
    %1540 = vst.msk [vmem:[%s9 + $0x60] sm:$0xff] %vm396, %v1508
    %1541 = vst.msk [vmem:[%s9 + $0x68] sm:$0xff] %vm396, %v1509
    %1542 = vst.msk [vmem:[%s9 + $0x70] sm:$0xff] %vm396, %v1510
    %1543 = vst.msk [vmem:[%s9 + $0x78] sm:$0xff] %vm396, %v1511
    %1544 = vst.msk [vmem:[%s9 + $0x80] sm:$0xff] %vm396, %v1512
    %1545 = vst.msk [vmem:[%s9 + $0x88] sm:$0xff] %vm396, %v1513
    %1546 = vst.msk [vmem:[%s9 + $0x90] sm:$0xff] %vm396, %v1514
    %1547 = vst.msk [vmem:[%s9 + $0x98] sm:$0xff] %vm396, %v1515
    %1548 = vst.msk [vmem:[%s9 + $0xa0] sm:$0xff] %vm396, %v1516
    %1549 = vst.msk [vmem:[%s9 + $0xa8] sm:$0xff] %vm396, %v1517
    %1550 = vst.msk [vmem:[%s9 + $0xb0] sm:$0xff] %vm396, %v1518
    %1551 = vst.msk [vmem:[%s9 + $0xb8] sm:$0xff] %vm396, %v1519
    %1552 = vst.msk [vmem:[%s9 + $0xc0] sm:$0xff] %vm396, %v1520
    %1553 = vst.msk [vmem:[%s9 + $0xc8] sm:$0xff] %vm396, %v1521
    %1554 = vst.msk [vmem:[%s9 + $0xd0] sm:$0xff] %vm396, %v1522
    %1555 = vst.msk [vmem:[%s9 + $0xd8] sm:$0xff] %vm396, %v1523
    %1556 = vst.msk [vmem:[%s9 + $0xe0] sm:$0xff] %vm396, %v1524
    %1557 = vst.msk [vmem:[%s9 + $0xe8] sm:$0xff] %vm396, %v1525
    %1558 = vst.msk [vmem:[%s9 + $0xf0] sm:$0xff] %vm396, %v1526
    %1559 = vst.msk [vmem:[%s9 + $0xf8] sm:$0xff] %vm396, %v1527
    %p1560 = scmp.eq.s32.totalorder 0, 0
    // Predicated region
    $region76: #{gravnet_block_forward.10} parent=1 // pred_check
      %p1561 = pneg %p1560
    $region77: #{gravnet_block_forward.10} parent=1 // pred_check_branch
      %1563 = sbr.rel (%p1561) target = $region79
    $region78: #{gravnet_block_forward.10} parent=1 // pred_region
      %vm1564 = vcmask 516096
      %1565 = vst.msk [vmem:[%s10] sm:$0x1] %vm1564, 0.0
      %1566 = vst.msk [vmem:[%s11] sm:$0x1] %vm1564, 0.0
    $region79: #{gravnet_block_forward.10} parent=1 // pred_fallthru
      _
    %v1567 = vld [vmem:[%s10] sm:$0x1]
    %v1568 = vsel %vm396, %v1496, 0.0
    %v1569 = vsel %vm396, %v1497, 0.0
    %v1570 = vadd.f32 %v1568, %v1569
    %v1571 = vsel %vm396, %v1498, 0.0
    %v1572 = vadd.f32 %v1570, %v1571
    %v1573 = vsel %vm396, %v1499, 0.0
    %v1574 = vadd.f32 %v1572, %v1573
    %v1575 = vsel %vm396, %v1500, 0.0
    %v1576 = vadd.f32 %v1574, %v1575
    %v1577 = vsel %vm396, %v1501, 0.0
    %v1578 = vadd.f32 %v1576, %v1577
    %v1579 = vsel %vm396, %v1502, 0.0
    %v1580 = vadd.f32 %v1578, %v1579
    %v1581 = vsel %vm396, %v1503, 0.0
    %v1582 = vadd.f32 %v1580, %v1581
    %v1583 = vsel %vm396, %v1504, 0.0
    %v1584 = vadd.f32 %v1582, %v1583
    %v1585 = vsel %vm396, %v1505, 0.0
    %v1586 = vadd.f32 %v1584, %v1585
    %v1587 = vsel %vm396, %v1506, 0.0
    %v1588 = vadd.f32 %v1586, %v1587
    %v1589 = vsel %vm396, %v1507, 0.0
    %v1590 = vadd.f32 %v1588, %v1589
    %v1591 = vsel %vm396, %v1508, 0.0
    %v1592 = vadd.f32 %v1590, %v1591
    %v1593 = vsel %vm396, %v1509, 0.0
    %v1594 = vadd.f32 %v1592, %v1593
    %v1595 = vsel %vm396, %v1510, 0.0
    %v1596 = vadd.f32 %v1594, %v1595
    %v1597 = vsel %vm396, %v1511, 0.0
    %v1598 = vadd.f32 %v1596, %v1597
    %v1599 = vsel %vm396, %v1512, 0.0
    %v1600 = vadd.f32 %v1598, %v1599
    %v1601 = vsel %vm396, %v1513, 0.0
    %v1602 = vadd.f32 %v1600, %v1601
    %v1603 = vsel %vm396, %v1514, 0.0
    %v1604 = vadd.f32 %v1602, %v1603
    %v1605 = vsel %vm396, %v1515, 0.0
    %v1606 = vadd.f32 %v1604, %v1605
    %v1607 = vsel %vm396, %v1516, 0.0
    %v1608 = vadd.f32 %v1606, %v1607
    %v1609 = vsel %vm396, %v1517, 0.0
    %v1610 = vadd.f32 %v1608, %v1609
    %v1611 = vsel %vm396, %v1518, 0.0
    %v1612 = vadd.f32 %v1610, %v1611
    %v1613 = vsel %vm396, %v1519, 0.0
    %v1614 = vadd.f32 %v1612, %v1613
    %v1615 = vsel %vm396, %v1520, 0.0
    %v1616 = vadd.f32 %v1614, %v1615
    %v1617 = vsel %vm396, %v1521, 0.0
    %v1618 = vadd.f32 %v1616, %v1617
    %v1619 = vsel %vm396, %v1522, 0.0
    %v1620 = vadd.f32 %v1618, %v1619
    %v1621 = vsel %vm396, %v1523, 0.0
    %v1622 = vadd.f32 %v1620, %v1621
    %v1623 = vsel %vm396, %v1524, 0.0
    %v1624 = vadd.f32 %v1622, %v1623
    %v1625 = vsel %vm396, %v1525, 0.0
    %v1626 = vadd.f32 %v1624, %v1625
    %v1627 = vsel %vm396, %v1526, 0.0
    %v1628 = vadd.f32 %v1626, %v1627
    %v1629 = vsel %vm396, %v1527, 0.0
    %v1630 = vadd.f32 %v1628, %v1629
    %v1631 = vrot.slane %v1630, 4
    %v1632 = vadd.f32 %v1630, %v1631
    %v1633 = vrot.slane %v1632, 2
    %v1634 = vadd.f32 %v1632, %v1633
    %v1635 = vrot.slane %v1634, 1
    %v1636 = vadd.f32 %v1634, %v1635
    %v1637 = vadd.f32 %v1567, %v1636
    %vm1638 = vcmask 516096
    %1639 = vst.msk [vmem:[%s10] sm:$0x1] %vm1638, %v1637
    %v1640 = vld [vmem:[%s11] sm:$0x1]
    %v1641 = vmul.f32 %v1496, %v1496
    %v1642 = vmul.f32 %v1497, %v1497
    %v1643 = vmul.f32 %v1498, %v1498
    %v1644 = vmul.f32 %v1499, %v1499
    %v1645 = vmul.f32 %v1500, %v1500
    %v1646 = vmul.f32 %v1501, %v1501
    %v1647 = vmul.f32 %v1502, %v1502
    %v1648 = vmul.f32 %v1503, %v1503
    %v1649 = vmul.f32 %v1504, %v1504
    %v1650 = vmul.f32 %v1505, %v1505
    %v1651 = vmul.f32 %v1506, %v1506
    %v1652 = vmul.f32 %v1507, %v1507
    %v1653 = vmul.f32 %v1508, %v1508
    %v1654 = vmul.f32 %v1509, %v1509
    %v1655 = vmul.f32 %v1510, %v1510
    %v1656 = vmul.f32 %v1511, %v1511
    %v1657 = vmul.f32 %v1512, %v1512
    %v1658 = vmul.f32 %v1513, %v1513
    %v1659 = vmul.f32 %v1514, %v1514
    %v1660 = vmul.f32 %v1515, %v1515
    %v1661 = vmul.f32 %v1516, %v1516
    %v1662 = vmul.f32 %v1517, %v1517
    %v1663 = vmul.f32 %v1518, %v1518
    %v1664 = vmul.f32 %v1519, %v1519
    %v1665 = vmul.f32 %v1520, %v1520
    %v1666 = vmul.f32 %v1521, %v1521
    %v1667 = vmul.f32 %v1522, %v1522
    %v1668 = vmul.f32 %v1523, %v1523
    %v1669 = vmul.f32 %v1524, %v1524
    %v1670 = vmul.f32 %v1525, %v1525
    %v1671 = vmul.f32 %v1526, %v1526
    %v1672 = vmul.f32 %v1527, %v1527
    %v1673 = vsel %vm396, %v1641, 0.0
    %v1674 = vsel %vm396, %v1642, 0.0
    %v1675 = vadd.f32 %v1673, %v1674
    %v1676 = vsel %vm396, %v1643, 0.0
    %v1677 = vadd.f32 %v1675, %v1676
    %v1678 = vsel %vm396, %v1644, 0.0
    %v1679 = vadd.f32 %v1677, %v1678
    %v1680 = vsel %vm396, %v1645, 0.0
    %v1681 = vadd.f32 %v1679, %v1680
    %v1682 = vsel %vm396, %v1646, 0.0
    %v1683 = vadd.f32 %v1681, %v1682
    %v1684 = vsel %vm396, %v1647, 0.0
    %v1685 = vadd.f32 %v1683, %v1684
    %v1686 = vsel %vm396, %v1648, 0.0
    %v1687 = vadd.f32 %v1685, %v1686
    %v1688 = vsel %vm396, %v1649, 0.0
    %v1689 = vadd.f32 %v1687, %v1688
    %v1690 = vsel %vm396, %v1650, 0.0
    %v1691 = vadd.f32 %v1689, %v1690
    %v1692 = vsel %vm396, %v1651, 0.0
    %v1693 = vadd.f32 %v1691, %v1692
    %v1694 = vsel %vm396, %v1652, 0.0
    %v1695 = vadd.f32 %v1693, %v1694
    %v1696 = vsel %vm396, %v1653, 0.0
    %v1697 = vadd.f32 %v1695, %v1696
    %v1698 = vsel %vm396, %v1654, 0.0
    %v1699 = vadd.f32 %v1697, %v1698
    %v1700 = vsel %vm396, %v1655, 0.0
    %v1701 = vadd.f32 %v1699, %v1700
    %v1702 = vsel %vm396, %v1656, 0.0
    %v1703 = vadd.f32 %v1701, %v1702
    %v1704 = vsel %vm396, %v1657, 0.0
    %v1705 = vadd.f32 %v1703, %v1704
    %v1706 = vsel %vm396, %v1658, 0.0
    %v1707 = vadd.f32 %v1705, %v1706
    %v1708 = vsel %vm396, %v1659, 0.0
    %v1709 = vadd.f32 %v1707, %v1708
    %v1710 = vsel %vm396, %v1660, 0.0
    %v1711 = vadd.f32 %v1709, %v1710
    %v1712 = vsel %vm396, %v1661, 0.0
    %v1713 = vadd.f32 %v1711, %v1712
    %v1714 = vsel %vm396, %v1662, 0.0
    %v1715 = vadd.f32 %v1713, %v1714
    %v1716 = vsel %vm396, %v1663, 0.0
    %v1717 = vadd.f32 %v1715, %v1716
    %v1718 = vsel %vm396, %v1664, 0.0
    %v1719 = vadd.f32 %v1717, %v1718
    %v1720 = vsel %vm396, %v1665, 0.0
    %v1721 = vadd.f32 %v1719, %v1720
    %v1722 = vsel %vm396, %v1666, 0.0
    %v1723 = vadd.f32 %v1721, %v1722
    %v1724 = vsel %vm396, %v1667, 0.0
    %v1725 = vadd.f32 %v1723, %v1724
    %v1726 = vsel %vm396, %v1668, 0.0
    %v1727 = vadd.f32 %v1725, %v1726
    %v1728 = vsel %vm396, %v1669, 0.0
    %v1729 = vadd.f32 %v1727, %v1728
    %v1730 = vsel %vm396, %v1670, 0.0
    %v1731 = vadd.f32 %v1729, %v1730
    %v1732 = vsel %vm396, %v1671, 0.0
    %v1733 = vadd.f32 %v1731, %v1732
    %v1734 = vsel %vm396, %v1672, 0.0
    %v1735 = vadd.f32 %v1733, %v1734
    %v1736 = vrot.slane %v1735, 4
    %v1737 = vadd.f32 %v1735, %v1736
    %v1738 = vrot.slane %v1737, 2
    %v1739 = vadd.f32 %v1737, %v1738
    %v1740 = vrot.slane %v1739, 1
    %v1741 = vadd.f32 %v1739, %v1740
    %v1742 = vadd.f32 %v1640, %v1741
    %1743 = vst.msk [vmem:[%s11] sm:$0x1] %vm1638, %v1742
    // Predicated region
    $region80: #{gravnet_block_forward.10} parent=1 // pred_check
      _
    $region81: #{gravnet_block_forward.10} parent=1 // pred_check_branch
      %1745 = sbr.rel (0) target = $region83
    $region82: #{gravnet_block_forward.10} parent=1 // pred_region
      _
    $region83: #{gravnet_block_forward.10} parent=1 // pred_fallthru
      _
    // Predicated region
    $region84: #{gravnet_block_forward.10} parent=1 // pred_check
      _
    $region85: #{gravnet_block_forward.10} parent=1 // pred_check_branch
      %1747 = sbr.rel (0) target = $region87
    $region86: #{gravnet_block_forward.10} parent=1 // pred_region
      _
    $region87: #{gravnet_block_forward.10} parent=1 // pred_fallthru
      _
    // Predicated region
    $region88: #{gravnet_block_forward.10} parent=1 // pred_check
      _
    $region89: #{gravnet_block_forward.10} parent=1 // pred_check_branch
      %1749 = sbr.rel (0) target = $region91
    $region90: #{gravnet_block_forward.10} parent=1 // pred_region
      _
    $region91: #{gravnet_block_forward.10} parent=1 // pred_fallthru
      _
    // Predicated region
    $region92: #{gravnet_block_forward.10} parent=1 // pred_check
      _
    $region93: #{gravnet_block_forward.10} parent=1 // pred_check_branch
      %1751 = sbr.rel (0) target = $region95
    $region94: #{gravnet_block_forward.10} parent=1 // pred_region
      _
    $region95: #{gravnet_block_forward.10} parent=1 // pred_fallthru
      _
    // Predicated region
    $region96: #{gravnet_block_forward.10} parent=1 // pred_check
      _
    $region97: #{gravnet_block_forward.10} parent=1 // pred_check_branch
      %1753 = sbr.rel (0) target = $region99
    $region98: #{gravnet_block_forward.10} parent=1 // pred_region
      _
    $region99: #{gravnet_block_forward.10} parent=1 // pred_fallthru
      _
    // Predicated region
    $region100: #{gravnet_block_forward.10} parent=1 // pred_check
      _
    $region101: #{gravnet_block_forward.10} parent=1 // pred_check_branch
      %1755 = sbr.rel (0) target = $region103
    $region102: #{gravnet_block_forward.10} parent=1 // pred_region
      _
    $region103: #{gravnet_block_forward.10} parent=1 // pred_fallthru
      _

// kernel: gravnet_block_forward.11
$region0: #{gravnet_block_forward.11}
  #allocation0 [shape = 'u32[]', space=smem, size = 0x4, offset = 0x4, fixed_abs, tag = 'smem constant byte address 0x4 - core index']
  #allocation1 [shape = 'u32[72,128]{1,0:T(1,128)}', space=vmem, size = 0x9000, scoped, tag = 'internal scratch']
  %s0 = inlined_call_operand.vmem [shape: f32[256,64], index: 0, kind: input, shape index: {}]
  %s1 = inlined_call_operand.vmem [shape: f32[1,64], index: 1, kind: input, shape index: {}]
  %s2 = inlined_call_operand.vmem [shape: f32[1,64], index: 2, kind: input, shape index: {}]
  %s3 = inlined_call_operand.vmem [shape: f32[256,64], index: 3, kind: output, shape index: {}]
  %s4 = sld [smem:[#allocation0]]
  $region22: #{gravnet_block_forward.11} parent=0
    _
  %s6 = ssub.s32 1, %s4
  %s7 = scalar_select 0, %s6, %s4
  // Predicated region
  $region2: #{gravnet_block_forward.11} parent=0 // pred_check
    _
  $region3: #{gravnet_block_forward.11} parent=0 // pred_check_branch
    %9 = sbr.rel (0) target = $region5
  $region4: #{gravnet_block_forward.11} parent=0 // pred_region
    _
  $region5: #{gravnet_block_forward.11} parent=0 // pred_fallthru
    _
  // Predicated region
  $region6: #{gravnet_block_forward.11} parent=0 // pred_check
    _
  $region7: #{gravnet_block_forward.11} parent=0 // pred_check_branch
    %11 = sbr.rel (0) target = $region9
  $region8: #{gravnet_block_forward.11} parent=0 // pred_region
    _
  $region9: #{gravnet_block_forward.11} parent=0 // pred_fallthru
    _
  // Predicated region
  $region10: #{gravnet_block_forward.11} parent=0 // pred_check
    _
  $region11: #{gravnet_block_forward.11} parent=0 // pred_check_branch
    %13 = sbr.rel (0) target = $region13
  $region12: #{gravnet_block_forward.11} parent=0 // pred_region
    _
  $region13: #{gravnet_block_forward.11} parent=0 // pred_fallthru
    _
  %v14 = vld [vmem:[%s0] sm:$0xff]
  %v15 = vld [vmem:[%s0 + $0x8] sm:$0xff]
  %v16 = vld [vmem:[%s0 + $0x10] sm:$0xff]
  %v17 = vld [vmem:[%s0 + $0x18] sm:$0xff]
  %v18 = vld [vmem:[%s0 + $0x20] sm:$0xff]
  %v19 = vld [vmem:[%s0 + $0x28] sm:$0xff]
  %v20 = vld [vmem:[%s0 + $0x30] sm:$0xff]
  %v21 = vld [vmem:[%s0 + $0x38] sm:$0xff]
  %v22 = vld [vmem:[%s0 + $0x40] sm:$0xff]
  %v23 = vld [vmem:[%s0 + $0x48] sm:$0xff]
  %v24 = vld [vmem:[%s0 + $0x50] sm:$0xff]
  %v25 = vld [vmem:[%s0 + $0x58] sm:$0xff]
  %v26 = vld [vmem:[%s0 + $0x60] sm:$0xff]
  %v27 = vld [vmem:[%s0 + $0x68] sm:$0xff]
  %v28 = vld [vmem:[%s0 + $0x70] sm:$0xff]
  %v29 = vld [vmem:[%s0 + $0x78] sm:$0xff]
  %v30 = vld [vmem:[%s0 + $0x80] sm:$0xff]
  %v31 = vld [vmem:[%s0 + $0x88] sm:$0xff]
  %v32 = vld [vmem:[%s0 + $0x90] sm:$0xff]
  %v33 = vld [vmem:[%s0 + $0x98] sm:$0xff]
  %v34 = vld [vmem:[%s0 + $0xa0] sm:$0xff]
  %v35 = vld [vmem:[%s0 + $0xa8] sm:$0xff]
  %v36 = vld [vmem:[%s0 + $0xb0] sm:$0xff]
  %v37 = vld [vmem:[%s0 + $0xb8] sm:$0xff]
  %v38 = vld [vmem:[%s0 + $0xc0] sm:$0xff]
  %v39 = vld [vmem:[%s0 + $0xc8] sm:$0xff]
  %v40 = vld [vmem:[%s0 + $0xd0] sm:$0xff]
  %v41 = vld [vmem:[%s0 + $0xd8] sm:$0xff]
  %v42 = vld [vmem:[%s0 + $0xe0] sm:$0xff]
  %v43 = vld [vmem:[%s0 + $0xe8] sm:$0xff]
  %v44 = vld [vmem:[%s0 + $0xf0] sm:$0xff]
  %v45 = vld [vmem:[%s0 + $0xf8] sm:$0xff]
  %v46 = vld [vmem:[%s1] sm:$0x1]
  %v48 = vperm.slane %v46, 0
  %v50 = vsub.f32 %v14, %v48
  %v51 = vsub.f32 %v15, %v48
  %v52 = vsub.f32 %v16, %v48
  %v53 = vsub.f32 %v17, %v48
  %v54 = vsub.f32 %v18, %v48
  %v55 = vsub.f32 %v19, %v48
  %v56 = vsub.f32 %v20, %v48
  %v57 = vsub.f32 %v21, %v48
  %v58 = vsub.f32 %v22, %v48
  %v59 = vsub.f32 %v23, %v48
  %v60 = vsub.f32 %v24, %v48
  %v61 = vsub.f32 %v25, %v48
  %v62 = vsub.f32 %v26, %v48
  %v63 = vsub.f32 %v27, %v48
  %v64 = vsub.f32 %v28, %v48
  %v65 = vsub.f32 %v29, %v48
  %v66 = vsub.f32 %v30, %v48
  %v67 = vsub.f32 %v31, %v48
  %v68 = vsub.f32 %v32, %v48
  %v69 = vsub.f32 %v33, %v48
  %v70 = vsub.f32 %v34, %v48
  %v71 = vsub.f32 %v35, %v48
  %v72 = vsub.f32 %v36, %v48
  %v73 = vsub.f32 %v37, %v48
  %v74 = vsub.f32 %v38, %v48
  %v75 = vsub.f32 %v39, %v48
  %v76 = vsub.f32 %v40, %v48
  %v77 = vsub.f32 %v41, %v48
  %v78 = vsub.f32 %v42, %v48
  %v79 = vsub.f32 %v43, %v48
  %v80 = vsub.f32 %v44, %v48
  %v81 = vsub.f32 %v45, %v48
  %v82 = vld [vmem:[%s2] sm:$0x1]
  %v84 = vperm.slane %v82, 0
  %v86 = vmul.f32 %v50, %v84
  %v87 = vmul.f32 %v51, %v84
  %v88 = vmul.f32 %v52, %v84
  %v89 = vmul.f32 %v53, %v84
  %v90 = vmul.f32 %v54, %v84
  %v91 = vmul.f32 %v55, %v84
  %v92 = vmul.f32 %v56, %v84
  %v93 = vmul.f32 %v57, %v84
  %v94 = vmul.f32 %v58, %v84
  %v95 = vmul.f32 %v59, %v84
  %v96 = vmul.f32 %v60, %v84
  %v97 = vmul.f32 %v61, %v84
  %v98 = vmul.f32 %v62, %v84
  %v99 = vmul.f32 %v63, %v84
  %v100 = vmul.f32 %v64, %v84
  %v101 = vmul.f32 %v65, %v84
  %v102 = vmul.f32 %v66, %v84
  %v103 = vmul.f32 %v67, %v84
  %v104 = vmul.f32 %v68, %v84
  %v105 = vmul.f32 %v69, %v84
  %v106 = vmul.f32 %v70, %v84
  %v107 = vmul.f32 %v71, %v84
  %v108 = vmul.f32 %v72, %v84
  %v109 = vmul.f32 %v73, %v84
  %v110 = vmul.f32 %v74, %v84
  %v111 = vmul.f32 %v75, %v84
  %v112 = vmul.f32 %v76, %v84
  %v113 = vmul.f32 %v77, %v84
  %v114 = vmul.f32 %v78, %v84
  %v115 = vmul.f32 %v79, %v84
  %v116 = vmul.f32 %v80, %v84
  %v117 = vmul.f32 %v81, %v84
  %vm118 = vcmask 523264
  %119 = vst.msk [vmem:[%s3] sm:$0xff] %vm118, %v86
  %120 = vst.msk [vmem:[%s3 + $0x8] sm:$0xff] %vm118, %v87
  %121 = vst.msk [vmem:[%s3 + $0x10] sm:$0xff] %vm118, %v88
  %122 = vst.msk [vmem:[%s3 + $0x18] sm:$0xff] %vm118, %v89
  %123 = vst.msk [vmem:[%s3 + $0x20] sm:$0xff] %vm118, %v90
  %124 = vst.msk [vmem:[%s3 + $0x28] sm:$0xff] %vm118, %v91
  %125 = vst.msk [vmem:[%s3 + $0x30] sm:$0xff] %vm118, %v92
  %126 = vst.msk [vmem:[%s3 + $0x38] sm:$0xff] %vm118, %v93
  %127 = vst.msk [vmem:[%s3 + $0x40] sm:$0xff] %vm118, %v94
  %128 = vst.msk [vmem:[%s3 + $0x48] sm:$0xff] %vm118, %v95
  %129 = vst.msk [vmem:[%s3 + $0x50] sm:$0xff] %vm118, %v96
  %130 = vst.msk [vmem:[%s3 + $0x58] sm:$0xff] %vm118, %v97
  %131 = vst.msk [vmem:[%s3 + $0x60] sm:$0xff] %vm118, %v98
  %132 = vst.msk [vmem:[%s3 + $0x68] sm:$0xff] %vm118, %v99
  %133 = vst.msk [vmem:[%s3 + $0x70] sm:$0xff] %vm118, %v100
  %134 = vst.msk [vmem:[%s3 + $0x78] sm:$0xff] %vm118, %v101
  %135 = vst.msk [vmem:[%s3 + $0x80] sm:$0xff] %vm118, %v102
  %136 = vst.msk [vmem:[%s3 + $0x88] sm:$0xff] %vm118, %v103
  %137 = vst.msk [vmem:[%s3 + $0x90] sm:$0xff] %vm118, %v104
  %138 = vst.msk [vmem:[%s3 + $0x98] sm:$0xff] %vm118, %v105
  %139 = vst.msk [vmem:[%s3 + $0xa0] sm:$0xff] %vm118, %v106
  %140 = vst.msk [vmem:[%s3 + $0xa8] sm:$0xff] %vm118, %v107
  %141 = vst.msk [vmem:[%s3 + $0xb0] sm:$0xff] %vm118, %v108
  %142 = vst.msk [vmem:[%s3 + $0xb8] sm:$0xff] %vm118, %v109
  %143 = vst.msk [vmem:[%s3 + $0xc0] sm:$0xff] %vm118, %v110
  %144 = vst.msk [vmem:[%s3 + $0xc8] sm:$0xff] %vm118, %v111
  %145 = vst.msk [vmem:[%s3 + $0xd0] sm:$0xff] %vm118, %v112
  %146 = vst.msk [vmem:[%s3 + $0xd8] sm:$0xff] %vm118, %v113
  %147 = vst.msk [vmem:[%s3 + $0xe0] sm:$0xff] %vm118, %v114
  %148 = vst.msk [vmem:[%s3 + $0xe8] sm:$0xff] %vm118, %v115
  %149 = vst.msk [vmem:[%s3 + $0xf0] sm:$0xff] %vm118, %v116
  %150 = vst.msk [vmem:[%s3 + $0xf8] sm:$0xff] %vm118, %v117
  // Predicated region
  $region14: #{gravnet_block_forward.11} parent=0 // pred_check
    _
  $region15: #{gravnet_block_forward.11} parent=0 // pred_check_branch
    %152 = sbr.rel (0) target = $region17
  $region16: #{gravnet_block_forward.11} parent=0 // pred_region
    _
  $region17: #{gravnet_block_forward.11} parent=0 // pred_fallthru
    _
  // Predicated region
  $region18: #{gravnet_block_forward.11} parent=0 // pred_check
    _
  $region19: #{gravnet_block_forward.11} parent=0 // pred_check_branch
    %154 = sbr.rel (0) target = $region21
  $region20: #{gravnet_block_forward.11} parent=0 // pred_region
    _
  $region21: #{gravnet_block_forward.11} parent=0 // pred_fallthru
    _

// kernel: gravnet_block_forward.9
$region0: #{gravnet_block_forward.9}
  #allocation0 [shape = 'u32[]', space=smem, size = 0x4, offset = 0x4, fixed_abs, tag = 'smem constant byte address 0x4 - core index']
  #allocation1 [shape = 'u32[72,128]{1,0:T(1,128)}', space=vmem, size = 0x9000, scoped, tag = 'internal scratch']
  %s0 = inlined_call_operand.vmem [shape: f32[256,8], index: 0, kind: input, shape index: {}]
  %s1 = inlined_call_operand.vmem [shape: f32[256,512], index: 1, kind: input, shape index: {}]
  %s2 = inlined_call_operand.vmem [shape: f32[256,256], index: 2, kind: input, shape index: {}]
  %s3 = inlined_call_operand.vmem [shape: f32[128,64], index: 3, kind: input, shape index: {}]
  %s4 = inlined_call_operand.vmem [shape: f32[1,64], index: 4, kind: input, shape index: {}]
  %s5 = inlined_call_operand.vmem [shape: f32[256,64], index: 5, kind: output, shape index: {}]
  %s6 = sld [smem:[#allocation0]]
  $region68: #{gravnet_block_forward.9} parent=0
    _
  %s8 = ssub.s32 1, %s6
  %s9 = scalar_select 0, %s8, %s6
  $region1: #{gravnet_block_forward.9} parent=0
    #allocation2 [shape = 'u8[131072]{0}', space=vmem, size = 0x20000, scoped, tag = 'input window, operand 2, single buffered']
    // Predicated region
    $region2: #{gravnet_block_forward.9} parent=1 // pred_check
      _
    $region3: #{gravnet_block_forward.9} parent=1 // pred_check_branch
      %11 = sbr.rel (0) target = $region5
    $region4: #{gravnet_block_forward.9} parent=1 // pred_region
      _
    $region5: #{gravnet_block_forward.9} parent=1 // pred_fallthru
      _
    // Predicated region
    $region6: #{gravnet_block_forward.9} parent=1 // pred_check
      _
    $region7: #{gravnet_block_forward.9} parent=1 // pred_check_branch
      %13 = sbr.rel (0) target = $region9
    $region8: #{gravnet_block_forward.9} parent=1 // pred_region
      _
    $region9: #{gravnet_block_forward.9} parent=1 // pred_fallthru
      _
    // Predicated region
    $region10: #{gravnet_block_forward.9} parent=1 // pred_check
      _
    $region11: #{gravnet_block_forward.9} parent=1 // pred_check_branch
      %15 = sbr.rel (0) target = $region13
    $region12: #{gravnet_block_forward.9} parent=1 // pred_region
      // Predicated region
      $region14: #{gravnet_block_forward.9} parent=12 // pred_check
        _
      $region15: #{gravnet_block_forward.9} parent=12 // pred_check_branch
        %17 = sbr.rel (0) target = $region17
      $region16: #{gravnet_block_forward.9} parent=12 // pred_region
        // Predicated region
        $region18: #{gravnet_block_forward.9} parent=16 // pred_check
          _
        $region19: #{gravnet_block_forward.9} parent=16 // pred_check_branch
          %19 = sbr.rel (0) target = $region21
        $region20: #{gravnet_block_forward.9} parent=16 // pred_region
          // Predicated region
          $region33: #{gravnet_block_forward.9} parent=20 // pred_check
            _
          $region34: #{gravnet_block_forward.9} parent=20 // pred_check_branch
            %97 = sbr.rel (0) target = $region36
          $region35: #{gravnet_block_forward.9} parent=20 // pred_region
            loop: start=0, step=1, limit=1
            $region37: #{gravnet_block_forward.9} parent=35 // loop_pre_header
              _
            $region38: #{gravnet_block_forward.9} parent=35 // loop_header
              %s99 = sphi 0, %s103
              %p100 = scmp.ge.s32.totalorder %s99, 1
              %s104 = sphi %s2, %s2
              %s105 = sphi [#allocation2], [#allocation2]
            $region39: #{gravnet_block_forward.9} parent=35 // loop_header_branch
              %102 = sbr.rel (%p100) target = $region43
            $region40: #{gravnet_block_forward.9} parent=35 // loop_body
              %v106 = vld [vmem:[%s104] sm:$0xff]
              %107 = vst [vmem:[%s105] sm:$0xff] %v106
              %v108 = vld [vmem:[%s104 + $0x10] sm:$0xff]
              %109 = vst [vmem:[%s105 + $0x8] sm:$0xff] %v108
              %v110 = vld [vmem:[%s104 + $0x20] sm:$0xff]
              %111 = vst [vmem:[%s105 + $0x10] sm:$0xff] %v110
              %v112 = vld [vmem:[%s104 + $0x30] sm:$0xff]
              %113 = vst [vmem:[%s105 + $0x18] sm:$0xff] %v112
              %v114 = vld [vmem:[%s104 + $0x40] sm:$0xff]
              %115 = vst [vmem:[%s105 + $0x20] sm:$0xff] %v114
              %v116 = vld [vmem:[%s104 + $0x50] sm:$0xff]
              %117 = vst [vmem:[%s105 + $0x28] sm:$0xff] %v116
              %v118 = vld [vmem:[%s104 + $0x60] sm:$0xff]
              %119 = vst [vmem:[%s105 + $0x30] sm:$0xff] %v118
              %v120 = vld [vmem:[%s104 + $0x70] sm:$0xff]
              %121 = vst [vmem:[%s105 + $0x38] sm:$0xff] %v120
              %v122 = vld [vmem:[%s104 + $0x80] sm:$0xff]
              %123 = vst [vmem:[%s105 + $0x40] sm:$0xff] %v122
              %v124 = vld [vmem:[%s104 + $0x90] sm:$0xff]
              %125 = vst [vmem:[%s105 + $0x48] sm:$0xff] %v124
              %v126 = vld [vmem:[%s104 + $0xa0] sm:$0xff]
              %127 = vst [vmem:[%s105 + $0x50] sm:$0xff] %v126
              %v128 = vld [vmem:[%s104 + $0xb0] sm:$0xff]
              %129 = vst [vmem:[%s105 + $0x58] sm:$0xff] %v128
              %v130 = vld [vmem:[%s104 + $0xc0] sm:$0xff]
              %131 = vst [vmem:[%s105 + $0x60] sm:$0xff] %v130
              %v132 = vld [vmem:[%s104 + $0xd0] sm:$0xff]
              %133 = vst [vmem:[%s105 + $0x68] sm:$0xff] %v132
              %v134 = vld [vmem:[%s104 + $0xe0] sm:$0xff]
              %135 = vst [vmem:[%s105 + $0x70] sm:$0xff] %v134
              %v136 = vld [vmem:[%s104 + $0xf0] sm:$0xff]
              %137 = vst [vmem:[%s105 + $0x78] sm:$0xff] %v136
              %v138 = vld [vmem:[%s104 + $0x100] sm:$0xff]
              %139 = vst [vmem:[%s105 + $0x80] sm:$0xff] %v138
              %v140 = vld [vmem:[%s104 + $0x110] sm:$0xff]
              %141 = vst [vmem:[%s105 + $0x88] sm:$0xff] %v140
              %v142 = vld [vmem:[%s104 + $0x120] sm:$0xff]
              %143 = vst [vmem:[%s105 + $0x90] sm:$0xff] %v142
              %v144 = vld [vmem:[%s104 + $0x130] sm:$0xff]
              %145 = vst [vmem:[%s105 + $0x98] sm:$0xff] %v144
              %v146 = vld [vmem:[%s104 + $0x140] sm:$0xff]
              %147 = vst [vmem:[%s105 + $0xa0] sm:$0xff] %v146
              %v148 = vld [vmem:[%s104 + $0x150] sm:$0xff]
              %149 = vst [vmem:[%s105 + $0xa8] sm:$0xff] %v148
              %v150 = vld [vmem:[%s104 + $0x160] sm:$0xff]
              %151 = vst [vmem:[%s105 + $0xb0] sm:$0xff] %v150
              %v152 = vld [vmem:[%s104 + $0x170] sm:$0xff]
              %153 = vst [vmem:[%s105 + $0xb8] sm:$0xff] %v152
              %v154 = vld [vmem:[%s104 + $0x180] sm:$0xff]
              %155 = vst [vmem:[%s105 + $0xc0] sm:$0xff] %v154
              %v156 = vld [vmem:[%s104 + $0x190] sm:$0xff]
              %157 = vst [vmem:[%s105 + $0xc8] sm:$0xff] %v156
              %v158 = vld [vmem:[%s104 + $0x1a0] sm:$0xff]
              %159 = vst [vmem:[%s105 + $0xd0] sm:$0xff] %v158
              %v160 = vld [vmem:[%s104 + $0x1b0] sm:$0xff]
              %161 = vst [vmem:[%s105 + $0xd8] sm:$0xff] %v160
              %v162 = vld [vmem:[%s104 + $0x1c0] sm:$0xff]
              %163 = vst [vmem:[%s105 + $0xe0] sm:$0xff] %v162
              %v164 = vld [vmem:[%s104 + $0x1d0] sm:$0xff]
              %165 = vst [vmem:[%s105 + $0xe8] sm:$0xff] %v164
              %v166 = vld [vmem:[%s104 + $0x1e0] sm:$0xff]
              %167 = vst [vmem:[%s105 + $0xf0] sm:$0xff] %v166
              %v168 = vld [vmem:[%s104 + $0x1f0] sm:$0xff]
              %169 = vst [vmem:[%s105 + $0xf8] sm:$0xff] %v168
            $region41: #{gravnet_block_forward.9} parent=35 // loop_footer
              %s103 = sadd.s32 1, %s99
            $region42: #{gravnet_block_forward.9} parent=35 // loop_footer_branch
              %98 = sbr.rel target = $region38
            $region43: #{gravnet_block_forward.9} parent=35 // loop_exit
              _
          $region36: #{gravnet_block_forward.9} parent=20 // pred_fallthru
            _
          // Predicated region
          $region44: #{gravnet_block_forward.9} parent=20 // pred_check
            _
          $region45: #{gravnet_block_forward.9} parent=20 // pred_check_branch
            %171 = sbr.rel target = $region47
          $region46: #{gravnet_block_forward.9} parent=20 // pred_region
            _
          $region47: #{gravnet_block_forward.9} parent=20 // pred_fallthru
            _
        $region21: #{gravnet_block_forward.9} parent=16 // pred_fallthru
          _
        // Predicated region
        $region22: #{gravnet_block_forward.9} parent=16 // pred_check
          _
        $region23: #{gravnet_block_forward.9} parent=16 // pred_check_branch
          %21 = sbr.rel target = $region25
        $region24: #{gravnet_block_forward.9} parent=16 // pred_region
          %s23 = ssub.s32 256, 1
          loop: start=0, step=1, limit=1
          $region26: #{gravnet_block_forward.9} parent=24 // loop_pre_header
            _
          $region27: #{gravnet_block_forward.9} parent=24 // loop_header
            %s25 = sphi 0, %s29
            %p26 = scmp.ge.s32.totalorder %s25, 1
            %s30 = sphi %s2, %s2
            %s31 = sphi [#allocation2], [#allocation2]
          $region28: #{gravnet_block_forward.9} parent=24 // loop_header_branch
            %28 = sbr.rel (%p26) target = $region32
          $region29: #{gravnet_block_forward.9} parent=24 // loop_body
            %v32 = vld [vmem:[%s30] sm:%s23]
            %33 = vst [vmem:[%s31] sm:%s23] %v32
            %v34 = vld [vmem:[%s30 + $0x10] sm:%s23]
            %35 = vst [vmem:[%s31 + $0x8] sm:%s23] %v34
            %v36 = vld [vmem:[%s30 + $0x20] sm:%s23]
            %37 = vst [vmem:[%s31 + $0x10] sm:%s23] %v36
            %v38 = vld [vmem:[%s30 + $0x30] sm:%s23]
            %39 = vst [vmem:[%s31 + $0x18] sm:%s23] %v38
            %v40 = vld [vmem:[%s30 + $0x40] sm:%s23]
            %41 = vst [vmem:[%s31 + $0x20] sm:%s23] %v40
            %v42 = vld [vmem:[%s30 + $0x50] sm:%s23]
            %43 = vst [vmem:[%s31 + $0x28] sm:%s23] %v42
            %v44 = vld [vmem:[%s30 + $0x60] sm:%s23]
            %45 = vst [vmem:[%s31 + $0x30] sm:%s23] %v44
            %v46 = vld [vmem:[%s30 + $0x70] sm:%s23]
            %47 = vst [vmem:[%s31 + $0x38] sm:%s23] %v46
            %v48 = vld [vmem:[%s30 + $0x80] sm:%s23]
            %49 = vst [vmem:[%s31 + $0x40] sm:%s23] %v48
            %v50 = vld [vmem:[%s30 + $0x90] sm:%s23]
            %51 = vst [vmem:[%s31 + $0x48] sm:%s23] %v50
            %v52 = vld [vmem:[%s30 + $0xa0] sm:%s23]
            %53 = vst [vmem:[%s31 + $0x50] sm:%s23] %v52
            %v54 = vld [vmem:[%s30 + $0xb0] sm:%s23]
            %55 = vst [vmem:[%s31 + $0x58] sm:%s23] %v54
            %v56 = vld [vmem:[%s30 + $0xc0] sm:%s23]
            %57 = vst [vmem:[%s31 + $0x60] sm:%s23] %v56
            %v58 = vld [vmem:[%s30 + $0xd0] sm:%s23]
            %59 = vst [vmem:[%s31 + $0x68] sm:%s23] %v58
            %v60 = vld [vmem:[%s30 + $0xe0] sm:%s23]
            %61 = vst [vmem:[%s31 + $0x70] sm:%s23] %v60
            %v62 = vld [vmem:[%s30 + $0xf0] sm:%s23]
            %63 = vst [vmem:[%s31 + $0x78] sm:%s23] %v62
            %v64 = vld [vmem:[%s30 + $0x100] sm:%s23]
            %65 = vst [vmem:[%s31 + $0x80] sm:%s23] %v64
            %v66 = vld [vmem:[%s30 + $0x110] sm:%s23]
            %67 = vst [vmem:[%s31 + $0x88] sm:%s23] %v66
            %v68 = vld [vmem:[%s30 + $0x120] sm:%s23]
            %69 = vst [vmem:[%s31 + $0x90] sm:%s23] %v68
            %v70 = vld [vmem:[%s30 + $0x130] sm:%s23]
            %71 = vst [vmem:[%s31 + $0x98] sm:%s23] %v70
            %v72 = vld [vmem:[%s30 + $0x140] sm:%s23]
            %73 = vst [vmem:[%s31 + $0xa0] sm:%s23] %v72
            %v74 = vld [vmem:[%s30 + $0x150] sm:%s23]
            %75 = vst [vmem:[%s31 + $0xa8] sm:%s23] %v74
            %v76 = vld [vmem:[%s30 + $0x160] sm:%s23]
            %77 = vst [vmem:[%s31 + $0xb0] sm:%s23] %v76
            %v78 = vld [vmem:[%s30 + $0x170] sm:%s23]
            %79 = vst [vmem:[%s31 + $0xb8] sm:%s23] %v78
            %v80 = vld [vmem:[%s30 + $0x180] sm:%s23]
            %81 = vst [vmem:[%s31 + $0xc0] sm:%s23] %v80
            %v82 = vld [vmem:[%s30 + $0x190] sm:%s23]
            %83 = vst [vmem:[%s31 + $0xc8] sm:%s23] %v82
            %v84 = vld [vmem:[%s30 + $0x1a0] sm:%s23]
            %85 = vst [vmem:[%s31 + $0xd0] sm:%s23] %v84
            %v86 = vld [vmem:[%s30 + $0x1b0] sm:%s23]
            %87 = vst [vmem:[%s31 + $0xd8] sm:%s23] %v86
            %v88 = vld [vmem:[%s30 + $0x1c0] sm:%s23]
            %89 = vst [vmem:[%s31 + $0xe0] sm:%s23] %v88
            %v90 = vld [vmem:[%s30 + $0x1d0] sm:%s23]
            %91 = vst [vmem:[%s31 + $0xe8] sm:%s23] %v90
            %v92 = vld [vmem:[%s30 + $0x1e0] sm:%s23]
            %93 = vst [vmem:[%s31 + $0xf0] sm:%s23] %v92
            %v94 = vld [vmem:[%s30 + $0x1f0] sm:%s23]
            %95 = vst [vmem:[%s31 + $0xf8] sm:%s23] %v94
          $region30: #{gravnet_block_forward.9} parent=24 // loop_footer
            %s29 = sadd.s32 1, %s25
          $region31: #{gravnet_block_forward.9} parent=24 // loop_footer_branch
            %24 = sbr.rel target = $region27
          $region32: #{gravnet_block_forward.9} parent=24 // loop_exit
            _
        $region25: #{gravnet_block_forward.9} parent=16 // pred_fallthru
          _
      $region17: #{gravnet_block_forward.9} parent=12 // pred_fallthru
        _
      %172 = vnop
    $region13: #{gravnet_block_forward.9} parent=1 // pred_fallthru
      _
    // Predicated region
    $region48: #{gravnet_block_forward.9} parent=1 // pred_check
      _
    $region49: #{gravnet_block_forward.9} parent=1 // pred_check_branch
      %174 = sbr.rel (0) target = $region51
    $region50: #{gravnet_block_forward.9} parent=1 // pred_region
      _
    $region51: #{gravnet_block_forward.9} parent=1 // pred_fallthru
      _
    // Predicated region
    $region52: #{gravnet_block_forward.9} parent=1 // pred_check
      _
    $region53: #{gravnet_block_forward.9} parent=1 // pred_check_branch
      %176 = sbr.rel (0) target = $region55
    $region54: #{gravnet_block_forward.9} parent=1 // pred_region
      _
    $region55: #{gravnet_block_forward.9} parent=1 // pred_fallthru
      _
    // Predicated region
    $region56: #{gravnet_block_forward.9} parent=1 // pred_check
      _
    $region57: #{gravnet_block_forward.9} parent=1 // pred_check_branch
      %178 = sbr.rel (0) target = $region59
    $region58: #{gravnet_block_forward.9} parent=1 // pred_region
      _
    $region59: #{gravnet_block_forward.9} parent=1 // pred_fallthru
      _
    %v179 = vld [vmem:[%s0] sm:$0xff]
    %v180 = vld [vmem:[%s0 + $0x8] sm:$0xff]
    %v181 = vld [vmem:[%s0 + $0x10] sm:$0xff]
    %v182 = vld [vmem:[%s0 + $0x18] sm:$0xff]
    %v183 = vld [vmem:[%s0 + $0x20] sm:$0xff]
    %v184 = vld [vmem:[%s0 + $0x28] sm:$0xff]
    %v185 = vld [vmem:[%s0 + $0x30] sm:$0xff]
    %v186 = vld [vmem:[%s0 + $0x38] sm:$0xff]
    %v187 = vld [vmem:[%s0 + $0x40] sm:$0xff]
    %v188 = vld [vmem:[%s0 + $0x48] sm:$0xff]
    %v189 = vld [vmem:[%s0 + $0x50] sm:$0xff]
    %v190 = vld [vmem:[%s0 + $0x58] sm:$0xff]
    %v191 = vld [vmem:[%s0 + $0x60] sm:$0xff]
    %v192 = vld [vmem:[%s0 + $0x68] sm:$0xff]
    %v193 = vld [vmem:[%s0 + $0x70] sm:$0xff]
    %v194 = vld [vmem:[%s0 + $0x78] sm:$0xff]
    %v195 = vld [vmem:[%s0 + $0x80] sm:$0xff]
    %v196 = vld [vmem:[%s0 + $0x88] sm:$0xff]
    %v197 = vld [vmem:[%s0 + $0x90] sm:$0xff]
    %v198 = vld [vmem:[%s0 + $0x98] sm:$0xff]
    %v199 = vld [vmem:[%s0 + $0xa0] sm:$0xff]
    %v200 = vld [vmem:[%s0 + $0xa8] sm:$0xff]
    %v201 = vld [vmem:[%s0 + $0xb0] sm:$0xff]
    %v202 = vld [vmem:[%s0 + $0xb8] sm:$0xff]
    %v203 = vld [vmem:[%s0 + $0xc0] sm:$0xff]
    %v204 = vld [vmem:[%s0 + $0xc8] sm:$0xff]
    %v205 = vld [vmem:[%s0 + $0xd0] sm:$0xff]
    %v206 = vld [vmem:[%s0 + $0xd8] sm:$0xff]
    %v207 = vld [vmem:[%s0 + $0xe0] sm:$0xff]
    %v208 = vld [vmem:[%s0 + $0xe8] sm:$0xff]
    %v209 = vld [vmem:[%s0 + $0xf0] sm:$0xff]
    %v210 = vld [vmem:[%s0 + $0xf8] sm:$0xff]
    %v211 = vmul.f32 %v179, -10.0
    %v212 = vmul.f32 %v180, -10.0
    %v213 = vmul.f32 %v181, -10.0
    %v214 = vmul.f32 %v182, -10.0
    %v215 = vmul.f32 %v183, -10.0
    %v216 = vmul.f32 %v184, -10.0
    %v217 = vmul.f32 %v185, -10.0
    %v218 = vmul.f32 %v186, -10.0
    %v219 = vmul.f32 %v187, -10.0
    %v220 = vmul.f32 %v188, -10.0
    %v221 = vmul.f32 %v189, -10.0
    %v222 = vmul.f32 %v190, -10.0
    %v223 = vmul.f32 %v191, -10.0
    %v224 = vmul.f32 %v192, -10.0
    %v225 = vmul.f32 %v193, -10.0
    %v226 = vmul.f32 %v194, -10.0
    %v227 = vmul.f32 %v195, -10.0
    %v228 = vmul.f32 %v196, -10.0
    %v229 = vmul.f32 %v197, -10.0
    %v230 = vmul.f32 %v198, -10.0
    %v231 = vmul.f32 %v199, -10.0
    %v232 = vmul.f32 %v200, -10.0
    %v233 = vmul.f32 %v201, -10.0
    %v234 = vmul.f32 %v202, -10.0
    %v235 = vmul.f32 %v203, -10.0
    %v236 = vmul.f32 %v204, -10.0
    %v237 = vmul.f32 %v205, -10.0
    %v238 = vmul.f32 %v206, -10.0
    %v239 = vmul.f32 %v207, -10.0
    %v240 = vmul.f32 %v208, -10.0
    %v241 = vmul.f32 %v209, -10.0
    %v242 = vmul.f32 %v210, -10.0
    %v243 = vmul.f32 %v211, 1.442695
    %v244 = vpow.pop %v243
    %v245 = vmul.f32 %v212, 1.442695
    %v246 = vpow.pop %v245
    %v247 = vmul.f32 %v213, 1.442695
    %v248 = vpow.pop %v247
    %v249 = vmul.f32 %v214, 1.442695
    %v250 = vpow.pop %v249
    %v251 = vmul.f32 %v215, 1.442695
    %v252 = vpow.pop %v251
    %v253 = vmul.f32 %v216, 1.442695
    %v254 = vpow.pop %v253
    %v255 = vmul.f32 %v217, 1.442695
    %v256 = vpow.pop %v255
    %v257 = vmul.f32 %v218, 1.442695
    %v258 = vpow.pop %v257
    %v259 = vmul.f32 %v219, 1.442695
    %v260 = vpow.pop %v259
    %v261 = vmul.f32 %v220, 1.442695
    %v262 = vpow.pop %v261
    %v263 = vmul.f32 %v221, 1.442695
    %v264 = vpow.pop %v263
    %v265 = vmul.f32 %v222, 1.442695
    %v266 = vpow.pop %v265
    %v267 = vmul.f32 %v223, 1.442695
    %v268 = vpow.pop %v267
    %v269 = vmul.f32 %v224, 1.442695
    %v270 = vpow.pop %v269
    %v271 = vmul.f32 %v225, 1.442695
    %v272 = vpow.pop %v271
    %v273 = vmul.f32 %v226, 1.442695
    %v274 = vpow.pop %v273
    %v275 = vmul.f32 %v227, 1.442695
    %v276 = vpow.pop %v275
    %v277 = vmul.f32 %v228, 1.442695
    %v278 = vpow.pop %v277
    %v279 = vmul.f32 %v229, 1.442695
    %v280 = vpow.pop %v279
    %v281 = vmul.f32 %v230, 1.442695
    %v282 = vpow.pop %v281
    %v283 = vmul.f32 %v231, 1.442695
    %v284 = vpow.pop %v283
    %v285 = vmul.f32 %v232, 1.442695
    %v286 = vpow.pop %v285
    %v287 = vmul.f32 %v233, 1.442695
    %v288 = vpow.pop %v287
    %v289 = vmul.f32 %v234, 1.442695
    %v290 = vpow.pop %v289
    %v291 = vmul.f32 %v235, 1.442695
    %v292 = vpow.pop %v291
    %v293 = vmul.f32 %v236, 1.442695
    %v294 = vpow.pop %v293
    %v295 = vmul.f32 %v237, 1.442695
    %v296 = vpow.pop %v295
    %v297 = vmul.f32 %v238, 1.442695
    %v298 = vpow.pop %v297
    %v299 = vmul.f32 %v239, 1.442695
    %v300 = vpow.pop %v299
    %v301 = vmul.f32 %v240, 1.442695
    %v302 = vpow.pop %v301
    %v303 = vmul.f32 %v241, 1.442695
    %v304 = vpow.pop %v303
    %v305 = vmul.f32 %v242, 1.442695
    %v306 = vpow.pop %v305
    %v307 = vld [vmem:[%s1] sm:$0xff]
    %v308 = vld [vmem:[%s1 + $0x20] sm:$0xff]
    %v309 = vld [vmem:[%s1 + $0x40] sm:$0xff]
    %v310 = vld [vmem:[%s1 + $0x60] sm:$0xff]
    %v311 = vld [vmem:[%s1 + $0x80] sm:$0xff]
    %v312 = vld [vmem:[%s1 + $0xa0] sm:$0xff]
    %v313 = vld [vmem:[%s1 + $0xc0] sm:$0xff]
    %v314 = vld [vmem:[%s1 + $0xe0] sm:$0xff]
    %v315 = vld [vmem:[%s1 + $0x100] sm:$0xff]
    %v316 = vld [vmem:[%s1 + $0x120] sm:$0xff]
    %v317 = vld [vmem:[%s1 + $0x140] sm:$0xff]
    %v318 = vld [vmem:[%s1 + $0x160] sm:$0xff]
    %v319 = vld [vmem:[%s1 + $0x180] sm:$0xff]
    %v320 = vld [vmem:[%s1 + $0x1a0] sm:$0xff]
    %v321 = vld [vmem:[%s1 + $0x1c0] sm:$0xff]
    %v322 = vld [vmem:[%s1 + $0x1e0] sm:$0xff]
    %v323 = vld [vmem:[%s1 + $0x200] sm:$0xff]
    %v324 = vld [vmem:[%s1 + $0x220] sm:$0xff]
    %v325 = vld [vmem:[%s1 + $0x240] sm:$0xff]
    %v326 = vld [vmem:[%s1 + $0x260] sm:$0xff]
    %v327 = vld [vmem:[%s1 + $0x280] sm:$0xff]
    %v328 = vld [vmem:[%s1 + $0x2a0] sm:$0xff]
    %v329 = vld [vmem:[%s1 + $0x2c0] sm:$0xff]
    %v330 = vld [vmem:[%s1 + $0x2e0] sm:$0xff]
    %v331 = vld [vmem:[%s1 + $0x300] sm:$0xff]
    %v332 = vld [vmem:[%s1 + $0x320] sm:$0xff]
    %v333 = vld [vmem:[%s1 + $0x340] sm:$0xff]
    %v334 = vld [vmem:[%s1 + $0x360] sm:$0xff]
    %v335 = vld [vmem:[%s1 + $0x380] sm:$0xff]
    %v336 = vld [vmem:[%s1 + $0x3a0] sm:$0xff]
    %v337 = vld [vmem:[%s1 + $0x3c0] sm:$0xff]
    %v338 = vld [vmem:[%s1 + $0x3e0] sm:$0xff]
    %340 = vset.pattern.permute.xlu0 0
    %341 = vperm.xlu0 %340, %v244
    %v342 = vpop.permute.xlu0 %341
    %345 = vset.pattern.permute.xlu0 0
    %346 = vperm.xlu0 %345, %v246
    %v347 = vpop.permute.xlu0 %346
    %350 = vset.pattern.permute.xlu0 0
    %351 = vperm.xlu0 %350, %v248
    %v352 = vpop.permute.xlu0 %351
    %355 = vset.pattern.permute.xlu0 0
    %356 = vperm.xlu0 %355, %v250
    %v357 = vpop.permute.xlu0 %356
    %360 = vset.pattern.permute.xlu0 0
    %361 = vperm.xlu0 %360, %v252
    %v362 = vpop.permute.xlu0 %361
    %365 = vset.pattern.permute.xlu0 0
    %366 = vperm.xlu0 %365, %v254
    %v367 = vpop.permute.xlu0 %366
    %370 = vset.pattern.permute.xlu0 0
    %371 = vperm.xlu0 %370, %v256
    %v372 = vpop.permute.xlu0 %371
    %375 = vset.pattern.permute.xlu0 0
    %376 = vperm.xlu0 %375, %v258
    %v377 = vpop.permute.xlu0 %376
    %380 = vset.pattern.permute.xlu0 0
    %381 = vperm.xlu0 %380, %v260
    %v382 = vpop.permute.xlu0 %381
    %385 = vset.pattern.permute.xlu0 0
    %386 = vperm.xlu0 %385, %v262
    %v387 = vpop.permute.xlu0 %386
    %390 = vset.pattern.permute.xlu0 0
    %391 = vperm.xlu0 %390, %v264
    %v392 = vpop.permute.xlu0 %391
    %395 = vset.pattern.permute.xlu0 0
    %396 = vperm.xlu0 %395, %v266
    %v397 = vpop.permute.xlu0 %396
    %400 = vset.pattern.permute.xlu0 0
    %401 = vperm.xlu0 %400, %v268
    %v402 = vpop.permute.xlu0 %401
    %405 = vset.pattern.permute.xlu0 0
    %406 = vperm.xlu0 %405, %v270
    %v407 = vpop.permute.xlu0 %406
    %410 = vset.pattern.permute.xlu0 0
    %411 = vperm.xlu0 %410, %v272
    %v412 = vpop.permute.xlu0 %411
    %415 = vset.pattern.permute.xlu0 0
    %416 = vperm.xlu0 %415, %v274
    %v417 = vpop.permute.xlu0 %416
    %420 = vset.pattern.permute.xlu0 0
    %421 = vperm.xlu0 %420, %v276
    %v422 = vpop.permute.xlu0 %421
    %425 = vset.pattern.permute.xlu0 0
    %426 = vperm.xlu0 %425, %v278
    %v427 = vpop.permute.xlu0 %426
    %430 = vset.pattern.permute.xlu0 0
    %431 = vperm.xlu0 %430, %v280
    %v432 = vpop.permute.xlu0 %431
    %435 = vset.pattern.permute.xlu0 0
    %436 = vperm.xlu0 %435, %v282
    %v437 = vpop.permute.xlu0 %436
    %440 = vset.pattern.permute.xlu0 0
    %441 = vperm.xlu0 %440, %v284
    %v442 = vpop.permute.xlu0 %441
    %445 = vset.pattern.permute.xlu0 0
    %446 = vperm.xlu0 %445, %v286
    %v447 = vpop.permute.xlu0 %446
    %450 = vset.pattern.permute.xlu0 0
    %451 = vperm.xlu0 %450, %v288
    %v452 = vpop.permute.xlu0 %451
    %455 = vset.pattern.permute.xlu0 0
    %456 = vperm.xlu0 %455, %v290
    %v457 = vpop.permute.xlu0 %456
    %460 = vset.pattern.permute.xlu0 0
    %461 = vperm.xlu0 %460, %v292
    %v462 = vpop.permute.xlu0 %461
    %465 = vset.pattern.permute.xlu0 0
    %466 = vperm.xlu0 %465, %v294
    %v467 = vpop.permute.xlu0 %466
    %470 = vset.pattern.permute.xlu0 0
    %471 = vperm.xlu0 %470, %v296
    %v472 = vpop.permute.xlu0 %471
    %475 = vset.pattern.permute.xlu0 0
    %476 = vperm.xlu0 %475, %v298
    %v477 = vpop.permute.xlu0 %476
    %480 = vset.pattern.permute.xlu0 0
    %481 = vperm.xlu0 %480, %v300
    %v482 = vpop.permute.xlu0 %481
    %485 = vset.pattern.permute.xlu0 0
    %486 = vperm.xlu0 %485, %v302
    %v487 = vpop.permute.xlu0 %486
    %490 = vset.pattern.permute.xlu0 0
    %491 = vperm.xlu0 %490, %v304
    %v492 = vpop.permute.xlu0 %491
    %495 = vset.pattern.permute.xlu0 0
    %496 = vperm.xlu0 %495, %v306
    %v497 = vpop.permute.xlu0 %496
    %v499 = vmul.f32 %v342, %v307
    %v500 = vmul.f32 %v347, %v308
    %v501 = vmul.f32 %v352, %v309
    %v502 = vmul.f32 %v357, %v310
    %v503 = vmul.f32 %v362, %v311
    %v504 = vmul.f32 %v367, %v312
    %v505 = vmul.f32 %v372, %v313
    %v506 = vmul.f32 %v377, %v314
    %v507 = vmul.f32 %v382, %v315
    %v508 = vmul.f32 %v387, %v316
    %v509 = vmul.f32 %v392, %v317
    %v510 = vmul.f32 %v397, %v318
    %v511 = vmul.f32 %v402, %v319
    %v512 = vmul.f32 %v407, %v320
    %v513 = vmul.f32 %v412, %v321
    %v514 = vmul.f32 %v417, %v322
    %v515 = vmul.f32 %v422, %v323
    %v516 = vmul.f32 %v427, %v324
    %v517 = vmul.f32 %v432, %v325
    %v518 = vmul.f32 %v437, %v326
    %v519 = vmul.f32 %v442, %v327
    %v520 = vmul.f32 %v447, %v328
    %v521 = vmul.f32 %v452, %v329
    %v522 = vmul.f32 %v457, %v330
    %v523 = vmul.f32 %v462, %v331
    %v524 = vmul.f32 %v467, %v332
    %v525 = vmul.f32 %v472, %v333
    %v526 = vmul.f32 %v477, %v334
    %v527 = vmul.f32 %v482, %v335
    %v528 = vmul.f32 %v487, %v336
    %v529 = vmul.f32 %v492, %v337
    %v530 = vmul.f32 %v497, %v338
    %531 = vset.pattern.permute.xlu0 1
    %532 = vperm.xlu0 %531, %v244
    %v533 = vpop.permute.xlu0 %532
    %535 = vset.pattern.permute.xlu0 1
    %536 = vperm.xlu0 %535, %v246
    %v537 = vpop.permute.xlu0 %536
    %539 = vset.pattern.permute.xlu0 1
    %540 = vperm.xlu0 %539, %v248
    %v541 = vpop.permute.xlu0 %540
    %543 = vset.pattern.permute.xlu0 1
    %544 = vperm.xlu0 %543, %v250
    %v545 = vpop.permute.xlu0 %544
    %547 = vset.pattern.permute.xlu0 1
    %548 = vperm.xlu0 %547, %v252
    %v549 = vpop.permute.xlu0 %548
    %551 = vset.pattern.permute.xlu0 1
    %552 = vperm.xlu0 %551, %v254
    %v553 = vpop.permute.xlu0 %552
    %555 = vset.pattern.permute.xlu0 1
    %556 = vperm.xlu0 %555, %v256
    %v557 = vpop.permute.xlu0 %556
    %559 = vset.pattern.permute.xlu0 1
    %560 = vperm.xlu0 %559, %v258
    %v561 = vpop.permute.xlu0 %560
    %563 = vset.pattern.permute.xlu0 1
    %564 = vperm.xlu0 %563, %v260
    %v565 = vpop.permute.xlu0 %564
    %567 = vset.pattern.permute.xlu0 1
    %568 = vperm.xlu0 %567, %v262
    %v569 = vpop.permute.xlu0 %568
    %571 = vset.pattern.permute.xlu0 1
    %572 = vperm.xlu0 %571, %v264
    %v573 = vpop.permute.xlu0 %572
    %575 = vset.pattern.permute.xlu0 1
    %576 = vperm.xlu0 %575, %v266
    %v577 = vpop.permute.xlu0 %576
    %579 = vset.pattern.permute.xlu0 1
    %580 = vperm.xlu0 %579, %v268
    %v581 = vpop.permute.xlu0 %580
    %583 = vset.pattern.permute.xlu0 1
    %584 = vperm.xlu0 %583, %v270
    %v585 = vpop.permute.xlu0 %584
    %587 = vset.pattern.permute.xlu0 1
    %588 = vperm.xlu0 %587, %v272
    %v589 = vpop.permute.xlu0 %588
    %591 = vset.pattern.permute.xlu0 1
    %592 = vperm.xlu0 %591, %v274
    %v593 = vpop.permute.xlu0 %592
    %595 = vset.pattern.permute.xlu0 1
    %596 = vperm.xlu0 %595, %v276
    %v597 = vpop.permute.xlu0 %596
    %599 = vset.pattern.permute.xlu0 1
    %600 = vperm.xlu0 %599, %v278
    %v601 = vpop.permute.xlu0 %600
    %603 = vset.pattern.permute.xlu0 1
    %604 = vperm.xlu0 %603, %v280
    %v605 = vpop.permute.xlu0 %604
    %607 = vset.pattern.permute.xlu0 1
    %608 = vperm.xlu0 %607, %v282
    %v609 = vpop.permute.xlu0 %608
    %611 = vset.pattern.permute.xlu0 1
    %612 = vperm.xlu0 %611, %v284
    %v613 = vpop.permute.xlu0 %612
    %615 = vset.pattern.permute.xlu0 1
    %616 = vperm.xlu0 %615, %v286
    %v617 = vpop.permute.xlu0 %616
    %619 = vset.pattern.permute.xlu0 1
    %620 = vperm.xlu0 %619, %v288
    %v621 = vpop.permute.xlu0 %620
    %623 = vset.pattern.permute.xlu0 1
    %624 = vperm.xlu0 %623, %v290
    %v625 = vpop.permute.xlu0 %624
    %627 = vset.pattern.permute.xlu0 1
    %628 = vperm.xlu0 %627, %v292
    %v629 = vpop.permute.xlu0 %628
    %631 = vset.pattern.permute.xlu0 1
    %632 = vperm.xlu0 %631, %v294
    %v633 = vpop.permute.xlu0 %632
    %635 = vset.pattern.permute.xlu0 1
    %636 = vperm.xlu0 %635, %v296
    %v637 = vpop.permute.xlu0 %636
    %639 = vset.pattern.permute.xlu0 1
    %640 = vperm.xlu0 %639, %v298
    %v641 = vpop.permute.xlu0 %640
    %643 = vset.pattern.permute.xlu0 1
    %644 = vperm.xlu0 %643, %v300
    %v645 = vpop.permute.xlu0 %644
    %647 = vset.pattern.permute.xlu0 1
    %648 = vperm.xlu0 %647, %v302
    %v649 = vpop.permute.xlu0 %648
    %651 = vset.pattern.permute.xlu0 1
    %652 = vperm.xlu0 %651, %v304
    %v653 = vpop.permute.xlu0 %652
    %655 = vset.pattern.permute.xlu0 1
    %656 = vperm.xlu0 %655, %v306
    %v657 = vpop.permute.xlu0 %656
    %v659 = vmul.f32 %v533, %v307
    %v660 = vmul.f32 %v537, %v308
    %v661 = vmul.f32 %v541, %v309
    %v662 = vmul.f32 %v545, %v310
    %v663 = vmul.f32 %v549, %v311
    %v664 = vmul.f32 %v553, %v312
    %v665 = vmul.f32 %v557, %v313
    %v666 = vmul.f32 %v561, %v314
    %v667 = vmul.f32 %v565, %v315
    %v668 = vmul.f32 %v569, %v316
    %v669 = vmul.f32 %v573, %v317
    %v670 = vmul.f32 %v577, %v318
    %v671 = vmul.f32 %v581, %v319
    %v672 = vmul.f32 %v585, %v320
    %v673 = vmul.f32 %v589, %v321
    %v674 = vmul.f32 %v593, %v322
    %v675 = vmul.f32 %v597, %v323
    %v676 = vmul.f32 %v601, %v324
    %v677 = vmul.f32 %v605, %v325
    %v678 = vmul.f32 %v609, %v326
    %v679 = vmul.f32 %v613, %v327
    %v680 = vmul.f32 %v617, %v328
    %v681 = vmul.f32 %v621, %v329
    %v682 = vmul.f32 %v625, %v330
    %v683 = vmul.f32 %v629, %v331
    %v684 = vmul.f32 %v633, %v332
    %v685 = vmul.f32 %v637, %v333
    %v686 = vmul.f32 %v641, %v334
    %v687 = vmul.f32 %v645, %v335
    %v688 = vmul.f32 %v649, %v336
    %v689 = vmul.f32 %v653, %v337
    %v690 = vmul.f32 %v657, %v338
    %723 = vrot.lane.b32.xlu0 %v659, 64
    %v724 = vpop.permute.xlu0 %723
    %725 = vrot.lane.b32.xlu0 %v660, 64
    %v726 = vpop.permute.xlu0 %725
    %727 = vrot.lane.b32.xlu0 %v661, 64
    %v728 = vpop.permute.xlu0 %727
    %729 = vrot.lane.b32.xlu0 %v662, 64
    %v730 = vpop.permute.xlu0 %729
    %731 = vrot.lane.b32.xlu0 %v663, 64
    %v732 = vpop.permute.xlu0 %731
    %733 = vrot.lane.b32.xlu0 %v664, 64
    %v734 = vpop.permute.xlu0 %733
    %735 = vrot.lane.b32.xlu0 %v665, 64
    %v736 = vpop.permute.xlu0 %735
    %737 = vrot.lane.b32.xlu0 %v666, 64
    %v738 = vpop.permute.xlu0 %737
    %739 = vrot.lane.b32.xlu0 %v667, 64
    %v740 = vpop.permute.xlu0 %739
    %741 = vrot.lane.b32.xlu0 %v668, 64
    %v742 = vpop.permute.xlu0 %741
    %743 = vrot.lane.b32.xlu0 %v669, 64
    %v744 = vpop.permute.xlu0 %743
    %745 = vrot.lane.b32.xlu0 %v670, 64
    %v746 = vpop.permute.xlu0 %745
    %747 = vrot.lane.b32.xlu0 %v671, 64
    %v748 = vpop.permute.xlu0 %747
    %749 = vrot.lane.b32.xlu0 %v672, 64
    %v750 = vpop.permute.xlu0 %749
    %751 = vrot.lane.b32.xlu0 %v673, 64
    %v752 = vpop.permute.xlu0 %751
    %753 = vrot.lane.b32.xlu0 %v674, 64
    %v754 = vpop.permute.xlu0 %753
    %755 = vrot.lane.b32.xlu0 %v675, 64
    %v756 = vpop.permute.xlu0 %755
    %757 = vrot.lane.b32.xlu0 %v676, 64
    %v758 = vpop.permute.xlu0 %757
    %759 = vrot.lane.b32.xlu0 %v677, 64
    %v760 = vpop.permute.xlu0 %759
    %761 = vrot.lane.b32.xlu0 %v678, 64
    %v762 = vpop.permute.xlu0 %761
    %763 = vrot.lane.b32.xlu0 %v679, 64
    %v764 = vpop.permute.xlu0 %763
    %765 = vrot.lane.b32.xlu0 %v680, 64
    %v766 = vpop.permute.xlu0 %765
    %767 = vrot.lane.b32.xlu0 %v681, 64
    %v768 = vpop.permute.xlu0 %767
    %769 = vrot.lane.b32.xlu0 %v682, 64
    %v770 = vpop.permute.xlu0 %769
    %771 = vrot.lane.b32.xlu0 %v683, 64
    %v772 = vpop.permute.xlu0 %771
    %773 = vrot.lane.b32.xlu0 %v684, 64
    %v774 = vpop.permute.xlu0 %773
    %775 = vrot.lane.b32.xlu0 %v685, 64
    %v776 = vpop.permute.xlu0 %775
    %777 = vrot.lane.b32.xlu0 %v686, 64
    %v778 = vpop.permute.xlu0 %777
    %779 = vrot.lane.b32.xlu0 %v687, 64
    %v780 = vpop.permute.xlu0 %779
    %781 = vrot.lane.b32.xlu0 %v688, 64
    %v782 = vpop.permute.xlu0 %781
    %783 = vrot.lane.b32.xlu0 %v689, 64
    %v784 = vpop.permute.xlu0 %783
    %785 = vrot.lane.b32.xlu0 %v690, 64
    %v786 = vpop.permute.xlu0 %785
    %v819 = vadd.f32 %v499, %v724
    %v820 = vadd.f32 %v500, %v726
    %v821 = vadd.f32 %v501, %v728
    %v822 = vadd.f32 %v502, %v730
    %v823 = vadd.f32 %v503, %v732
    %v824 = vadd.f32 %v504, %v734
    %v825 = vadd.f32 %v505, %v736
    %v826 = vadd.f32 %v506, %v738
    %v827 = vadd.f32 %v507, %v740
    %v828 = vadd.f32 %v508, %v742
    %v829 = vadd.f32 %v509, %v744
    %v830 = vadd.f32 %v510, %v746
    %v831 = vadd.f32 %v511, %v748
    %v832 = vadd.f32 %v512, %v750
    %v833 = vadd.f32 %v513, %v752
    %v834 = vadd.f32 %v514, %v754
    %v835 = vadd.f32 %v515, %v756
    %v836 = vadd.f32 %v516, %v758
    %v837 = vadd.f32 %v517, %v760
    %v838 = vadd.f32 %v518, %v762
    %v839 = vadd.f32 %v519, %v764
    %v840 = vadd.f32 %v520, %v766
    %v841 = vadd.f32 %v521, %v768
    %v842 = vadd.f32 %v522, %v770
    %v843 = vadd.f32 %v523, %v772
    %v844 = vadd.f32 %v524, %v774
    %v845 = vadd.f32 %v525, %v776
    %v846 = vadd.f32 %v526, %v778
    %v847 = vadd.f32 %v527, %v780
    %v848 = vadd.f32 %v528, %v782
    %v849 = vadd.f32 %v529, %v784
    %v850 = vadd.f32 %v530, %v786
    %v851 = vmax.f32 %v499, %v724
    %v852 = vmax.f32 %v500, %v726
    %v853 = vmax.f32 %v501, %v728
    %v854 = vmax.f32 %v502, %v730
    %v855 = vmax.f32 %v503, %v732
    %v856 = vmax.f32 %v504, %v734
    %v857 = vmax.f32 %v505, %v736
    %v858 = vmax.f32 %v506, %v738
    %v859 = vmax.f32 %v507, %v740
    %v860 = vmax.f32 %v508, %v742
    %v861 = vmax.f32 %v509, %v744
    %v862 = vmax.f32 %v510, %v746
    %v863 = vmax.f32 %v511, %v748
    %v864 = vmax.f32 %v512, %v750
    %v865 = vmax.f32 %v513, %v752
    %v866 = vmax.f32 %v514, %v754
    %v867 = vmax.f32 %v515, %v756
    %v868 = vmax.f32 %v516, %v758
    %v869 = vmax.f32 %v517, %v760
    %v870 = vmax.f32 %v518, %v762
    %v871 = vmax.f32 %v519, %v764
    %v872 = vmax.f32 %v520, %v766
    %v873 = vmax.f32 %v521, %v768
    %v874 = vmax.f32 %v522, %v770
    %v875 = vmax.f32 %v523, %v772
    %v876 = vmax.f32 %v524, %v774
    %v877 = vmax.f32 %v525, %v776
    %v878 = vmax.f32 %v526, %v778
    %v879 = vmax.f32 %v527, %v780
    %v880 = vmax.f32 %v528, %v782
    %v881 = vmax.f32 %v529, %v784
    %v882 = vmax.f32 %v530, %v786
    %v883 = vld [vmem:[%s1 + $0x8] sm:$0xff]
    %v884 = vld [vmem:[%s1 + $0x28] sm:$0xff]
    %v885 = vld [vmem:[%s1 + $0x48] sm:$0xff]
    %v886 = vld [vmem:[%s1 + $0x68] sm:$0xff]
    %v887 = vld [vmem:[%s1 + $0x88] sm:$0xff]
    %v888 = vld [vmem:[%s1 + $0xa8] sm:$0xff]
    %v889 = vld [vmem:[%s1 + $0xc8] sm:$0xff]
    %v890 = vld [vmem:[%s1 + $0xe8] sm:$0xff]
    %v891 = vld [vmem:[%s1 + $0x108] sm:$0xff]
    %v892 = vld [vmem:[%s1 + $0x128] sm:$0xff]
    %v893 = vld [vmem:[%s1 + $0x148] sm:$0xff]
    %v894 = vld [vmem:[%s1 + $0x168] sm:$0xff]
    %v895 = vld [vmem:[%s1 + $0x188] sm:$0xff]
    %v896 = vld [vmem:[%s1 + $0x1a8] sm:$0xff]
    %v897 = vld [vmem:[%s1 + $0x1c8] sm:$0xff]
    %v898 = vld [vmem:[%s1 + $0x1e8] sm:$0xff]
    %v899 = vld [vmem:[%s1 + $0x208] sm:$0xff]
    %v900 = vld [vmem:[%s1 + $0x228] sm:$0xff]
    %v901 = vld [vmem:[%s1 + $0x248] sm:$0xff]
    %v902 = vld [vmem:[%s1 + $0x268] sm:$0xff]
    %v903 = vld [vmem:[%s1 + $0x288] sm:$0xff]
    %v904 = vld [vmem:[%s1 + $0x2a8] sm:$0xff]
    %v905 = vld [vmem:[%s1 + $0x2c8] sm:$0xff]
    %v906 = vld [vmem:[%s1 + $0x2e8] sm:$0xff]
    %v907 = vld [vmem:[%s1 + $0x308] sm:$0xff]
    %v908 = vld [vmem:[%s1 + $0x328] sm:$0xff]
    %v909 = vld [vmem:[%s1 + $0x348] sm:$0xff]
    %v910 = vld [vmem:[%s1 + $0x368] sm:$0xff]
    %v911 = vld [vmem:[%s1 + $0x388] sm:$0xff]
    %v912 = vld [vmem:[%s1 + $0x3a8] sm:$0xff]
    %v913 = vld [vmem:[%s1 + $0x3c8] sm:$0xff]
    %v914 = vld [vmem:[%s1 + $0x3e8] sm:$0xff]
    %915 = vset.pattern.permute.xlu0 2
    %916 = vperm.xlu0 %915, %v244
    %v917 = vpop.permute.xlu0 %916
    %919 = vset.pattern.permute.xlu0 2
    %920 = vperm.xlu0 %919, %v246
    %v921 = vpop.permute.xlu0 %920
    %923 = vset.pattern.permute.xlu0 2
    %924 = vperm.xlu0 %923, %v248
    %v925 = vpop.permute.xlu0 %924
    %927 = vset.pattern.permute.xlu0 2
    %928 = vperm.xlu0 %927, %v250
    %v929 = vpop.permute.xlu0 %928
    %931 = vset.pattern.permute.xlu0 2
    %932 = vperm.xlu0 %931, %v252
    %v933 = vpop.permute.xlu0 %932
    %935 = vset.pattern.permute.xlu0 2
    %936 = vperm.xlu0 %935, %v254
    %v937 = vpop.permute.xlu0 %936
    %939 = vset.pattern.permute.xlu0 2
    %940 = vperm.xlu0 %939, %v256
    %v941 = vpop.permute.xlu0 %940
    %943 = vset.pattern.permute.xlu0 2
    %944 = vperm.xlu0 %943, %v258
    %v945 = vpop.permute.xlu0 %944
    %947 = vset.pattern.permute.xlu0 2
    %948 = vperm.xlu0 %947, %v260
    %v949 = vpop.permute.xlu0 %948
    %951 = vset.pattern.permute.xlu0 2
    %952 = vperm.xlu0 %951, %v262
    %v953 = vpop.permute.xlu0 %952
    %955 = vset.pattern.permute.xlu0 2
    %956 = vperm.xlu0 %955, %v264
    %v957 = vpop.permute.xlu0 %956
    %959 = vset.pattern.permute.xlu0 2
    %960 = vperm.xlu0 %959, %v266
    %v961 = vpop.permute.xlu0 %960
    %963 = vset.pattern.permute.xlu0 2
    %964 = vperm.xlu0 %963, %v268
    %v965 = vpop.permute.xlu0 %964
    %967 = vset.pattern.permute.xlu0 2
    %968 = vperm.xlu0 %967, %v270
    %v969 = vpop.permute.xlu0 %968
    %971 = vset.pattern.permute.xlu0 2
    %972 = vperm.xlu0 %971, %v272
    %v973 = vpop.permute.xlu0 %972
    %975 = vset.pattern.permute.xlu0 2
    %976 = vperm.xlu0 %975, %v274
    %v977 = vpop.permute.xlu0 %976
    %979 = vset.pattern.permute.xlu0 2
    %980 = vperm.xlu0 %979, %v276
    %v981 = vpop.permute.xlu0 %980
    %983 = vset.pattern.permute.xlu0 2
    %984 = vperm.xlu0 %983, %v278
    %v985 = vpop.permute.xlu0 %984
    %987 = vset.pattern.permute.xlu0 2
    %988 = vperm.xlu0 %987, %v280
    %v989 = vpop.permute.xlu0 %988
    %991 = vset.pattern.permute.xlu0 2
    %992 = vperm.xlu0 %991, %v282
    %v993 = vpop.permute.xlu0 %992
    %995 = vset.pattern.permute.xlu0 2
    %996 = vperm.xlu0 %995, %v284
    %v997 = vpop.permute.xlu0 %996
    %999 = vset.pattern.permute.xlu0 2
    %1000 = vperm.xlu0 %999, %v286
    %v1001 = vpop.permute.xlu0 %1000
    %1003 = vset.pattern.permute.xlu0 2
    %1004 = vperm.xlu0 %1003, %v288
    %v1005 = vpop.permute.xlu0 %1004
    %1007 = vset.pattern.permute.xlu0 2
    %1008 = vperm.xlu0 %1007, %v290
    %v1009 = vpop.permute.xlu0 %1008
    %1011 = vset.pattern.permute.xlu0 2
    %1012 = vperm.xlu0 %1011, %v292
    %v1013 = vpop.permute.xlu0 %1012
    %1015 = vset.pattern.permute.xlu0 2
    %1016 = vperm.xlu0 %1015, %v294
    %v1017 = vpop.permute.xlu0 %1016
    %1019 = vset.pattern.permute.xlu0 2
    %1020 = vperm.xlu0 %1019, %v296
    %v1021 = vpop.permute.xlu0 %1020
    %1023 = vset.pattern.permute.xlu0 2
    %1024 = vperm.xlu0 %1023, %v298
    %v1025 = vpop.permute.xlu0 %1024
    %1027 = vset.pattern.permute.xlu0 2
    %1028 = vperm.xlu0 %1027, %v300
    %v1029 = vpop.permute.xlu0 %1028
    %1031 = vset.pattern.permute.xlu0 2
    %1032 = vperm.xlu0 %1031, %v302
    %v1033 = vpop.permute.xlu0 %1032
    %1035 = vset.pattern.permute.xlu0 2
    %1036 = vperm.xlu0 %1035, %v304
    %v1037 = vpop.permute.xlu0 %1036
    %1039 = vset.pattern.permute.xlu0 2
    %1040 = vperm.xlu0 %1039, %v306
    %v1041 = vpop.permute.xlu0 %1040
    %v1043 = vmul.f32 %v917, %v883
    %v1044 = vmul.f32 %v921, %v884
    %v1045 = vmul.f32 %v925, %v885
    %v1046 = vmul.f32 %v929, %v886
    %v1047 = vmul.f32 %v933, %v887
    %v1048 = vmul.f32 %v937, %v888
    %v1049 = vmul.f32 %v941, %v889
    %v1050 = vmul.f32 %v945, %v890
    %v1051 = vmul.f32 %v949, %v891
    %v1052 = vmul.f32 %v953, %v892
    %v1053 = vmul.f32 %v957, %v893
    %v1054 = vmul.f32 %v961, %v894
    %v1055 = vmul.f32 %v965, %v895
    %v1056 = vmul.f32 %v969, %v896
    %v1057 = vmul.f32 %v973, %v897
    %v1058 = vmul.f32 %v977, %v898
    %v1059 = vmul.f32 %v981, %v899
    %v1060 = vmul.f32 %v985, %v900
    %v1061 = vmul.f32 %v989, %v901
    %v1062 = vmul.f32 %v993, %v902
    %v1063 = vmul.f32 %v997, %v903
    %v1064 = vmul.f32 %v1001, %v904
    %v1065 = vmul.f32 %v1005, %v905
    %v1066 = vmul.f32 %v1009, %v906
    %v1067 = vmul.f32 %v1013, %v907
    %v1068 = vmul.f32 %v1017, %v908
    %v1069 = vmul.f32 %v1021, %v909
    %v1070 = vmul.f32 %v1025, %v910
    %v1071 = vmul.f32 %v1029, %v911
    %v1072 = vmul.f32 %v1033, %v912
    %v1073 = vmul.f32 %v1037, %v913
    %v1074 = vmul.f32 %v1041, %v914
    %v1075 = vadd.f32 %v819, %v1043
    %v1076 = vadd.f32 %v820, %v1044
    %v1077 = vadd.f32 %v821, %v1045
    %v1078 = vadd.f32 %v822, %v1046
    %v1079 = vadd.f32 %v823, %v1047
    %v1080 = vadd.f32 %v824, %v1048
    %v1081 = vadd.f32 %v825, %v1049
    %v1082 = vadd.f32 %v826, %v1050
    %v1083 = vadd.f32 %v827, %v1051
    %v1084 = vadd.f32 %v828, %v1052
    %v1085 = vadd.f32 %v829, %v1053
    %v1086 = vadd.f32 %v830, %v1054
    %v1087 = vadd.f32 %v831, %v1055
    %v1088 = vadd.f32 %v832, %v1056
    %v1089 = vadd.f32 %v833, %v1057
    %v1090 = vadd.f32 %v834, %v1058
    %v1091 = vadd.f32 %v835, %v1059
    %v1092 = vadd.f32 %v836, %v1060
    %v1093 = vadd.f32 %v837, %v1061
    %v1094 = vadd.f32 %v838, %v1062
    %v1095 = vadd.f32 %v839, %v1063
    %v1096 = vadd.f32 %v840, %v1064
    %v1097 = vadd.f32 %v841, %v1065
    %v1098 = vadd.f32 %v842, %v1066
    %v1099 = vadd.f32 %v843, %v1067
    %v1100 = vadd.f32 %v844, %v1068
    %v1101 = vadd.f32 %v845, %v1069
    %v1102 = vadd.f32 %v846, %v1070
    %v1103 = vadd.f32 %v847, %v1071
    %v1104 = vadd.f32 %v848, %v1072
    %v1105 = vadd.f32 %v849, %v1073
    %v1106 = vadd.f32 %v850, %v1074
    %v1107 = vmax.f32 %v851, %v1043
    %v1108 = vmax.f32 %v852, %v1044
    %v1109 = vmax.f32 %v853, %v1045
    %v1110 = vmax.f32 %v854, %v1046
    %v1111 = vmax.f32 %v855, %v1047
    %v1112 = vmax.f32 %v856, %v1048
    %v1113 = vmax.f32 %v857, %v1049
    %v1114 = vmax.f32 %v858, %v1050
    %v1115 = vmax.f32 %v859, %v1051
    %v1116 = vmax.f32 %v860, %v1052
    %v1117 = vmax.f32 %v861, %v1053
    %v1118 = vmax.f32 %v862, %v1054
    %v1119 = vmax.f32 %v863, %v1055
    %v1120 = vmax.f32 %v864, %v1056
    %v1121 = vmax.f32 %v865, %v1057
    %v1122 = vmax.f32 %v866, %v1058
    %v1123 = vmax.f32 %v867, %v1059
    %v1124 = vmax.f32 %v868, %v1060
    %v1125 = vmax.f32 %v869, %v1061
    %v1126 = vmax.f32 %v870, %v1062
    %v1127 = vmax.f32 %v871, %v1063
    %v1128 = vmax.f32 %v872, %v1064
    %v1129 = vmax.f32 %v873, %v1065
    %v1130 = vmax.f32 %v874, %v1066
    %v1131 = vmax.f32 %v875, %v1067
    %v1132 = vmax.f32 %v876, %v1068
    %v1133 = vmax.f32 %v877, %v1069
    %v1134 = vmax.f32 %v878, %v1070
    %v1135 = vmax.f32 %v879, %v1071
    %v1136 = vmax.f32 %v880, %v1072
    %v1137 = vmax.f32 %v881, %v1073
    %v1138 = vmax.f32 %v882, %v1074
    %1139 = vset.pattern.permute.xlu0 3
    %1140 = vperm.xlu0 %1139, %v244
    %v1141 = vpop.permute.xlu0 %1140
    %1143 = vset.pattern.permute.xlu0 3
    %1144 = vperm.xlu0 %1143, %v246
    %v1145 = vpop.permute.xlu0 %1144
    %1147 = vset.pattern.permute.xlu0 3
    %1148 = vperm.xlu0 %1147, %v248
    %v1149 = vpop.permute.xlu0 %1148
    %1151 = vset.pattern.permute.xlu0 3
    %1152 = vperm.xlu0 %1151, %v250
    %v1153 = vpop.permute.xlu0 %1152
    %1155 = vset.pattern.permute.xlu0 3
    %1156 = vperm.xlu0 %1155, %v252
    %v1157 = vpop.permute.xlu0 %1156
    %1159 = vset.pattern.permute.xlu0 3
    %1160 = vperm.xlu0 %1159, %v254
    %v1161 = vpop.permute.xlu0 %1160
    %1163 = vset.pattern.permute.xlu0 3
    %1164 = vperm.xlu0 %1163, %v256
    %v1165 = vpop.permute.xlu0 %1164
    %1167 = vset.pattern.permute.xlu0 3
    %1168 = vperm.xlu0 %1167, %v258
    %v1169 = vpop.permute.xlu0 %1168
    %1171 = vset.pattern.permute.xlu0 3
    %1172 = vperm.xlu0 %1171, %v260
    %v1173 = vpop.permute.xlu0 %1172
    %1175 = vset.pattern.permute.xlu0 3
    %1176 = vperm.xlu0 %1175, %v262
    %v1177 = vpop.permute.xlu0 %1176
    %1179 = vset.pattern.permute.xlu0 3
    %1180 = vperm.xlu0 %1179, %v264
    %v1181 = vpop.permute.xlu0 %1180
    %1183 = vset.pattern.permute.xlu0 3
    %1184 = vperm.xlu0 %1183, %v266
    %v1185 = vpop.permute.xlu0 %1184
    %1187 = vset.pattern.permute.xlu0 3
    %1188 = vperm.xlu0 %1187, %v268
    %v1189 = vpop.permute.xlu0 %1188
    %1191 = vset.pattern.permute.xlu0 3
    %1192 = vperm.xlu0 %1191, %v270
    %v1193 = vpop.permute.xlu0 %1192
    %1195 = vset.pattern.permute.xlu0 3
    %1196 = vperm.xlu0 %1195, %v272
    %v1197 = vpop.permute.xlu0 %1196
    %1199 = vset.pattern.permute.xlu0 3
    %1200 = vperm.xlu0 %1199, %v274
    %v1201 = vpop.permute.xlu0 %1200
    %1203 = vset.pattern.permute.xlu0 3
    %1204 = vperm.xlu0 %1203, %v276
    %v1205 = vpop.permute.xlu0 %1204
    %1207 = vset.pattern.permute.xlu0 3
    %1208 = vperm.xlu0 %1207, %v278
    %v1209 = vpop.permute.xlu0 %1208
    %1211 = vset.pattern.permute.xlu0 3
    %1212 = vperm.xlu0 %1211, %v280
    %v1213 = vpop.permute.xlu0 %1212
    %1215 = vset.pattern.permute.xlu0 3
    %1216 = vperm.xlu0 %1215, %v282
    %v1217 = vpop.permute.xlu0 %1216
    %1219 = vset.pattern.permute.xlu0 3
    %1220 = vperm.xlu0 %1219, %v284
    %v1221 = vpop.permute.xlu0 %1220
    %1223 = vset.pattern.permute.xlu0 3
    %1224 = vperm.xlu0 %1223, %v286
    %v1225 = vpop.permute.xlu0 %1224
    %1227 = vset.pattern.permute.xlu0 3
    %1228 = vperm.xlu0 %1227, %v288
    %v1229 = vpop.permute.xlu0 %1228
    %1231 = vset.pattern.permute.xlu0 3
    %1232 = vperm.xlu0 %1231, %v290
    %v1233 = vpop.permute.xlu0 %1232
    %1235 = vset.pattern.permute.xlu0 3
    %1236 = vperm.xlu0 %1235, %v292
    %v1237 = vpop.permute.xlu0 %1236
    %1239 = vset.pattern.permute.xlu0 3
    %1240 = vperm.xlu0 %1239, %v294
    %v1241 = vpop.permute.xlu0 %1240
    %1243 = vset.pattern.permute.xlu0 3
    %1244 = vperm.xlu0 %1243, %v296
    %v1245 = vpop.permute.xlu0 %1244
    %1247 = vset.pattern.permute.xlu0 3
    %1248 = vperm.xlu0 %1247, %v298
    %v1249 = vpop.permute.xlu0 %1248
    %1251 = vset.pattern.permute.xlu0 3
    %1252 = vperm.xlu0 %1251, %v300
    %v1253 = vpop.permute.xlu0 %1252
    %1255 = vset.pattern.permute.xlu0 3
    %1256 = vperm.xlu0 %1255, %v302
    %v1257 = vpop.permute.xlu0 %1256
    %1259 = vset.pattern.permute.xlu0 3
    %1260 = vperm.xlu0 %1259, %v304
    %v1261 = vpop.permute.xlu0 %1260
    %1263 = vset.pattern.permute.xlu0 3
    %1264 = vperm.xlu0 %1263, %v306
    %v1265 = vpop.permute.xlu0 %1264
    %v1267 = vmul.f32 %v1141, %v883
    %v1268 = vmul.f32 %v1145, %v884
    %v1269 = vmul.f32 %v1149, %v885
    %v1270 = vmul.f32 %v1153, %v886
    %v1271 = vmul.f32 %v1157, %v887
    %v1272 = vmul.f32 %v1161, %v888
    %v1273 = vmul.f32 %v1165, %v889
    %v1274 = vmul.f32 %v1169, %v890
    %v1275 = vmul.f32 %v1173, %v891
    %v1276 = vmul.f32 %v1177, %v892
    %v1277 = vmul.f32 %v1181, %v893
    %v1278 = vmul.f32 %v1185, %v894
    %v1279 = vmul.f32 %v1189, %v895
    %v1280 = vmul.f32 %v1193, %v896
    %v1281 = vmul.f32 %v1197, %v897
    %v1282 = vmul.f32 %v1201, %v898
    %v1283 = vmul.f32 %v1205, %v899
    %v1284 = vmul.f32 %v1209, %v900
    %v1285 = vmul.f32 %v1213, %v901
    %v1286 = vmul.f32 %v1217, %v902
    %v1287 = vmul.f32 %v1221, %v903
    %v1288 = vmul.f32 %v1225, %v904
    %v1289 = vmul.f32 %v1229, %v905
    %v1290 = vmul.f32 %v1233, %v906
    %v1291 = vmul.f32 %v1237, %v907
    %v1292 = vmul.f32 %v1241, %v908
    %v1293 = vmul.f32 %v1245, %v909
    %v1294 = vmul.f32 %v1249, %v910
    %v1295 = vmul.f32 %v1253, %v911
    %v1296 = vmul.f32 %v1257, %v912
    %v1297 = vmul.f32 %v1261, %v913
    %v1298 = vmul.f32 %v1265, %v914
    %1331 = vrot.lane.b32.xlu0 %v1267, 64
    %v1332 = vpop.permute.xlu0 %1331
    %1333 = vrot.lane.b32.xlu0 %v1268, 64
    %v1334 = vpop.permute.xlu0 %1333
    %1335 = vrot.lane.b32.xlu0 %v1269, 64
    %v1336 = vpop.permute.xlu0 %1335
    %1337 = vrot.lane.b32.xlu0 %v1270, 64
    %v1338 = vpop.permute.xlu0 %1337
    %1339 = vrot.lane.b32.xlu0 %v1271, 64
    %v1340 = vpop.permute.xlu0 %1339
    %1341 = vrot.lane.b32.xlu0 %v1272, 64
    %v1342 = vpop.permute.xlu0 %1341
    %1343 = vrot.lane.b32.xlu0 %v1273, 64
    %v1344 = vpop.permute.xlu0 %1343
    %1345 = vrot.lane.b32.xlu0 %v1274, 64
    %v1346 = vpop.permute.xlu0 %1345
    %1347 = vrot.lane.b32.xlu0 %v1275, 64
    %v1348 = vpop.permute.xlu0 %1347
    %1349 = vrot.lane.b32.xlu0 %v1276, 64
    %v1350 = vpop.permute.xlu0 %1349
    %1351 = vrot.lane.b32.xlu0 %v1277, 64
    %v1352 = vpop.permute.xlu0 %1351
    %1353 = vrot.lane.b32.xlu0 %v1278, 64
    %v1354 = vpop.permute.xlu0 %1353
    %1355 = vrot.lane.b32.xlu0 %v1279, 64
    %v1356 = vpop.permute.xlu0 %1355
    %1357 = vrot.lane.b32.xlu0 %v1280, 64
    %v1358 = vpop.permute.xlu0 %1357
    %1359 = vrot.lane.b32.xlu0 %v1281, 64
    %v1360 = vpop.permute.xlu0 %1359
    %1361 = vrot.lane.b32.xlu0 %v1282, 64
    %v1362 = vpop.permute.xlu0 %1361
    %1363 = vrot.lane.b32.xlu0 %v1283, 64
    %v1364 = vpop.permute.xlu0 %1363
    %1365 = vrot.lane.b32.xlu0 %v1284, 64
    %v1366 = vpop.permute.xlu0 %1365
    %1367 = vrot.lane.b32.xlu0 %v1285, 64
    %v1368 = vpop.permute.xlu0 %1367
    %1369 = vrot.lane.b32.xlu0 %v1286, 64
    %v1370 = vpop.permute.xlu0 %1369
    %1371 = vrot.lane.b32.xlu0 %v1287, 64
    %v1372 = vpop.permute.xlu0 %1371
    %1373 = vrot.lane.b32.xlu0 %v1288, 64
    %v1374 = vpop.permute.xlu0 %1373
    %1375 = vrot.lane.b32.xlu0 %v1289, 64
    %v1376 = vpop.permute.xlu0 %1375
    %1377 = vrot.lane.b32.xlu0 %v1290, 64
    %v1378 = vpop.permute.xlu0 %1377
    %1379 = vrot.lane.b32.xlu0 %v1291, 64
    %v1380 = vpop.permute.xlu0 %1379
    %1381 = vrot.lane.b32.xlu0 %v1292, 64
    %v1382 = vpop.permute.xlu0 %1381
    %1383 = vrot.lane.b32.xlu0 %v1293, 64
    %v1384 = vpop.permute.xlu0 %1383
    %1385 = vrot.lane.b32.xlu0 %v1294, 64
    %v1386 = vpop.permute.xlu0 %1385
    %1387 = vrot.lane.b32.xlu0 %v1295, 64
    %v1388 = vpop.permute.xlu0 %1387
    %1389 = vrot.lane.b32.xlu0 %v1296, 64
    %v1390 = vpop.permute.xlu0 %1389
    %1391 = vrot.lane.b32.xlu0 %v1297, 64
    %v1392 = vpop.permute.xlu0 %1391
    %1393 = vrot.lane.b32.xlu0 %v1298, 64
    %v1394 = vpop.permute.xlu0 %1393
    %v1427 = vadd.f32 %v1075, %v1332
    %v1428 = vadd.f32 %v1076, %v1334
    %v1429 = vadd.f32 %v1077, %v1336
    %v1430 = vadd.f32 %v1078, %v1338
    %v1431 = vadd.f32 %v1079, %v1340
    %v1432 = vadd.f32 %v1080, %v1342
    %v1433 = vadd.f32 %v1081, %v1344
    %v1434 = vadd.f32 %v1082, %v1346
    %v1435 = vadd.f32 %v1083, %v1348
    %v1436 = vadd.f32 %v1084, %v1350
    %v1437 = vadd.f32 %v1085, %v1352
    %v1438 = vadd.f32 %v1086, %v1354
    %v1439 = vadd.f32 %v1087, %v1356
    %v1440 = vadd.f32 %v1088, %v1358
    %v1441 = vadd.f32 %v1089, %v1360
    %v1442 = vadd.f32 %v1090, %v1362
    %v1443 = vadd.f32 %v1091, %v1364
    %v1444 = vadd.f32 %v1092, %v1366
    %v1445 = vadd.f32 %v1093, %v1368
    %v1446 = vadd.f32 %v1094, %v1370
    %v1447 = vadd.f32 %v1095, %v1372
    %v1448 = vadd.f32 %v1096, %v1374
    %v1449 = vadd.f32 %v1097, %v1376
    %v1450 = vadd.f32 %v1098, %v1378
    %v1451 = vadd.f32 %v1099, %v1380
    %v1452 = vadd.f32 %v1100, %v1382
    %v1453 = vadd.f32 %v1101, %v1384
    %v1454 = vadd.f32 %v1102, %v1386
    %v1455 = vadd.f32 %v1103, %v1388
    %v1456 = vadd.f32 %v1104, %v1390
    %v1457 = vadd.f32 %v1105, %v1392
    %v1458 = vadd.f32 %v1106, %v1394
    %v1459 = vmax.f32 %v1107, %v1332
    %v1460 = vmax.f32 %v1108, %v1334
    %v1461 = vmax.f32 %v1109, %v1336
    %v1462 = vmax.f32 %v1110, %v1338
    %v1463 = vmax.f32 %v1111, %v1340
    %v1464 = vmax.f32 %v1112, %v1342
    %v1465 = vmax.f32 %v1113, %v1344
    %v1466 = vmax.f32 %v1114, %v1346
    %v1467 = vmax.f32 %v1115, %v1348
    %v1468 = vmax.f32 %v1116, %v1350
    %v1469 = vmax.f32 %v1117, %v1352
    %v1470 = vmax.f32 %v1118, %v1354
    %v1471 = vmax.f32 %v1119, %v1356
    %v1472 = vmax.f32 %v1120, %v1358
    %v1473 = vmax.f32 %v1121, %v1360
    %v1474 = vmax.f32 %v1122, %v1362
    %v1475 = vmax.f32 %v1123, %v1364
    %v1476 = vmax.f32 %v1124, %v1366
    %v1477 = vmax.f32 %v1125, %v1368
    %v1478 = vmax.f32 %v1126, %v1370
    %v1479 = vmax.f32 %v1127, %v1372
    %v1480 = vmax.f32 %v1128, %v1374
    %v1481 = vmax.f32 %v1129, %v1376
    %v1482 = vmax.f32 %v1130, %v1378
    %v1483 = vmax.f32 %v1131, %v1380
    %v1484 = vmax.f32 %v1132, %v1382
    %v1485 = vmax.f32 %v1133, %v1384
    %v1486 = vmax.f32 %v1134, %v1386
    %v1487 = vmax.f32 %v1135, %v1388
    %v1488 = vmax.f32 %v1136, %v1390
    %v1489 = vmax.f32 %v1137, %v1392
    %v1490 = vmax.f32 %v1138, %v1394
    %v1491 = vld [vmem:[%s1 + $0x10] sm:$0xff]
    %v1492 = vld [vmem:[%s1 + $0x30] sm:$0xff]
    %v1493 = vld [vmem:[%s1 + $0x50] sm:$0xff]
    %v1494 = vld [vmem:[%s1 + $0x70] sm:$0xff]
    %v1495 = vld [vmem:[%s1 + $0x90] sm:$0xff]
    %v1496 = vld [vmem:[%s1 + $0xb0] sm:$0xff]
    %v1497 = vld [vmem:[%s1 + $0xd0] sm:$0xff]
    %v1498 = vld [vmem:[%s1 + $0xf0] sm:$0xff]
    %v1499 = vld [vmem:[%s1 + $0x110] sm:$0xff]
    %v1500 = vld [vmem:[%s1 + $0x130] sm:$0xff]
    %v1501 = vld [vmem:[%s1 + $0x150] sm:$0xff]
    %v1502 = vld [vmem:[%s1 + $0x170] sm:$0xff]
    %v1503 = vld [vmem:[%s1 + $0x190] sm:$0xff]
    %v1504 = vld [vmem:[%s1 + $0x1b0] sm:$0xff]
    %v1505 = vld [vmem:[%s1 + $0x1d0] sm:$0xff]
    %v1506 = vld [vmem:[%s1 + $0x1f0] sm:$0xff]
    %v1507 = vld [vmem:[%s1 + $0x210] sm:$0xff]
    %v1508 = vld [vmem:[%s1 + $0x230] sm:$0xff]
    %v1509 = vld [vmem:[%s1 + $0x250] sm:$0xff]
    %v1510 = vld [vmem:[%s1 + $0x270] sm:$0xff]
    %v1511 = vld [vmem:[%s1 + $0x290] sm:$0xff]
    %v1512 = vld [vmem:[%s1 + $0x2b0] sm:$0xff]
    %v1513 = vld [vmem:[%s1 + $0x2d0] sm:$0xff]
    %v1514 = vld [vmem:[%s1 + $0x2f0] sm:$0xff]
    %v1515 = vld [vmem:[%s1 + $0x310] sm:$0xff]
    %v1516 = vld [vmem:[%s1 + $0x330] sm:$0xff]
    %v1517 = vld [vmem:[%s1 + $0x350] sm:$0xff]
    %v1518 = vld [vmem:[%s1 + $0x370] sm:$0xff]
    %v1519 = vld [vmem:[%s1 + $0x390] sm:$0xff]
    %v1520 = vld [vmem:[%s1 + $0x3b0] sm:$0xff]
    %v1521 = vld [vmem:[%s1 + $0x3d0] sm:$0xff]
    %v1522 = vld [vmem:[%s1 + $0x3f0] sm:$0xff]
    %1523 = vset.pattern.permute.xlu0 4
    %1524 = vperm.xlu0 %1523, %v244
    %v1525 = vpop.permute.xlu0 %1524
    %1527 = vset.pattern.permute.xlu0 4
    %1528 = vperm.xlu0 %1527, %v246
    %v1529 = vpop.permute.xlu0 %1528
    %1531 = vset.pattern.permute.xlu0 4
    %1532 = vperm.xlu0 %1531, %v248
    %v1533 = vpop.permute.xlu0 %1532
    %1535 = vset.pattern.permute.xlu0 4
    %1536 = vperm.xlu0 %1535, %v250
    %v1537 = vpop.permute.xlu0 %1536
    %1539 = vset.pattern.permute.xlu0 4
    %1540 = vperm.xlu0 %1539, %v252
    %v1541 = vpop.permute.xlu0 %1540
    %1543 = vset.pattern.permute.xlu0 4
    %1544 = vperm.xlu0 %1543, %v254
    %v1545 = vpop.permute.xlu0 %1544
    %1547 = vset.pattern.permute.xlu0 4
    %1548 = vperm.xlu0 %1547, %v256
    %v1549 = vpop.permute.xlu0 %1548
    %1551 = vset.pattern.permute.xlu0 4
    %1552 = vperm.xlu0 %1551, %v258
    %v1553 = vpop.permute.xlu0 %1552
    %1555 = vset.pattern.permute.xlu0 4
    %1556 = vperm.xlu0 %1555, %v260
    %v1557 = vpop.permute.xlu0 %1556
    %1559 = vset.pattern.permute.xlu0 4
    %1560 = vperm.xlu0 %1559, %v262
    %v1561 = vpop.permute.xlu0 %1560
    %1563 = vset.pattern.permute.xlu0 4
    %1564 = vperm.xlu0 %1563, %v264
    %v1565 = vpop.permute.xlu0 %1564
    %1567 = vset.pattern.permute.xlu0 4
    %1568 = vperm.xlu0 %1567, %v266
    %v1569 = vpop.permute.xlu0 %1568
    %1571 = vset.pattern.permute.xlu0 4
    %1572 = vperm.xlu0 %1571, %v268
    %v1573 = vpop.permute.xlu0 %1572
    %1575 = vset.pattern.permute.xlu0 4
    %1576 = vperm.xlu0 %1575, %v270
    %v1577 = vpop.permute.xlu0 %1576
    %1579 = vset.pattern.permute.xlu0 4
    %1580 = vperm.xlu0 %1579, %v272
    %v1581 = vpop.permute.xlu0 %1580
    %1583 = vset.pattern.permute.xlu0 4
    %1584 = vperm.xlu0 %1583, %v274
    %v1585 = vpop.permute.xlu0 %1584
    %1587 = vset.pattern.permute.xlu0 4
    %1588 = vperm.xlu0 %1587, %v276
    %v1589 = vpop.permute.xlu0 %1588
    %1591 = vset.pattern.permute.xlu0 4
    %1592 = vperm.xlu0 %1591, %v278
    %v1593 = vpop.permute.xlu0 %1592
    %1595 = vset.pattern.permute.xlu0 4
    %1596 = vperm.xlu0 %1595, %v280
    %v1597 = vpop.permute.xlu0 %1596
    %1599 = vset.pattern.permute.xlu0 4
    %1600 = vperm.xlu0 %1599, %v282
    %v1601 = vpop.permute.xlu0 %1600
    %1603 = vset.pattern.permute.xlu0 4
    %1604 = vperm.xlu0 %1603, %v284
    %v1605 = vpop.permute.xlu0 %1604
    %1607 = vset.pattern.permute.xlu0 4
    %1608 = vperm.xlu0 %1607, %v286
    %v1609 = vpop.permute.xlu0 %1608
    %1611 = vset.pattern.permute.xlu0 4
    %1612 = vperm.xlu0 %1611, %v288
    %v1613 = vpop.permute.xlu0 %1612
    %1615 = vset.pattern.permute.xlu0 4
    %1616 = vperm.xlu0 %1615, %v290
    %v1617 = vpop.permute.xlu0 %1616
    %1619 = vset.pattern.permute.xlu0 4
    %1620 = vperm.xlu0 %1619, %v292
    %v1621 = vpop.permute.xlu0 %1620
    %1623 = vset.pattern.permute.xlu0 4
    %1624 = vperm.xlu0 %1623, %v294
    %v1625 = vpop.permute.xlu0 %1624
    %1627 = vset.pattern.permute.xlu0 4
    %1628 = vperm.xlu0 %1627, %v296
    %v1629 = vpop.permute.xlu0 %1628
    %1631 = vset.pattern.permute.xlu0 4
    %1632 = vperm.xlu0 %1631, %v298
    %v1633 = vpop.permute.xlu0 %1632
    %1635 = vset.pattern.permute.xlu0 4
    %1636 = vperm.xlu0 %1635, %v300
    %v1637 = vpop.permute.xlu0 %1636
    %1639 = vset.pattern.permute.xlu0 4
    %1640 = vperm.xlu0 %1639, %v302
    %v1641 = vpop.permute.xlu0 %1640
    %1643 = vset.pattern.permute.xlu0 4
    %1644 = vperm.xlu0 %1643, %v304
    %v1645 = vpop.permute.xlu0 %1644
    %1647 = vset.pattern.permute.xlu0 4
    %1648 = vperm.xlu0 %1647, %v306
    %v1649 = vpop.permute.xlu0 %1648
    %v1651 = vmul.f32 %v1525, %v1491
    %v1652 = vmul.f32 %v1529, %v1492
    %v1653 = vmul.f32 %v1533, %v1493
    %v1654 = vmul.f32 %v1537, %v1494
    %v1655 = vmul.f32 %v1541, %v1495
    %v1656 = vmul.f32 %v1545, %v1496
    %v1657 = vmul.f32 %v1549, %v1497
    %v1658 = vmul.f32 %v1553, %v1498
    %v1659 = vmul.f32 %v1557, %v1499
    %v1660 = vmul.f32 %v1561, %v1500
    %v1661 = vmul.f32 %v1565, %v1501
    %v1662 = vmul.f32 %v1569, %v1502
    %v1663 = vmul.f32 %v1573, %v1503
    %v1664 = vmul.f32 %v1577, %v1504
    %v1665 = vmul.f32 %v1581, %v1505
    %v1666 = vmul.f32 %v1585, %v1506
    %v1667 = vmul.f32 %v1589, %v1507
    %v1668 = vmul.f32 %v1593, %v1508
    %v1669 = vmul.f32 %v1597, %v1509
    %v1670 = vmul.f32 %v1601, %v1510
    %v1671 = vmul.f32 %v1605, %v1511
    %v1672 = vmul.f32 %v1609, %v1512
    %v1673 = vmul.f32 %v1613, %v1513
    %v1674 = vmul.f32 %v1617, %v1514
    %v1675 = vmul.f32 %v1621, %v1515
    %v1676 = vmul.f32 %v1625, %v1516
    %v1677 = vmul.f32 %v1629, %v1517
    %v1678 = vmul.f32 %v1633, %v1518
    %v1679 = vmul.f32 %v1637, %v1519
    %v1680 = vmul.f32 %v1641, %v1520
    %v1681 = vmul.f32 %v1645, %v1521
    %v1682 = vmul.f32 %v1649, %v1522
    %v1683 = vadd.f32 %v1427, %v1651
    %v1684 = vadd.f32 %v1428, %v1652
    %v1685 = vadd.f32 %v1429, %v1653
    %v1686 = vadd.f32 %v1430, %v1654
    %v1687 = vadd.f32 %v1431, %v1655
    %v1688 = vadd.f32 %v1432, %v1656
    %v1689 = vadd.f32 %v1433, %v1657
    %v1690 = vadd.f32 %v1434, %v1658
    %v1691 = vadd.f32 %v1435, %v1659
    %v1692 = vadd.f32 %v1436, %v1660
    %v1693 = vadd.f32 %v1437, %v1661
    %v1694 = vadd.f32 %v1438, %v1662
    %v1695 = vadd.f32 %v1439, %v1663
    %v1696 = vadd.f32 %v1440, %v1664
    %v1697 = vadd.f32 %v1441, %v1665
    %v1698 = vadd.f32 %v1442, %v1666
    %v1699 = vadd.f32 %v1443, %v1667
    %v1700 = vadd.f32 %v1444, %v1668
    %v1701 = vadd.f32 %v1445, %v1669
    %v1702 = vadd.f32 %v1446, %v1670
    %v1703 = vadd.f32 %v1447, %v1671
    %v1704 = vadd.f32 %v1448, %v1672
    %v1705 = vadd.f32 %v1449, %v1673
    %v1706 = vadd.f32 %v1450, %v1674
    %v1707 = vadd.f32 %v1451, %v1675
    %v1708 = vadd.f32 %v1452, %v1676
    %v1709 = vadd.f32 %v1453, %v1677
    %v1710 = vadd.f32 %v1454, %v1678
    %v1711 = vadd.f32 %v1455, %v1679
    %v1712 = vadd.f32 %v1456, %v1680
    %v1713 = vadd.f32 %v1457, %v1681
    %v1714 = vadd.f32 %v1458, %v1682
    %v1715 = vmax.f32 %v1459, %v1651
    %v1716 = vmax.f32 %v1460, %v1652
    %v1717 = vmax.f32 %v1461, %v1653
    %v1718 = vmax.f32 %v1462, %v1654
    %v1719 = vmax.f32 %v1463, %v1655
    %v1720 = vmax.f32 %v1464, %v1656
    %v1721 = vmax.f32 %v1465, %v1657
    %v1722 = vmax.f32 %v1466, %v1658
    %v1723 = vmax.f32 %v1467, %v1659
    %v1724 = vmax.f32 %v1468, %v1660
    %v1725 = vmax.f32 %v1469, %v1661
    %v1726 = vmax.f32 %v1470, %v1662
    %v1727 = vmax.f32 %v1471, %v1663
    %v1728 = vmax.f32 %v1472, %v1664
    %v1729 = vmax.f32 %v1473, %v1665
    %v1730 = vmax.f32 %v1474, %v1666
    %v1731 = vmax.f32 %v1475, %v1667
    %v1732 = vmax.f32 %v1476, %v1668
    %v1733 = vmax.f32 %v1477, %v1669
    %v1734 = vmax.f32 %v1478, %v1670
    %v1735 = vmax.f32 %v1479, %v1671
    %v1736 = vmax.f32 %v1480, %v1672
    %v1737 = vmax.f32 %v1481, %v1673
    %v1738 = vmax.f32 %v1482, %v1674
    %v1739 = vmax.f32 %v1483, %v1675
    %v1740 = vmax.f32 %v1484, %v1676
    %v1741 = vmax.f32 %v1485, %v1677
    %v1742 = vmax.f32 %v1486, %v1678
    %v1743 = vmax.f32 %v1487, %v1679
    %v1744 = vmax.f32 %v1488, %v1680
    %v1745 = vmax.f32 %v1489, %v1681
    %v1746 = vmax.f32 %v1490, %v1682
    %1747 = vset.pattern.permute.xlu0 5
    %1748 = vperm.xlu0 %1747, %v244
    %v1749 = vpop.permute.xlu0 %1748
    %1751 = vset.pattern.permute.xlu0 5
    %1752 = vperm.xlu0 %1751, %v246
    %v1753 = vpop.permute.xlu0 %1752
    %1755 = vset.pattern.permute.xlu0 5
    %1756 = vperm.xlu0 %1755, %v248
    %v1757 = vpop.permute.xlu0 %1756
    %1759 = vset.pattern.permute.xlu0 5
    %1760 = vperm.xlu0 %1759, %v250
    %v1761 = vpop.permute.xlu0 %1760
    %1763 = vset.pattern.permute.xlu0 5
    %1764 = vperm.xlu0 %1763, %v252
    %v1765 = vpop.permute.xlu0 %1764
    %1767 = vset.pattern.permute.xlu0 5
    %1768 = vperm.xlu0 %1767, %v254
    %v1769 = vpop.permute.xlu0 %1768
    %1771 = vset.pattern.permute.xlu0 5
    %1772 = vperm.xlu0 %1771, %v256
    %v1773 = vpop.permute.xlu0 %1772
    %1775 = vset.pattern.permute.xlu0 5
    %1776 = vperm.xlu0 %1775, %v258
    %v1777 = vpop.permute.xlu0 %1776
    %1779 = vset.pattern.permute.xlu0 5
    %1780 = vperm.xlu0 %1779, %v260
    %v1781 = vpop.permute.xlu0 %1780
    %1783 = vset.pattern.permute.xlu0 5
    %1784 = vperm.xlu0 %1783, %v262
    %v1785 = vpop.permute.xlu0 %1784
    %1787 = vset.pattern.permute.xlu0 5
    %1788 = vperm.xlu0 %1787, %v264
    %v1789 = vpop.permute.xlu0 %1788
    %1791 = vset.pattern.permute.xlu0 5
    %1792 = vperm.xlu0 %1791, %v266
    %v1793 = vpop.permute.xlu0 %1792
    %1795 = vset.pattern.permute.xlu0 5
    %1796 = vperm.xlu0 %1795, %v268
    %v1797 = vpop.permute.xlu0 %1796
    %1799 = vset.pattern.permute.xlu0 5
    %1800 = vperm.xlu0 %1799, %v270
    %v1801 = vpop.permute.xlu0 %1800
    %1803 = vset.pattern.permute.xlu0 5
    %1804 = vperm.xlu0 %1803, %v272
    %v1805 = vpop.permute.xlu0 %1804
    %1807 = vset.pattern.permute.xlu0 5
    %1808 = vperm.xlu0 %1807, %v274
    %v1809 = vpop.permute.xlu0 %1808
    %1811 = vset.pattern.permute.xlu0 5
    %1812 = vperm.xlu0 %1811, %v276
    %v1813 = vpop.permute.xlu0 %1812
    %1815 = vset.pattern.permute.xlu0 5
    %1816 = vperm.xlu0 %1815, %v278
    %v1817 = vpop.permute.xlu0 %1816
    %1819 = vset.pattern.permute.xlu0 5
    %1820 = vperm.xlu0 %1819, %v280
    %v1821 = vpop.permute.xlu0 %1820
    %1823 = vset.pattern.permute.xlu0 5
    %1824 = vperm.xlu0 %1823, %v282
    %v1825 = vpop.permute.xlu0 %1824
    %1827 = vset.pattern.permute.xlu0 5
    %1828 = vperm.xlu0 %1827, %v284
    %v1829 = vpop.permute.xlu0 %1828
    %1831 = vset.pattern.permute.xlu0 5
    %1832 = vperm.xlu0 %1831, %v286
    %v1833 = vpop.permute.xlu0 %1832
    %1835 = vset.pattern.permute.xlu0 5
    %1836 = vperm.xlu0 %1835, %v288
    %v1837 = vpop.permute.xlu0 %1836
    %1839 = vset.pattern.permute.xlu0 5
    %1840 = vperm.xlu0 %1839, %v290
    %v1841 = vpop.permute.xlu0 %1840
    %1843 = vset.pattern.permute.xlu0 5
    %1844 = vperm.xlu0 %1843, %v292
    %v1845 = vpop.permute.xlu0 %1844
    %1847 = vset.pattern.permute.xlu0 5
    %1848 = vperm.xlu0 %1847, %v294
    %v1849 = vpop.permute.xlu0 %1848
    %1851 = vset.pattern.permute.xlu0 5
    %1852 = vperm.xlu0 %1851, %v296
    %v1853 = vpop.permute.xlu0 %1852
    %1855 = vset.pattern.permute.xlu0 5
    %1856 = vperm.xlu0 %1855, %v298
    %v1857 = vpop.permute.xlu0 %1856
    %1859 = vset.pattern.permute.xlu0 5
    %1860 = vperm.xlu0 %1859, %v300
    %v1861 = vpop.permute.xlu0 %1860
    %1863 = vset.pattern.permute.xlu0 5
    %1864 = vperm.xlu0 %1863, %v302
    %v1865 = vpop.permute.xlu0 %1864
    %1867 = vset.pattern.permute.xlu0 5
    %1868 = vperm.xlu0 %1867, %v304
    %v1869 = vpop.permute.xlu0 %1868
    %1871 = vset.pattern.permute.xlu0 5
    %1872 = vperm.xlu0 %1871, %v306
    %v1873 = vpop.permute.xlu0 %1872
    %v1875 = vmul.f32 %v1749, %v1491
    %v1876 = vmul.f32 %v1753, %v1492
    %v1877 = vmul.f32 %v1757, %v1493
    %v1878 = vmul.f32 %v1761, %v1494
    %v1879 = vmul.f32 %v1765, %v1495
    %v1880 = vmul.f32 %v1769, %v1496
    %v1881 = vmul.f32 %v1773, %v1497
    %v1882 = vmul.f32 %v1777, %v1498
    %v1883 = vmul.f32 %v1781, %v1499
    %v1884 = vmul.f32 %v1785, %v1500
    %v1885 = vmul.f32 %v1789, %v1501
    %v1886 = vmul.f32 %v1793, %v1502
    %v1887 = vmul.f32 %v1797, %v1503
    %v1888 = vmul.f32 %v1801, %v1504
    %v1889 = vmul.f32 %v1805, %v1505
    %v1890 = vmul.f32 %v1809, %v1506
    %v1891 = vmul.f32 %v1813, %v1507
    %v1892 = vmul.f32 %v1817, %v1508
    %v1893 = vmul.f32 %v1821, %v1509
    %v1894 = vmul.f32 %v1825, %v1510
    %v1895 = vmul.f32 %v1829, %v1511
    %v1896 = vmul.f32 %v1833, %v1512
    %v1897 = vmul.f32 %v1837, %v1513
    %v1898 = vmul.f32 %v1841, %v1514
    %v1899 = vmul.f32 %v1845, %v1515
    %v1900 = vmul.f32 %v1849, %v1516
    %v1901 = vmul.f32 %v1853, %v1517
    %v1902 = vmul.f32 %v1857, %v1518
    %v1903 = vmul.f32 %v1861, %v1519
    %v1904 = vmul.f32 %v1865, %v1520
    %v1905 = vmul.f32 %v1869, %v1521
    %v1906 = vmul.f32 %v1873, %v1522
    %1939 = vrot.lane.b32.xlu0 %v1875, 64
    %v1940 = vpop.permute.xlu0 %1939
    %1941 = vrot.lane.b32.xlu0 %v1876, 64
    %v1942 = vpop.permute.xlu0 %1941
    %1943 = vrot.lane.b32.xlu0 %v1877, 64
    %v1944 = vpop.permute.xlu0 %1943
    %1945 = vrot.lane.b32.xlu0 %v1878, 64
    %v1946 = vpop.permute.xlu0 %1945
    %1947 = vrot.lane.b32.xlu0 %v1879, 64
    %v1948 = vpop.permute.xlu0 %1947
    %1949 = vrot.lane.b32.xlu0 %v1880, 64
    %v1950 = vpop.permute.xlu0 %1949
    %1951 = vrot.lane.b32.xlu0 %v1881, 64
    %v1952 = vpop.permute.xlu0 %1951
    %1953 = vrot.lane.b32.xlu0 %v1882, 64
    %v1954 = vpop.permute.xlu0 %1953
    %1955 = vrot.lane.b32.xlu0 %v1883, 64
    %v1956 = vpop.permute.xlu0 %1955
    %1957 = vrot.lane.b32.xlu0 %v1884, 64
    %v1958 = vpop.permute.xlu0 %1957
    %1959 = vrot.lane.b32.xlu0 %v1885, 64
    %v1960 = vpop.permute.xlu0 %1959
    %1961 = vrot.lane.b32.xlu0 %v1886, 64
    %v1962 = vpop.permute.xlu0 %1961
    %1963 = vrot.lane.b32.xlu0 %v1887, 64
    %v1964 = vpop.permute.xlu0 %1963
    %1965 = vrot.lane.b32.xlu0 %v1888, 64
    %v1966 = vpop.permute.xlu0 %1965
    %1967 = vrot.lane.b32.xlu0 %v1889, 64
    %v1968 = vpop.permute.xlu0 %1967
    %1969 = vrot.lane.b32.xlu0 %v1890, 64
    %v1970 = vpop.permute.xlu0 %1969
    %1971 = vrot.lane.b32.xlu0 %v1891, 64
    %v1972 = vpop.permute.xlu0 %1971
    %1973 = vrot.lane.b32.xlu0 %v1892, 64
    %v1974 = vpop.permute.xlu0 %1973
    %1975 = vrot.lane.b32.xlu0 %v1893, 64
    %v1976 = vpop.permute.xlu0 %1975
    %1977 = vrot.lane.b32.xlu0 %v1894, 64
    %v1978 = vpop.permute.xlu0 %1977
    %1979 = vrot.lane.b32.xlu0 %v1895, 64
    %v1980 = vpop.permute.xlu0 %1979
    %1981 = vrot.lane.b32.xlu0 %v1896, 64
    %v1982 = vpop.permute.xlu0 %1981
    %1983 = vrot.lane.b32.xlu0 %v1897, 64
    %v1984 = vpop.permute.xlu0 %1983
    %1985 = vrot.lane.b32.xlu0 %v1898, 64
    %v1986 = vpop.permute.xlu0 %1985
    %1987 = vrot.lane.b32.xlu0 %v1899, 64
    %v1988 = vpop.permute.xlu0 %1987
    %1989 = vrot.lane.b32.xlu0 %v1900, 64
    %v1990 = vpop.permute.xlu0 %1989
    %1991 = vrot.lane.b32.xlu0 %v1901, 64
    %v1992 = vpop.permute.xlu0 %1991
    %1993 = vrot.lane.b32.xlu0 %v1902, 64
    %v1994 = vpop.permute.xlu0 %1993
    %1995 = vrot.lane.b32.xlu0 %v1903, 64
    %v1996 = vpop.permute.xlu0 %1995
    %1997 = vrot.lane.b32.xlu0 %v1904, 64
    %v1998 = vpop.permute.xlu0 %1997
    %1999 = vrot.lane.b32.xlu0 %v1905, 64
    %v2000 = vpop.permute.xlu0 %1999
    %2001 = vrot.lane.b32.xlu0 %v1906, 64
    %v2002 = vpop.permute.xlu0 %2001
    %v2035 = vadd.f32 %v1683, %v1940
    %v2036 = vadd.f32 %v1684, %v1942
    %v2037 = vadd.f32 %v1685, %v1944
    %v2038 = vadd.f32 %v1686, %v1946
    %v2039 = vadd.f32 %v1687, %v1948
    %v2040 = vadd.f32 %v1688, %v1950
    %v2041 = vadd.f32 %v1689, %v1952
    %v2042 = vadd.f32 %v1690, %v1954
    %v2043 = vadd.f32 %v1691, %v1956
    %v2044 = vadd.f32 %v1692, %v1958
    %v2045 = vadd.f32 %v1693, %v1960
    %v2046 = vadd.f32 %v1694, %v1962
    %v2047 = vadd.f32 %v1695, %v1964
    %v2048 = vadd.f32 %v1696, %v1966
    %v2049 = vadd.f32 %v1697, %v1968
    %v2050 = vadd.f32 %v1698, %v1970
    %v2051 = vadd.f32 %v1699, %v1972
    %v2052 = vadd.f32 %v1700, %v1974
    %v2053 = vadd.f32 %v1701, %v1976
    %v2054 = vadd.f32 %v1702, %v1978
    %v2055 = vadd.f32 %v1703, %v1980
    %v2056 = vadd.f32 %v1704, %v1982
    %v2057 = vadd.f32 %v1705, %v1984
    %v2058 = vadd.f32 %v1706, %v1986
    %v2059 = vadd.f32 %v1707, %v1988
    %v2060 = vadd.f32 %v1708, %v1990
    %v2061 = vadd.f32 %v1709, %v1992
    %v2062 = vadd.f32 %v1710, %v1994
    %v2063 = vadd.f32 %v1711, %v1996
    %v2064 = vadd.f32 %v1712, %v1998
    %v2065 = vadd.f32 %v1713, %v2000
    %v2066 = vadd.f32 %v1714, %v2002
    %v2067 = vmax.f32 %v1715, %v1940
    %v2068 = vmax.f32 %v1716, %v1942
    %v2069 = vmax.f32 %v1717, %v1944
    %v2070 = vmax.f32 %v1718, %v1946
    %v2071 = vmax.f32 %v1719, %v1948
    %v2072 = vmax.f32 %v1720, %v1950
    %v2073 = vmax.f32 %v1721, %v1952
    %v2074 = vmax.f32 %v1722, %v1954
    %v2075 = vmax.f32 %v1723, %v1956
    %v2076 = vmax.f32 %v1724, %v1958
    %v2077 = vmax.f32 %v1725, %v1960
    %v2078 = vmax.f32 %v1726, %v1962
    %v2079 = vmax.f32 %v1727, %v1964
    %v2080 = vmax.f32 %v1728, %v1966
    %v2081 = vmax.f32 %v1729, %v1968
    %v2082 = vmax.f32 %v1730, %v1970
    %v2083 = vmax.f32 %v1731, %v1972
    %v2084 = vmax.f32 %v1732, %v1974
    %v2085 = vmax.f32 %v1733, %v1976
    %v2086 = vmax.f32 %v1734, %v1978
    %v2087 = vmax.f32 %v1735, %v1980
    %v2088 = vmax.f32 %v1736, %v1982
    %v2089 = vmax.f32 %v1737, %v1984
    %v2090 = vmax.f32 %v1738, %v1986
    %v2091 = vmax.f32 %v1739, %v1988
    %v2092 = vmax.f32 %v1740, %v1990
    %v2093 = vmax.f32 %v1741, %v1992
    %v2094 = vmax.f32 %v1742, %v1994
    %v2095 = vmax.f32 %v1743, %v1996
    %v2096 = vmax.f32 %v1744, %v1998
    %v2097 = vmax.f32 %v1745, %v2000
    %v2098 = vmax.f32 %v1746, %v2002
    %v2099 = vld [vmem:[%s1 + $0x18] sm:$0xff]
    %v2100 = vld [vmem:[%s1 + $0x38] sm:$0xff]
    %v2101 = vld [vmem:[%s1 + $0x58] sm:$0xff]
    %v2102 = vld [vmem:[%s1 + $0x78] sm:$0xff]
    %v2103 = vld [vmem:[%s1 + $0x98] sm:$0xff]
    %v2104 = vld [vmem:[%s1 + $0xb8] sm:$0xff]
    %v2105 = vld [vmem:[%s1 + $0xd8] sm:$0xff]
    %v2106 = vld [vmem:[%s1 + $0xf8] sm:$0xff]
    %v2107 = vld [vmem:[%s1 + $0x118] sm:$0xff]
    %v2108 = vld [vmem:[%s1 + $0x138] sm:$0xff]
    %v2109 = vld [vmem:[%s1 + $0x158] sm:$0xff]
    %v2110 = vld [vmem:[%s1 + $0x178] sm:$0xff]
    %v2111 = vld [vmem:[%s1 + $0x198] sm:$0xff]
    %v2112 = vld [vmem:[%s1 + $0x1b8] sm:$0xff]
    %v2113 = vld [vmem:[%s1 + $0x1d8] sm:$0xff]
    %v2114 = vld [vmem:[%s1 + $0x1f8] sm:$0xff]
    %v2115 = vld [vmem:[%s1 + $0x218] sm:$0xff]
    %v2116 = vld [vmem:[%s1 + $0x238] sm:$0xff]
    %v2117 = vld [vmem:[%s1 + $0x258] sm:$0xff]
    %v2118 = vld [vmem:[%s1 + $0x278] sm:$0xff]
    %v2119 = vld [vmem:[%s1 + $0x298] sm:$0xff]
    %v2120 = vld [vmem:[%s1 + $0x2b8] sm:$0xff]
    %v2121 = vld [vmem:[%s1 + $0x2d8] sm:$0xff]
    %v2122 = vld [vmem:[%s1 + $0x2f8] sm:$0xff]
    %v2123 = vld [vmem:[%s1 + $0x318] sm:$0xff]
    %v2124 = vld [vmem:[%s1 + $0x338] sm:$0xff]
    %v2125 = vld [vmem:[%s1 + $0x358] sm:$0xff]
    %v2126 = vld [vmem:[%s1 + $0x378] sm:$0xff]
    %v2127 = vld [vmem:[%s1 + $0x398] sm:$0xff]
    %v2128 = vld [vmem:[%s1 + $0x3b8] sm:$0xff]
    %v2129 = vld [vmem:[%s1 + $0x3d8] sm:$0xff]
    %v2130 = vld [vmem:[%s1 + $0x3f8] sm:$0xff]
    %2131 = vset.pattern.permute.xlu0 6
    %2132 = vperm.xlu0 %2131, %v244
    %v2133 = vpop.permute.xlu0 %2132
    %2135 = vset.pattern.permute.xlu0 6
    %2136 = vperm.xlu0 %2135, %v246
    %v2137 = vpop.permute.xlu0 %2136
    %2139 = vset.pattern.permute.xlu0 6
    %2140 = vperm.xlu0 %2139, %v248
    %v2141 = vpop.permute.xlu0 %2140
    %2143 = vset.pattern.permute.xlu0 6
    %2144 = vperm.xlu0 %2143, %v250
    %v2145 = vpop.permute.xlu0 %2144
    %2147 = vset.pattern.permute.xlu0 6
    %2148 = vperm.xlu0 %2147, %v252
    %v2149 = vpop.permute.xlu0 %2148
    %2151 = vset.pattern.permute.xlu0 6
    %2152 = vperm.xlu0 %2151, %v254
    %v2153 = vpop.permute.xlu0 %2152
    %2155 = vset.pattern.permute.xlu0 6
    %2156 = vperm.xlu0 %2155, %v256
    %v2157 = vpop.permute.xlu0 %2156
    %2159 = vset.pattern.permute.xlu0 6
    %2160 = vperm.xlu0 %2159, %v258
    %v2161 = vpop.permute.xlu0 %2160
    %2163 = vset.pattern.permute.xlu0 6
    %2164 = vperm.xlu0 %2163, %v260
    %v2165 = vpop.permute.xlu0 %2164
    %2167 = vset.pattern.permute.xlu0 6
    %2168 = vperm.xlu0 %2167, %v262
    %v2169 = vpop.permute.xlu0 %2168
    %2171 = vset.pattern.permute.xlu0 6
    %2172 = vperm.xlu0 %2171, %v264
    %v2173 = vpop.permute.xlu0 %2172
    %2175 = vset.pattern.permute.xlu0 6
    %2176 = vperm.xlu0 %2175, %v266
    %v2177 = vpop.permute.xlu0 %2176
    %2179 = vset.pattern.permute.xlu0 6
    %2180 = vperm.xlu0 %2179, %v268
    %v2181 = vpop.permute.xlu0 %2180
    %2183 = vset.pattern.permute.xlu0 6
    %2184 = vperm.xlu0 %2183, %v270
    %v2185 = vpop.permute.xlu0 %2184
    %2187 = vset.pattern.permute.xlu0 6
    %2188 = vperm.xlu0 %2187, %v272
    %v2189 = vpop.permute.xlu0 %2188
    %2191 = vset.pattern.permute.xlu0 6
    %2192 = vperm.xlu0 %2191, %v274
    %v2193 = vpop.permute.xlu0 %2192
    %2195 = vset.pattern.permute.xlu0 6
    %2196 = vperm.xlu0 %2195, %v276
    %v2197 = vpop.permute.xlu0 %2196
    %2199 = vset.pattern.permute.xlu0 6
    %2200 = vperm.xlu0 %2199, %v278
    %v2201 = vpop.permute.xlu0 %2200
    %2203 = vset.pattern.permute.xlu0 6
    %2204 = vperm.xlu0 %2203, %v280
    %v2205 = vpop.permute.xlu0 %2204
    %2207 = vset.pattern.permute.xlu0 6
    %2208 = vperm.xlu0 %2207, %v282
    %v2209 = vpop.permute.xlu0 %2208
    %2211 = vset.pattern.permute.xlu0 6
    %2212 = vperm.xlu0 %2211, %v284
    %v2213 = vpop.permute.xlu0 %2212
    %2215 = vset.pattern.permute.xlu0 6
    %2216 = vperm.xlu0 %2215, %v286
    %v2217 = vpop.permute.xlu0 %2216
    %2219 = vset.pattern.permute.xlu0 6
    %2220 = vperm.xlu0 %2219, %v288
    %v2221 = vpop.permute.xlu0 %2220
    %2223 = vset.pattern.permute.xlu0 6
    %2224 = vperm.xlu0 %2223, %v290
    %v2225 = vpop.permute.xlu0 %2224
    %2227 = vset.pattern.permute.xlu0 6
    %2228 = vperm.xlu0 %2227, %v292
    %v2229 = vpop.permute.xlu0 %2228
    %2231 = vset.pattern.permute.xlu0 6
    %2232 = vperm.xlu0 %2231, %v294
    %v2233 = vpop.permute.xlu0 %2232
    %2235 = vset.pattern.permute.xlu0 6
    %2236 = vperm.xlu0 %2235, %v296
    %v2237 = vpop.permute.xlu0 %2236
    %2239 = vset.pattern.permute.xlu0 6
    %2240 = vperm.xlu0 %2239, %v298
    %v2241 = vpop.permute.xlu0 %2240
    %2243 = vset.pattern.permute.xlu0 6
    %2244 = vperm.xlu0 %2243, %v300
    %v2245 = vpop.permute.xlu0 %2244
    %2247 = vset.pattern.permute.xlu0 6
    %2248 = vperm.xlu0 %2247, %v302
    %v2249 = vpop.permute.xlu0 %2248
    %2251 = vset.pattern.permute.xlu0 6
    %2252 = vperm.xlu0 %2251, %v304
    %v2253 = vpop.permute.xlu0 %2252
    %2255 = vset.pattern.permute.xlu0 6
    %2256 = vperm.xlu0 %2255, %v306
    %v2257 = vpop.permute.xlu0 %2256
    %v2259 = vmul.f32 %v2133, %v2099
    %v2260 = vmul.f32 %v2137, %v2100
    %v2261 = vmul.f32 %v2141, %v2101
    %v2262 = vmul.f32 %v2145, %v2102
    %v2263 = vmul.f32 %v2149, %v2103
    %v2264 = vmul.f32 %v2153, %v2104
    %v2265 = vmul.f32 %v2157, %v2105
    %v2266 = vmul.f32 %v2161, %v2106
    %v2267 = vmul.f32 %v2165, %v2107
    %v2268 = vmul.f32 %v2169, %v2108
    %v2269 = vmul.f32 %v2173, %v2109
    %v2270 = vmul.f32 %v2177, %v2110
    %v2271 = vmul.f32 %v2181, %v2111
    %v2272 = vmul.f32 %v2185, %v2112
    %v2273 = vmul.f32 %v2189, %v2113
    %v2274 = vmul.f32 %v2193, %v2114
    %v2275 = vmul.f32 %v2197, %v2115
    %v2276 = vmul.f32 %v2201, %v2116
    %v2277 = vmul.f32 %v2205, %v2117
    %v2278 = vmul.f32 %v2209, %v2118
    %v2279 = vmul.f32 %v2213, %v2119
    %v2280 = vmul.f32 %v2217, %v2120
    %v2281 = vmul.f32 %v2221, %v2121
    %v2282 = vmul.f32 %v2225, %v2122
    %v2283 = vmul.f32 %v2229, %v2123
    %v2284 = vmul.f32 %v2233, %v2124
    %v2285 = vmul.f32 %v2237, %v2125
    %v2286 = vmul.f32 %v2241, %v2126
    %v2287 = vmul.f32 %v2245, %v2127
    %v2288 = vmul.f32 %v2249, %v2128
    %v2289 = vmul.f32 %v2253, %v2129
    %v2290 = vmul.f32 %v2257, %v2130
    %v2291 = vadd.f32 %v2035, %v2259
    %v2292 = vadd.f32 %v2036, %v2260
    %v2293 = vadd.f32 %v2037, %v2261
    %v2294 = vadd.f32 %v2038, %v2262
    %v2295 = vadd.f32 %v2039, %v2263
    %v2296 = vadd.f32 %v2040, %v2264
    %v2297 = vadd.f32 %v2041, %v2265
    %v2298 = vadd.f32 %v2042, %v2266
    %v2299 = vadd.f32 %v2043, %v2267
    %v2300 = vadd.f32 %v2044, %v2268
    %v2301 = vadd.f32 %v2045, %v2269
    %v2302 = vadd.f32 %v2046, %v2270
    %v2303 = vadd.f32 %v2047, %v2271
    %v2304 = vadd.f32 %v2048, %v2272
    %v2305 = vadd.f32 %v2049, %v2273
    %v2306 = vadd.f32 %v2050, %v2274
    %v2307 = vadd.f32 %v2051, %v2275
    %v2308 = vadd.f32 %v2052, %v2276
    %v2309 = vadd.f32 %v2053, %v2277
    %v2310 = vadd.f32 %v2054, %v2278
    %v2311 = vadd.f32 %v2055, %v2279
    %v2312 = vadd.f32 %v2056, %v2280
    %v2313 = vadd.f32 %v2057, %v2281
    %v2314 = vadd.f32 %v2058, %v2282
    %v2315 = vadd.f32 %v2059, %v2283
    %v2316 = vadd.f32 %v2060, %v2284
    %v2317 = vadd.f32 %v2061, %v2285
    %v2318 = vadd.f32 %v2062, %v2286
    %v2319 = vadd.f32 %v2063, %v2287
    %v2320 = vadd.f32 %v2064, %v2288
    %v2321 = vadd.f32 %v2065, %v2289
    %v2322 = vadd.f32 %v2066, %v2290
    %v2323 = vmax.f32 %v2067, %v2259
    %v2324 = vmax.f32 %v2068, %v2260
    %v2325 = vmax.f32 %v2069, %v2261
    %v2326 = vmax.f32 %v2070, %v2262
    %v2327 = vmax.f32 %v2071, %v2263
    %v2328 = vmax.f32 %v2072, %v2264
    %v2329 = vmax.f32 %v2073, %v2265
    %v2330 = vmax.f32 %v2074, %v2266
    %v2331 = vmax.f32 %v2075, %v2267
    %v2332 = vmax.f32 %v2076, %v2268
    %v2333 = vmax.f32 %v2077, %v2269
    %v2334 = vmax.f32 %v2078, %v2270
    %v2335 = vmax.f32 %v2079, %v2271
    %v2336 = vmax.f32 %v2080, %v2272
    %v2337 = vmax.f32 %v2081, %v2273
    %v2338 = vmax.f32 %v2082, %v2274
    %v2339 = vmax.f32 %v2083, %v2275
    %v2340 = vmax.f32 %v2084, %v2276
    %v2341 = vmax.f32 %v2085, %v2277
    %v2342 = vmax.f32 %v2086, %v2278
    %v2343 = vmax.f32 %v2087, %v2279
    %v2344 = vmax.f32 %v2088, %v2280
    %v2345 = vmax.f32 %v2089, %v2281
    %v2346 = vmax.f32 %v2090, %v2282
    %v2347 = vmax.f32 %v2091, %v2283
    %v2348 = vmax.f32 %v2092, %v2284
    %v2349 = vmax.f32 %v2093, %v2285
    %v2350 = vmax.f32 %v2094, %v2286
    %v2351 = vmax.f32 %v2095, %v2287
    %v2352 = vmax.f32 %v2096, %v2288
    %v2353 = vmax.f32 %v2097, %v2289
    %v2354 = vmax.f32 %v2098, %v2290
    %2355 = vset.pattern.permute.xlu0 7
    %2356 = vperm.xlu0 %2355, %v244
    %v2357 = vpop.permute.xlu0 %2356
    %2359 = vset.pattern.permute.xlu0 7
    %2360 = vperm.xlu0 %2359, %v246
    %v2361 = vpop.permute.xlu0 %2360
    %2363 = vset.pattern.permute.xlu0 7
    %2364 = vperm.xlu0 %2363, %v248
    %v2365 = vpop.permute.xlu0 %2364
    %2367 = vset.pattern.permute.xlu0 7
    %2368 = vperm.xlu0 %2367, %v250
    %v2369 = vpop.permute.xlu0 %2368
    %2371 = vset.pattern.permute.xlu0 7
    %2372 = vperm.xlu0 %2371, %v252
    %v2373 = vpop.permute.xlu0 %2372
    %2375 = vset.pattern.permute.xlu0 7
    %2376 = vperm.xlu0 %2375, %v254
    %v2377 = vpop.permute.xlu0 %2376
    %2379 = vset.pattern.permute.xlu0 7
    %2380 = vperm.xlu0 %2379, %v256
    %v2381 = vpop.permute.xlu0 %2380
    %2383 = vset.pattern.permute.xlu0 7
    %2384 = vperm.xlu0 %2383, %v258
    %v2385 = vpop.permute.xlu0 %2384
    %2387 = vset.pattern.permute.xlu0 7
    %2388 = vperm.xlu0 %2387, %v260
    %v2389 = vpop.permute.xlu0 %2388
    %2391 = vset.pattern.permute.xlu0 7
    %2392 = vperm.xlu0 %2391, %v262
    %v2393 = vpop.permute.xlu0 %2392
    %2395 = vset.pattern.permute.xlu0 7
    %2396 = vperm.xlu0 %2395, %v264
    %v2397 = vpop.permute.xlu0 %2396
    %2399 = vset.pattern.permute.xlu0 7
    %2400 = vperm.xlu0 %2399, %v266
    %v2401 = vpop.permute.xlu0 %2400
    %2403 = vset.pattern.permute.xlu0 7
    %2404 = vperm.xlu0 %2403, %v268
    %v2405 = vpop.permute.xlu0 %2404
    %2407 = vset.pattern.permute.xlu0 7
    %2408 = vperm.xlu0 %2407, %v270
    %v2409 = vpop.permute.xlu0 %2408
    %2411 = vset.pattern.permute.xlu0 7
    %2412 = vperm.xlu0 %2411, %v272
    %v2413 = vpop.permute.xlu0 %2412
    %2415 = vset.pattern.permute.xlu0 7
    %2416 = vperm.xlu0 %2415, %v274
    %v2417 = vpop.permute.xlu0 %2416
    %2419 = vset.pattern.permute.xlu0 7
    %2420 = vperm.xlu0 %2419, %v276
    %v2421 = vpop.permute.xlu0 %2420
    %2423 = vset.pattern.permute.xlu0 7
    %2424 = vperm.xlu0 %2423, %v278
    %v2425 = vpop.permute.xlu0 %2424
    %2427 = vset.pattern.permute.xlu0 7
    %2428 = vperm.xlu0 %2427, %v280
    %v2429 = vpop.permute.xlu0 %2428
    %2431 = vset.pattern.permute.xlu0 7
    %2432 = vperm.xlu0 %2431, %v282
    %v2433 = vpop.permute.xlu0 %2432
    %2435 = vset.pattern.permute.xlu0 7
    %2436 = vperm.xlu0 %2435, %v284
    %v2437 = vpop.permute.xlu0 %2436
    %2439 = vset.pattern.permute.xlu0 7
    %2440 = vperm.xlu0 %2439, %v286
    %v2441 = vpop.permute.xlu0 %2440
    %2443 = vset.pattern.permute.xlu0 7
    %2444 = vperm.xlu0 %2443, %v288
    %v2445 = vpop.permute.xlu0 %2444
    %2447 = vset.pattern.permute.xlu0 7
    %2448 = vperm.xlu0 %2447, %v290
    %v2449 = vpop.permute.xlu0 %2448
    %2451 = vset.pattern.permute.xlu0 7
    %2452 = vperm.xlu0 %2451, %v292
    %v2453 = vpop.permute.xlu0 %2452
    %2455 = vset.pattern.permute.xlu0 7
    %2456 = vperm.xlu0 %2455, %v294
    %v2457 = vpop.permute.xlu0 %2456
    %2459 = vset.pattern.permute.xlu0 7
    %2460 = vperm.xlu0 %2459, %v296
    %v2461 = vpop.permute.xlu0 %2460
    %2463 = vset.pattern.permute.xlu0 7
    %2464 = vperm.xlu0 %2463, %v298
    %v2465 = vpop.permute.xlu0 %2464
    %2467 = vset.pattern.permute.xlu0 7
    %2468 = vperm.xlu0 %2467, %v300
    %v2469 = vpop.permute.xlu0 %2468
    %2471 = vset.pattern.permute.xlu0 7
    %2472 = vperm.xlu0 %2471, %v302
    %v2473 = vpop.permute.xlu0 %2472
    %2475 = vset.pattern.permute.xlu0 7
    %2476 = vperm.xlu0 %2475, %v304
    %v2477 = vpop.permute.xlu0 %2476
    %2479 = vset.pattern.permute.xlu0 7
    %2480 = vperm.xlu0 %2479, %v306
    %v2481 = vpop.permute.xlu0 %2480
    %v2483 = vmul.f32 %v2357, %v2099
    %v2484 = vmul.f32 %v2361, %v2100
    %v2485 = vmul.f32 %v2365, %v2101
    %v2486 = vmul.f32 %v2369, %v2102
    %v2487 = vmul.f32 %v2373, %v2103
    %v2488 = vmul.f32 %v2377, %v2104
    %v2489 = vmul.f32 %v2381, %v2105
    %v2490 = vmul.f32 %v2385, %v2106
    %v2491 = vmul.f32 %v2389, %v2107
    %v2492 = vmul.f32 %v2393, %v2108
    %v2493 = vmul.f32 %v2397, %v2109
    %v2494 = vmul.f32 %v2401, %v2110
    %v2495 = vmul.f32 %v2405, %v2111
    %v2496 = vmul.f32 %v2409, %v2112
    %v2497 = vmul.f32 %v2413, %v2113
    %v2498 = vmul.f32 %v2417, %v2114
    %v2499 = vmul.f32 %v2421, %v2115
    %v2500 = vmul.f32 %v2425, %v2116
    %v2501 = vmul.f32 %v2429, %v2117
    %v2502 = vmul.f32 %v2433, %v2118
    %v2503 = vmul.f32 %v2437, %v2119
    %v2504 = vmul.f32 %v2441, %v2120
    %v2505 = vmul.f32 %v2445, %v2121
    %v2506 = vmul.f32 %v2449, %v2122
    %v2507 = vmul.f32 %v2453, %v2123
    %v2508 = vmul.f32 %v2457, %v2124
    %v2509 = vmul.f32 %v2461, %v2125
    %v2510 = vmul.f32 %v2465, %v2126
    %v2511 = vmul.f32 %v2469, %v2127
    %v2512 = vmul.f32 %v2473, %v2128
    %v2513 = vmul.f32 %v2477, %v2129
    %v2514 = vmul.f32 %v2481, %v2130
    %2547 = vrot.lane.b32.xlu0 %v2483, 64
    %v2548 = vpop.permute.xlu0 %2547
    %2549 = vrot.lane.b32.xlu0 %v2484, 64
    %v2550 = vpop.permute.xlu0 %2549
    %2551 = vrot.lane.b32.xlu0 %v2485, 64
    %v2552 = vpop.permute.xlu0 %2551
    %2553 = vrot.lane.b32.xlu0 %v2486, 64
    %v2554 = vpop.permute.xlu0 %2553
    %2555 = vrot.lane.b32.xlu0 %v2487, 64
    %v2556 = vpop.permute.xlu0 %2555
    %2557 = vrot.lane.b32.xlu0 %v2488, 64
    %v2558 = vpop.permute.xlu0 %2557
    %2559 = vrot.lane.b32.xlu0 %v2489, 64
    %v2560 = vpop.permute.xlu0 %2559
    %2561 = vrot.lane.b32.xlu0 %v2490, 64
    %v2562 = vpop.permute.xlu0 %2561
    %2563 = vrot.lane.b32.xlu0 %v2491, 64
    %v2564 = vpop.permute.xlu0 %2563
    %2565 = vrot.lane.b32.xlu0 %v2492, 64
    %v2566 = vpop.permute.xlu0 %2565
    %2567 = vrot.lane.b32.xlu0 %v2493, 64
    %v2568 = vpop.permute.xlu0 %2567
    %2569 = vrot.lane.b32.xlu0 %v2494, 64
    %v2570 = vpop.permute.xlu0 %2569
    %2571 = vrot.lane.b32.xlu0 %v2495, 64
    %v2572 = vpop.permute.xlu0 %2571
    %2573 = vrot.lane.b32.xlu0 %v2496, 64
    %v2574 = vpop.permute.xlu0 %2573
    %2575 = vrot.lane.b32.xlu0 %v2497, 64
    %v2576 = vpop.permute.xlu0 %2575
    %2577 = vrot.lane.b32.xlu0 %v2498, 64
    %v2578 = vpop.permute.xlu0 %2577
    %2579 = vrot.lane.b32.xlu0 %v2499, 64
    %v2580 = vpop.permute.xlu0 %2579
    %2581 = vrot.lane.b32.xlu0 %v2500, 64
    %v2582 = vpop.permute.xlu0 %2581
    %2583 = vrot.lane.b32.xlu0 %v2501, 64
    %v2584 = vpop.permute.xlu0 %2583
    %2585 = vrot.lane.b32.xlu0 %v2502, 64
    %v2586 = vpop.permute.xlu0 %2585
    %2587 = vrot.lane.b32.xlu0 %v2503, 64
    %v2588 = vpop.permute.xlu0 %2587
    %2589 = vrot.lane.b32.xlu0 %v2504, 64
    %v2590 = vpop.permute.xlu0 %2589
    %2591 = vrot.lane.b32.xlu0 %v2505, 64
    %v2592 = vpop.permute.xlu0 %2591
    %2593 = vrot.lane.b32.xlu0 %v2506, 64
    %v2594 = vpop.permute.xlu0 %2593
    %2595 = vrot.lane.b32.xlu0 %v2507, 64
    %v2596 = vpop.permute.xlu0 %2595
    %2597 = vrot.lane.b32.xlu0 %v2508, 64
    %v2598 = vpop.permute.xlu0 %2597
    %2599 = vrot.lane.b32.xlu0 %v2509, 64
    %v2600 = vpop.permute.xlu0 %2599
    %2601 = vrot.lane.b32.xlu0 %v2510, 64
    %v2602 = vpop.permute.xlu0 %2601
    %2603 = vrot.lane.b32.xlu0 %v2511, 64
    %v2604 = vpop.permute.xlu0 %2603
    %2605 = vrot.lane.b32.xlu0 %v2512, 64
    %v2606 = vpop.permute.xlu0 %2605
    %2607 = vrot.lane.b32.xlu0 %v2513, 64
    %v2608 = vpop.permute.xlu0 %2607
    %2609 = vrot.lane.b32.xlu0 %v2514, 64
    %v2610 = vpop.permute.xlu0 %2609
    %v2643 = vadd.f32 %v2291, %v2548
    %v2644 = vadd.f32 %v2292, %v2550
    %v2645 = vadd.f32 %v2293, %v2552
    %v2646 = vadd.f32 %v2294, %v2554
    %v2647 = vadd.f32 %v2295, %v2556
    %v2648 = vadd.f32 %v2296, %v2558
    %v2649 = vadd.f32 %v2297, %v2560
    %v2650 = vadd.f32 %v2298, %v2562
    %v2651 = vadd.f32 %v2299, %v2564
    %v2652 = vadd.f32 %v2300, %v2566
    %v2653 = vadd.f32 %v2301, %v2568
    %v2654 = vadd.f32 %v2302, %v2570
    %v2655 = vadd.f32 %v2303, %v2572
    %v2656 = vadd.f32 %v2304, %v2574
    %v2657 = vadd.f32 %v2305, %v2576
    %v2658 = vadd.f32 %v2306, %v2578
    %v2659 = vadd.f32 %v2307, %v2580
    %v2660 = vadd.f32 %v2308, %v2582
    %v2661 = vadd.f32 %v2309, %v2584
    %v2662 = vadd.f32 %v2310, %v2586
    %v2663 = vadd.f32 %v2311, %v2588
    %v2664 = vadd.f32 %v2312, %v2590
    %v2665 = vadd.f32 %v2313, %v2592
    %v2666 = vadd.f32 %v2314, %v2594
    %v2667 = vadd.f32 %v2315, %v2596
    %v2668 = vadd.f32 %v2316, %v2598
    %v2669 = vadd.f32 %v2317, %v2600
    %v2670 = vadd.f32 %v2318, %v2602
    %v2671 = vadd.f32 %v2319, %v2604
    %v2672 = vadd.f32 %v2320, %v2606
    %v2673 = vadd.f32 %v2321, %v2608
    %v2674 = vadd.f32 %v2322, %v2610
    %v2675 = vmax.f32 %v2323, %v2548
    %v2676 = vmax.f32 %v2324, %v2550
    %v2677 = vmax.f32 %v2325, %v2552
    %v2678 = vmax.f32 %v2326, %v2554
    %v2679 = vmax.f32 %v2327, %v2556
    %v2680 = vmax.f32 %v2328, %v2558
    %v2681 = vmax.f32 %v2329, %v2560
    %v2682 = vmax.f32 %v2330, %v2562
    %v2683 = vmax.f32 %v2331, %v2564
    %v2684 = vmax.f32 %v2332, %v2566
    %v2685 = vmax.f32 %v2333, %v2568
    %v2686 = vmax.f32 %v2334, %v2570
    %v2687 = vmax.f32 %v2335, %v2572
    %v2688 = vmax.f32 %v2336, %v2574
    %v2689 = vmax.f32 %v2337, %v2576
    %v2690 = vmax.f32 %v2338, %v2578
    %v2691 = vmax.f32 %v2339, %v2580
    %v2692 = vmax.f32 %v2340, %v2582
    %v2693 = vmax.f32 %v2341, %v2584
    %v2694 = vmax.f32 %v2342, %v2586
    %v2695 = vmax.f32 %v2343, %v2588
    %v2696 = vmax.f32 %v2344, %v2590
    %v2697 = vmax.f32 %v2345, %v2592
    %v2698 = vmax.f32 %v2346, %v2594
    %v2699 = vmax.f32 %v2347, %v2596
    %v2700 = vmax.f32 %v2348, %v2598
    %v2701 = vmax.f32 %v2349, %v2600
    %v2702 = vmax.f32 %v2350, %v2602
    %v2703 = vmax.f32 %v2351, %v2604
    %v2704 = vmax.f32 %v2352, %v2606
    %v2705 = vmax.f32 %v2353, %v2608
    %v2706 = vmax.f32 %v2354, %v2610
    %v2707 = vmul.f32 %v2643, 0.125
    %v2708 = vmul.f32 %v2644, 0.125
    %v2709 = vmul.f32 %v2645, 0.125
    %v2710 = vmul.f32 %v2646, 0.125
    %v2711 = vmul.f32 %v2647, 0.125
    %v2712 = vmul.f32 %v2648, 0.125
    %v2713 = vmul.f32 %v2649, 0.125
    %v2714 = vmul.f32 %v2650, 0.125
    %v2715 = vmul.f32 %v2651, 0.125
    %v2716 = vmul.f32 %v2652, 0.125
    %v2717 = vmul.f32 %v2653, 0.125
    %v2718 = vmul.f32 %v2654, 0.125
    %v2719 = vmul.f32 %v2655, 0.125
    %v2720 = vmul.f32 %v2656, 0.125
    %v2721 = vmul.f32 %v2657, 0.125
    %v2722 = vmul.f32 %v2658, 0.125
    %v2723 = vmul.f32 %v2659, 0.125
    %v2724 = vmul.f32 %v2660, 0.125
    %v2725 = vmul.f32 %v2661, 0.125
    %v2726 = vmul.f32 %v2662, 0.125
    %v2727 = vmul.f32 %v2663, 0.125
    %v2728 = vmul.f32 %v2664, 0.125
    %v2729 = vmul.f32 %v2665, 0.125
    %v2730 = vmul.f32 %v2666, 0.125
    %v2731 = vmul.f32 %v2667, 0.125
    %v2732 = vmul.f32 %v2668, 0.125
    %v2733 = vmul.f32 %v2669, 0.125
    %v2734 = vmul.f32 %v2670, 0.125
    %v2735 = vmul.f32 %v2671, 0.125
    %v2736 = vmul.f32 %v2672, 0.125
    %v2737 = vmul.f32 %v2673, 0.125
    %v2738 = vmul.f32 %v2674, 0.125
    %v2739 = vld [vmem:[#allocation2] sm:$0xff]
    %v2740 = vld [vmem:[#allocation2 + $0x8] sm:$0xff]
    %v2741 = vld [vmem:[#allocation2 + $0x10] sm:$0xff]
    %v2742 = vld [vmem:[#allocation2 + $0x18] sm:$0xff]
    %v2743 = vld [vmem:[#allocation2 + $0x20] sm:$0xff]
    %v2744 = vld [vmem:[#allocation2 + $0x28] sm:$0xff]
    %v2745 = vld [vmem:[#allocation2 + $0x30] sm:$0xff]
    %v2746 = vld [vmem:[#allocation2 + $0x38] sm:$0xff]
    %v2747 = vld [vmem:[#allocation2 + $0x40] sm:$0xff]
    %v2748 = vld [vmem:[#allocation2 + $0x48] sm:$0xff]
    %v2749 = vld [vmem:[#allocation2 + $0x50] sm:$0xff]
    %v2750 = vld [vmem:[#allocation2 + $0x58] sm:$0xff]
    %v2751 = vld [vmem:[#allocation2 + $0x60] sm:$0xff]
    %v2752 = vld [vmem:[#allocation2 + $0x68] sm:$0xff]
    %v2753 = vld [vmem:[#allocation2 + $0x70] sm:$0xff]
    %v2754 = vld [vmem:[#allocation2 + $0x78] sm:$0xff]
    %v2755 = vld [vmem:[#allocation2 + $0x80] sm:$0xff]
    %v2756 = vld [vmem:[#allocation2 + $0x88] sm:$0xff]
    %v2757 = vld [vmem:[#allocation2 + $0x90] sm:$0xff]
    %v2758 = vld [vmem:[#allocation2 + $0x98] sm:$0xff]
    %v2759 = vld [vmem:[#allocation2 + $0xa0] sm:$0xff]
    %v2760 = vld [vmem:[#allocation2 + $0xa8] sm:$0xff]
    %v2761 = vld [vmem:[#allocation2 + $0xb0] sm:$0xff]
    %v2762 = vld [vmem:[#allocation2 + $0xb8] sm:$0xff]
    %v2763 = vld [vmem:[#allocation2 + $0xc0] sm:$0xff]
    %v2764 = vld [vmem:[#allocation2 + $0xc8] sm:$0xff]
    %v2765 = vld [vmem:[#allocation2 + $0xd0] sm:$0xff]
    %v2766 = vld [vmem:[#allocation2 + $0xd8] sm:$0xff]
    %v2767 = vld [vmem:[#allocation2 + $0xe0] sm:$0xff]
    %v2768 = vld [vmem:[#allocation2 + $0xe8] sm:$0xff]
    %v2769 = vld [vmem:[#allocation2 + $0xf0] sm:$0xff]
    %v2770 = vld [vmem:[#allocation2 + $0xf8] sm:$0xff]
    %v2771 = vld [vmem:[%s3] sm:$0xff]
    %v2772 = vld [vmem:[%s3 + $0x8] sm:$0xff]
    %v2773 = vld [vmem:[%s3 + $0x10] sm:$0xff]
    %v2774 = vld [vmem:[%s3 + $0x18] sm:$0xff]
    %v2775 = vld [vmem:[%s3 + $0x20] sm:$0xff]
    %v2776 = vld [vmem:[%s3 + $0x28] sm:$0xff]
    %v2777 = vld [vmem:[%s3 + $0x30] sm:$0xff]
    %v2778 = vld [vmem:[%s3 + $0x38] sm:$0xff]
    %vm2779 = vcmask 523264
    %v2781 = vsel %vm2779, %v2707, 0
    %v2784 = vsel %vm2779, %v2708, 0
    %v2787 = vsel %vm2779, %v2709, 0
    %v2790 = vsel %vm2779, %v2710, 0
    %v2793 = vsel %vm2779, %v2711, 0
    %v2796 = vsel %vm2779, %v2712, 0
    %v2799 = vsel %vm2779, %v2713, 0
    %v2802 = vsel %vm2779, %v2714, 0
    %v2805 = vsel %vm2779, %v2715, 0
    %v2808 = vsel %vm2779, %v2716, 0
    %v2811 = vsel %vm2779, %v2717, 0
    %v2814 = vsel %vm2779, %v2718, 0
    %v2817 = vsel %vm2779, %v2719, 0
    %v2820 = vsel %vm2779, %v2720, 0
    %v2823 = vsel %vm2779, %v2721, 0
    %v2826 = vsel %vm2779, %v2722, 0
    %v2829 = vsel %vm2779, %v2723, 0
    %v2832 = vsel %vm2779, %v2724, 0
    %v2835 = vsel %vm2779, %v2725, 0
    %v2838 = vsel %vm2779, %v2726, 0
    %v2841 = vsel %vm2779, %v2727, 0
    %v2844 = vsel %vm2779, %v2728, 0
    %v2847 = vsel %vm2779, %v2729, 0
    %v2850 = vsel %vm2779, %v2730, 0
    %v2853 = vsel %vm2779, %v2731, 0
    %v2856 = vsel %vm2779, %v2732, 0
    %v2859 = vsel %vm2779, %v2733, 0
    %v2862 = vsel %vm2779, %v2734, 0
    %v2865 = vsel %vm2779, %v2735, 0
    %v2868 = vsel %vm2779, %v2736, 0
    %v2871 = vsel %vm2779, %v2737, 0
    %v2874 = vsel %vm2779, %v2738, 0
    %2876 = vmatpush.msra.mxu0 0.0
    %2877 = vmatpush.msra.mxu0 0.0
    %2878 = vmatpush.msra.mxu0 0.0
    %2879 = vmatpush.msra.mxu0 0.0
    %2880 = vmatpush.msra.mxu0 0.0
    %2881 = vmatpush.msra.mxu0 0.0
    %2882 = vmatpush.msra.mxu0 0.0
    %2883 = vmatpush.msra.mxu0 0.0
    %2884 = vmatpush.msra.mxu0 %v2778
    %2885 = vmatpush.msra.mxu0 %v2777
    %2886 = vmatpush.msra.mxu0 %v2776
    %2887 = vmatpush.msra.mxu0 %v2775
    %2888 = vmatpush.msra.mxu0 %v2774
    %2889 = vmatpush.msra.mxu0 %v2773
    %2890 = vmatpush.msra.mxu0 %v2772
    %2891 = vmatpush.msra.mxu0 %v2771
    %2892 = vmatmul.f32.gmra.mxu0 %v2781
    %v2893 = vpop.f32.mrf.mxu0
    %v2894 = vadd.f32 0.0, %v2893
    %2895 = vmatmul.f32.gmra.mxu0 %v2784
    %v2896 = vpop.f32.mrf.mxu0
    %v2897 = vadd.f32 0.0, %v2896
    %2898 = vmatmul.f32.gmra.mxu0 %v2787
    %v2899 = vpop.f32.mrf.mxu0
    %v2900 = vadd.f32 0.0, %v2899
    %2901 = vmatmul.f32.gmra.mxu0 %v2790
    %v2902 = vpop.f32.mrf.mxu0
    %v2903 = vadd.f32 0.0, %v2902
    %2904 = vmatmul.f32.gmra.mxu0 %v2793
    %v2905 = vpop.f32.mrf.mxu0
    %v2906 = vadd.f32 0.0, %v2905
    %2907 = vmatmul.f32.gmra.mxu0 %v2796
    %v2908 = vpop.f32.mrf.mxu0
    %v2909 = vadd.f32 0.0, %v2908
    %2910 = vmatmul.f32.gmra.mxu0 %v2799
    %v2911 = vpop.f32.mrf.mxu0
    %v2912 = vadd.f32 0.0, %v2911
    %2913 = vmatmul.f32.gmra.mxu0 %v2802
    %v2914 = vpop.f32.mrf.mxu0
    %v2915 = vadd.f32 0.0, %v2914
    %2916 = vmatmul.f32.gmra.mxu0 %v2805
    %v2917 = vpop.f32.mrf.mxu0
    %v2918 = vadd.f32 0.0, %v2917
    %2919 = vmatmul.f32.gmra.mxu0 %v2808
    %v2920 = vpop.f32.mrf.mxu0
    %v2921 = vadd.f32 0.0, %v2920
    %2922 = vmatmul.f32.gmra.mxu0 %v2811
    %v2923 = vpop.f32.mrf.mxu0
    %v2924 = vadd.f32 0.0, %v2923
    %2925 = vmatmul.f32.gmra.mxu0 %v2814
    %v2926 = vpop.f32.mrf.mxu0
    %v2927 = vadd.f32 0.0, %v2926
    %2928 = vmatmul.f32.gmra.mxu0 %v2817
    %v2929 = vpop.f32.mrf.mxu0
    %v2930 = vadd.f32 0.0, %v2929
    %2931 = vmatmul.f32.gmra.mxu0 %v2820
    %v2932 = vpop.f32.mrf.mxu0
    %v2933 = vadd.f32 0.0, %v2932
    %2934 = vmatmul.f32.gmra.mxu0 %v2823
    %v2935 = vpop.f32.mrf.mxu0
    %v2936 = vadd.f32 0.0, %v2935
    %2937 = vmatmul.f32.gmra.mxu0 %v2826
    %v2938 = vpop.f32.mrf.mxu0
    %v2939 = vadd.f32 0.0, %v2938
    %2940 = vmatmul.f32.gmra.mxu0 %v2829
    %v2941 = vpop.f32.mrf.mxu0
    %v2942 = vadd.f32 0.0, %v2941
    %2943 = vmatmul.f32.gmra.mxu0 %v2832
    %v2944 = vpop.f32.mrf.mxu0
    %v2945 = vadd.f32 0.0, %v2944
    %2946 = vmatmul.f32.gmra.mxu0 %v2835
    %v2947 = vpop.f32.mrf.mxu0
    %v2948 = vadd.f32 0.0, %v2947
    %2949 = vmatmul.f32.gmra.mxu0 %v2838
    %v2950 = vpop.f32.mrf.mxu0
    %v2951 = vadd.f32 0.0, %v2950
    %2952 = vmatmul.f32.gmra.mxu0 %v2841
    %v2953 = vpop.f32.mrf.mxu0
    %v2954 = vadd.f32 0.0, %v2953
    %2955 = vmatmul.f32.gmra.mxu0 %v2844
    %v2956 = vpop.f32.mrf.mxu0
    %v2957 = vadd.f32 0.0, %v2956
    %2958 = vmatmul.f32.gmra.mxu0 %v2847
    %v2959 = vpop.f32.mrf.mxu0
    %v2960 = vadd.f32 0.0, %v2959
    %2961 = vmatmul.f32.gmra.mxu0 %v2850
    %v2962 = vpop.f32.mrf.mxu0
    %v2963 = vadd.f32 0.0, %v2962
    %2964 = vmatmul.f32.gmra.mxu0 %v2853
    %v2965 = vpop.f32.mrf.mxu0
    %v2966 = vadd.f32 0.0, %v2965
    %2967 = vmatmul.f32.gmra.mxu0 %v2856
    %v2968 = vpop.f32.mrf.mxu0
    %v2969 = vadd.f32 0.0, %v2968
    %2970 = vmatmul.f32.gmra.mxu0 %v2859
    %v2971 = vpop.f32.mrf.mxu0
    %v2972 = vadd.f32 0.0, %v2971
    %2973 = vmatmul.f32.gmra.mxu0 %v2862
    %v2974 = vpop.f32.mrf.mxu0
    %v2975 = vadd.f32 0.0, %v2974
    %2976 = vmatmul.f32.gmra.mxu0 %v2865
    %v2977 = vpop.f32.mrf.mxu0
    %v2978 = vadd.f32 0.0, %v2977
    %2979 = vmatmul.f32.gmra.mxu0 %v2868
    %v2980 = vpop.f32.mrf.mxu0
    %v2981 = vadd.f32 0.0, %v2980
    %2982 = vmatmul.f32.gmra.mxu0 %v2871
    %v2983 = vpop.f32.mrf.mxu0
    %v2984 = vadd.f32 0.0, %v2983
    %2985 = vmatmul.f32.gmra.mxu0 %v2874
    %v2986 = vpop.f32.mrf.mxu0
    %v2987 = vadd.f32 0.0, %v2986
    %2988 = vdwg.mxu0
    %3021 = vrot.lane.b32.xlu0 %v2894, 64
    %v3022 = vpop.permute.xlu0 %3021
    %3023 = vrot.lane.b32.xlu0 %v2897, 64
    %v3024 = vpop.permute.xlu0 %3023
    %3025 = vrot.lane.b32.xlu0 %v2900, 64
    %v3026 = vpop.permute.xlu0 %3025
    %3027 = vrot.lane.b32.xlu0 %v2903, 64
    %v3028 = vpop.permute.xlu0 %3027
    %3029 = vrot.lane.b32.xlu0 %v2906, 64
    %v3030 = vpop.permute.xlu0 %3029
    %3031 = vrot.lane.b32.xlu0 %v2909, 64
    %v3032 = vpop.permute.xlu0 %3031
    %3033 = vrot.lane.b32.xlu0 %v2912, 64
    %v3034 = vpop.permute.xlu0 %3033
    %3035 = vrot.lane.b32.xlu0 %v2915, 64
    %v3036 = vpop.permute.xlu0 %3035
    %3037 = vrot.lane.b32.xlu0 %v2918, 64
    %v3038 = vpop.permute.xlu0 %3037
    %3039 = vrot.lane.b32.xlu0 %v2921, 64
    %v3040 = vpop.permute.xlu0 %3039
    %3041 = vrot.lane.b32.xlu0 %v2924, 64
    %v3042 = vpop.permute.xlu0 %3041
    %3043 = vrot.lane.b32.xlu0 %v2927, 64
    %v3044 = vpop.permute.xlu0 %3043
    %3045 = vrot.lane.b32.xlu0 %v2930, 64
    %v3046 = vpop.permute.xlu0 %3045
    %3047 = vrot.lane.b32.xlu0 %v2933, 64
    %v3048 = vpop.permute.xlu0 %3047
    %3049 = vrot.lane.b32.xlu0 %v2936, 64
    %v3050 = vpop.permute.xlu0 %3049
    %3051 = vrot.lane.b32.xlu0 %v2939, 64
    %v3052 = vpop.permute.xlu0 %3051
    %3053 = vrot.lane.b32.xlu0 %v2942, 64
    %v3054 = vpop.permute.xlu0 %3053
    %3055 = vrot.lane.b32.xlu0 %v2945, 64
    %v3056 = vpop.permute.xlu0 %3055
    %3057 = vrot.lane.b32.xlu0 %v2948, 64
    %v3058 = vpop.permute.xlu0 %3057
    %3059 = vrot.lane.b32.xlu0 %v2951, 64
    %v3060 = vpop.permute.xlu0 %3059
    %3061 = vrot.lane.b32.xlu0 %v2954, 64
    %v3062 = vpop.permute.xlu0 %3061
    %3063 = vrot.lane.b32.xlu0 %v2957, 64
    %v3064 = vpop.permute.xlu0 %3063
    %3065 = vrot.lane.b32.xlu0 %v2960, 64
    %v3066 = vpop.permute.xlu0 %3065
    %3067 = vrot.lane.b32.xlu0 %v2963, 64
    %v3068 = vpop.permute.xlu0 %3067
    %3069 = vrot.lane.b32.xlu0 %v2966, 64
    %v3070 = vpop.permute.xlu0 %3069
    %3071 = vrot.lane.b32.xlu0 %v2969, 64
    %v3072 = vpop.permute.xlu0 %3071
    %3073 = vrot.lane.b32.xlu0 %v2972, 64
    %v3074 = vpop.permute.xlu0 %3073
    %3075 = vrot.lane.b32.xlu0 %v2975, 64
    %v3076 = vpop.permute.xlu0 %3075
    %3077 = vrot.lane.b32.xlu0 %v2978, 64
    %v3078 = vpop.permute.xlu0 %3077
    %3079 = vrot.lane.b32.xlu0 %v2981, 64
    %v3080 = vpop.permute.xlu0 %3079
    %3081 = vrot.lane.b32.xlu0 %v2984, 64
    %v3082 = vpop.permute.xlu0 %3081
    %3083 = vrot.lane.b32.xlu0 %v2987, 64
    %v3084 = vpop.permute.xlu0 %3083
    %v3117 = vadd.f32 %v2739, %v3022
    %v3118 = vadd.f32 %v2740, %v3024
    %v3119 = vadd.f32 %v2741, %v3026
    %v3120 = vadd.f32 %v2742, %v3028
    %v3121 = vadd.f32 %v2743, %v3030
    %v3122 = vadd.f32 %v2744, %v3032
    %v3123 = vadd.f32 %v2745, %v3034
    %v3124 = vadd.f32 %v2746, %v3036
    %v3125 = vadd.f32 %v2747, %v3038
    %v3126 = vadd.f32 %v2748, %v3040
    %v3127 = vadd.f32 %v2749, %v3042
    %v3128 = vadd.f32 %v2750, %v3044
    %v3129 = vadd.f32 %v2751, %v3046
    %v3130 = vadd.f32 %v2752, %v3048
    %v3131 = vadd.f32 %v2753, %v3050
    %v3132 = vadd.f32 %v2754, %v3052
    %v3133 = vadd.f32 %v2755, %v3054
    %v3134 = vadd.f32 %v2756, %v3056
    %v3135 = vadd.f32 %v2757, %v3058
    %v3136 = vadd.f32 %v2758, %v3060
    %v3137 = vadd.f32 %v2759, %v3062
    %v3138 = vadd.f32 %v2760, %v3064
    %v3139 = vadd.f32 %v2761, %v3066
    %v3140 = vadd.f32 %v2762, %v3068
    %v3141 = vadd.f32 %v2763, %v3070
    %v3142 = vadd.f32 %v2764, %v3072
    %v3143 = vadd.f32 %v2765, %v3074
    %v3144 = vadd.f32 %v2766, %v3076
    %v3145 = vadd.f32 %v2767, %v3078
    %v3146 = vadd.f32 %v2768, %v3080
    %v3147 = vadd.f32 %v2769, %v3082
    %v3148 = vadd.f32 %v2770, %v3084
    %v3149 = vld [vmem:[%s3 + $0x40] sm:$0xff]
    %v3150 = vld [vmem:[%s3 + $0x48] sm:$0xff]
    %v3151 = vld [vmem:[%s3 + $0x50] sm:$0xff]
    %v3152 = vld [vmem:[%s3 + $0x58] sm:$0xff]
    %v3153 = vld [vmem:[%s3 + $0x60] sm:$0xff]
    %v3154 = vld [vmem:[%s3 + $0x68] sm:$0xff]
    %v3155 = vld [vmem:[%s3 + $0x70] sm:$0xff]
    %v3156 = vld [vmem:[%s3 + $0x78] sm:$0xff]
    %v3158 = vsel %vm2779, %v2675, 0
    %v3161 = vsel %vm2779, %v2676, 0
    %v3164 = vsel %vm2779, %v2677, 0
    %v3167 = vsel %vm2779, %v2678, 0
    %v3170 = vsel %vm2779, %v2679, 0
    %v3173 = vsel %vm2779, %v2680, 0
    %v3176 = vsel %vm2779, %v2681, 0
    %v3179 = vsel %vm2779, %v2682, 0
    %v3182 = vsel %vm2779, %v2683, 0
    %v3185 = vsel %vm2779, %v2684, 0
    %v3188 = vsel %vm2779, %v2685, 0
    %v3191 = vsel %vm2779, %v2686, 0
    %v3194 = vsel %vm2779, %v2687, 0
    %v3197 = vsel %vm2779, %v2688, 0
    %v3200 = vsel %vm2779, %v2689, 0
    %v3203 = vsel %vm2779, %v2690, 0
    %v3206 = vsel %vm2779, %v2691, 0
    %v3209 = vsel %vm2779, %v2692, 0
    %v3212 = vsel %vm2779, %v2693, 0
    %v3215 = vsel %vm2779, %v2694, 0
    %v3218 = vsel %vm2779, %v2695, 0
    %v3221 = vsel %vm2779, %v2696, 0
    %v3224 = vsel %vm2779, %v2697, 0
    %v3227 = vsel %vm2779, %v2698, 0
    %v3230 = vsel %vm2779, %v2699, 0
    %v3233 = vsel %vm2779, %v2700, 0
    %v3236 = vsel %vm2779, %v2701, 0
    %v3239 = vsel %vm2779, %v2702, 0
    %v3242 = vsel %vm2779, %v2703, 0
    %v3245 = vsel %vm2779, %v2704, 0
    %v3248 = vsel %vm2779, %v2705, 0
    %v3251 = vsel %vm2779, %v2706, 0
    %3253 = vmatpush.msra.mxu0 0.0
    %3254 = vmatpush.msra.mxu0 0.0
    %3255 = vmatpush.msra.mxu0 0.0
    %3256 = vmatpush.msra.mxu0 0.0
    %3257 = vmatpush.msra.mxu0 0.0
    %3258 = vmatpush.msra.mxu0 0.0
    %3259 = vmatpush.msra.mxu0 0.0
    %3260 = vmatpush.msra.mxu0 0.0
    %3261 = vmatpush.msra.mxu0 %v3156
    %3262 = vmatpush.msra.mxu0 %v3155
    %3263 = vmatpush.msra.mxu0 %v3154
    %3264 = vmatpush.msra.mxu0 %v3153
    %3265 = vmatpush.msra.mxu0 %v3152
    %3266 = vmatpush.msra.mxu0 %v3151
    %3267 = vmatpush.msra.mxu0 %v3150
    %3268 = vmatpush.msra.mxu0 %v3149
    %3269 = vmatmul.f32.gmra.mxu0 %v3158
    %v3270 = vpop.f32.mrf.mxu0
    %v3271 = vadd.f32 0.0, %v3270
    %3272 = vmatmul.f32.gmra.mxu0 %v3161
    %v3273 = vpop.f32.mrf.mxu0
    %v3274 = vadd.f32 0.0, %v3273
    %3275 = vmatmul.f32.gmra.mxu0 %v3164
    %v3276 = vpop.f32.mrf.mxu0
    %v3277 = vadd.f32 0.0, %v3276
    %3278 = vmatmul.f32.gmra.mxu0 %v3167
    %v3279 = vpop.f32.mrf.mxu0
    %v3280 = vadd.f32 0.0, %v3279
    %3281 = vmatmul.f32.gmra.mxu0 %v3170
    %v3282 = vpop.f32.mrf.mxu0
    %v3283 = vadd.f32 0.0, %v3282
    %3284 = vmatmul.f32.gmra.mxu0 %v3173
    %v3285 = vpop.f32.mrf.mxu0
    %v3286 = vadd.f32 0.0, %v3285
    %3287 = vmatmul.f32.gmra.mxu0 %v3176
    %v3288 = vpop.f32.mrf.mxu0
    %v3289 = vadd.f32 0.0, %v3288
    %3290 = vmatmul.f32.gmra.mxu0 %v3179
    %v3291 = vpop.f32.mrf.mxu0
    %v3292 = vadd.f32 0.0, %v3291
    %3293 = vmatmul.f32.gmra.mxu0 %v3182
    %v3294 = vpop.f32.mrf.mxu0
    %v3295 = vadd.f32 0.0, %v3294
    %3296 = vmatmul.f32.gmra.mxu0 %v3185
    %v3297 = vpop.f32.mrf.mxu0
    %v3298 = vadd.f32 0.0, %v3297
    %3299 = vmatmul.f32.gmra.mxu0 %v3188
    %v3300 = vpop.f32.mrf.mxu0
    %v3301 = vadd.f32 0.0, %v3300
    %3302 = vmatmul.f32.gmra.mxu0 %v3191
    %v3303 = vpop.f32.mrf.mxu0
    %v3304 = vadd.f32 0.0, %v3303
    %3305 = vmatmul.f32.gmra.mxu0 %v3194
    %v3306 = vpop.f32.mrf.mxu0
    %v3307 = vadd.f32 0.0, %v3306
    %3308 = vmatmul.f32.gmra.mxu0 %v3197
    %v3309 = vpop.f32.mrf.mxu0
    %v3310 = vadd.f32 0.0, %v3309
    %3311 = vmatmul.f32.gmra.mxu0 %v3200
    %v3312 = vpop.f32.mrf.mxu0
    %v3313 = vadd.f32 0.0, %v3312
    %3314 = vmatmul.f32.gmra.mxu0 %v3203
    %v3315 = vpop.f32.mrf.mxu0
    %v3316 = vadd.f32 0.0, %v3315
    %3317 = vmatmul.f32.gmra.mxu0 %v3206
    %v3318 = vpop.f32.mrf.mxu0
    %v3319 = vadd.f32 0.0, %v3318
    %3320 = vmatmul.f32.gmra.mxu0 %v3209
    %v3321 = vpop.f32.mrf.mxu0
    %v3322 = vadd.f32 0.0, %v3321
    %3323 = vmatmul.f32.gmra.mxu0 %v3212
    %v3324 = vpop.f32.mrf.mxu0
    %v3325 = vadd.f32 0.0, %v3324
    %3326 = vmatmul.f32.gmra.mxu0 %v3215
    %v3327 = vpop.f32.mrf.mxu0
    %v3328 = vadd.f32 0.0, %v3327
    %3329 = vmatmul.f32.gmra.mxu0 %v3218
    %v3330 = vpop.f32.mrf.mxu0
    %v3331 = vadd.f32 0.0, %v3330
    %3332 = vmatmul.f32.gmra.mxu0 %v3221
    %v3333 = vpop.f32.mrf.mxu0
    %v3334 = vadd.f32 0.0, %v3333
    %3335 = vmatmul.f32.gmra.mxu0 %v3224
    %v3336 = vpop.f32.mrf.mxu0
    %v3337 = vadd.f32 0.0, %v3336
    %3338 = vmatmul.f32.gmra.mxu0 %v3227
    %v3339 = vpop.f32.mrf.mxu0
    %v3340 = vadd.f32 0.0, %v3339
    %3341 = vmatmul.f32.gmra.mxu0 %v3230
    %v3342 = vpop.f32.mrf.mxu0
    %v3343 = vadd.f32 0.0, %v3342
    %3344 = vmatmul.f32.gmra.mxu0 %v3233
    %v3345 = vpop.f32.mrf.mxu0
    %v3346 = vadd.f32 0.0, %v3345
    %3347 = vmatmul.f32.gmra.mxu0 %v3236
    %v3348 = vpop.f32.mrf.mxu0
    %v3349 = vadd.f32 0.0, %v3348
    %3350 = vmatmul.f32.gmra.mxu0 %v3239
    %v3351 = vpop.f32.mrf.mxu0
    %v3352 = vadd.f32 0.0, %v3351
    %3353 = vmatmul.f32.gmra.mxu0 %v3242
    %v3354 = vpop.f32.mrf.mxu0
    %v3355 = vadd.f32 0.0, %v3354
    %3356 = vmatmul.f32.gmra.mxu0 %v3245
    %v3357 = vpop.f32.mrf.mxu0
    %v3358 = vadd.f32 0.0, %v3357
    %3359 = vmatmul.f32.gmra.mxu0 %v3248
    %v3360 = vpop.f32.mrf.mxu0
    %v3361 = vadd.f32 0.0, %v3360
    %3362 = vmatmul.f32.gmra.mxu0 %v3251
    %v3363 = vpop.f32.mrf.mxu0
    %v3364 = vadd.f32 0.0, %v3363
    %3365 = vdwg.mxu0
    %3398 = vrot.lane.b32.xlu0 %v3271, 64
    %v3399 = vpop.permute.xlu0 %3398
    %3400 = vrot.lane.b32.xlu0 %v3274, 64
    %v3401 = vpop.permute.xlu0 %3400
    %3402 = vrot.lane.b32.xlu0 %v3277, 64
    %v3403 = vpop.permute.xlu0 %3402
    %3404 = vrot.lane.b32.xlu0 %v3280, 64
    %v3405 = vpop.permute.xlu0 %3404
    %3406 = vrot.lane.b32.xlu0 %v3283, 64
    %v3407 = vpop.permute.xlu0 %3406
    %3408 = vrot.lane.b32.xlu0 %v3286, 64
    %v3409 = vpop.permute.xlu0 %3408
    %3410 = vrot.lane.b32.xlu0 %v3289, 64
    %v3411 = vpop.permute.xlu0 %3410
    %3412 = vrot.lane.b32.xlu0 %v3292, 64
    %v3413 = vpop.permute.xlu0 %3412
    %3414 = vrot.lane.b32.xlu0 %v3295, 64
    %v3415 = vpop.permute.xlu0 %3414
    %3416 = vrot.lane.b32.xlu0 %v3298, 64
    %v3417 = vpop.permute.xlu0 %3416
    %3418 = vrot.lane.b32.xlu0 %v3301, 64
    %v3419 = vpop.permute.xlu0 %3418
    %3420 = vrot.lane.b32.xlu0 %v3304, 64
    %v3421 = vpop.permute.xlu0 %3420
    %3422 = vrot.lane.b32.xlu0 %v3307, 64
    %v3423 = vpop.permute.xlu0 %3422
    %3424 = vrot.lane.b32.xlu0 %v3310, 64
    %v3425 = vpop.permute.xlu0 %3424
    %3426 = vrot.lane.b32.xlu0 %v3313, 64
    %v3427 = vpop.permute.xlu0 %3426
    %3428 = vrot.lane.b32.xlu0 %v3316, 64
    %v3429 = vpop.permute.xlu0 %3428
    %3430 = vrot.lane.b32.xlu0 %v3319, 64
    %v3431 = vpop.permute.xlu0 %3430
    %3432 = vrot.lane.b32.xlu0 %v3322, 64
    %v3433 = vpop.permute.xlu0 %3432
    %3434 = vrot.lane.b32.xlu0 %v3325, 64
    %v3435 = vpop.permute.xlu0 %3434
    %3436 = vrot.lane.b32.xlu0 %v3328, 64
    %v3437 = vpop.permute.xlu0 %3436
    %3438 = vrot.lane.b32.xlu0 %v3331, 64
    %v3439 = vpop.permute.xlu0 %3438
    %3440 = vrot.lane.b32.xlu0 %v3334, 64
    %v3441 = vpop.permute.xlu0 %3440
    %3442 = vrot.lane.b32.xlu0 %v3337, 64
    %v3443 = vpop.permute.xlu0 %3442
    %3444 = vrot.lane.b32.xlu0 %v3340, 64
    %v3445 = vpop.permute.xlu0 %3444
    %3446 = vrot.lane.b32.xlu0 %v3343, 64
    %v3447 = vpop.permute.xlu0 %3446
    %3448 = vrot.lane.b32.xlu0 %v3346, 64
    %v3449 = vpop.permute.xlu0 %3448
    %3450 = vrot.lane.b32.xlu0 %v3349, 64
    %v3451 = vpop.permute.xlu0 %3450
    %3452 = vrot.lane.b32.xlu0 %v3352, 64
    %v3453 = vpop.permute.xlu0 %3452
    %3454 = vrot.lane.b32.xlu0 %v3355, 64
    %v3455 = vpop.permute.xlu0 %3454
    %3456 = vrot.lane.b32.xlu0 %v3358, 64
    %v3457 = vpop.permute.xlu0 %3456
    %3458 = vrot.lane.b32.xlu0 %v3361, 64
    %v3459 = vpop.permute.xlu0 %3458
    %3460 = vrot.lane.b32.xlu0 %v3364, 64
    %v3461 = vpop.permute.xlu0 %3460
    %v3494 = vadd.f32 %v3117, %v3399
    %v3495 = vadd.f32 %v3118, %v3401
    %v3496 = vadd.f32 %v3119, %v3403
    %v3497 = vadd.f32 %v3120, %v3405
    %v3498 = vadd.f32 %v3121, %v3407
    %v3499 = vadd.f32 %v3122, %v3409
    %v3500 = vadd.f32 %v3123, %v3411
    %v3501 = vadd.f32 %v3124, %v3413
    %v3502 = vadd.f32 %v3125, %v3415
    %v3503 = vadd.f32 %v3126, %v3417
    %v3504 = vadd.f32 %v3127, %v3419
    %v3505 = vadd.f32 %v3128, %v3421
    %v3506 = vadd.f32 %v3129, %v3423
    %v3507 = vadd.f32 %v3130, %v3425
    %v3508 = vadd.f32 %v3131, %v3427
    %v3509 = vadd.f32 %v3132, %v3429
    %v3510 = vadd.f32 %v3133, %v3431
    %v3511 = vadd.f32 %v3134, %v3433
    %v3512 = vadd.f32 %v3135, %v3435
    %v3513 = vadd.f32 %v3136, %v3437
    %v3514 = vadd.f32 %v3137, %v3439
    %v3515 = vadd.f32 %v3138, %v3441
    %v3516 = vadd.f32 %v3139, %v3443
    %v3517 = vadd.f32 %v3140, %v3445
    %v3518 = vadd.f32 %v3141, %v3447
    %v3519 = vadd.f32 %v3142, %v3449
    %v3520 = vadd.f32 %v3143, %v3451
    %v3521 = vadd.f32 %v3144, %v3453
    %v3522 = vadd.f32 %v3145, %v3455
    %v3523 = vadd.f32 %v3146, %v3457
    %v3524 = vadd.f32 %v3147, %v3459
    %v3525 = vadd.f32 %v3148, %v3461
    %v3526 = vld [vmem:[%s4] sm:$0x1]
    %v3528 = vperm.slane %v3526, 0
    %3529 = vrot.lane.b32.xlu0 %v3528, 64
    %v3530 = vpop.permute.xlu0 %3529
    %v3532 = vadd.f32 %v3494, %v3530
    %v3533 = vadd.f32 %v3495, %v3530
    %v3534 = vadd.f32 %v3496, %v3530
    %v3535 = vadd.f32 %v3497, %v3530
    %v3536 = vadd.f32 %v3498, %v3530
    %v3537 = vadd.f32 %v3499, %v3530
    %v3538 = vadd.f32 %v3500, %v3530
    %v3539 = vadd.f32 %v3501, %v3530
    %v3540 = vadd.f32 %v3502, %v3530
    %v3541 = vadd.f32 %v3503, %v3530
    %v3542 = vadd.f32 %v3504, %v3530
    %v3543 = vadd.f32 %v3505, %v3530
    %v3544 = vadd.f32 %v3506, %v3530
    %v3545 = vadd.f32 %v3507, %v3530
    %v3546 = vadd.f32 %v3508, %v3530
    %v3547 = vadd.f32 %v3509, %v3530
    %v3548 = vadd.f32 %v3510, %v3530
    %v3549 = vadd.f32 %v3511, %v3530
    %v3550 = vadd.f32 %v3512, %v3530
    %v3551 = vadd.f32 %v3513, %v3530
    %v3552 = vadd.f32 %v3514, %v3530
    %v3553 = vadd.f32 %v3515, %v3530
    %v3554 = vadd.f32 %v3516, %v3530
    %v3555 = vadd.f32 %v3517, %v3530
    %v3556 = vadd.f32 %v3518, %v3530
    %v3557 = vadd.f32 %v3519, %v3530
    %v3558 = vadd.f32 %v3520, %v3530
    %v3559 = vadd.f32 %v3521, %v3530
    %v3560 = vadd.f32 %v3522, %v3530
    %v3561 = vadd.f32 %v3523, %v3530
    %v3562 = vadd.f32 %v3524, %v3530
    %v3563 = vadd.f32 %v3525, %v3530
    %3596 = vrot.lane.b32.xlu0 %v3532, 64
    %v3597 = vpop.permute.xlu0 %3596
    %3598 = vrot.lane.b32.xlu0 %v3533, 64
    %v3599 = vpop.permute.xlu0 %3598
    %3600 = vrot.lane.b32.xlu0 %v3534, 64
    %v3601 = vpop.permute.xlu0 %3600
    %3602 = vrot.lane.b32.xlu0 %v3535, 64
    %v3603 = vpop.permute.xlu0 %3602
    %3604 = vrot.lane.b32.xlu0 %v3536, 64
    %v3605 = vpop.permute.xlu0 %3604
    %3606 = vrot.lane.b32.xlu0 %v3537, 64
    %v3607 = vpop.permute.xlu0 %3606
    %3608 = vrot.lane.b32.xlu0 %v3538, 64
    %v3609 = vpop.permute.xlu0 %3608
    %3610 = vrot.lane.b32.xlu0 %v3539, 64
    %v3611 = vpop.permute.xlu0 %3610
    %3612 = vrot.lane.b32.xlu0 %v3540, 64
    %v3613 = vpop.permute.xlu0 %3612
    %3614 = vrot.lane.b32.xlu0 %v3541, 64
    %v3615 = vpop.permute.xlu0 %3614
    %3616 = vrot.lane.b32.xlu0 %v3542, 64
    %v3617 = vpop.permute.xlu0 %3616
    %3618 = vrot.lane.b32.xlu0 %v3543, 64
    %v3619 = vpop.permute.xlu0 %3618
    %3620 = vrot.lane.b32.xlu0 %v3544, 64
    %v3621 = vpop.permute.xlu0 %3620
    %3622 = vrot.lane.b32.xlu0 %v3545, 64
    %v3623 = vpop.permute.xlu0 %3622
    %3624 = vrot.lane.b32.xlu0 %v3546, 64
    %v3625 = vpop.permute.xlu0 %3624
    %3626 = vrot.lane.b32.xlu0 %v3547, 64
    %v3627 = vpop.permute.xlu0 %3626
    %3628 = vrot.lane.b32.xlu0 %v3548, 64
    %v3629 = vpop.permute.xlu0 %3628
    %3630 = vrot.lane.b32.xlu0 %v3549, 64
    %v3631 = vpop.permute.xlu0 %3630
    %3632 = vrot.lane.b32.xlu0 %v3550, 64
    %v3633 = vpop.permute.xlu0 %3632
    %3634 = vrot.lane.b32.xlu0 %v3551, 64
    %v3635 = vpop.permute.xlu0 %3634
    %3636 = vrot.lane.b32.xlu0 %v3552, 64
    %v3637 = vpop.permute.xlu0 %3636
    %3638 = vrot.lane.b32.xlu0 %v3553, 64
    %v3639 = vpop.permute.xlu0 %3638
    %3640 = vrot.lane.b32.xlu0 %v3554, 64
    %v3641 = vpop.permute.xlu0 %3640
    %3642 = vrot.lane.b32.xlu0 %v3555, 64
    %v3643 = vpop.permute.xlu0 %3642
    %3644 = vrot.lane.b32.xlu0 %v3556, 64
    %v3645 = vpop.permute.xlu0 %3644
    %3646 = vrot.lane.b32.xlu0 %v3557, 64
    %v3647 = vpop.permute.xlu0 %3646
    %3648 = vrot.lane.b32.xlu0 %v3558, 64
    %v3649 = vpop.permute.xlu0 %3648
    %3650 = vrot.lane.b32.xlu0 %v3559, 64
    %v3651 = vpop.permute.xlu0 %3650
    %3652 = vrot.lane.b32.xlu0 %v3560, 64
    %v3653 = vpop.permute.xlu0 %3652
    %3654 = vrot.lane.b32.xlu0 %v3561, 64
    %v3655 = vpop.permute.xlu0 %3654
    %3656 = vrot.lane.b32.xlu0 %v3562, 64
    %v3657 = vpop.permute.xlu0 %3656
    %3658 = vrot.lane.b32.xlu0 %v3563, 64
    %v3659 = vpop.permute.xlu0 %3658
    %3692 = vst.msk [vmem:[%s5] sm:$0xff] %vm2779, %v3597
    %3693 = vst.msk [vmem:[%s5 + $0x8] sm:$0xff] %vm2779, %v3599
    %3694 = vst.msk [vmem:[%s5 + $0x10] sm:$0xff] %vm2779, %v3601
    %3695 = vst.msk [vmem:[%s5 + $0x18] sm:$0xff] %vm2779, %v3603
    %3696 = vst.msk [vmem:[%s5 + $0x20] sm:$0xff] %vm2779, %v3605
    %3697 = vst.msk [vmem:[%s5 + $0x28] sm:$0xff] %vm2779, %v3607
    %3698 = vst.msk [vmem:[%s5 + $0x30] sm:$0xff] %vm2779, %v3609
    %3699 = vst.msk [vmem:[%s5 + $0x38] sm:$0xff] %vm2779, %v3611
    %3700 = vst.msk [vmem:[%s5 + $0x40] sm:$0xff] %vm2779, %v3613
    %3701 = vst.msk [vmem:[%s5 + $0x48] sm:$0xff] %vm2779, %v3615
    %3702 = vst.msk [vmem:[%s5 + $0x50] sm:$0xff] %vm2779, %v3617
    %3703 = vst.msk [vmem:[%s5 + $0x58] sm:$0xff] %vm2779, %v3619
    %3704 = vst.msk [vmem:[%s5 + $0x60] sm:$0xff] %vm2779, %v3621
    %3705 = vst.msk [vmem:[%s5 + $0x68] sm:$0xff] %vm2779, %v3623
    %3706 = vst.msk [vmem:[%s5 + $0x70] sm:$0xff] %vm2779, %v3625
    %3707 = vst.msk [vmem:[%s5 + $0x78] sm:$0xff] %vm2779, %v3627
    %3708 = vst.msk [vmem:[%s5 + $0x80] sm:$0xff] %vm2779, %v3629
    %3709 = vst.msk [vmem:[%s5 + $0x88] sm:$0xff] %vm2779, %v3631
    %3710 = vst.msk [vmem:[%s5 + $0x90] sm:$0xff] %vm2779, %v3633
    %3711 = vst.msk [vmem:[%s5 + $0x98] sm:$0xff] %vm2779, %v3635
    %3712 = vst.msk [vmem:[%s5 + $0xa0] sm:$0xff] %vm2779, %v3637
    %3713 = vst.msk [vmem:[%s5 + $0xa8] sm:$0xff] %vm2779, %v3639
    %3714 = vst.msk [vmem:[%s5 + $0xb0] sm:$0xff] %vm2779, %v3641
    %3715 = vst.msk [vmem:[%s5 + $0xb8] sm:$0xff] %vm2779, %v3643
    %3716 = vst.msk [vmem:[%s5 + $0xc0] sm:$0xff] %vm2779, %v3645
    %3717 = vst.msk [vmem:[%s5 + $0xc8] sm:$0xff] %vm2779, %v3647
    %3718 = vst.msk [vmem:[%s5 + $0xd0] sm:$0xff] %vm2779, %v3649
    %3719 = vst.msk [vmem:[%s5 + $0xd8] sm:$0xff] %vm2779, %v3651
    %3720 = vst.msk [vmem:[%s5 + $0xe0] sm:$0xff] %vm2779, %v3653
    %3721 = vst.msk [vmem:[%s5 + $0xe8] sm:$0xff] %vm2779, %v3655
    %3722 = vst.msk [vmem:[%s5 + $0xf0] sm:$0xff] %vm2779, %v3657
    %3723 = vst.msk [vmem:[%s5 + $0xf8] sm:$0xff] %vm2779, %v3659
    // Predicated region
    $region60: #{gravnet_block_forward.9} parent=1 // pred_check
      _
    $region61: #{gravnet_block_forward.9} parent=1 // pred_check_branch
      %3725 = sbr.rel (0) target = $region63
    $region62: #{gravnet_block_forward.9} parent=1 // pred_region
      _
    $region63: #{gravnet_block_forward.9} parent=1 // pred_fallthru
      _
    // Predicated region
    $region64: #{gravnet_block_forward.9} parent=1 // pred_check
      _
    $region65: #{gravnet_block_forward.9} parent=1 // pred_check_branch
      %3727 = sbr.rel (0) target = $region67
    $region66: #{gravnet_block_forward.9} parent=1 // pred_region
      _
    $region67: #{gravnet_block_forward.9} parent=1 // pred_fallthru
      _

</llo_original>
